<compile_context>
chip_gen: v6e
topology: v6e:2x2x1
jax: 0.10.0
libtpu: 0.0.40
codegen_flags: <defaults>
</compile_context>

<pallas_src>
import math
from functools import partial

import numpy as np
import jax
import jax.numpy as jnp
from jax import lax
from jax.experimental import pallas as pl
from jax.experimental.pallas import tpu as pltpu


def _dw_pack(pad_ref, W):
    """(R, W+2, C) zero-haloed ref -> (R, W, 3C) dw-packed window (lane concat)."""
    return jnp.concatenate(
        [pad_ref[:, 0:W, :], pad_ref[:, 1:W + 1, :], pad_ref[:, 2:W + 2, :]],
        axis=-1)


def _conv_rows(r, w_ref, m):
    """3x3 conv as 3 accumulating K=3C MXU matmuls.

    r:     (m+2, W, 3C) bf16 dw-packed window (includes 1-row halo each side)
    w_ref: (3, 3C, Cout) bf16 weights, leading axis = dh
    returns (m, W, Cout) f32
    """
    dims = (((2,), (0,)), ((), ()))
    acc = lax.dot_general(r[0:m], w_ref[0], dims,
                          preferred_element_type=jnp.float32)
    acc = acc + lax.dot_general(r[1:m + 1], w_ref[1], dims,
                                preferred_element_type=jnp.float32)
    acc = acc + lax.dot_general(r[2:m + 2], w_ref[2], dims,
                                preferred_element_type=jnp.float32)
    return acc


def _basic_block_kernel(x_ref, s1_ref, b1_ref, w1_ref, s2_ref, b2_ref, w2_ref,
                        o_ref, pad1_ref, pad2_ref, *, tile_h):
    TH = tile_h
    _, W, C = x_ref.shape                     # x_ref: (H, W, C) bf16, full plane
    t = pl.program_id(1)
    nt = pl.num_programs(1)
    r0 = pl.multiple_of(t * TH, TH)           # first image row owned by this tile

    # BN params in bf16 (bf16 VPU math on v6e/v7x; lowers fine on v5e too).
    s1 = s1_ref[...].astype(jnp.bfloat16)
    b1 = b1_ref[...].astype(jnp.bfloat16)
    s2 = s2_ref[...].astype(jnp.bfloat16)
    b2 = b2_ref[...].astype(jnp.bfloat16)

    def bn_relu1(rows):                       # rows: (n, W, C) bf16
        return jnp.maximum(rows * s1 + b1, 0.0).astype(jnp.bfloat16)

    # ---- pad1: (TH+4, W+2, C) bf16 = a1 with zero W-halo and 2-row H-halo ----
    # buffer row p <-> image row r0 - 2 + p
    zcol1 = jnp.zeros((TH + 4, 1, C), jnp.bfloat16)
    pad1_ref[:, 0:1, :] = zcol1
    pad1_ref[:, W + 1:W + 2, :] = zcol1
    # owned rows (always in-image)
    pad1_ref[2:TH + 2, 1:W + 1, :] = bn_relu1(x_ref[pl.ds(r0, TH), :, :])

    # top halo rows (image rows r0-2, r0-1)
    @pl.when(t > 0)
    def _():
        pad1_ref[0:2, 1:W + 1, :] = bn_relu1(x_ref[pl.ds(r0 - 2, 2), :, :])

    @pl.when(t == 0)
    def _():
        pad1_ref[0:2, 1:W + 1, :] = jnp.zeros((2, W, C), jnp.bfloat16)

    # bottom halo rows (image rows r0+TH, r0+TH+1)
    @pl.when(t < nt - 1)
    def _():
        pad1_ref[TH + 2:TH + 4, 1:W + 1, :] = bn_relu1(
            x_ref[pl.ds(r0 + TH, 2), :, :])

    @pl.when(t == nt - 1)
    def _():
        pad1_ref[TH + 2:TH + 4, 1:W + 1, :] = jnp.zeros((2, W, C), jnp.bfloat16)

    # conv1 for TH+2 output rows (image rows r0-1 .. r0+TH)
    r1 = _dw_pack(pad1_ref, W)                          # (TH+4, W, 3C)
    c1 = _conv_rows(r1, w1_ref, TH + 2)                 # (TH+2, W, C) f32

    # bn2 + relu2 in bf16  (dropRate == 0.0 -> dropout is a no-op)
    a2 = jnp.maximum(c1.astype(jnp.bfloat16) * s2 + b2, 0.0).astype(jnp.bfloat16)

    # ---- pad2: (TH+2, W+2, C) bf16 = a2 with zero W-halo and 1-row H-halo ----
    # buffer row q <-> image row r0 - 1 + q
    zcol2 = jnp.zeros((TH + 2, 1, C), jnp.bfloat16)
    pad2_ref[:, 0:1, :] = zcol2
    pad2_ref[:, W + 1:W + 2, :] = zcol2
    pad2_ref[:, 1:W + 1, :] = a2

    @pl.when(t == 0)                                    # image row -1 -> zero
    def _():
        pad2_ref[0:1, 1:W + 1, :] = jnp.zeros((1, W, C), jnp.bfloat16)

    @pl.when(t == nt - 1)                               # image row H -> zero
    def _():
        pad2_ref[TH + 1:TH + 2, 1:W + 1, :] = jnp.zeros((1, W, C), jnp.bfloat16)

    # conv2 for the TH owned output rows
    r2 = _dw_pack(pad2_ref, W)                          # (TH+2, W, 3C)
    c2 = _conv_rows(r2, w2_ref, TH)                     # (TH, W, C) f32

    # residual add: equalInOut=True -> shortcut is the original (pre-BN) input.
    # Re-read the owned bf16 rows here (short live range, no f32 x held around).
    x_res = x_ref[pl.ds(r0, TH), :, :].astype(jnp.float32)
    o_ref[...] = (x_res + c2).astype(o_ref.dtype)


def _default_vmem_limit():
    try:
        kind = jax.devices()[0].device_kind.lower()
    except Exception:
        kind = ""
    if "v7" in kind:
        return 48 * 1024 * 1024     # v7x: 64 MiB/TC physical -> leave headroom
    return 96 * 1024 * 1024         # v5e/v6e: 128 MiB physical VMEM


def basic_block(x, s1, b1, w1, s2, b2, w2, *, tile_h=None,
                single_buffer_consts=True, vmem_limit_bytes=None):
    """x: (B,H,W,C) NHWC; w1/w2: (3,3,Cin,Cout) HWIO; s*/b*: (1,1,C) f32.

    Implements the equalInOut=True, stride=1, inference-BN, dropRate=0 path.
    Returns (B,H,W,Cout) in bf16.
    """
    B, H, W, Cin = x.shape
    Cout = w1.shape[3]
    assert Cin == Cout, "this kernel implements the equalInOut=True path"
    assert w1.shape == (3, 3, Cin, Cout) and w2.shape == (3, 3, Cout, Cout)

    if tile_h is None:
        tile_h = 8 if (H % 8 == 0 and H > 8) else H
    assert H % tile_h == 0, "H must be divisible by the row tile"
    nt = H // tile_h

    if vmem_limit_bytes is None:
        vmem_limit_bytes = _default_vmem_limit()

    # bf16 at the kernel boundary (x, weights, output); BN scale/bias stay f32
    # at the boundary and are cast once inside the kernel.
    x = x.astype(jnp.bfloat16)
    w1r = w1.reshape(3, 3 * Cin, Cout).astype(jnp.bfloat16)   # [dh, dw*Cin+ci, co]
    w2r = w2.reshape(3, 3 * Cout, Cout).astype(jnp.bfloat16)
    s1 = s1.astype(jnp.float32)
    b1 = b1.astype(jnp.float32)
    s2 = s2.astype(jnp.float32)
    b2 = b2.astype(jnp.float32)

    def build(use_buffered_1):
        const_kw = dict(pipeline_mode=pl.Buffered(1)) if use_buffered_1 else {}
        grid_spec = pltpu.PrefetchScalarGridSpec(
            num_scalar_prefetch=0,
            grid=(B, nt),
            in_specs=[
                # full x plane resident per batch element (row-tile halos read
                # from it); block index constant along the row-tile axis.
                pl.BlockSpec((None, H, W, Cin), lambda b, t: (b, 0, 0, 0)),
                pl.BlockSpec((1, 1, Cin), lambda b, t: (0, 0, 0), **const_kw),
                pl.BlockSpec((1, 1, Cin), lambda b, t: (0, 0, 0), **const_kw),
                pl.BlockSpec((3, 3 * Cin, Cout), lambda b, t: (0, 0, 0), **const_kw),
                pl.BlockSpec((1, 1, Cout), lambda b, t: (0, 0, 0), **const_kw),
                pl.BlockSpec((1, 1, Cout), lambda b, t: (0, 0, 0), **const_kw),
                pl.BlockSpec((3, 3 * Cout, Cout), lambda b, t: (0, 0, 0), **const_kw),
            ],
            out_specs=pl.BlockSpec((None, tile_h, W, Cout),
                                   lambda b, t: (b, t, 0, 0)),
            scratch_shapes=[
                pltpu.VMEM((tile_h + 4, W + 2, Cin), jnp.bfloat16),   # a1 halo buf
                pltpu.VMEM((tile_h + 2, W + 2, Cout), jnp.bfloat16),  # a2 halo buf
            ],
        )
        return pl.pallas_call(
            partial(_basic_block_kernel, tile_h=tile_h),
            out_shape=jax.ShapeDtypeStruct((B, H, W, Cout), jnp.bfloat16),
            grid_spec=grid_spec,
            compiler_params=pltpu.CompilerParams(
                dimension_semantics=("parallel", "parallel"),
                vmem_limit_bytes=vmem_limit_bytes),
        )

    args = (x, s1, b1, w1r, s2, b2, w2r)
    if single_buffer_consts and hasattr(pl, "Buffered"):
        try:
            # Single-buffer the grid-invariant operands (weights, scale/bias).
            return build(True)(*args)
        except Exception:
            # pipeline_mode=Buffered(1) not accepted by this JAX build: fall
            # back to default double-buffering (correctness unaffected).
            pass
    return build(False)(*args)


def reference(x_bf16, s1, b1, w1_bf16, s2, b2, w2_bf16):
    """Module semantics in f32 on the same bf16-quantized inputs the kernel sees."""
    x = x_bf16.astype(jnp.float32)
    w1 = w1_bf16.astype(jnp.float32)
    w2 = w2_bf16.astype(jnp.float32)
    dn = lax.conv_dimension_numbers(x.shape, w1.shape, ('NHWC', 'HWIO', 'NHWC'))
    a1 = jnp.maximum(x * s1 + b1, 0.0)
    c1 = lax.conv_general_dilated(a1, w1, (1, 1), 'SAME', dimension_numbers=dn)
    a2 = jnp.maximum(c1 * s2 + b2, 0.0)
    c2 = lax.conv_general_dilated(a2, w2, (1, 1), 'SAME', dimension_numbers=dn)
    return x + c2


if __name__ == "__main__":
    B, C, H, W = 2, 4, 16, 16   # in_planes == out_planes == 4, stride=1
    eps = 1e-5

    key = jax.random.PRNGKey(0)
    keys = jax.random.split(key, 12)

    # input (NHWC)
    x = jax.random.normal(keys[0], (B, H, W, C), jnp.float32)

    # conv weights, PyTorch OIHW init (normal * sqrt(2/(k*k*out))) -> HWIO
    std = math.sqrt(2.0 / (3 * 3 * C))
    w1_oihw = jax.random.normal(keys[1], (C, C, 3, 3), jnp.float32) * std
    w2_oihw = jax.random.normal(keys[2], (C, C, 3, 3), jnp.float32) * std
    w1 = jnp.transpose(w1_oihw, (2, 3, 1, 0))   # (3, 3, Cin, Cout)
    w2 = jnp.transpose(w2_oihw, (2, 3, 1, 0))

    # BatchNorm2d params (inference mode with running stats)
    g1 = jax.random.uniform(keys[3], (C,), jnp.float32, 0.5, 1.5)
    be1 = jax.random.normal(keys[4], (C,), jnp.float32) * 0.1
    m1 = jax.random.normal(keys[5], (C,), jnp.float32) * 0.1
    v1 = jax.random.uniform(keys[6], (C,), jnp.float32, 0.5, 1.5)
    g2 = jax.random.uniform(keys[7], (C,), jnp.float32, 0.5, 1.5)
    be2 = jax.random.normal(keys[8], (C,), jnp.float32) * 0.1
    m2 = jax.random.normal(keys[9], (C,), jnp.float32) * 0.1
    v2 = jax.random.uniform(keys[10], (C,), jnp.float32, 0.5, 1.5)

    # fold BN into per-channel scale/bias (glue), shaped (1,1,C) for broadcast
    s1 = (g1 / jnp.sqrt(v1 + eps)).reshape(1, 1, C)
    b1 = (be1 - m1 * g1 / jnp.sqrt(v1 + eps)).reshape(1, 1, C)
    s2 = (g2 / jnp.sqrt(v2 + eps)).reshape(1, 1, C)
    b2 = (be2 - m2 * g2 / jnp.sqrt(v2 + eps)).reshape(1, 1, C)

    # bf16-quantize x and weights once (kernel and reference see the same data)
    x_bf = x.astype(jnp.bfloat16)
    w1_bf = w1.astype(jnp.bfloat16)
    w2_bf = w2.astype(jnp.bfloat16)

    out = basic_block(x_bf, s1, b1, w1_bf, s2, b2, w2_bf)
    out = jax.block_until_ready(out)

    ref = jax.block_until_ready(reference(x_bf, s1, b1, w1_bf, s2, b2, w2_bf))
    np.testing.assert_allclose(np.asarray(out.astype(jnp.float32)),
                               np.asarray(ref), rtol=2e-2, atol=2e-2)

    print("KERNEL_OK")
</pallas_src>

<mosaic_0001>
module attributes {stable_mosaic.version = 11 : i64} {
  func.func @_basic_block_kernel(%arg0: i32, %arg1: i32, %arg2: memref<1x16x16x4xbf16, #tpu.memory_space<vmem>>, %arg3: memref<1x1x4xf32, #tpu.memory_space<vmem>>, %arg4: memref<1x1x4xf32, #tpu.memory_space<vmem>>, %arg5: memref<3x12x4xbf16, #tpu.memory_space<vmem>>, %arg6: memref<1x1x4xf32, #tpu.memory_space<vmem>>, %arg7: memref<1x1x4xf32, #tpu.memory_space<vmem>>, %arg8: memref<3x12x4xbf16, #tpu.memory_space<vmem>>, %arg9: memref<1x8x16x4xbf16, #tpu.memory_space<vmem>>, %arg10: memref<12x18x4xbf16, #tpu.memory_space<vmem>>, %arg11: memref<10x18x4xbf16, #tpu.memory_space<vmem>>) attributes {dimension_semantics = [#tpu.dimension_semantics<parallel>, #tpu.dimension_semantics<parallel>], iteration_bounds = array<i64: 2, 2>, scalar_prefetch = 0 : i64, scratch_operands = 2 : i64, tpu.core_type = #tpu.core_type<tc>, window_params = [{transform_indices = @transform_0, window_bounds = array<i64: 1, 16, 16, 4>}, {pipeline_mode = #tpu.pipeline_mode<synchronous>, transform_indices = @transform_1, window_bounds = array<i64: 1, 1, 4>}, {pipeline_mode = #tpu.pipeline_mode<synchronous>, transform_indices = @transform_2, window_bounds = array<i64: 1, 1, 4>}, {pipeline_mode = #tpu.pipeline_mode<synchronous>, transform_indices = @transform_3, window_bounds = array<i64: 3, 12, 4>}, {pipeline_mode = #tpu.pipeline_mode<synchronous>, transform_indices = @transform_4, window_bounds = array<i64: 1, 1, 4>}, {pipeline_mode = #tpu.pipeline_mode<synchronous>, transform_indices = @transform_5, window_bounds = array<i64: 1, 1, 4>}, {pipeline_mode = #tpu.pipeline_mode<synchronous>, transform_indices = @transform_6, window_bounds = array<i64: 3, 12, 4>}, {transform_indices = @transform_7, window_bounds = array<i64: 1, 8, 16, 4>}]} {
    %c8_i32 = arith.constant 8 : i32
    %0 = arith.muli %arg1, %c8_i32 : i32
    %1 = tpu.assume_multiple %0, 8 : i32
    %c0 = arith.constant 0 : index
    %c0_0 = arith.constant 0 : index
    %c0_1 = arith.constant 0 : index
    %2 = vector.load %arg3[%c0, %c0_0, %c0_1] : memref<1x1x4xf32, #tpu.memory_space<vmem>>, vector<1x1x4xf32>
    %3 = arith.truncf %2 : vector<1x1x4xf32> to vector<1x1x4xbf16>
    %c0_2 = arith.constant 0 : index
    %c0_3 = arith.constant 0 : index
    %c0_4 = arith.constant 0 : index
    %4 = vector.load %arg4[%c0_2, %c0_3, %c0_4] : memref<1x1x4xf32, #tpu.memory_space<vmem>>, vector<1x1x4xf32>
    %5 = arith.truncf %4 : vector<1x1x4xf32> to vector<1x1x4xbf16>
    %c0_5 = arith.constant 0 : index
    %c0_6 = arith.constant 0 : index
    %c0_7 = arith.constant 0 : index
    %6 = vector.load %arg6[%c0_5, %c0_6, %c0_7] : memref<1x1x4xf32, #tpu.memory_space<vmem>>, vector<1x1x4xf32>
    %7 = arith.truncf %6 : vector<1x1x4xf32> to vector<1x1x4xbf16>
    %c0_8 = arith.constant 0 : index
    %c0_9 = arith.constant 0 : index
    %c0_10 = arith.constant 0 : index
    %8 = vector.load %arg7[%c0_8, %c0_9, %c0_10] : memref<1x1x4xf32, #tpu.memory_space<vmem>>, vector<1x1x4xf32>
    %9 = arith.truncf %8 : vector<1x1x4xf32> to vector<1x1x4xbf16>
    %cst = arith.constant 0.000000e+00 : bf16
    %10 = vector.broadcast %cst : bf16 to vector<12x1x4xbf16>
    %c0_11 = arith.constant 0 : index
    %c0_12 = arith.constant 0 : index
    %c0_13 = arith.constant 0 : index
    %11 = vector.load %arg10[%c0_11, %c0_12, %c0_13] : memref<12x18x4xbf16, #tpu.memory_space<vmem>>, vector<12x1x4xbf16>
    tpu.vector_store %arg10[%c0_11, %c0_12, %c0_13], %10 {strides = array<i32>} : memref<12x18x4xbf16, #tpu.memory_space<vmem>>, vector<12x1x4xbf16>,
    %c0_14 = arith.constant 0 : index
    %c17 = arith.constant 17 : index
    %c0_15 = arith.constant 0 : index
    %12 = vector.load %arg10[%c0_14, %c17, %c0_15] : memref<12x18x4xbf16, #tpu.memory_space<vmem>>, vector<12x1x4xbf16>
    tpu.vector_store %arg10[%c0_14, %c17, %c0_15], %10 {strides = array<i32>} : memref<12x18x4xbf16, #tpu.memory_space<vmem>>, vector<12x1x4xbf16>,
    %c0_16 = arith.constant 0 : index
    %13 = arith.index_cast %1 : i32 to index
    %c0_17 = arith.constant 0 : index
    %c0_18 = arith.constant 0 : index
    %14 = vector.load %arg2[%c0_16, %13, %c0_17, %c0_18] : memref<1x16x16x4xbf16, #tpu.memory_space<vmem>>, vector<1x8x16x4xbf16>
    %15 = vector.shape_cast %14 : vector<1x8x16x4xbf16> to vector<8x16x4xbf16>
    %16 = vector.broadcast %3 : vector<1x1x4xbf16> to vector<8x16x4xbf16>
    %17 = arith.mulf %15, %16 : vector<8x16x4xbf16>
    %18 = vector.broadcast %5 : vector<1x1x4xbf16> to vector<8x16x4xbf16>
    %19 = arith.addf %17, %18 : vector<8x16x4xbf16>
    %cst_19 = arith.constant 0.000000e+00 : bf16
    %20 = vector.broadcast %cst_19 : bf16 to vector<8x16x4xbf16>
    %21 = arith.maximumf %19, %20 : vector<8x16x4xbf16>
    %c2 = arith.constant 2 : index
    %c1 = arith.constant 1 : index
    %c0_20 = arith.constant 0 : index
    %22 = vector.load %arg10[%c2, %c1, %c0_20] : memref<12x18x4xbf16, #tpu.memory_space<vmem>>, vector<8x16x4xbf16>
    tpu.vector_store %arg10[%c2, %c1, %c0_20], %21 {strides = array<i32>} : memref<12x18x4xbf16, #tpu.memory_space<vmem>>, vector<8x16x4xbf16>,
    %c0_i32 = arith.constant 0 : i32
    %23 = arith.cmpi sgt, %arg1, %c0_i32 : i32
    %24 = arith.extui %23 : i1 to i32
    %c0_i32_21 = arith.constant 0 : i32
    %25 = arith.cmpi ne, %24, %c0_i32_21 : i32
    scf.if %25 {
      %c2_i32 = arith.constant 2 : i32
      %97 = arith.subi %1, %c2_i32 : i32
      %c0_91 = arith.constant 0 : index
      %98 = arith.index_cast %97 : i32 to index
      %c0_92 = arith.constant 0 : index
      %c0_93 = arith.constant 0 : index
      %99 = vector.load %arg2[%c0_91, %98, %c0_92, %c0_93] : memref<1x16x16x4xbf16, #tpu.memory_space<vmem>>, vector<1x2x16x4xbf16>
      %100 = vector.shape_cast %99 : vector<1x2x16x4xbf16> to vector<2x16x4xbf16>
      %101 = vector.broadcast %3 : vector<1x1x4xbf16> to vector<2x16x4xbf16>
      %102 = arith.mulf %100, %101 : vector<2x16x4xbf16>
      %103 = vector.broadcast %5 : vector<1x1x4xbf16> to vector<2x16x4xbf16>
      %104 = arith.addf %102, %103 : vector<2x16x4xbf16>
      %cst_94 = arith.constant 0.000000e+00 : bf16
      %105 = vector.broadcast %cst_94 : bf16 to vector<2x16x4xbf16>
      %106 = arith.maximumf %104, %105 : vector<2x16x4xbf16>
      %c0_95 = arith.constant 0 : index
      %c1_96 = arith.constant 1 : index
      %c0_97 = arith.constant 0 : index
      %107 = vector.load %arg10[%c0_95, %c1_96, %c0_97] : memref<12x18x4xbf16, #tpu.memory_space<vmem>>, vector<2x16x4xbf16>
      tpu.vector_store %arg10[%c0_95, %c1_96, %c0_97], %106 {strides = array<i32>} : memref<12x18x4xbf16, #tpu.memory_space<vmem>>, vector<2x16x4xbf16>,
    } else {
    }
    %c0_i32_22 = arith.constant 0 : i32
    %26 = arith.cmpi eq, %arg1, %c0_i32_22 : i32
    %27 = arith.extui %26 : i1 to i32
    %c0_i32_23 = arith.constant 0 : i32
    %28 = arith.cmpi ne, %27, %c0_i32_23 : i32
    scf.if %28 {
      %cst_91 = arith.constant 0.000000e+00 : bf16
      %97 = vector.broadcast %cst_91 : bf16 to vector<2x16x4xbf16>
      %c0_92 = arith.constant 0 : index
      %c1_93 = arith.constant 1 : index
      %c0_94 = arith.constant 0 : index
      %98 = vector.load %arg10[%c0_92, %c1_93, %c0_94] : memref<12x18x4xbf16, #tpu.memory_space<vmem>>, vector<2x16x4xbf16>
      tpu.vector_store %arg10[%c0_92, %c1_93, %c0_94], %97 {strides = array<i32>} : memref<12x18x4xbf16, #tpu.memory_space<vmem>>, vector<2x16x4xbf16>,
    } else {
    }
    %c1_i32 = arith.constant 1 : i32
    %29 = arith.cmpi slt, %arg1, %c1_i32 : i32
    %30 = arith.extui %29 : i1 to i32
    %c0_i32_24 = arith.constant 0 : i32
    %31 = arith.cmpi ne, %30, %c0_i32_24 : i32
    scf.if %31 {
      %c8_i32_91 = arith.constant 8 : i32
      %97 = arith.addi %1, %c8_i32_91 : i32
      %c0_92 = arith.constant 0 : index
      %98 = arith.index_cast %97 : i32 to index
      %c0_93 = arith.constant 0 : index
      %c0_94 = arith.constant 0 : index
      %99 = vector.load %arg2[%c0_92, %98, %c0_93, %c0_94] : memref<1x16x16x4xbf16, #tpu.memory_space<vmem>>, vector<1x2x16x4xbf16>
      %100 = vector.shape_cast %99 : vector<1x2x16x4xbf16> to vector<2x16x4xbf16>
      %101 = vector.broadcast %3 : vector<1x1x4xbf16> to vector<2x16x4xbf16>
      %102 = arith.mulf %100, %101 : vector<2x16x4xbf16>
      %103 = vector.broadcast %5 : vector<1x1x4xbf16> to vector<2x16x4xbf16>
      %104 = arith.addf %102, %103 : vector<2x16x4xbf16>
      %cst_95 = arith.constant 0.000000e+00 : bf16
      %105 = vector.broadcast %cst_95 : bf16 to vector<2x16x4xbf16>
      %106 = arith.maximumf %104, %105 : vector<2x16x4xbf16>
      %c10 = arith.constant 10 : index
      %c1_96 = arith.constant 1 : index
      %c0_97 = arith.constant 0 : index
      %107 = vector.load %arg10[%c10, %c1_96, %c0_97] : memref<12x18x4xbf16, #tpu.memory_space<vmem>>, vector<2x16x4xbf16>
      tpu.vector_store %arg10[%c10, %c1_96, %c0_97], %106 {strides = array<i32>} : memref<12x18x4xbf16, #tpu.memory_space<vmem>>, vector<2x16x4xbf16>,
    } else {
    }
    %c1_i32_25 = arith.constant 1 : i32
    %32 = arith.cmpi eq, %arg1, %c1_i32_25 : i32
    %33 = arith.extui %32 : i1 to i32
    %c0_i32_26 = arith.constant 0 : i32
    %34 = arith.cmpi ne, %33, %c0_i32_26 : i32
    scf.if %34 {
      %cst_91 = arith.constant 0.000000e+00 : bf16
      %97 = vector.broadcast %cst_91 : bf16 to vector<2x16x4xbf16>
      %c10 = arith.constant 10 : index
      %c1_92 = arith.constant 1 : index
      %c0_93 = arith.constant 0 : index
      %98 = vector.load %arg10[%c10, %c1_92, %c0_93] : memref<12x18x4xbf16, #tpu.memory_space<vmem>>, vector<2x16x4xbf16>
      tpu.vector_store %arg10[%c10, %c1_92, %c0_93], %97 {strides = array<i32>} : memref<12x18x4xbf16, #tpu.memory_space<vmem>>, vector<2x16x4xbf16>,
    } else {
    }
    %c0_27 = arith.constant 0 : index
    %c0_28 = arith.constant 0 : index
    %c0_29 = arith.constant 0 : index
    %35 = vector.load %arg10[%c0_27, %c0_28, %c0_29] : memref<12x18x4xbf16, #tpu.memory_space<vmem>>, vector<12x16x4xbf16>
    %c0_30 = arith.constant 0 : index
    %c1_31 = arith.constant 1 : index
    %c0_32 = arith.constant 0 : index
    %36 = vector.load %arg10[%c0_30, %c1_31, %c0_32] : memref<12x18x4xbf16, #tpu.memory_space<vmem>>, vector<12x16x4xbf16>
    %c0_33 = arith.constant 0 : index
    %c2_34 = arith.constant 2 : index
    %c0_35 = arith.constant 0 : index
    %37 = vector.load %arg10[%c0_33, %c2_34, %c0_35] : memref<12x18x4xbf16, #tpu.memory_space<vmem>>, vector<12x16x4xbf16>
    %38 = tpu.concatenate %35, %36, %37 in 2 : vector<12x16x4xbf16>, vector<12x16x4xbf16>, vector<12x16x4xbf16> -> vector<12x16x12xbf16>
    %39 = vector.extract_strided_slice %38 {offsets = [0, 0, 0], sizes = [10, 16, 12], strides = [1, 1, 1]} : vector<12x16x12xbf16> to vector<10x16x12xbf16>
    %c0_36 = arith.constant 0 : index
    %c0_37 = arith.constant 0 : index
    %c0_38 = arith.constant 0 : index
    %40 = vector.load %arg5[%c0_36, %c0_37, %c0_38] : memref<3x12x4xbf16, #tpu.memory_space<vmem>>, vector<1x12x4xbf16>
    %41 = vector.shape_cast %40 : vector<1x12x4xbf16> to vector<12x4xbf16>
    %cst_39 = arith.constant dense<0.000000e+00> : vector<10x16x4xf32>
    %42 = tpu.matmul %39, %41, %cst_39 {dimension_numbers = #tpu.dot_dimension_numbers<[2], [0], [0, 1], [1], [0, 0, 0, 1, 1, 1], [], []>} : vector<10x16x12xbf16>, vector<12x4xbf16>, vector<10x16x4xf32> -> vector<10x16x4xf32>
    %43 = vector.extract_strided_slice %38 {offsets = [1, 0, 0], sizes = [10, 16, 12], strides = [1, 1, 1]} : vector<12x16x12xbf16> to vector<10x16x12xbf16>
    %c1_40 = arith.constant 1 : index
    %c0_41 = arith.constant 0 : index
    %c0_42 = arith.constant 0 : index
    %44 = vector.load %arg5[%c1_40, %c0_41, %c0_42] : memref<3x12x4xbf16, #tpu.memory_space<vmem>>, vector<1x12x4xbf16>
    %45 = vector.shape_cast %44 : vector<1x12x4xbf16> to vector<12x4xbf16>
    %cst_43 = arith.constant dense<0.000000e+00> : vector<10x16x4xf32>
    %46 = tpu.matmul %43, %45, %cst_43 {dimension_numbers = #tpu.dot_dimension_numbers<[2], [0], [0, 1], [1], [0, 0, 0, 1, 1, 1], [], []>} : vector<10x16x12xbf16>, vector<12x4xbf16>, vector<10x16x4xf32> -> vector<10x16x4xf32>
    %47 = arith.addf %42, %46 : vector<10x16x4xf32>
    %48 = vector.extract_strided_slice %38 {offsets = [2, 0, 0], sizes = [10, 16, 12], strides = [1, 1, 1]} : vector<12x16x12xbf16> to vector<10x16x12xbf16>
    %c2_44 = arith.constant 2 : index
    %c0_45 = arith.constant 0 : index
    %c0_46 = arith.constant 0 : index
    %49 = vector.load %arg5[%c2_44, %c0_45, %c0_46] : memref<3x12x4xbf16, #tpu.memory_space<vmem>>, vector<1x12x4xbf16>
    %50 = vector.shape_cast %49 : vector<1x12x4xbf16> to vector<12x4xbf16>
    %cst_47 = arith.constant dense<0.000000e+00> : vector<10x16x4xf32>
    %51 = tpu.matmul %48, %50, %cst_47 {dimension_numbers = #tpu.dot_dimension_numbers<[2], [0], [0, 1], [1], [0, 0, 0, 1, 1, 1], [], []>} : vector<10x16x12xbf16>, vector<12x4xbf16>, vector<10x16x4xf32> -> vector<10x16x4xf32>
    %52 = arith.addf %47, %51 : vector<10x16x4xf32>
    %53 = arith.truncf %52 : vector<10x16x4xf32> to vector<10x16x4xbf16>
    %54 = vector.broadcast %7 : vector<1x1x4xbf16> to vector<10x16x4xbf16>
    %55 = arith.mulf %53, %54 : vector<10x16x4xbf16>
    %56 = vector.broadcast %9 : vector<1x1x4xbf16> to vector<10x16x4xbf16>
    %57 = arith.addf %55, %56 : vector<10x16x4xbf16>
    %cst_48 = arith.constant 0.000000e+00 : bf16
    %58 = vector.broadcast %cst_48 : bf16 to vector<10x16x4xbf16>
    %59 = arith.maximumf %57, %58 : vector<10x16x4xbf16>
    %cst_49 = arith.constant 0.000000e+00 : bf16
    %60 = vector.broadcast %cst_49 : bf16 to vector<10x1x4xbf16>
    %c0_50 = arith.constant 0 : index
    %c0_51 = arith.constant 0 : index
    %c0_52 = arith.constant 0 : index
    %61 = vector.load %arg11[%c0_50, %c0_51, %c0_52] : memref<10x18x4xbf16, #tpu.memory_space<vmem>>, vector<10x1x4xbf16>
    tpu.vector_store %arg11[%c0_50, %c0_51, %c0_52], %60 {strides = array<i32>} : memref<10x18x4xbf16, #tpu.memory_space<vmem>>, vector<10x1x4xbf16>,
    %c0_53 = arith.constant 0 : index
    %c17_54 = arith.constant 17 : index
    %c0_55 = arith.constant 0 : index
    %62 = vector.load %arg11[%c0_53, %c17_54, %c0_55] : memref<10x18x4xbf16, #tpu.memory_space<vmem>>, vector<10x1x4xbf16>
    tpu.vector_store %arg11[%c0_53, %c17_54, %c0_55], %60 {strides = array<i32>} : memref<10x18x4xbf16, #tpu.memory_space<vmem>>, vector<10x1x4xbf16>,
    %c0_56 = arith.constant 0 : index
    %c1_57 = arith.constant 1 : index
    %c0_58 = arith.constant 0 : index
    %63 = vector.load %arg11[%c0_56, %c1_57, %c0_58] : memref<10x18x4xbf16, #tpu.memory_space<vmem>>, vector<10x16x4xbf16>
    tpu.vector_store %arg11[%c0_56, %c1_57, %c0_58], %59 {strides = array<i32>} : memref<10x18x4xbf16, #tpu.memory_space<vmem>>, vector<10x16x4xbf16>,
    %c0_i32_59 = arith.constant 0 : i32
    %64 = arith.cmpi eq, %arg1, %c0_i32_59 : i32
    %65 = arith.extui %64 : i1 to i32
    %c0_i32_60 = arith.constant 0 : i32
    %66 = arith.cmpi ne, %65, %c0_i32_60 : i32
    scf.if %66 {
      %cst_91 = arith.constant 0.000000e+00 : bf16
      %97 = vector.broadcast %cst_91 : bf16 to vector<1x16x4xbf16>
      %c0_92 = arith.constant 0 : index
      %c1_93 = arith.constant 1 : index
      %c0_94 = arith.constant 0 : index
      %98 = vector.load %arg11[%c0_92, %c1_93, %c0_94] : memref<10x18x4xbf16, #tpu.memory_space<vmem>>, vector<1x16x4xbf16>
      tpu.vector_store %arg11[%c0_92, %c1_93, %c0_94], %97 {strides = array<i32>} : memref<10x18x4xbf16, #tpu.memory_space<vmem>>, vector<1x16x4xbf16>,
    } else {
    }
    %c1_i32_61 = arith.constant 1 : i32
    %67 = arith.cmpi eq, %arg1, %c1_i32_61 : i32
    %68 = arith.extui %67 : i1 to i32
    %c0_i32_62 = arith.constant 0 : i32
    %69 = arith.cmpi ne, %68, %c0_i32_62 : i32
    scf.if %69 {
      %cst_91 = arith.constant 0.000000e+00 : bf16
      %97 = vector.broadcast %cst_91 : bf16 to vector<1x16x4xbf16>
      %c9 = arith.constant 9 : index
      %c1_92 = arith.constant 1 : index
      %c0_93 = arith.constant 0 : index
      %98 = vector.load %arg11[%c9, %c1_92, %c0_93] : memref<10x18x4xbf16, #tpu.memory_space<vmem>>, vector<1x16x4xbf16>
      tpu.vector_store %arg11[%c9, %c1_92, %c0_93], %97 {strides = array<i32>} : memref<10x18x4xbf16, #tpu.memory_space<vmem>>, vector<1x16x4xbf16>,
    } else {
    }
    %c0_63 = arith.constant 0 : index
    %c0_64 = arith.constant 0 : index
    %c0_65 = arith.constant 0 : index
    %70 = vector.load %arg11[%c0_63, %c0_64, %c0_65] : memref<10x18x4xbf16, #tpu.memory_space<vmem>>, vector<10x16x4xbf16>
    %c0_66 = arith.constant 0 : index
    %c1_67 = arith.constant 1 : index
    %c0_68 = arith.constant 0 : index
    %71 = vector.load %arg11[%c0_66, %c1_67, %c0_68] : memref<10x18x4xbf16, #tpu.memory_space<vmem>>, vector<10x16x4xbf16>
    %c0_69 = arith.constant 0 : index
    %c2_70 = arith.constant 2 : index
    %c0_71 = arith.constant 0 : index
    %72 = vector.load %arg11[%c0_69, %c2_70, %c0_71] : memref<10x18x4xbf16, #tpu.memory_space<vmem>>, vector<10x16x4xbf16>
    %73 = tpu.concatenate %70, %71, %72 in 2 : vector<10x16x4xbf16>, vector<10x16x4xbf16>, vector<10x16x4xbf16> -> vector<10x16x12xbf16>
    %74 = vector.extract_strided_slice %73 {offsets = [0, 0, 0], sizes = [8, 16, 12], strides = [1, 1, 1]} : vector<10x16x12xbf16> to vector<8x16x12xbf16>
    %c0_72 = arith.constant 0 : index
    %c0_73 = arith.constant 0 : index
    %c0_74 = arith.constant 0 : index
    %75 = vector.load %arg8[%c0_72, %c0_73, %c0_74] : memref<3x12x4xbf16, #tpu.memory_space<vmem>>, vector<1x12x4xbf16>
    %76 = vector.shape_cast %75 : vector<1x12x4xbf16> to vector<12x4xbf16>
    %cst_75 = arith.constant dense<0.000000e+00> : vector<8x16x4xf32>
    %77 = tpu.matmul %74, %76, %cst_75 {dimension_numbers = #tpu.dot_dimension_numbers<[2], [0], [0, 1], [1], [0, 0, 0, 1, 1, 1], [], []>} : vector<8x16x12xbf16>, vector<12x4xbf16>, vector<8x16x4xf32> -> vector<8x16x4xf32>
    %78 = vector.extract_strided_slice %73 {offsets = [1, 0, 0], sizes = [8, 16, 12], strides = [1, 1, 1]} : vector<10x16x12xbf16> to vector<8x16x12xbf16>
    %c1_76 = arith.constant 1 : index
    %c0_77 = arith.constant 0 : index
    %c0_78 = arith.constant 0 : index
    %79 = vector.load %arg8[%c1_76, %c0_77, %c0_78] : memref<3x12x4xbf16, #tpu.memory_space<vmem>>, vector<1x12x4xbf16>
    %80 = vector.shape_cast %79 : vector<1x12x4xbf16> to vector<12x4xbf16>
    %cst_79 = arith.constant dense<0.000000e+00> : vector<8x16x4xf32>
    %81 = tpu.matmul %78, %80, %cst_79 {dimension_numbers = #tpu.dot_dimension_numbers<[2], [0], [0, 1], [1], [0, 0, 0, 1, 1, 1], [], []>} : vector<8x16x12xbf16>, vector<12x4xbf16>, vector<8x16x4xf32> -> vector<8x16x4xf32>
    %82 = arith.addf %77, %81 : vector<8x16x4xf32>
    %83 = vector.extract_strided_slice %73 {offsets = [2, 0, 0], sizes = [8, 16, 12], strides = [1, 1, 1]} : vector<10x16x12xbf16> to vector<8x16x12xbf16>
    %c2_80 = arith.constant 2 : index
    %c0_81 = arith.constant 0 : index
    %c0_82 = arith.constant 0 : index
    %84 = vector.load %arg8[%c2_80, %c0_81, %c0_82] : memref<3x12x4xbf16, #tpu.memory_space<vmem>>, vector<1x12x4xbf16>
    %85 = vector.shape_cast %84 : vector<1x12x4xbf16> to vector<12x4xbf16>
    %cst_83 = arith.constant dense<0.000000e+00> : vector<8x16x4xf32>
    %86 = tpu.matmul %83, %85, %cst_83 {dimension_numbers = #tpu.dot_dimension_numbers<[2], [0], [0, 1], [1], [0, 0, 0, 1, 1, 1], [], []>} : vector<8x16x12xbf16>, vector<12x4xbf16>, vector<8x16x4xf32> -> vector<8x16x4xf32>
    %87 = arith.addf %82, %86 : vector<8x16x4xf32>
    %c0_84 = arith.constant 0 : index
    %88 = arith.index_cast %1 : i32 to index
    %c0_85 = arith.constant 0 : index
    %c0_86 = arith.constant 0 : index
    %89 = vector.load %arg2[%c0_84, %88, %c0_85, %c0_86] : memref<1x16x16x4xbf16, #tpu.memory_space<vmem>>, vector<1x8x16x4xbf16>
    %90 = vector.shape_cast %89 : vector<1x8x16x4xbf16> to vector<8x16x4xbf16>
    %91 = arith.extf %90 : vector<8x16x4xbf16> to vector<8x16x4xf32>
    %92 = arith.addf %91, %87 : vector<8x16x4xf32>
    %93 = arith.truncf %92 : vector<8x16x4xf32> to vector<8x16x4xbf16>
    %c0_87 = arith.constant 0 : index
    %c0_88 = arith.constant 0 : index
    %c0_89 = arith.constant 0 : index
    %c0_90 = arith.constant 0 : index
    %94 = vector.load %arg9[%c0_87, %c0_88, %c0_89, %c0_90] : memref<1x8x16x4xbf16, #tpu.memory_space<vmem>>, vector<1x8x16x4xbf16>
    %95 = vector.shape_cast %94 : vector<1x8x16x4xbf16> to vector<8x16x4xbf16>
    %96 = vector.shape_cast %93 : vector<8x16x4xbf16> to vector<1x8x16x4xbf16>
    tpu.vector_store %arg9[%c0_87, %c0_88, %c0_89, %c0_90], %96 {strides = array<i32>} : memref<1x8x16x4xbf16, #tpu.memory_space<vmem>>, vector<1x8x16x4xbf16>,
    return
  }
  func.func @transform_0(%arg0: i32, %arg1: i32) -> (i32, i32, i32, i32) {
    %c0_i32 = arith.constant 0 : i32
    %c0_i32_0 = arith.constant 0 : i32
    %c0_i32_1 = arith.constant 0 : i32
    %c0_i32_2 = arith.constant 0 : i32
    return %arg0, %c0_i32, %c0_i32_0, %c0_i32_1 : i32, i32, i32, i32
  }
  func.func @transform_1(%arg0: i32, %arg1: i32) -> (i32, i32, i32) {
    %c0_i32 = arith.constant 0 : i32
    %c0_i32_0 = arith.constant 0 : i32
    %c0_i32_1 = arith.constant 0 : i32
    %c0_i32_2 = arith.constant 0 : i32
    return %c0_i32, %c0_i32_0, %c0_i32_1 : i32, i32, i32
  }
  func.func @transform_2(%arg0: i32, %arg1: i32) -> (i32, i32, i32) {
    %c0_i32 = arith.constant 0 : i32
    %c0_i32_0 = arith.constant 0 : i32
    %c0_i32_1 = arith.constant 0 : i32
    %c0_i32_2 = arith.constant 0 : i32
    return %c0_i32, %c0_i32_0, %c0_i32_1 : i32, i32, i32
  }
  func.func @transform_3(%arg0: i32, %arg1: i32) -> (i32, i32, i32) {
    %c0_i32 = arith.constant 0 : i32
    %c0_i32_0 = arith.constant 0 : i32
    %c0_i32_1 = arith.constant 0 : i32
    %c0_i32_2 = arith.constant 0 : i32
    return %c0_i32, %c0_i32_0, %c0_i32_1 : i32, i32, i32
  }
  func.func @transform_4(%arg0: i32, %arg1: i32) -> (i32, i32, i32) {
    %c0_i32 = arith.constant 0 : i32
    %c0_i32_0 = arith.constant 0 : i32
    %c0_i32_1 = arith.constant 0 : i32
    %c0_i32_2 = arith.constant 0 : i32
    return %c0_i32, %c0_i32_0, %c0_i32_1 : i32, i32, i32
  }
  func.func @transform_5(%arg0: i32, %arg1: i32) -> (i32, i32, i32) {
    %c0_i32 = arith.constant 0 : i32
    %c0_i32_0 = arith.constant 0 : i32
    %c0_i32_1 = arith.constant 0 : i32
    %c0_i32_2 = arith.constant 0 : i32
    return %c0_i32, %c0_i32_0, %c0_i32_1 : i32, i32, i32
  }
  func.func @transform_6(%arg0: i32, %arg1: i32) -> (i32, i32, i32) {
    %c0_i32 = arith.constant 0 : i32
    %c0_i32_0 = arith.constant 0 : i32
    %c0_i32_1 = arith.constant 0 : i32
    %c0_i32_2 = arith.constant 0 : i32
    return %c0_i32, %c0_i32_0, %c0_i32_1 : i32, i32, i32
  }
  func.func @transform_7(%arg0: i32, %arg1: i32) -> (i32, i32, i32, i32) {
    %c0_i32 = arith.constant 0 : i32
    %c0_i32_0 = arith.constant 0 : i32
    %c0_i32_1 = arith.constant 0 : i32
    return %arg0, %arg1, %c0_i32, %c0_i32_0 : i32, i32, i32, i32
  }
}

module attributes {stable_mosaic.version = 11 : i64} {
  func.func @_basic_block_kernel(%arg0: i32, %arg1: i32, %arg2: memref<1x16x16x4xbf16, #tpu.memory_space<vmem>>, %arg3: memref<1x1x4xf32, #tpu.memory_space<vmem>>, %arg4: memref<1x1x4xf32, #tpu.memory_space<vmem>>, %arg5: memref<3x12x4xbf16, #tpu.memory_space<vmem>>, %arg6: memref<1x1x4xf32, #tpu.memory_space<vmem>>, %arg7: memref<1x1x4xf32, #tpu.memory_space<vmem>>, %arg8: memref<3x12x4xbf16, #tpu.memory_space<vmem>>, %arg9: memref<1x8x16x4xbf16, #tpu.memory_space<vmem>>, %arg10: memref<12x18x4xbf16, #tpu.memory_space<vmem>>, %arg11: memref<10x18x4xbf16, #tpu.memory_space<vmem>>) attributes {dimension_semantics = [#tpu.dimension_semantics<parallel>, #tpu.dimension_semantics<parallel>], iteration_bounds = array<i64: 2, 2>, scalar_prefetch = 0 : i64, scratch_operands = 2 : i64, tpu.core_type = #tpu.core_type<tc>, window_params = [{transform_indices = @transform_0, window_bounds = array<i64: 1, 16, 16, 4>}, {pipeline_mode = #tpu.pipeline_mode<synchronous>, transform_indices = @transform_1, window_bounds = array<i64: 1, 1, 4>}, {pipeline_mode = #tpu.pipeline_mode<synchronous>, transform_indices = @transform_2, window_bounds = array<i64: 1, 1, 4>}, {pipeline_mode = #tpu.pipeline_mode<synchronous>, transform_indices = @transform_3, window_bounds = array<i64: 3, 12, 4>}, {pipeline_mode = #tpu.pipeline_mode<synchronous>, transform_indices = @transform_4, window_bounds = array<i64: 1, 1, 4>}, {pipeline_mode = #tpu.pipeline_mode<synchronous>, transform_indices = @transform_5, window_bounds = array<i64: 1, 1, 4>}, {pipeline_mode = #tpu.pipeline_mode<synchronous>, transform_indices = @transform_6, window_bounds = array<i64: 3, 12, 4>}, {transform_indices = @transform_7, window_bounds = array<i64: 1, 8, 16, 4>}]} {
    %c8_i32 = arith.constant 8 : i32
    %0 = arith.muli %arg1, %c8_i32 : i32
    %1 = tpu.assume_multiple %0, 8 : i32
    %c0 = arith.constant 0 : index
    %c0_0 = arith.constant 0 : index
    %c0_1 = arith.constant 0 : index
    %2 = vector.load %arg3[%c0, %c0_0, %c0_1] : memref<1x1x4xf32, #tpu.memory_space<vmem>>, vector<1x1x4xf32>
    %3 = arith.truncf %2 : vector<1x1x4xf32> to vector<1x1x4xbf16>
    %c0_2 = arith.constant 0 : index
    %c0_3 = arith.constant 0 : index
    %c0_4 = arith.constant 0 : index
    %4 = vector.load %arg4[%c0_2, %c0_3, %c0_4] : memref<1x1x4xf32, #tpu.memory_space<vmem>>, vector<1x1x4xf32>
    %5 = arith.truncf %4 : vector<1x1x4xf32> to vector<1x1x4xbf16>
    %c0_5 = arith.constant 0 : index
    %c0_6 = arith.constant 0 : index
    %c0_7 = arith.constant 0 : index
    %6 = vector.load %arg6[%c0_5, %c0_6, %c0_7] : memref<1x1x4xf32, #tpu.memory_space<vmem>>, vector<1x1x4xf32>
    %7 = arith.truncf %6 : vector<1x1x4xf32> to vector<1x1x4xbf16>
    %c0_8 = arith.constant 0 : index
    %c0_9 = arith.constant 0 : index
    %c0_10 = arith.constant 0 : index
    %8 = vector.load %arg7[%c0_8, %c0_9, %c0_10] : memref<1x1x4xf32, #tpu.memory_space<vmem>>, vector<1x1x4xf32>
    %9 = arith.truncf %8 : vector<1x1x4xf32> to vector<1x1x4xbf16>
    %cst = arith.constant 0.000000e+00 : bf16
    %10 = vector.broadcast %cst : bf16 to vector<12x1x4xbf16>
    %c0_11 = arith.constant 0 : index
    %c0_12 = arith.constant 0 : index
    %c0_13 = arith.constant 0 : index
    %11 = vector.load %arg10[%c0_11, %c0_12, %c0_13] : memref<12x18x4xbf16, #tpu.memory_space<vmem>>, vector<12x1x4xbf16>
    tpu.vector_store %arg10[%c0_11, %c0_12, %c0_13], %10 {strides = array<i32>} : memref<12x18x4xbf16, #tpu.memory_space<vmem>>, vector<12x1x4xbf16>,
    %c0_14 = arith.constant 0 : index
    %c17 = arith.constant 17 : index
    %c0_15 = arith.constant 0 : index
    %12 = vector.load %arg10[%c0_14, %c17, %c0_15] : memref<12x18x4xbf16, #tpu.memory_space<vmem>>, vector<12x1x4xbf16>
    tpu.vector_store %arg10[%c0_14, %c17, %c0_15], %10 {strides = array<i32>} : memref<12x18x4xbf16, #tpu.memory_space<vmem>>, vector<12x1x4xbf16>,
    %c0_16 = arith.constant 0 : index
    %13 = arith.index_cast %1 : i32 to index
    %c0_17 = arith.constant 0 : index
    %c0_18 = arith.constant 0 : index
    %14 = vector.load %arg2[%c0_16, %13, %c0_17, %c0_18] : memref<1x16x16x4xbf16, #tpu.memory_space<vmem>>, vector<1x8x16x4xbf16>
    %15 = vector.shape_cast %14 : vector<1x8x16x4xbf16> to vector<8x16x4xbf16>
    %16 = vector.broadcast %3 : vector<1x1x4xbf16> to vector<8x16x4xbf16>
    %17 = arith.mulf %15, %16 : vector<8x16x4xbf16>
    %18 = vector.broadcast %5 : vector<1x1x4xbf16> to vector<8x16x4xbf16>
    %19 = arith.addf %17, %18 : vector<8x16x4xbf16>
    %cst_19 = arith.constant 0.000000e+00 : bf16
    %20 = vector.broadcast %cst_19 : bf16 to vector<8x16x4xbf16>
    %21 = arith.maximumf %19, %20 : vector<8x16x4xbf16>
    %c2 = arith.constant 2 : index
    %c1 = arith.constant 1 : index
    %c0_20 = arith.constant 0 : index
    %22 = vector.load %arg10[%c2, %c1, %c0_20] : memref<12x18x4xbf16, #tpu.memory_space<vmem>>, vector<8x16x4xbf16>
    tpu.vector_store %arg10[%c2, %c1, %c0_20], %21 {strides = array<i32>} : memref<12x18x4xbf16, #tpu.memory_space<vmem>>, vector<8x16x4xbf16>,
    %c0_i32 = arith.constant 0 : i32
    %23 = arith.cmpi sgt, %arg1, %c0_i32 : i32
    %24 = arith.extui %23 : i1 to i32
    %c0_i32_21 = arith.constant 0 : i32
    %25 = arith.cmpi ne, %24, %c0_i32_21 : i32
    scf.if %25 {
      %c2_i32 = arith.constant 2 : i32
      %97 = arith.subi %1, %c2_i32 : i32
      %c0_91 = arith.constant 0 : index
      %98 = arith.index_cast %97 : i32 to index
      %c0_92 = arith.constant 0 : index
      %c0_93 = arith.constant 0 : index
      %99 = vector.load %arg2[%c0_91, %98, %c0_92, %c0_93] : memref<1x16x16x4xbf16, #tpu.memory_space<vmem>>, vector<1x2x16x4xbf16>
      %100 = vector.shape_cast %99 : vector<1x2x16x4xbf16> to vector<2x16x4xbf16>
      %101 = vector.broadcast %3 : vector<1x1x4xbf16> to vector<2x16x4xbf16>
      %102 = arith.mulf %100, %101 : vector<2x16x4xbf16>
      %103 = vector.broadcast %5 : vector<1x1x4xbf16> to vector<2x16x4xbf16>
      %104 = arith.addf %102, %103 : vector<2x16x4xbf16>
      %cst_94 = arith.constant 0.000000e+00 : bf16
      %105 = vector.broadcast %cst_94 : bf16 to vector<2x16x4xbf16>
      %106 = arith.maximumf %104, %105 : vector<2x16x4xbf16>
      %c0_95 = arith.constant 0 : index
      %c1_96 = arith.constant 1 : index
      %c0_97 = arith.constant 0 : index
      %107 = vector.load %arg10[%c0_95, %c1_96, %c0_97] : memref<12x18x4xbf16, #tpu.memory_space<vmem>>, vector<2x16x4xbf16>
      tpu.vector_store %arg10[%c0_95, %c1_96, %c0_97], %106 {strides = array<i32>} : memref<12x18x4xbf16, #tpu.memory_space<vmem>>, vector<2x16x4xbf16>,
    } else {
    }
    %c0_i32_22 = arith.constant 0 : i32
    %26 = arith.cmpi eq, %arg1, %c0_i32_22 : i32
    %27 = arith.extui %26 : i1 to i32
    %c0_i32_23 = arith.constant 0 : i32
    %28 = arith.cmpi ne, %27, %c0_i32_23 : i32
    scf.if %28 {
      %cst_91 = arith.constant 0.000000e+00 : bf16
      %97 = vector.broadcast %cst_91 : bf16 to vector<2x16x4xbf16>
      %c0_92 = arith.constant 0 : index
      %c1_93 = arith.constant 1 : index
      %c0_94 = arith.constant 0 : index
      %98 = vector.load %arg10[%c0_92, %c1_93, %c0_94] : memref<12x18x4xbf16, #tpu.memory_space<vmem>>, vector<2x16x4xbf16>
      tpu.vector_store %arg10[%c0_92, %c1_93, %c0_94], %97 {strides = array<i32>} : memref<12x18x4xbf16, #tpu.memory_space<vmem>>, vector<2x16x4xbf16>,
    } else {
    }
    %c1_i32 = arith.constant 1 : i32
    %29 = arith.cmpi slt, %arg1, %c1_i32 : i32
    %30 = arith.extui %29 : i1 to i32
    %c0_i32_24 = arith.constant 0 : i32
    %31 = arith.cmpi ne, %30, %c0_i32_24 : i32
    scf.if %31 {
      %c8_i32_91 = arith.constant 8 : i32
      %97 = arith.addi %1, %c8_i32_91 : i32
      %c0_92 = arith.constant 0 : index
      %98 = arith.index_cast %97 : i32 to index
      %c0_93 = arith.constant 0 : index
      %c0_94 = arith.constant 0 : index
      %99 = vector.load %arg2[%c0_92, %98, %c0_93, %c0_94] : memref<1x16x16x4xbf16, #tpu.memory_space<vmem>>, vector<1x2x16x4xbf16>
      %100 = vector.shape_cast %99 : vector<1x2x16x4xbf16> to vector<2x16x4xbf16>
      %101 = vector.broadcast %3 : vector<1x1x4xbf16> to vector<2x16x4xbf16>
      %102 = arith.mulf %100, %101 : vector<2x16x4xbf16>
      %103 = vector.broadcast %5 : vector<1x1x4xbf16> to vector<2x16x4xbf16>
      %104 = arith.addf %102, %103 : vector<2x16x4xbf16>
      %cst_95 = arith.constant 0.000000e+00 : bf16
      %105 = vector.broadcast %cst_95 : bf16 to vector<2x16x4xbf16>
      %106 = arith.maximumf %104, %105 : vector<2x16x4xbf16>
      %c10 = arith.constant 10 : index
      %c1_96 = arith.constant 1 : index
      %c0_97 = arith.constant 0 : index
      %107 = vector.load %arg10[%c10, %c1_96, %c0_97] : memref<12x18x4xbf16, #tpu.memory_space<vmem>>, vector<2x16x4xbf16>
      tpu.vector_store %arg10[%c10, %c1_96, %c0_97], %106 {strides = array<i32>} : memref<12x18x4xbf16, #tpu.memory_space<vmem>>, vector<2x16x4xbf16>,
    } else {
    }
    %c1_i32_25 = arith.constant 1 : i32
    %32 = arith.cmpi eq, %arg1, %c1_i32_25 : i32
    %33 = arith.extui %32 : i1 to i32
    %c0_i32_26 = arith.constant 0 : i32
    %34 = arith.cmpi ne, %33, %c0_i32_26 : i32
    scf.if %34 {
      %cst_91 = arith.constant 0.000000e+00 : bf16
      %97 = vector.broadcast %cst_91 : bf16 to vector<2x16x4xbf16>
      %c10 = arith.constant 10 : index
      %c1_92 = arith.constant 1 : index
      %c0_93 = arith.constant 0 : index
      %98 = vector.load %arg10[%c10, %c1_92, %c0_93] : memref<12x18x4xbf16, #tpu.memory_space<vmem>>, vector<2x16x4xbf16>
      tpu.vector_store %arg10[%c10, %c1_92, %c0_93], %97 {strides = array<i32>} : memref<12x18x4xbf16, #tpu.memory_space<vmem>>, vector<2x16x4xbf16>,
    } else {
    }
    %c0_27 = arith.constant 0 : index
    %c0_28 = arith.constant 0 : index
    %c0_29 = arith.constant 0 : index
    %35 = vector.load %arg10[%c0_27, %c0_28, %c0_29] : memref<12x18x4xbf16, #tpu.memory_space<vmem>>, vector<12x16x4xbf16>
    %c0_30 = arith.constant 0 : index
    %c1_31 = arith.constant 1 : index
    %c0_32 = arith.constant 0 : index
    %36 = vector.load %arg10[%c0_30, %c1_31, %c0_32] : memref<12x18x4xbf16, #tpu.memory_space<vmem>>, vector<12x16x4xbf16>
    %c0_33 = arith.constant 0 : index
    %c2_34 = arith.constant 2 : index
    %c0_35 = arith.constant 0 : index
    %37 = vector.load %arg10[%c0_33, %c2_34, %c0_35] : memref<12x18x4xbf16, #tpu.memory_space<vmem>>, vector<12x16x4xbf16>
    %38 = tpu.concatenate %35, %36, %37 in 2 : vector<12x16x4xbf16>, vector<12x16x4xbf16>, vector<12x16x4xbf16> -> vector<12x16x12xbf16>
    %39 = vector.extract_strided_slice %38 {offsets = [0, 0, 0], sizes = [10, 16, 12], strides = [1, 1, 1]} : vector<12x16x12xbf16> to vector<10x16x12xbf16>
    %c0_36 = arith.constant 0 : index
    %c0_37 = arith.constant 0 : index
    %c0_38 = arith.constant 0 : index
    %40 = vector.load %arg5[%c0_36, %c0_37, %c0_38] : memref<3x12x4xbf16, #tpu.memory_space<vmem>>, vector<1x12x4xbf16>
    %41 = vector.shape_cast %40 : vector<1x12x4xbf16> to vector<12x4xbf16>
    %cst_39 = arith.constant dense<0.000000e+00> : vector<10x16x4xf32>
    %42 = tpu.matmul %39, %41, %cst_39 {dimension_numbers = #tpu.dot_dimension_numbers<[2], [0], [0, 1], [1], [0, 0, 0, 1, 1, 1], [], []>} : vector<10x16x12xbf16>, vector<12x4xbf16>, vector<10x16x4xf32> -> vector<10x16x4xf32>
    %43 = vector.extract_strided_slice %38 {offsets = [1, 0, 0], sizes = [10, 16, 12], strides = [1, 1, 1]} : vector<12x16x12xbf16> to vector<10x16x12xbf16>
    %c1_40 = arith.constant 1 : index
    %c0_41 = arith.constant 0 : index
    %c0_42 = arith.constant 0 : index
    %44 = vector.load %arg5[%c1_40, %c0_41, %c0_42] : memref<3x12x4xbf16, #tpu.memory_space<vmem>>, vector<1x12x4xbf16>
    %45 = vector.shape_cast %44 : vector<1x12x4xbf16> to vector<12x4xbf16>
    %cst_43 = arith.constant dense<0.000000e+00> : vector<10x16x4xf32>
    %46 = tpu.matmul %43, %45, %cst_43 {dimension_numbers = #tpu.dot_dimension_numbers<[2], [0], [0, 1], [1], [0, 0, 0, 1, 1, 1], [], []>} : vector<10x16x12xbf16>, vector<12x4xbf16>, vector<10x16x4xf32> -> vector<10x16x4xf32>
    %47 = arith.addf %42, %46 : vector<10x16x4xf32>
    %48 = vector.extract_strided_slice %38 {offsets = [2, 0, 0], sizes = [10, 16, 12], strides = [1, 1, 1]} : vector<12x16x12xbf16> to vector<10x16x12xbf16>
    %c2_44 = arith.constant 2 : index
    %c0_45 = arith.constant 0 : index
    %c0_46 = arith.constant 0 : index
    %49 = vector.load %arg5[%c2_44, %c0_45, %c0_46] : memref<3x12x4xbf16, #tpu.memory_space<vmem>>, vector<1x12x4xbf16>
    %50 = vector.shape_cast %49 : vector<1x12x4xbf16> to vector<12x4xbf16>
    %cst_47 = arith.constant dense<0.000000e+00> : vector<10x16x4xf32>
    %51 = tpu.matmul %48, %50, %cst_47 {dimension_numbers = #tpu.dot_dimension_numbers<[2], [0], [0, 1], [1], [0, 0, 0, 1, 1, 1], [], []>} : vector<10x16x12xbf16>, vector<12x4xbf16>, vector<10x16x4xf32> -> vector<10x16x4xf32>
    %52 = arith.addf %47, %51 : vector<10x16x4xf32>
    %53 = arith.truncf %52 : vector<10x16x4xf32> to vector<10x16x4xbf16>
    %54 = vector.broadcast %7 : vector<1x1x4xbf16> to vector<10x16x4xbf16>
    %55 = arith.mulf %53, %54 : vector<10x16x4xbf16>
    %56 = vector.broadcast %9 : vector<1x1x4xbf16> to vector<10x16x4xbf16>
    %57 = arith.addf %55, %56 : vector<10x16x4xbf16>
    %cst_48 = arith.constant 0.000000e+00 : bf16
    %58 = vector.broadcast %cst_48 : bf16 to vector<10x16x4xbf16>
    %59 = arith.maximumf %57, %58 : vector<10x16x4xbf16>
    %cst_49 = arith.constant 0.000000e+00 : bf16
    %60 = vector.broadcast %cst_49 : bf16 to vector<10x1x4xbf16>
    %c0_50 = arith.constant 0 : index
    %c0_51 = arith.constant 0 : index
    %c0_52 = arith.constant 0 : index
    %61 = vector.load %arg11[%c0_50, %c0_51, %c0_52] : memref<10x18x4xbf16, #tpu.memory_space<vmem>>, vector<10x1x4xbf16>
    tpu.vector_store %arg11[%c0_50, %c0_51, %c0_52], %60 {strides = array<i32>} : memref<10x18x4xbf16, #tpu.memory_space<vmem>>, vector<10x1x4xbf16>,
    %c0_53 = arith.constant 0 : index
    %c17_54 = arith.constant 17 : index
    %c0_55 = arith.constant 0 : index
    %62 = vector.load %arg11[%c0_53, %c17_54, %c0_55] : memref<10x18x4xbf16, #tpu.memory_space<vmem>>, vector<10x1x4xbf16>
    tpu.vector_store %arg11[%c0_53, %c17_54, %c0_55], %60 {strides = array<i32>} : memref<10x18x4xbf16, #tpu.memory_space<vmem>>, vector<10x1x4xbf16>,
    %c0_56 = arith.constant 0 : index
    %c1_57 = arith.constant 1 : index
    %c0_58 = arith.constant 0 : index
    %63 = vector.load %arg11[%c0_56, %c1_57, %c0_58] : memref<10x18x4xbf16, #tpu.memory_space<vmem>>, vector<10x16x4xbf16>
    tpu.vector_store %arg11[%c0_56, %c1_57, %c0_58], %59 {strides = array<i32>} : memref<10x18x4xbf16, #tpu.memory_space<vmem>>, vector<10x16x4xbf16>,
    %c0_i32_59 = arith.constant 0 : i32
    %64 = arith.cmpi eq, %arg1, %c0_i32_59 : i32
    %65 = arith.extui %64 : i1 to i32
    %c0_i32_60 = arith.constant 0 : i32
    %66 = arith.cmpi ne, %65, %c0_i32_60 : i32
    scf.if %66 {
      %cst_91 = arith.constant 0.000000e+00 : bf16
      %97 = vector.broadcast %cst_91 : bf16 to vector<1x16x4xbf16>
      %c0_92 = arith.constant 0 : index
      %c1_93 = arith.constant 1 : index
      %c0_94 = arith.constant 0 : index
      %98 = vector.load %arg11[%c0_92, %c1_93, %c0_94] : memref<10x18x4xbf16, #tpu.memory_space<vmem>>, vector<1x16x4xbf16>
      tpu.vector_store %arg11[%c0_92, %c1_93, %c0_94], %97 {strides = array<i32>} : memref<10x18x4xbf16, #tpu.memory_space<vmem>>, vector<1x16x4xbf16>,
    } else {
    }
    %c1_i32_61 = arith.constant 1 : i32
    %67 = arith.cmpi eq, %arg1, %c1_i32_61 : i32
    %68 = arith.extui %67 : i1 to i32
    %c0_i32_62 = arith.constant 0 : i32
    %69 = arith.cmpi ne, %68, %c0_i32_62 : i32
    scf.if %69 {
      %cst_91 = arith.constant 0.000000e+00 : bf16
      %97 = vector.broadcast %cst_91 : bf16 to vector<1x16x4xbf16>
      %c9 = arith.constant 9 : index
      %c1_92 = arith.constant 1 : index
      %c0_93 = arith.constant 0 : index
      %98 = vector.load %arg11[%c9, %c1_92, %c0_93] : memref<10x18x4xbf16, #tpu.memory_space<vmem>>, vector<1x16x4xbf16>
      tpu.vector_store %arg11[%c9, %c1_92, %c0_93], %97 {strides = array<i32>} : memref<10x18x4xbf16, #tpu.memory_space<vmem>>, vector<1x16x4xbf16>,
    } else {
    }
    %c0_63 = arith.constant 0 : index
    %c0_64 = arith.constant 0 : index
    %c0_65 = arith.constant 0 : index
    %70 = vector.load %arg11[%c0_63, %c0_64, %c0_65] : memref<10x18x4xbf16, #tpu.memory_space<vmem>>, vector<10x16x4xbf16>
    %c0_66 = arith.constant 0 : index
    %c1_67 = arith.constant 1 : index
    %c0_68 = arith.constant 0 : index
    %71 = vector.load %arg11[%c0_66, %c1_67, %c0_68] : memref<10x18x4xbf16, #tpu.memory_space<vmem>>, vector<10x16x4xbf16>
    %c0_69 = arith.constant 0 : index
    %c2_70 = arith.constant 2 : index
    %c0_71 = arith.constant 0 : index
    %72 = vector.load %arg11[%c0_69, %c2_70, %c0_71] : memref<10x18x4xbf16, #tpu.memory_space<vmem>>, vector<10x16x4xbf16>
    %73 = tpu.concatenate %70, %71, %72 in 2 : vector<10x16x4xbf16>, vector<10x16x4xbf16>, vector<10x16x4xbf16> -> vector<10x16x12xbf16>
    %74 = vector.extract_strided_slice %73 {offsets = [0, 0, 0], sizes = [8, 16, 12], strides = [1, 1, 1]} : vector<10x16x12xbf16> to vector<8x16x12xbf16>
    %c0_72 = arith.constant 0 : index
    %c0_73 = arith.constant 0 : index
    %c0_74 = arith.constant 0 : index
    %75 = vector.load %arg8[%c0_72, %c0_73, %c0_74] : memref<3x12x4xbf16, #tpu.memory_space<vmem>>, vector<1x12x4xbf16>
    %76 = vector.shape_cast %75 : vector<1x12x4xbf16> to vector<12x4xbf16>
    %cst_75 = arith.constant dense<0.000000e+00> : vector<8x16x4xf32>
    %77 = tpu.matmul %74, %76, %cst_75 {dimension_numbers = #tpu.dot_dimension_numbers<[2], [0], [0, 1], [1], [0, 0, 0, 1, 1, 1], [], []>} : vector<8x16x12xbf16>, vector<12x4xbf16>, vector<8x16x4xf32> -> vector<8x16x4xf32>
    %78 = vector.extract_strided_slice %73 {offsets = [1, 0, 0], sizes = [8, 16, 12], strides = [1, 1, 1]} : vector<10x16x12xbf16> to vector<8x16x12xbf16>
    %c1_76 = arith.constant 1 : index
    %c0_77 = arith.constant 0 : index
    %c0_78 = arith.constant 0 : index
    %79 = vector.load %arg8[%c1_76, %c0_77, %c0_78] : memref<3x12x4xbf16, #tpu.memory_space<vmem>>, vector<1x12x4xbf16>
    %80 = vector.shape_cast %79 : vector<1x12x4xbf16> to vector<12x4xbf16>
    %cst_79 = arith.constant dense<0.000000e+00> : vector<8x16x4xf32>
    %81 = tpu.matmul %78, %80, %cst_79 {dimension_numbers = #tpu.dot_dimension_numbers<[2], [0], [0, 1], [1], [0, 0, 0, 1, 1, 1], [], []>} : vector<8x16x12xbf16>, vector<12x4xbf16>, vector<8x16x4xf32> -> vector<8x16x4xf32>
    %82 = arith.addf %77, %81 : vector<8x16x4xf32>
    %83 = vector.extract_strided_slice %73 {offsets = [2, 0, 0], sizes = [8, 16, 12], strides = [1, 1, 1]} : vector<10x16x12xbf16> to vector<8x16x12xbf16>
    %c2_80 = arith.constant 2 : index
    %c0_81 = arith.constant 0 : index
    %c0_82 = arith.constant 0 : index
    %84 = vector.load %arg8[%c2_80, %c0_81, %c0_82] : memref<3x12x4xbf16, #tpu.memory_space<vmem>>, vector<1x12x4xbf16>
    %85 = vector.shape_cast %84 : vector<1x12x4xbf16> to vector<12x4xbf16>
    %cst_83 = arith.constant dense<0.000000e+00> : vector<8x16x4xf32>
    %86 = tpu.matmul %83, %85, %cst_83 {dimension_numbers = #tpu.dot_dimension_numbers<[2], [0], [0, 1], [1], [0, 0, 0, 1, 1, 1], [], []>} : vector<8x16x12xbf16>, vector<12x4xbf16>, vector<8x16x4xf32> -> vector<8x16x4xf32>
    %87 = arith.addf %82, %86 : vector<8x16x4xf32>
    %c0_84 = arith.constant 0 : index
    %88 = arith.index_cast %1 : i32 to index
    %c0_85 = arith.constant 0 : index
    %c0_86 = arith.constant 0 : index
    %89 = vector.load %arg2[%c0_84, %88, %c0_85, %c0_86] : memref<1x16x16x4xbf16, #tpu.memory_space<vmem>>, vector<1x8x16x4xbf16>
    %90 = vector.shape_cast %89 : vector<1x8x16x4xbf16> to vector<8x16x4xbf16>
    %91 = arith.extf %90 : vector<8x16x4xbf16> to vector<8x16x4xf32>
    %92 = arith.addf %91, %87 : vector<8x16x4xf32>
    %93 = arith.truncf %92 : vector<8x16x4xf32> to vector<8x16x4xbf16>
    %c0_87 = arith.constant 0 : index
    %c0_88 = arith.constant 0 : index
    %c0_89 = arith.constant 0 : index
    %c0_90 = arith.constant 0 : index
    %94 = vector.load %arg9[%c0_87, %c0_88, %c0_89, %c0_90] : memref<1x8x16x4xbf16, #tpu.memory_space<vmem>>, vector<1x8x16x4xbf16>
    %95 = vector.shape_cast %94 : vector<1x8x16x4xbf16> to vector<8x16x4xbf16>
    %96 = vector.shape_cast %93 : vector<8x16x4xbf16> to vector<1x8x16x4xbf16>
    tpu.vector_store %arg9[%c0_87, %c0_88, %c0_89, %c0_90], %96 {strides = array<i32>} : memref<1x8x16x4xbf16, #tpu.memory_space<vmem>>, vector<1x8x16x4xbf16>,
    return
  }
  func.func @transform_0(%arg0: i32, %arg1: i32) -> (i32, i32, i32, i32) {
    %c0_i32 = arith.constant 0 : i32
    %c0_i32_0 = arith.constant 0 : i32
    %c0_i32_1 = arith.constant 0 : i32
    %c0_i32_2 = arith.constant 0 : i32
    return %arg0, %c0_i32, %c0_i32_0, %c0_i32_1 : i32, i32, i32, i32
  }
  func.func @transform_1(%arg0: i32, %arg1: i32) -> (i32, i32, i32) {
    %c0_i32 = arith.constant 0 : i32
    %c0_i32_0 = arith.constant 0 : i32
    %c0_i32_1 = arith.constant 0 : i32
    %c0_i32_2 = arith.constant 0 : i32
    return %c0_i32, %c0_i32_0, %c0_i32_1 : i32, i32, i32
  }
  func.func @transform_2(%arg0: i32, %arg1: i32) -> (i32, i32, i32) {
    %c0_i32 = arith.constant 0 : i32
    %c0_i32_0 = arith.constant 0 : i32
    %c0_i32_1 = arith.constant 0 : i32
    %c0_i32_2 = arith.constant 0 : i32
    return %c0_i32, %c0_i32_0, %c0_i32_1 : i32, i32, i32
  }
  func.func @transform_3(%arg0: i32, %arg1: i32) -> (i32, i32, i32) {
    %c0_i32 = arith.constant 0 : i32
    %c0_i32_0 = arith.constant 0 : i32
    %c0_i32_1 = arith.constant 0 : i32
    %c0_i32_2 = arith.constant 0 : i32
    return %c0_i32, %c0_i32_0, %c0_i32_1 : i32, i32, i32
  }
  func.func @transform_4(%arg0: i32, %arg1: i32) -> (i32, i32, i32) {
    %c0_i32 = arith.constant 0 : i32
    %c0_i32_0 = arith.constant 0 : i32
    %c0_i32_1 = arith.constant 0 : i32
    %c0_i32_2 = arith.constant 0 : i32
    return %c0_i32, %c0_i32_0, %c0_i32_1 : i32, i32, i32
  }
  func.func @transform_5(%arg0: i32, %arg1: i32) -> (i32, i32, i32) {
    %c0_i32 = arith.constant 0 : i32
    %c0_i32_0 = arith.constant 0 : i32
    %c0_i32_1 = arith.constant 0 : i32
    %c0_i32_2 = arith.constant 0 : i32
    return %c0_i32, %c0_i32_0, %c0_i32_1 : i32, i32, i32
  }
  func.func @transform_6(%arg0: i32, %arg1: i32) -> (i32, i32, i32) {
    %c0_i32 = arith.constant 0 : i32
    %c0_i32_0 = arith.constant 0 : i32
    %c0_i32_1 = arith.constant 0 : i32
    %c0_i32_2 = arith.constant 0 : i32
    return %c0_i32, %c0_i32_0, %c0_i32_1 : i32, i32, i32
  }
  func.func @transform_7(%arg0: i32, %arg1: i32) -> (i32, i32, i32, i32) {
    %c0_i32 = arith.constant 0 : i32
    %c0_i32_0 = arith.constant 0 : i32
    %c0_i32_1 = arith.constant 0 : i32
    return %arg0, %arg1, %c0_i32, %c0_i32_0 : i32, i32, i32, i32
  }
}

</mosaic_0001>

<llo_original>
// kernel: tpu_custom_call.1
$region0: #{tpu_custom_call.1}
  #allocation0 [shape = 'u32[]', space=smem, size = 0x4, offset = 0x4, fixed_abs, tag = 'smem constant byte address 0x4 - core index']
  #allocation1 [shape = 'u32[144,128]{1,0:T(1,128)}', space=vmem, size = 0x12000, scoped, tag = 'internal scratch']
  #allocation2 [shape = 'bf16[12,18,4]{2,1,0:T(8,128)(2,1)}', space=vmem, size = 0x12000, scoped, tag = 'scratch operand']
  #allocation3 [shape = 'bf16[10,18,4]{2,1,0:T(8,128)(2,1)}', space=vmem, size = 0xf000, scoped, tag = 'scratch operand']
  %s0 = inlined_call_operand.vmem [shape: bf16[2,16,16,4], index: 0, kind: input, shape index: {}]
  %s1 = inlined_call_operand.vmem [shape: f32[1,1,4], index: 1, kind: input, shape index: {}]
  %s2 = inlined_call_operand.vmem [shape: f32[1,1,4], index: 2, kind: input, shape index: {}]
  %s3 = inlined_call_operand.vmem [shape: bf16[3,12,4], index: 3, kind: input, shape index: {}]
  %s4 = inlined_call_operand.vmem [shape: f32[1,1,4], index: 4, kind: input, shape index: {}]
  %s5 = inlined_call_operand.vmem [shape: f32[1,1,4], index: 5, kind: input, shape index: {}]
  %s6 = inlined_call_operand.vmem [shape: bf16[3,12,4], index: 6, kind: input, shape index: {}]
  %s7 = inlined_call_operand.vmem [shape: bf16[2,16,16,4], index: 7, kind: output, shape index: {}]
  %s8 = sld [smem:[#allocation0]]
  $region85: #{tpu_custom_call.1} parent=0
    _
  %s10 = ssub.s32 1, %s8
  %s11 = scalar_select 0, %s10, %s8
  loop: start=0, step=1, limit=6
  $region2: #{tpu_custom_call.1} parent=0 // loop_pre_header
    _
  $region3: #{tpu_custom_call.1} parent=0 // loop_header
    %s13 = sphi 0, %s17
    %p14 = scmp.ge.s32.totalorder %s13, 6
    %s20 = sphi 0, %s32
    %s21 = sphi 0, %s28
    %s22 = sphi 0, %s20
    %s23 = sphi 0, %s21
    %s24 = sphi 0, %s22
    %s25 = sphi 0, %s23
    %s35 = sphi 0, %s37
    %s38 = sphi 0, %s35
    %s39 = sphi 0, %s38
    %s55 = sphi 0, %s39
    %s59 = sphi 0, %s59
    %s61 = sphi 0, %s59
    %s62 = sphi 0, %s61
    %s76 = sphi 0, %s62
    %s80 = sphi 0, %s80
    %s82 = sphi 0, %s80
    %s83 = sphi 0, %s82
    %s97 = sphi 0, %s83
    %s101 = sphi 0, %s101
    %s103 = sphi 0, %s101
    %s104 = sphi 0, %s103
    %s118 = sphi 0, %s104
    %s122 = sphi 0, %s122
    %s124 = sphi 0, %s122
    %s125 = sphi 0, %s124
    %s139 = sphi 0, %s125
    %s143 = sphi 0, %s143
    %s145 = sphi 0, %s143
    %s146 = sphi 0, %s145
    %s160 = sphi 0, %s146
    %s164 = sphi 0, %s164
    %s166 = sphi 0, %s164
    %s167 = sphi 0, %s166
    %s181 = sphi 0, %s167
    %s189 = sphi 0, %s191
    %s192 = sphi 0, %s189
    %s193 = sphi 0, %s192
    %s209 = sphi 0, %s193
  $region4: #{tpu_custom_call.1} parent=0 // loop_header_branch
    %16 = sbr.rel (%p14) target = $region8
  $region5: #{tpu_custom_call.1} parent=0 // loop_body
    %s18 = ssub.s32 %s13, 1
    %s19 = ssub.s32 %s13, 2
    %s26 = sadd.s32 1, %s21
    %p27 = scmp.ge.s32.totalorder %s26, 2
    %s28 = scalar_select %p27, 0, %s26
    %s29 = sadd.s32 1, %s20
    %s30 = scalar_select %p27, %s29, %s20
    %p31 = scmp.ge.s32.totalorder %s30, 2
    %s32 = scalar_select %p31, 0, %s30
    %s33 = ssub.s32 %s20, %s32
    %p34 = scmp.eq.s32.totalorder %s33, 0
    %s36 = sadd.s32 %s35, 1
    %s37 = scalar_select %p34, %s35, %s36
    %p40 = pneg %p34
    %p41 = scmp.eq.s32.totalorder %s13, 3
    %p42 = por %p40, %p41
    %p43 = scmp.ne.s32.totalorder %s35, %s38
    %p44 = scmp.eq.s32.totalorder %s13, 0
    %p45 = por %p43, %p44
    %p46 = scmp.ne.s32.totalorder %s35, %s38
    %p47 = scmp.eq.s32.totalorder %s18, 3
    %p48 = por %p46, %p47
    %p49 = scmp.ne.s32.totalorder %s38, %s39
    %p50 = scmp.eq.s32.totalorder %s18, 0
    %p51 = por %p49, %p50
    %p52 = scmp.ne.s32.totalorder %s38, %s39
    %p53 = scmp.eq.s32.totalorder %s19, 3
    %p54 = por %p52, %p53
    %p56 = scmp.ne.s32.totalorder %s39, %s55
    %p57 = scmp.eq.s32.totalorder %s19, 0
    %p58 = por %p56, %p57
    %s60 = sadd.s32 %s59, 1
    %p63 = scmp.eq.s32.totalorder %s13, 3
    %p64 = scmp.ne.s32.totalorder %s59, %s61
    %p65 = scmp.eq.s32.totalorder %s13, 0
    %p66 = por %p64, %p65
    %p67 = scmp.ne.s32.totalorder %s59, %s61
    %p68 = scmp.eq.s32.totalorder %s18, 3
    %p69 = por %p67, %p68
    %p70 = scmp.ne.s32.totalorder %s61, %s62
    %p71 = scmp.eq.s32.totalorder %s18, 0
    %p72 = por %p70, %p71
    %p73 = scmp.ne.s32.totalorder %s61, %s62
    %p74 = scmp.eq.s32.totalorder %s19, 3
    %p75 = por %p73, %p74
    %p77 = scmp.ne.s32.totalorder %s62, %s76
    %p78 = scmp.eq.s32.totalorder %s19, 0
    %p79 = por %p77, %p78
    %s81 = sadd.s32 %s80, 1
    %p84 = scmp.eq.s32.totalorder %s13, 3
    %p85 = scmp.ne.s32.totalorder %s80, %s82
    %p86 = scmp.eq.s32.totalorder %s13, 0
    %p87 = por %p85, %p86
    %p88 = scmp.ne.s32.totalorder %s80, %s82
    %p89 = scmp.eq.s32.totalorder %s18, 3
    %p90 = por %p88, %p89
    %p91 = scmp.ne.s32.totalorder %s82, %s83
    %p92 = scmp.eq.s32.totalorder %s18, 0
    %p93 = por %p91, %p92
    %p94 = scmp.ne.s32.totalorder %s82, %s83
    %p95 = scmp.eq.s32.totalorder %s19, 3
    %p96 = por %p94, %p95
    %p98 = scmp.ne.s32.totalorder %s83, %s97
    %p99 = scmp.eq.s32.totalorder %s19, 0
    %p100 = por %p98, %p99
    %s102 = sadd.s32 %s101, 1
    %p105 = scmp.eq.s32.totalorder %s13, 3
    %p106 = scmp.ne.s32.totalorder %s101, %s103
    %p107 = scmp.eq.s32.totalorder %s13, 0
    %p108 = por %p106, %p107
    %p109 = scmp.ne.s32.totalorder %s101, %s103
    %p110 = scmp.eq.s32.totalorder %s18, 3
    %p111 = por %p109, %p110
    %p112 = scmp.ne.s32.totalorder %s103, %s104
    %p113 = scmp.eq.s32.totalorder %s18, 0
    %p114 = por %p112, %p113
    %p115 = scmp.ne.s32.totalorder %s103, %s104
    %p116 = scmp.eq.s32.totalorder %s19, 3
    %p117 = por %p115, %p116
    %p119 = scmp.ne.s32.totalorder %s104, %s118
    %p120 = scmp.eq.s32.totalorder %s19, 0
    %p121 = por %p119, %p120
    %s123 = sadd.s32 %s122, 1
    %p126 = scmp.eq.s32.totalorder %s13, 3
    %p127 = scmp.ne.s32.totalorder %s122, %s124
    %p128 = scmp.eq.s32.totalorder %s13, 0
    %p129 = por %p127, %p128
    %p130 = scmp.ne.s32.totalorder %s122, %s124
    %p131 = scmp.eq.s32.totalorder %s18, 3
    %p132 = por %p130, %p131
    %p133 = scmp.ne.s32.totalorder %s124, %s125
    %p134 = scmp.eq.s32.totalorder %s18, 0
    %p135 = por %p133, %p134
    %p136 = scmp.ne.s32.totalorder %s124, %s125
    %p137 = scmp.eq.s32.totalorder %s19, 3
    %p138 = por %p136, %p137
    %p140 = scmp.ne.s32.totalorder %s125, %s139
    %p141 = scmp.eq.s32.totalorder %s19, 0
    %p142 = por %p140, %p141
    %s144 = sadd.s32 %s143, 1
    %p147 = scmp.eq.s32.totalorder %s13, 3
    %p148 = scmp.ne.s32.totalorder %s143, %s145
    %p149 = scmp.eq.s32.totalorder %s13, 0
    %p150 = por %p148, %p149
    %p151 = scmp.ne.s32.totalorder %s143, %s145
    %p152 = scmp.eq.s32.totalorder %s18, 3
    %p153 = por %p151, %p152
    %p154 = scmp.ne.s32.totalorder %s145, %s146
    %p155 = scmp.eq.s32.totalorder %s18, 0
    %p156 = por %p154, %p155
    %p157 = scmp.ne.s32.totalorder %s145, %s146
    %p158 = scmp.eq.s32.totalorder %s19, 3
    %p159 = por %p157, %p158
    %p161 = scmp.ne.s32.totalorder %s146, %s160
    %p162 = scmp.eq.s32.totalorder %s19, 0
    %p163 = por %p161, %p162
    %s165 = sadd.s32 %s164, 1
    %p168 = scmp.eq.s32.totalorder %s13, 3
    %p169 = scmp.ne.s32.totalorder %s164, %s166
    %p170 = scmp.eq.s32.totalorder %s13, 0
    %p171 = por %p169, %p170
    %p172 = scmp.ne.s32.totalorder %s164, %s166
    %p173 = scmp.eq.s32.totalorder %s18, 3
    %p174 = por %p172, %p173
    %p175 = scmp.ne.s32.totalorder %s166, %s167
    %p176 = scmp.eq.s32.totalorder %s18, 0
    %p177 = por %p175, %p176
    %p178 = scmp.ne.s32.totalorder %s166, %s167
    %p179 = scmp.eq.s32.totalorder %s19, 3
    %p180 = por %p178, %p179
    %p182 = scmp.ne.s32.totalorder %s167, %s181
    %p183 = scmp.eq.s32.totalorder %s19, 0
    %p184 = por %p182, %p183
    %s185 = ssub.s32 %s20, %s32
    %s186 = ssub.s32 %s21, %s28
    %s187 = sor.u32 %s185, %s186
    %p188 = scmp.eq.s32.totalorder %s187, 0
    %s190 = sadd.s32 %s189, 1
    %s191 = scalar_select %p188, %s189, %s190
    %p194 = pneg %p188
    %p195 = scmp.eq.s32.totalorder %s13, 3
    %p196 = por %p194, %p195
    %p197 = scmp.ne.s32.totalorder %s189, %s192
    %p198 = scmp.eq.s32.totalorder %s13, 0
    %p199 = por %p197, %p198
    %p200 = scmp.ne.s32.totalorder %s189, %s192
    %p201 = scmp.eq.s32.totalorder %s18, 3
    %p202 = por %p200, %p201
    %p203 = scmp.ne.s32.totalorder %s192, %s193
    %p204 = scmp.eq.s32.totalorder %s18, 0
    %p205 = por %p203, %p204
    %p206 = scmp.ne.s32.totalorder %s192, %s193
    %p207 = scmp.eq.s32.totalorder %s19, 3
    %p208 = por %p206, %p207
    %p210 = scmp.ne.s32.totalorder %s193, %s209
    %p211 = scmp.eq.s32.totalorder %s19, 0
    %p212 = por %p210, %p211
    %p213 = scmp.le.s32.totalorder 1, %s13
    %p214 = scmp.lt.s32.totalorder %s13, 5
    %p215 = pnand %p213, %p214
    %p216 = pneg %p215
    // Predicated region
    $region9: #{tpu_custom_call.1} parent=5 // pred_check
      _
    $region10: #{tpu_custom_call.1} parent=5 // pred_check_branch
      %218 = sbr.rel (%p215) target = $region12
    $region11: #{tpu_custom_call.1} parent=5 // pred_region
      %s219 = ssub.s32 %s13, 1
      // Predicated region
      $region13: #{tpu_custom_call.1} parent=11 // pred_check
        %p220 = pneg %p72
      $region14: #{tpu_custom_call.1} parent=11 // pred_check_branch
        %222 = sbr.rel (%p220) target = $region16
      $region15: #{tpu_custom_call.1} parent=11 // pred_region
        _
      $region16: #{tpu_custom_call.1} parent=11 // pred_fallthru
        _
      // Predicated region
      $region17: #{tpu_custom_call.1} parent=11 // pred_check
        %p223 = pneg %p93
      $region18: #{tpu_custom_call.1} parent=11 // pred_check_branch
        %225 = sbr.rel (%p223) target = $region20
      $region19: #{tpu_custom_call.1} parent=11 // pred_region
        _
      $region20: #{tpu_custom_call.1} parent=11 // pred_fallthru
        _
      // Predicated region
      $region21: #{tpu_custom_call.1} parent=11 // pred_check
        %p226 = pneg %p114
      $region22: #{tpu_custom_call.1} parent=11 // pred_check_branch
        %228 = sbr.rel (%p226) target = $region24
      $region23: #{tpu_custom_call.1} parent=11 // pred_region
        _
      $region24: #{tpu_custom_call.1} parent=11 // pred_fallthru
        _
      // Predicated region
      $region25: #{tpu_custom_call.1} parent=11 // pred_check
        %p229 = pneg %p135
      $region26: #{tpu_custom_call.1} parent=11 // pred_check_branch
        %231 = sbr.rel (%p229) target = $region28
      $region27: #{tpu_custom_call.1} parent=11 // pred_region
        _
      $region28: #{tpu_custom_call.1} parent=11 // pred_fallthru
        _
      // Predicated region
      $region29: #{tpu_custom_call.1} parent=11 // pred_check
        %p232 = pneg %p156
      $region30: #{tpu_custom_call.1} parent=11 // pred_check_branch
        %234 = sbr.rel (%p232) target = $region32
      $region31: #{tpu_custom_call.1} parent=11 // pred_region
        _
      $region32: #{tpu_custom_call.1} parent=11 // pred_fallthru
        _
      // Predicated region
      $region33: #{tpu_custom_call.1} parent=11 // pred_check
        %p235 = pneg %p177
      $region34: #{tpu_custom_call.1} parent=11 // pred_check_branch
        %237 = sbr.rel (%p235) target = $region36
      $region35: #{tpu_custom_call.1} parent=11 // pred_region
        _
      $region36: #{tpu_custom_call.1} parent=11 // pred_fallthru
        _
    $region12: #{tpu_custom_call.1} parent=5 // pred_fallthru
      _
    %p238 = scmp.lt.s32.totalorder %s13, 4
    // Predicated region
    $region37: #{tpu_custom_call.1} parent=5 // pred_check
      %p239 = pneg %p238
    $region38: #{tpu_custom_call.1} parent=5 // pred_check_branch
      %241 = sbr.rel (%p239) target = $region40
    $region39: #{tpu_custom_call.1} parent=5 // pred_region
      // Predicated region
      $region41: #{tpu_custom_call.1} parent=39 // pred_check
        %p242 = pneg %p45
      $region42: #{tpu_custom_call.1} parent=39 // pred_check_branch
        %244 = sbr.rel (%p242) target = $region44
      $region43: #{tpu_custom_call.1} parent=39 // pred_region
        %p245 = scmp.lt.s32.totalorder %s20, 1
        %s246 = scalar_select %p245, %s20, 1
        %s247 = smul.addr %s246, 32
        %s248 = smul.addr %s247, 4
        %s249 = scalar_lea.vmem %s0, %s248
      $region44: #{tpu_custom_call.1} parent=39 // pred_fallthru
        _
    $region40: #{tpu_custom_call.1} parent=5 // pred_fallthru
      _
    %p250 = scmp.le.s32.totalorder 1, %s13
    %p251 = scmp.lt.s32.totalorder %s13, 5
    %p252 = pnand %p250, %p251
    %p253 = pneg %p252
    // Predicated region
    $region45: #{tpu_custom_call.1} parent=5 // pred_check
      _
    $region46: #{tpu_custom_call.1} parent=5 // pred_check_branch
      %255 = sbr.rel (%p252) target = $region48
    $region47: #{tpu_custom_call.1} parent=5 // pred_region
      %s256 = ssub.s32 %s13, 1
      %p257 = scmp.lt.s32.totalorder %s22, 1
      %s258 = scalar_select %p257, %s22, 1
      %s259 = smul.addr %s258, 32
      %s260 = smul.addr %s259, 4
      %s261 = scalar_lea.vmem %s0, %s260
      %p262 = pneg %p51
      %p263 = pneg %p48
      %p264 = pneg %p72
      %p265 = pneg %p69
      %p266 = pneg %p93
      %p267 = pneg %p90
      %p268 = pneg %p114
      %p269 = pneg %p111
      %p270 = pneg %p135
      %p271 = pneg %p132
      %p272 = pneg %p156
      %p273 = pneg %p153
      %p274 = pneg %p177
      %p275 = pneg %p174
      %p276 = pneg %p205
      %p277 = pneg %p202
      %s278 = smul.u32 8, %s23
      %p279 = scmp.lt.s32.totalorder %s22, 1
      %s280 = scalar_select %p279, %s22, 1
      %p281 = scmp.lt.s32.totalorder %s278, 15
      %s282 = scalar_select %p281, %s278, 15
      %s283 = smul.addr %s282, 2
      %s284 = smul.addr %s280, 32
      %s285 = sadd.s32 %s283, %s284
      %s286 = smul.addr %s285, 4
      %s287 = scalar_lea.vmem %s7, %s286
      %p288 = scmp.lt.s32.totalorder %s22, 1
      %s289 = scalar_select %p288, %s22, 1
      %s290 = smul.addr %s289, 32
      %s291 = smul.addr %s290, 4
      %s292 = scalar_lea.vmem %s0, %s291
      %s293 = smul.u32 8, %s23
      %p294 = scmp.lt.s32.totalorder %s22, 1
      %s295 = scalar_select %p294, %s22, 1
      %p296 = scmp.lt.s32.totalorder %s293, 15
      %s297 = scalar_select %p296, %s293, 15
      %s298 = smul.addr %s297, 2
      %s299 = smul.addr %s295, 32
      %s300 = sadd.s32 %s298, %s299
      %s301 = smul.addr %s300, 4
      %s302 = scalar_lea.vmem %s7, %s301
      %s303 = smul.u32 8, %s23
      %s305 = smul.u32 %s23, 8
      %v306 = vld [vmem:[%s1] sm:$0x1]
      %v307 = vpack.c.bf16 %v306, %v306
      %v308 = vld [vmem:[%s2] sm:$0x1]
      %v309 = vpack.c.bf16 %v308, %v308
      %v310 = vld [vmem:[%s4] sm:$0x1]
      %v311 = vpack.c.bf16 %v310, %v310
      %v312 = vld [vmem:[%s5] sm:$0x1]
      %v313 = vpack.c.bf16 %v312, %v312
      %vm314 = vcmask 24576
      %vm315 = vsmask.f32 256
      %vm316 = vmand %vm314, %vm315
      %v317 = vld [vmem:[#allocation2] sm:$0x1]
      %v318 = vsel %vm316, 0, %v317
      %319 = vst [vmem:[#allocation2] sm:$0x1] %v318
      %v320 = vld [vmem:[#allocation2 + $0xc] sm:$0x1]
      %v321 = vsel %vm316, 0, %v320
      %322 = vst [vmem:[#allocation2 + $0xc] sm:$0x1] %v321
      %v323 = vld [vmem:[#allocation2 + $0x18] sm:$0x1]
      %v324 = vsel %vm316, 0, %v323
      %325 = vst [vmem:[#allocation2 + $0x18] sm:$0x1] %v324
      %v326 = vld [vmem:[#allocation2 + $0x24] sm:$0x1]
      %v327 = vsel %vm316, 0, %v326
      %328 = vst [vmem:[#allocation2 + $0x24] sm:$0x1] %v327
      %v329 = vld [vmem:[#allocation2 + $0x30] sm:$0x1]
      %v330 = vsel %vm316, 0, %v329
      %331 = vst [vmem:[#allocation2 + $0x30] sm:$0x1] %v330
      %v332 = vld [vmem:[#allocation2 + $0x3c] sm:$0x1]
      %v333 = vsel %vm316, 0, %v332
      %334 = vst [vmem:[#allocation2 + $0x3c] sm:$0x1] %v333
      %v335 = vld [vmem:[#allocation2 + $0x48] sm:$0x1]
      %v336 = vsel %vm316, 0, %v335
      %337 = vst [vmem:[#allocation2 + $0x48] sm:$0x1] %v336
      %v338 = vld [vmem:[#allocation2 + $0x54] sm:$0x1]
      %v339 = vsel %vm316, 0, %v338
      %340 = vst [vmem:[#allocation2 + $0x54] sm:$0x1] %v339
      %v341 = vld [vmem:[#allocation2 + $0x60] sm:$0x1]
      %v342 = vsel %vm316, 0, %v341
      %343 = vst [vmem:[#allocation2 + $0x60] sm:$0x1] %v342
      %v344 = vld [vmem:[#allocation2 + $0x6c] sm:$0x1]
      %v345 = vsel %vm316, 0, %v344
      %346 = vst [vmem:[#allocation2 + $0x6c] sm:$0x1] %v345
      %v347 = vld [vmem:[#allocation2 + $0x78] sm:$0x1]
      %v348 = vsel %vm316, 0, %v347
      %349 = vst [vmem:[#allocation2 + $0x78] sm:$0x1] %v348
      %v350 = vld [vmem:[#allocation2 + $0x84] sm:$0x1]
      %v351 = vsel %vm316, 0, %v350
      %352 = vst [vmem:[#allocation2 + $0x84] sm:$0x1] %v351
      %vm353 = vsmask.f32 7938
      %vm354 = vmand %vm314, %vm353
      %v355 = vld [vmem:[#allocation2 + $0x8] sm:$0x1]
      %v356 = vsel %vm354, 0, %v355
      %357 = vst [vmem:[#allocation2 + $0x8] sm:$0x1] %v356
      %v358 = vld [vmem:[#allocation2 + $0x14] sm:$0x1]
      %v359 = vsel %vm354, 0, %v358
      %360 = vst [vmem:[#allocation2 + $0x14] sm:$0x1] %v359
      %v361 = vld [vmem:[#allocation2 + $0x20] sm:$0x1]
      %v362 = vsel %vm354, 0, %v361
      %363 = vst [vmem:[#allocation2 + $0x20] sm:$0x1] %v362
      %v364 = vld [vmem:[#allocation2 + $0x2c] sm:$0x1]
      %v365 = vsel %vm354, 0, %v364
      %366 = vst [vmem:[#allocation2 + $0x2c] sm:$0x1] %v365
      %v367 = vld [vmem:[#allocation2 + $0x38] sm:$0x1]
      %v368 = vsel %vm354, 0, %v367
      %369 = vst [vmem:[#allocation2 + $0x38] sm:$0x1] %v368
      %v370 = vld [vmem:[#allocation2 + $0x44] sm:$0x1]
      %v371 = vsel %vm354, 0, %v370
      %372 = vst [vmem:[#allocation2 + $0x44] sm:$0x1] %v371
      %v373 = vld [vmem:[#allocation2 + $0x50] sm:$0x1]
      %v374 = vsel %vm354, 0, %v373
      %375 = vst [vmem:[#allocation2 + $0x50] sm:$0x1] %v374
      %v376 = vld [vmem:[#allocation2 + $0x5c] sm:$0x1]
      %v377 = vsel %vm354, 0, %v376
      %378 = vst [vmem:[#allocation2 + $0x5c] sm:$0x1] %v377
      %v379 = vld [vmem:[#allocation2 + $0x68] sm:$0x1]
      %v380 = vsel %vm354, 0, %v379
      %381 = vst [vmem:[#allocation2 + $0x68] sm:$0x1] %v380
      %v382 = vld [vmem:[#allocation2 + $0x74] sm:$0x1]
      %v383 = vsel %vm354, 0, %v382
      %384 = vst [vmem:[#allocation2 + $0x74] sm:$0x1] %v383
      %v385 = vld [vmem:[#allocation2 + $0x80] sm:$0x1]
      %v386 = vsel %vm354, 0, %v385
      %387 = vst [vmem:[#allocation2 + $0x80] sm:$0x1] %v386
      %v388 = vld [vmem:[#allocation2 + $0x8c] sm:$0x1]
      %v389 = vsel %vm354, 0, %v388
      %390 = vst [vmem:[#allocation2 + $0x8c] sm:$0x1] %v389
      %s391 = smul.u32 %s305, 2
      %s392 = smul.addr %s391, 4
      %s393 = scalar_lea.vmem %s292, %s392
      %v394 = vld [vmem:[%s393] sm:$0xf]
      %v395 = vld [vmem:[%s393 + $0x4] sm:$0xf]
      %v396 = vld [vmem:[%s393 + $0x8] sm:$0xf]
      %v397 = vld [vmem:[%s393 + $0xc] sm:$0xf]
      %v398 = vld [vmem:[%s393 + $0x10] sm:$0xf]
      %v399 = vld [vmem:[%s393 + $0x14] sm:$0xf]
      %v400 = vld [vmem:[%s393 + $0x18] sm:$0xf]
      %v401 = vld [vmem:[%s393 + $0x1c] sm:$0xf]
      %v402 = vld [vmem:[%s393 + $0x20] sm:$0xf]
      %v403 = vld [vmem:[%s393 + $0x24] sm:$0xf]
      %v404 = vld [vmem:[%s393 + $0x28] sm:$0xf]
      %v405 = vld [vmem:[%s393 + $0x2c] sm:$0xf]
      %v406 = vld [vmem:[%s393 + $0x30] sm:$0xf]
      %v407 = vld [vmem:[%s393 + $0x34] sm:$0xf]
      %v408 = vld [vmem:[%s393 + $0x38] sm:$0xf]
      %v409 = vld [vmem:[%s393 + $0x3c] sm:$0xf]
      %v411 = vpack.i.b16 %v307, %v307
      %v413 = vlaneseq
      %v414 = vshrl.u32 %v413, 7
      %v415 = vsub.s32 0, %v414
      %v416 = vrot.slane %v411, %v415
      %v418 = vunpack.c.l.b16 %v416
      %v419 = vpack.c.b16 %v418, %v418
      %v421 = vmul.bf16 %v394, %v419
      %v422 = vmul.bf16 %v395, %v419
      %v423 = vmul.bf16 %v396, %v419
      %v424 = vmul.bf16 %v397, %v419
      %v425 = vmul.bf16 %v398, %v419
      %v426 = vmul.bf16 %v399, %v419
      %v427 = vmul.bf16 %v400, %v419
      %v428 = vmul.bf16 %v401, %v419
      %v429 = vmul.bf16 %v402, %v419
      %v430 = vmul.bf16 %v403, %v419
      %v431 = vmul.bf16 %v404, %v419
      %v432 = vmul.bf16 %v405, %v419
      %v433 = vmul.bf16 %v406, %v419
      %v434 = vmul.bf16 %v407, %v419
      %v435 = vmul.bf16 %v408, %v419
      %v436 = vmul.bf16 %v409, %v419
      %v438 = vpack.i.b16 %v309, %v309
      %v440 = vlaneseq
      %v441 = vshrl.u32 %v440, 7
      %v442 = vsub.s32 0, %v441
      %v443 = vrot.slane %v438, %v442
      %v445 = vunpack.c.l.b16 %v443
      %v446 = vpack.c.b16 %v445, %v445
      %v448 = vadd.bf16 %v421, %v446
      %v449 = vadd.bf16 %v422, %v446
      %v450 = vadd.bf16 %v423, %v446
      %v451 = vadd.bf16 %v424, %v446
      %v452 = vadd.bf16 %v425, %v446
      %v453 = vadd.bf16 %v426, %v446
      %v454 = vadd.bf16 %v427, %v446
      %v455 = vadd.bf16 %v428, %v446
      %v456 = vadd.bf16 %v429, %v446
      %v457 = vadd.bf16 %v430, %v446
      %v458 = vadd.bf16 %v431, %v446
      %v459 = vadd.bf16 %v432, %v446
      %v460 = vadd.bf16 %v433, %v446
      %v461 = vadd.bf16 %v434, %v446
      %v462 = vadd.bf16 %v435, %v446
      %v463 = vadd.bf16 %v436, %v446
      %v464 = vmax.bf16 %v448, 0
      %v465 = vmax.bf16 %v449, 0
      %v466 = vmax.bf16 %v450, 0
      %v467 = vmax.bf16 %v451, 0
      %v468 = vmax.bf16 %v452, 0
      %v469 = vmax.bf16 %v453, 0
      %v470 = vmax.bf16 %v454, 0
      %v471 = vmax.bf16 %v455, 0
      %v472 = vmax.bf16 %v456, 0
      %v473 = vmax.bf16 %v457, 0
      %v474 = vmax.bf16 %v458, 0
      %v475 = vmax.bf16 %v459, 0
      %v476 = vmax.bf16 %v460, 0
      %v477 = vmax.bf16 %v461, 0
      %v478 = vmax.bf16 %v462, 0
      %v479 = vmax.bf16 %v463, 0
      %vm480 = vsmask.f32 4368
      %vm481 = vmor %vm315, %vm480
      %v483 = vshrl.u32 %v464, 16
      %v485 = vrot.slane %v483, 7
      %v486 = vshll.u32 %v464, 16
      %v488 = vor.u32 %v485, %v486
      %v489 = vrot.slane %v485, 4
      %v491 = vshrl.u32 %v465, 16
      %v493 = vrot.slane %v491, 7
      %v494 = vshll.u32 %v465, 16
      %v496 = vor.u32 %v493, %v494
      %v497 = vsel %vm481, %v489, %v496
      %v498 = vrot.slane %v493, 4
      %v500 = vshrl.u32 %v466, 16
      %v502 = vrot.slane %v500, 7
      %v503 = vshll.u32 %v466, 16
      %v505 = vor.u32 %v502, %v503
      %v506 = vrot.slane %v502, 4
      %v508 = vshrl.u32 %v467, 16
      %v510 = vrot.slane %v508, 7
      %v511 = vshll.u32 %v467, 16
      %v513 = vor.u32 %v510, %v511
      %v514 = vsel %vm481, %v506, %v513
      %v515 = vrot.slane %v510, 4
      %v517 = vshrl.u32 %v468, 16
      %v519 = vrot.slane %v517, 7
      %v520 = vshll.u32 %v468, 16
      %v522 = vor.u32 %v519, %v520
      %v523 = vrot.slane %v519, 4
      %v525 = vshrl.u32 %v469, 16
      %v527 = vrot.slane %v525, 7
      %v528 = vshll.u32 %v469, 16
      %v530 = vor.u32 %v527, %v528
      %v531 = vsel %vm481, %v523, %v530
      %v532 = vrot.slane %v527, 4
      %v534 = vshrl.u32 %v470, 16
      %v536 = vrot.slane %v534, 7
      %v537 = vshll.u32 %v470, 16
      %v539 = vor.u32 %v536, %v537
      %v540 = vrot.slane %v536, 4
      %v542 = vshrl.u32 %v471, 16
      %v544 = vrot.slane %v542, 7
      %v545 = vshll.u32 %v471, 16
      %v547 = vor.u32 %v544, %v545
      %v548 = vsel %vm481, %v540, %v547
      %v549 = vrot.slane %v544, 4
      %v551 = vshrl.u32 %v472, 16
      %v553 = vrot.slane %v551, 7
      %v554 = vshll.u32 %v472, 16
      %v556 = vor.u32 %v553, %v554
      %v557 = vrot.slane %v553, 4
      %v559 = vshrl.u32 %v473, 16
      %v561 = vrot.slane %v559, 7
      %v562 = vshll.u32 %v473, 16
      %v564 = vor.u32 %v561, %v562
      %v565 = vsel %vm481, %v557, %v564
      %v566 = vrot.slane %v561, 4
      %v568 = vshrl.u32 %v474, 16
      %v570 = vrot.slane %v568, 7
      %v571 = vshll.u32 %v474, 16
      %v573 = vor.u32 %v570, %v571
      %v574 = vrot.slane %v570, 4
      %v576 = vshrl.u32 %v475, 16
      %v578 = vrot.slane %v576, 7
      %v579 = vshll.u32 %v475, 16
      %v581 = vor.u32 %v578, %v579
      %v582 = vsel %vm481, %v574, %v581
      %v583 = vrot.slane %v578, 4
      %v585 = vshrl.u32 %v476, 16
      %v587 = vrot.slane %v585, 7
      %v588 = vshll.u32 %v476, 16
      %v590 = vor.u32 %v587, %v588
      %v591 = vrot.slane %v587, 4
      %v593 = vshrl.u32 %v477, 16
      %v595 = vrot.slane %v593, 7
      %v596 = vshll.u32 %v477, 16
      %v598 = vor.u32 %v595, %v596
      %v599 = vsel %vm481, %v591, %v598
      %v600 = vrot.slane %v595, 4
      %v602 = vshrl.u32 %v478, 16
      %v604 = vrot.slane %v602, 7
      %v605 = vshll.u32 %v478, 16
      %v607 = vor.u32 %v604, %v605
      %v608 = vrot.slane %v604, 4
      %v610 = vshrl.u32 %v479, 16
      %v612 = vrot.slane %v610, 7
      %v613 = vshll.u32 %v479, 16
      %v615 = vor.u32 %v612, %v613
      %v616 = vsel %vm481, %v608, %v615
      %v617 = vrot.slane %v612, 4
      %s642 = scalar_lea.vmem [#allocation2], 24
      %vm643 = vcmask 27648
      %vm644 = vmand %vm643, %vm353
      %v645 = vld [vmem:[%s642] sm:$0xf]
      %v646 = vsel %vm644, %v488, %v645
      %647 = vst [vmem:[%s642] sm:$0xf] %v646
      %vm648 = vcmask 27648
      %649 = vst.msk [vmem:[%s642 + $0x4] sm:$0xf] %vm648, %v497
      %v650 = vld [vmem:[%s642 + $0x8] sm:$0x1]
      %v651 = vsel %vm316, %v498, %v650
      %652 = vst [vmem:[%s642 + $0x8] sm:$0x1] %v651
      %v653 = vld [vmem:[%s642 + $0xc] sm:$0xf]
      %v654 = vsel %vm644, %v505, %v653
      %655 = vst [vmem:[%s642 + $0xc] sm:$0xf] %v654
      %656 = vst.msk [vmem:[%s642 + $0x10] sm:$0xf] %vm648, %v514
      %v657 = vld [vmem:[%s642 + $0x14] sm:$0x1]
      %v658 = vsel %vm316, %v515, %v657
      %659 = vst [vmem:[%s642 + $0x14] sm:$0x1] %v658
      %v660 = vld [vmem:[%s642 + $0x18] sm:$0xf]
      %v661 = vsel %vm644, %v522, %v660
      %662 = vst [vmem:[%s642 + $0x18] sm:$0xf] %v661
      %663 = vst.msk [vmem:[%s642 + $0x1c] sm:$0xf] %vm648, %v531
      %v664 = vld [vmem:[%s642 + $0x20] sm:$0x1]
      %v665 = vsel %vm316, %v532, %v664
      %666 = vst [vmem:[%s642 + $0x20] sm:$0x1] %v665
      %v667 = vld [vmem:[%s642 + $0x24] sm:$0xf]
      %v668 = vsel %vm644, %v539, %v667
      %669 = vst [vmem:[%s642 + $0x24] sm:$0xf] %v668
      %670 = vst.msk [vmem:[%s642 + $0x28] sm:$0xf] %vm648, %v548
      %v671 = vld [vmem:[%s642 + $0x2c] sm:$0x1]
      %v672 = vsel %vm316, %v549, %v671
      %673 = vst [vmem:[%s642 + $0x2c] sm:$0x1] %v672
      %v674 = vld [vmem:[%s642 + $0x30] sm:$0xf]
      %v675 = vsel %vm644, %v556, %v674
      %676 = vst [vmem:[%s642 + $0x30] sm:$0xf] %v675
      %677 = vst.msk [vmem:[%s642 + $0x34] sm:$0xf] %vm648, %v565
      %v678 = vld [vmem:[%s642 + $0x38] sm:$0x1]
      %v679 = vsel %vm316, %v566, %v678
      %680 = vst [vmem:[%s642 + $0x38] sm:$0x1] %v679
      %v681 = vld [vmem:[%s642 + $0x3c] sm:$0xf]
      %v682 = vsel %vm644, %v573, %v681
      %683 = vst [vmem:[%s642 + $0x3c] sm:$0xf] %v682
      %684 = vst.msk [vmem:[%s642 + $0x40] sm:$0xf] %vm648, %v582
      %v685 = vld [vmem:[%s642 + $0x44] sm:$0x1]
      %v686 = vsel %vm316, %v583, %v685
      %687 = vst [vmem:[%s642 + $0x44] sm:$0x1] %v686
      %v688 = vld [vmem:[%s642 + $0x48] sm:$0xf]
      %v689 = vsel %vm644, %v590, %v688
      %690 = vst [vmem:[%s642 + $0x48] sm:$0xf] %v689
      %691 = vst.msk [vmem:[%s642 + $0x4c] sm:$0xf] %vm648, %v599
      %v692 = vld [vmem:[%s642 + $0x50] sm:$0x1]
      %v693 = vsel %vm316, %v600, %v692
      %694 = vst [vmem:[%s642 + $0x50] sm:$0x1] %v693
      %v695 = vld [vmem:[%s642 + $0x54] sm:$0xf]
      %v696 = vsel %vm644, %v607, %v695
      %697 = vst [vmem:[%s642 + $0x54] sm:$0xf] %v696
      %698 = vst.msk [vmem:[%s642 + $0x58] sm:$0xf] %vm648, %v616
      %v699 = vld [vmem:[%s642 + $0x5c] sm:$0x1]
      %v700 = vsel %vm316, %v617, %v699
      %701 = vst [vmem:[%s642 + $0x5c] sm:$0x1] %v700
      %p702 = scmp.gt.s32.totalorder %s23, 0
      // Predicated region
      $region49: #{tpu_custom_call.1} parent=47 // pred_check
        %p703 = pneg %p702
      $region50: #{tpu_custom_call.1} parent=47 // pred_check_branch
        %705 = sbr.rel (%p703) target = $region52
      $region51: #{tpu_custom_call.1} parent=47 // pred_region
        %s706 = ssub.s32 %s305, 2
        %s707 = smul.u32 %s706, 2
        %s708 = smul.addr %s707, 4
        %s709 = scalar_lea.vmem %s292, %s708
        %v710 = vld [vmem:[%s709] sm:$0xf]
        %v711 = vld [vmem:[%s709 + $0x4] sm:$0xf]
        %v712 = vld [vmem:[%s709 + $0x8] sm:$0xf]
        %v713 = vld [vmem:[%s709 + $0xc] sm:$0xf]
        %v714 = vmul.bf16 %v710, %v419
        %v715 = vmul.bf16 %v711, %v419
        %v716 = vmul.bf16 %v712, %v419
        %v717 = vmul.bf16 %v713, %v419
        %v718 = vadd.bf16 %v714, %v446
        %v719 = vadd.bf16 %v715, %v446
        %v720 = vadd.bf16 %v716, %v446
        %v721 = vadd.bf16 %v717, %v446
        %v722 = vmax.bf16 %v718, 0
        %v723 = vmax.bf16 %v719, 0
        %v724 = vmax.bf16 %v720, 0
        %v725 = vmax.bf16 %v721, 0
        %v727 = vshrl.u32 %v722, 16
        %v729 = vrot.slane %v727, 7
        %v730 = vshll.u32 %v722, 16
        %v732 = vor.u32 %v729, %v730
        %v733 = vrot.slane %v729, 4
        %v735 = vshrl.u32 %v723, 16
        %v737 = vrot.slane %v735, 7
        %v738 = vshll.u32 %v723, 16
        %v740 = vor.u32 %v737, %v738
        %v741 = vsel %vm481, %v733, %v740
        %v742 = vrot.slane %v737, 4
        %v744 = vshrl.u32 %v724, 16
        %v746 = vrot.slane %v744, 7
        %v747 = vshll.u32 %v724, 16
        %v749 = vor.u32 %v746, %v747
        %v750 = vrot.slane %v746, 4
        %v752 = vshrl.u32 %v725, 16
        %v754 = vrot.slane %v752, 7
        %v755 = vshll.u32 %v725, 16
        %v757 = vor.u32 %v754, %v755
        %v758 = vsel %vm481, %v750, %v757
        %v759 = vrot.slane %v754, 4
        %v766 = vld [vmem:[#allocation2] sm:$0xf]
        %v767 = vsel %vm644, %v732, %v766
        %768 = vst [vmem:[#allocation2] sm:$0xf] %v767
        %769 = vst.msk [vmem:[#allocation2 + $0x4] sm:$0xf] %vm648, %v741
        %v770 = vld [vmem:[#allocation2 + $0x8] sm:$0x1]
        %v771 = vsel %vm316, %v742, %v770
        %772 = vst [vmem:[#allocation2 + $0x8] sm:$0x1] %v771
        %v773 = vld [vmem:[#allocation2 + $0xc] sm:$0xf]
        %v774 = vsel %vm644, %v749, %v773
        %775 = vst [vmem:[#allocation2 + $0xc] sm:$0xf] %v774
        %776 = vst.msk [vmem:[#allocation2 + $0x10] sm:$0xf] %vm648, %v758
        %v777 = vld [vmem:[#allocation2 + $0x14] sm:$0x1]
        %v778 = vsel %vm316, %v759, %v777
        %779 = vst [vmem:[#allocation2 + $0x14] sm:$0x1] %v778
      $region52: #{tpu_custom_call.1} parent=47 // pred_fallthru
        _
      %p780 = scmp.eq.s32.totalorder %s23, 0
      // Predicated region
      $region53: #{tpu_custom_call.1} parent=47 // pred_check
        %p781 = pneg %p780
      $region54: #{tpu_custom_call.1} parent=47 // pred_check_branch
        %783 = sbr.rel (%p781) target = $region56
      $region55: #{tpu_custom_call.1} parent=47 // pred_region
        %v784 = vld [vmem:[#allocation2] sm:$0xf]
        %v785 = vsel %vm644, 0, %v784
        %786 = vst [vmem:[#allocation2] sm:$0xf] %v785
        %787 = vst.msk [vmem:[#allocation2 + $0x4] sm:$0xf] %vm648, 0
        %v788 = vld [vmem:[#allocation2 + $0x8] sm:$0x1]
        %v789 = vsel %vm316, 0, %v788
        %790 = vst [vmem:[#allocation2 + $0x8] sm:$0x1] %v789
        %v791 = vld [vmem:[#allocation2 + $0xc] sm:$0xf]
        %v792 = vsel %vm644, 0, %v791
        %793 = vst [vmem:[#allocation2 + $0xc] sm:$0xf] %v792
        %794 = vst.msk [vmem:[#allocation2 + $0x10] sm:$0xf] %vm648, 0
        %v795 = vld [vmem:[#allocation2 + $0x14] sm:$0x1]
        %v796 = vsel %vm316, 0, %v795
        %797 = vst [vmem:[#allocation2 + $0x14] sm:$0x1] %v796
      $region56: #{tpu_custom_call.1} parent=47 // pred_fallthru
        _
      %p798 = scmp.lt.s32.totalorder %s23, 1
      // Predicated region
      $region57: #{tpu_custom_call.1} parent=47 // pred_check
        %p799 = pneg %p798
      $region58: #{tpu_custom_call.1} parent=47 // pred_check_branch
        %801 = sbr.rel (%p799) target = $region60
      $region59: #{tpu_custom_call.1} parent=47 // pred_region
        %s802 = sadd.s32 %s305, 8
        %s803 = smul.u32 %s802, 2
        %s804 = smul.addr %s803, 4
        %s805 = scalar_lea.vmem %s292, %s804
        %v806 = vld [vmem:[%s805] sm:$0xf]
        %v807 = vld [vmem:[%s805 + $0x4] sm:$0xf]
        %v808 = vld [vmem:[%s805 + $0x8] sm:$0xf]
        %v809 = vld [vmem:[%s805 + $0xc] sm:$0xf]
        %v810 = vmul.bf16 %v806, %v419
        %v811 = vmul.bf16 %v807, %v419
        %v812 = vmul.bf16 %v808, %v419
        %v813 = vmul.bf16 %v809, %v419
        %v814 = vadd.bf16 %v810, %v446
        %v815 = vadd.bf16 %v811, %v446
        %v816 = vadd.bf16 %v812, %v446
        %v817 = vadd.bf16 %v813, %v446
        %v818 = vmax.bf16 %v814, 0
        %v819 = vmax.bf16 %v815, 0
        %v820 = vmax.bf16 %v816, 0
        %v821 = vmax.bf16 %v817, 0
        %v823 = vshrl.u32 %v818, 16
        %v825 = vrot.slane %v823, 7
        %v826 = vshll.u32 %v818, 16
        %v828 = vor.u32 %v825, %v826
        %v829 = vrot.slane %v825, 4
        %v831 = vshrl.u32 %v819, 16
        %v833 = vrot.slane %v831, 7
        %v834 = vshll.u32 %v819, 16
        %v836 = vor.u32 %v833, %v834
        %v837 = vsel %vm481, %v829, %v836
        %v838 = vrot.slane %v833, 4
        %v840 = vshrl.u32 %v820, 16
        %v842 = vrot.slane %v840, 7
        %v843 = vshll.u32 %v820, 16
        %v845 = vor.u32 %v842, %v843
        %v846 = vrot.slane %v842, 4
        %v848 = vshrl.u32 %v821, 16
        %v850 = vrot.slane %v848, 7
        %v851 = vshll.u32 %v821, 16
        %v853 = vor.u32 %v850, %v851
        %v854 = vsel %vm481, %v846, %v853
        %v855 = vrot.slane %v850, 4
        %s862 = scalar_lea.vmem [#allocation2], 120
        %v863 = vld [vmem:[%s862] sm:$0xf]
        %v864 = vsel %vm644, %v828, %v863
        %865 = vst [vmem:[%s862] sm:$0xf] %v864
        %866 = vst.msk [vmem:[%s862 + $0x4] sm:$0xf] %vm648, %v837
        %v867 = vld [vmem:[%s862 + $0x8] sm:$0x1]
        %v868 = vsel %vm316, %v838, %v867
        %869 = vst [vmem:[%s862 + $0x8] sm:$0x1] %v868
        %v870 = vld [vmem:[%s862 + $0xc] sm:$0xf]
        %v871 = vsel %vm644, %v845, %v870
        %872 = vst [vmem:[%s862 + $0xc] sm:$0xf] %v871
        %873 = vst.msk [vmem:[%s862 + $0x10] sm:$0xf] %vm648, %v854
        %v874 = vld [vmem:[%s862 + $0x14] sm:$0x1]
        %v875 = vsel %vm316, %v855, %v874
        %876 = vst [vmem:[%s862 + $0x14] sm:$0x1] %v875
      $region60: #{tpu_custom_call.1} parent=47 // pred_fallthru
        _
      %p877 = scmp.eq.s32.totalorder %s23, 1
      // Predicated region
      $region61: #{tpu_custom_call.1} parent=47 // pred_check
        %p878 = pneg %p877
      $region62: #{tpu_custom_call.1} parent=47 // pred_check_branch
        %880 = sbr.rel (%p878) target = $region64
      $region63: #{tpu_custom_call.1} parent=47 // pred_region
        %s881 = scalar_lea.vmem [#allocation2], 120
        %v882 = vld [vmem:[%s881] sm:$0xf]
        %v883 = vsel %vm644, 0, %v882
        %884 = vst [vmem:[%s881] sm:$0xf] %v883
        %885 = vst.msk [vmem:[%s881 + $0x4] sm:$0xf] %vm648, 0
        %v886 = vld [vmem:[%s881 + $0x8] sm:$0x1]
        %v887 = vsel %vm316, 0, %v886
        %888 = vst [vmem:[%s881 + $0x8] sm:$0x1] %v887
        %v889 = vld [vmem:[%s881 + $0xc] sm:$0xf]
        %v890 = vsel %vm644, 0, %v889
        %891 = vst [vmem:[%s881 + $0xc] sm:$0xf] %v890
        %892 = vst.msk [vmem:[%s881 + $0x10] sm:$0xf] %vm648, 0
        %v893 = vld [vmem:[%s881 + $0x14] sm:$0x1]
        %v894 = vsel %vm316, 0, %v893
        %895 = vst [vmem:[%s881 + $0x14] sm:$0x1] %v894
      $region64: #{tpu_custom_call.1} parent=47 // pred_fallthru
        _
      %v896 = vld [vmem:[#allocation2] sm:$0xf]
      %v897 = vld [vmem:[#allocation2 + $0x4] sm:$0xf]
      %v898 = vld [vmem:[#allocation2 + $0xc] sm:$0xf]
      %v899 = vld [vmem:[#allocation2 + $0x10] sm:$0xf]
      %v900 = vld [vmem:[#allocation2 + $0x18] sm:$0xf]
      %v901 = vld [vmem:[#allocation2 + $0x1c] sm:$0xf]
      %v902 = vld [vmem:[#allocation2 + $0x24] sm:$0xf]
      %v903 = vld [vmem:[#allocation2 + $0x28] sm:$0xf]
      %v904 = vld [vmem:[#allocation2 + $0x30] sm:$0xf]
      %v905 = vld [vmem:[#allocation2 + $0x34] sm:$0xf]
      %v906 = vld [vmem:[#allocation2 + $0x3c] sm:$0xf]
      %v907 = vld [vmem:[#allocation2 + $0x40] sm:$0xf]
      %v908 = vld [vmem:[#allocation2 + $0x48] sm:$0xf]
      %v909 = vld [vmem:[#allocation2 + $0x4c] sm:$0xf]
      %v910 = vld [vmem:[#allocation2 + $0x54] sm:$0xf]
      %v911 = vld [vmem:[#allocation2 + $0x58] sm:$0xf]
      %v912 = vld [vmem:[#allocation2 + $0x60] sm:$0xf]
      %v913 = vld [vmem:[#allocation2 + $0x64] sm:$0xf]
      %v914 = vld [vmem:[#allocation2 + $0x6c] sm:$0xf]
      %v915 = vld [vmem:[#allocation2 + $0x70] sm:$0xf]
      %v916 = vld [vmem:[#allocation2 + $0x78] sm:$0xf]
      %v917 = vld [vmem:[#allocation2 + $0x7c] sm:$0xf]
      %v918 = vld [vmem:[#allocation2 + $0x84] sm:$0xf]
      %v919 = vld [vmem:[#allocation2 + $0x88] sm:$0xf]
      %v920 = vld [vmem:[#allocation2 + $0x8] sm:$0x1]
      %v921 = vld [vmem:[#allocation2 + $0x14] sm:$0x1]
      %v922 = vld [vmem:[#allocation2 + $0x20] sm:$0x1]
      %v923 = vld [vmem:[#allocation2 + $0x2c] sm:$0x1]
      %v924 = vld [vmem:[#allocation2 + $0x38] sm:$0x1]
      %v925 = vld [vmem:[#allocation2 + $0x44] sm:$0x1]
      %v926 = vld [vmem:[#allocation2 + $0x50] sm:$0x1]
      %v927 = vld [vmem:[#allocation2 + $0x5c] sm:$0x1]
      %v928 = vld [vmem:[#allocation2 + $0x68] sm:$0x1]
      %v929 = vld [vmem:[#allocation2 + $0x74] sm:$0x1]
      %v930 = vld [vmem:[#allocation2 + $0x80] sm:$0x1]
      %v931 = vld [vmem:[#allocation2 + $0x8c] sm:$0x1]
      %v932 = vld [vmem:[#allocation2] sm:$0xe]
      %v933 = vld [vmem:[#allocation2 + $0xc] sm:$0xe]
      %v934 = vld [vmem:[#allocation2 + $0x18] sm:$0xe]
      %v935 = vld [vmem:[#allocation2 + $0x24] sm:$0xe]
      %v936 = vld [vmem:[#allocation2 + $0x30] sm:$0xe]
      %v937 = vld [vmem:[#allocation2 + $0x3c] sm:$0xe]
      %v938 = vld [vmem:[#allocation2 + $0x48] sm:$0xe]
      %v939 = vld [vmem:[#allocation2 + $0x54] sm:$0xe]
      %v940 = vld [vmem:[#allocation2 + $0x60] sm:$0xe]
      %v941 = vld [vmem:[#allocation2 + $0x6c] sm:$0xe]
      %v942 = vld [vmem:[#allocation2 + $0x78] sm:$0xe]
      %v943 = vld [vmem:[#allocation2 + $0x84] sm:$0xe]
      %v968 = vunpack.c.l.b16 %v896
      %v969 = vunpack.c.l.b16 %v897
      %v970 = vunpack.c.l.b16 %v898
      %v971 = vunpack.c.l.b16 %v899
      %v972 = vunpack.c.l.b16 %v900
      %v973 = vunpack.c.l.b16 %v901
      %v974 = vunpack.c.l.b16 %v902
      %v975 = vunpack.c.l.b16 %v903
      %v976 = vunpack.c.l.b16 %v904
      %v977 = vunpack.c.l.b16 %v905
      %v978 = vunpack.c.l.b16 %v906
      %v979 = vunpack.c.l.b16 %v907
      %v980 = vunpack.c.l.b16 %v908
      %v981 = vunpack.c.l.b16 %v909
      %v982 = vunpack.c.l.b16 %v910
      %v983 = vunpack.c.l.b16 %v911
      %v984 = vunpack.c.l.b16 %v912
      %v985 = vunpack.c.l.b16 %v913
      %v986 = vunpack.c.l.b16 %v914
      %v987 = vunpack.c.l.b16 %v915
      %v988 = vunpack.c.l.b16 %v916
      %v989 = vunpack.c.l.b16 %v917
      %v990 = vunpack.c.l.b16 %v918
      %v991 = vunpack.c.l.b16 %v919
      %v992 = vpack.c.b16 %v969, %v968
      %v993 = vpack.c.b16 %v971, %v970
      %v994 = vpack.c.b16 %v973, %v972
      %v995 = vpack.c.b16 %v975, %v974
      %v996 = vpack.c.b16 %v977, %v976
      %v997 = vpack.c.b16 %v979, %v978
      %v998 = vpack.c.b16 %v981, %v980
      %v999 = vpack.c.b16 %v983, %v982
      %v1000 = vpack.c.b16 %v985, %v984
      %v1001 = vpack.c.b16 %v987, %v986
      %v1002 = vpack.c.b16 %v989, %v988
      %v1003 = vpack.c.b16 %v991, %v990
      %v1016 = vunpack.c.l.b16 %v920
      %v1017 = vunpack.c.l.b16 %v921
      %v1018 = vunpack.c.l.b16 %v922
      %v1019 = vunpack.c.l.b16 %v923
      %v1020 = vunpack.c.l.b16 %v924
      %v1021 = vunpack.c.l.b16 %v925
      %v1022 = vunpack.c.l.b16 %v926
      %v1023 = vunpack.c.l.b16 %v927
      %v1024 = vunpack.c.l.b16 %v928
      %v1025 = vunpack.c.l.b16 %v929
      %v1026 = vunpack.c.l.b16 %v930
      %v1027 = vunpack.c.l.b16 %v931
      %v1028 = vpack.c.b16 %v1016, %v1016
      %v1029 = vpack.c.b16 %v1017, %v1017
      %v1030 = vpack.c.b16 %v1018, %v1018
      %v1031 = vpack.c.b16 %v1019, %v1019
      %v1032 = vpack.c.b16 %v1020, %v1020
      %v1033 = vpack.c.b16 %v1021, %v1021
      %v1034 = vpack.c.b16 %v1022, %v1022
      %v1035 = vpack.c.b16 %v1023, %v1023
      %v1036 = vpack.c.b16 %v1024, %v1024
      %v1037 = vpack.c.b16 %v1025, %v1025
      %v1038 = vpack.c.b16 %v1026, %v1026
      %v1039 = vpack.c.b16 %v1027, %v1027
      %vm1040 = vsmask.f32 7424
      %v1042 = vshrl.u32 %v992, 16
      %v1044 = vshll.u32 %v992, 16
      %v1046 = vrot.slane %v1044, 1
      %v1047 = vor.u32 %v1042, %v1046
      %v1049 = vshll.u32 %v1028, 16
      %v1051 = vrot.slane %v1049, 1
      %v1052 = vsel %vm1040, %v1047, %v1051
      %v1054 = vshrl.u32 %v993, 16
      %v1056 = vshll.u32 %v993, 16
      %v1058 = vrot.slane %v1056, 1
      %v1059 = vor.u32 %v1054, %v1058
      %v1061 = vshll.u32 %v1029, 16
      %v1063 = vrot.slane %v1061, 1
      %v1064 = vsel %vm1040, %v1059, %v1063
      %v1066 = vshrl.u32 %v994, 16
      %v1068 = vshll.u32 %v994, 16
      %v1070 = vrot.slane %v1068, 1
      %v1071 = vor.u32 %v1066, %v1070
      %v1073 = vshll.u32 %v1030, 16
      %v1075 = vrot.slane %v1073, 1
      %v1076 = vsel %vm1040, %v1071, %v1075
      %v1078 = vshrl.u32 %v995, 16
      %v1080 = vshll.u32 %v995, 16
      %v1082 = vrot.slane %v1080, 1
      %v1083 = vor.u32 %v1078, %v1082
      %v1085 = vshll.u32 %v1031, 16
      %v1087 = vrot.slane %v1085, 1
      %v1088 = vsel %vm1040, %v1083, %v1087
      %v1090 = vshrl.u32 %v996, 16
      %v1092 = vshll.u32 %v996, 16
      %v1094 = vrot.slane %v1092, 1
      %v1095 = vor.u32 %v1090, %v1094
      %v1097 = vshll.u32 %v1032, 16
      %v1099 = vrot.slane %v1097, 1
      %v1100 = vsel %vm1040, %v1095, %v1099
      %v1102 = vshrl.u32 %v997, 16
      %v1104 = vshll.u32 %v997, 16
      %v1106 = vrot.slane %v1104, 1
      %v1107 = vor.u32 %v1102, %v1106
      %v1109 = vshll.u32 %v1033, 16
      %v1111 = vrot.slane %v1109, 1
      %v1112 = vsel %vm1040, %v1107, %v1111
      %v1114 = vshrl.u32 %v998, 16
      %v1116 = vshll.u32 %v998, 16
      %v1118 = vrot.slane %v1116, 1
      %v1119 = vor.u32 %v1114, %v1118
      %v1121 = vshll.u32 %v1034, 16
      %v1123 = vrot.slane %v1121, 1
      %v1124 = vsel %vm1040, %v1119, %v1123
      %v1126 = vshrl.u32 %v999, 16
      %v1128 = vshll.u32 %v999, 16
      %v1130 = vrot.slane %v1128, 1
      %v1131 = vor.u32 %v1126, %v1130
      %v1133 = vshll.u32 %v1035, 16
      %v1135 = vrot.slane %v1133, 1
      %v1136 = vsel %vm1040, %v1131, %v1135
      %v1138 = vshrl.u32 %v1000, 16
      %v1140 = vshll.u32 %v1000, 16
      %v1142 = vrot.slane %v1140, 1
      %v1143 = vor.u32 %v1138, %v1142
      %v1145 = vshll.u32 %v1036, 16
      %v1147 = vrot.slane %v1145, 1
      %v1148 = vsel %vm1040, %v1143, %v1147
      %v1150 = vshrl.u32 %v1001, 16
      %v1152 = vshll.u32 %v1001, 16
      %v1154 = vrot.slane %v1152, 1
      %v1155 = vor.u32 %v1150, %v1154
      %v1157 = vshll.u32 %v1037, 16
      %v1159 = vrot.slane %v1157, 1
      %v1160 = vsel %vm1040, %v1155, %v1159
      %v1162 = vshrl.u32 %v1002, 16
      %v1164 = vshll.u32 %v1002, 16
      %v1166 = vrot.slane %v1164, 1
      %v1167 = vor.u32 %v1162, %v1166
      %v1169 = vshll.u32 %v1038, 16
      %v1171 = vrot.slane %v1169, 1
      %v1172 = vsel %vm1040, %v1167, %v1171
      %v1174 = vshrl.u32 %v1003, 16
      %v1176 = vshll.u32 %v1003, 16
      %v1178 = vrot.slane %v1176, 1
      %v1179 = vor.u32 %v1174, %v1178
      %v1181 = vshll.u32 %v1039, 16
      %v1183 = vrot.slane %v1181, 1
      %v1184 = vsel %vm1040, %v1179, %v1183
      %1185 = vrot.lane.b32.xlu0 %v1052, 4
      %v1186 = vpop.permute.xlu0 %1185
      %1187 = vrot.lane.b32.xlu0 %v1064, 4
      %v1188 = vpop.permute.xlu0 %1187
      %1189 = vrot.lane.b32.xlu0 %v1076, 4
      %v1190 = vpop.permute.xlu0 %1189
      %1191 = vrot.lane.b32.xlu0 %v1088, 4
      %v1192 = vpop.permute.xlu0 %1191
      %1193 = vrot.lane.b32.xlu0 %v1100, 4
      %v1194 = vpop.permute.xlu0 %1193
      %1195 = vrot.lane.b32.xlu0 %v1112, 4
      %v1196 = vpop.permute.xlu0 %1195
      %1197 = vrot.lane.b32.xlu0 %v1124, 4
      %v1198 = vpop.permute.xlu0 %1197
      %1199 = vrot.lane.b32.xlu0 %v1136, 4
      %v1200 = vpop.permute.xlu0 %1199
      %1201 = vrot.lane.b32.xlu0 %v1148, 4
      %v1202 = vpop.permute.xlu0 %1201
      %1203 = vrot.lane.b32.xlu0 %v1160, 4
      %v1204 = vpop.permute.xlu0 %1203
      %1205 = vrot.lane.b32.xlu0 %v1172, 4
      %v1206 = vpop.permute.xlu0 %1205
      %1207 = vrot.lane.b32.xlu0 %v1184, 4
      %v1208 = vpop.permute.xlu0 %1207
      %v1221 = vunpack.c.l.b16 %v932
      %v1222 = vunpack.c.l.b16 %v933
      %v1223 = vunpack.c.l.b16 %v934
      %v1224 = vunpack.c.l.b16 %v935
      %v1225 = vunpack.c.l.b16 %v936
      %v1226 = vunpack.c.l.b16 %v937
      %v1227 = vunpack.c.l.b16 %v938
      %v1228 = vunpack.c.l.b16 %v939
      %v1229 = vunpack.c.l.b16 %v940
      %v1230 = vunpack.c.l.b16 %v941
      %v1231 = vunpack.c.l.b16 %v942
      %v1232 = vunpack.c.l.b16 %v943
      %v1233 = vpack.c.b16 %v969, %v1221
      %v1234 = vpack.c.b16 %v971, %v1222
      %v1235 = vpack.c.b16 %v973, %v1223
      %v1236 = vpack.c.b16 %v975, %v1224
      %v1237 = vpack.c.b16 %v977, %v1225
      %v1238 = vpack.c.b16 %v979, %v1226
      %v1239 = vpack.c.b16 %v981, %v1227
      %v1240 = vpack.c.b16 %v983, %v1228
      %v1241 = vpack.c.b16 %v985, %v1229
      %v1242 = vpack.c.b16 %v987, %v1230
      %v1243 = vpack.c.b16 %v989, %v1231
      %v1244 = vpack.c.b16 %v991, %v1232
      %vm1245 = vcmask 1046528
      %v1246 = vrot.slane %v1233, 1
      %v1247 = vrot.slane %v1028, 1
      %v1248 = vsel %vm1245, %v1246, %v1247
      %v1249 = vrot.slane %v1234, 1
      %v1250 = vrot.slane %v1029, 1
      %v1251 = vsel %vm1245, %v1249, %v1250
      %v1252 = vrot.slane %v1235, 1
      %v1253 = vrot.slane %v1030, 1
      %v1254 = vsel %vm1245, %v1252, %v1253
      %v1255 = vrot.slane %v1236, 1
      %v1256 = vrot.slane %v1031, 1
      %v1257 = vsel %vm1245, %v1255, %v1256
      %v1258 = vrot.slane %v1237, 1
      %v1259 = vrot.slane %v1032, 1
      %v1260 = vsel %vm1245, %v1258, %v1259
      %v1261 = vrot.slane %v1238, 1
      %v1262 = vrot.slane %v1033, 1
      %v1263 = vsel %vm1245, %v1261, %v1262
      %v1264 = vrot.slane %v1239, 1
      %v1265 = vrot.slane %v1034, 1
      %v1266 = vsel %vm1245, %v1264, %v1265
      %v1267 = vrot.slane %v1240, 1
      %v1268 = vrot.slane %v1035, 1
      %v1269 = vsel %vm1245, %v1267, %v1268
      %v1270 = vrot.slane %v1241, 1
      %v1271 = vrot.slane %v1036, 1
      %v1272 = vsel %vm1245, %v1270, %v1271
      %v1273 = vrot.slane %v1242, 1
      %v1274 = vrot.slane %v1037, 1
      %v1275 = vsel %vm1245, %v1273, %v1274
      %v1276 = vrot.slane %v1243, 1
      %v1277 = vrot.slane %v1038, 1
      %v1278 = vsel %vm1245, %v1276, %v1277
      %v1279 = vrot.slane %v1244, 1
      %v1280 = vrot.slane %v1039, 1
      %v1281 = vsel %vm1245, %v1279, %v1280
      %1282 = vrot.lane.b32.xlu0 %v1248, 8
      %v1283 = vpop.permute.xlu0 %1282
      %1284 = vrot.lane.b32.xlu0 %v1251, 8
      %v1285 = vpop.permute.xlu0 %1284
      %1286 = vrot.lane.b32.xlu0 %v1254, 8
      %v1287 = vpop.permute.xlu0 %1286
      %1288 = vrot.lane.b32.xlu0 %v1257, 8
      %v1289 = vpop.permute.xlu0 %1288
      %1290 = vrot.lane.b32.xlu0 %v1260, 8
      %v1291 = vpop.permute.xlu0 %1290
      %1292 = vrot.lane.b32.xlu0 %v1263, 8
      %v1293 = vpop.permute.xlu0 %1292
      %1294 = vrot.lane.b32.xlu0 %v1266, 8
      %v1295 = vpop.permute.xlu0 %1294
      %1296 = vrot.lane.b32.xlu0 %v1269, 8
      %v1297 = vpop.permute.xlu0 %1296
      %1298 = vrot.lane.b32.xlu0 %v1272, 8
      %v1299 = vpop.permute.xlu0 %1298
      %1300 = vrot.lane.b32.xlu0 %v1275, 8
      %v1301 = vpop.permute.xlu0 %1300
      %1302 = vrot.lane.b32.xlu0 %v1278, 8
      %v1303 = vpop.permute.xlu0 %1302
      %1304 = vrot.lane.b32.xlu0 %v1281, 8
      %v1305 = vpop.permute.xlu0 %1304
      %vm1306 = vcmask 31744
      %v1308 = vsel %vm1306, %v992, %v1186
      %v1310 = vsel %vm1306, %v993, %v1188
      %v1312 = vsel %vm1306, %v994, %v1190
      %v1314 = vsel %vm1306, %v995, %v1192
      %v1316 = vsel %vm1306, %v996, %v1194
      %v1318 = vsel %vm1306, %v997, %v1196
      %v1320 = vsel %vm1306, %v998, %v1198
      %v1322 = vsel %vm1306, %v999, %v1200
      %v1324 = vsel %vm1306, %v1000, %v1202
      %v1326 = vsel %vm1306, %v1001, %v1204
      %v1328 = vsel %vm1306, %v1002, %v1206
      %v1330 = vsel %vm1306, %v1003, %v1208
      %vm1331 = vcmask 64512
      %v1333 = vsel %vm1331, %v1308, %v1283
      %v1335 = vsel %vm1331, %v1310, %v1285
      %v1337 = vsel %vm1331, %v1312, %v1287
      %v1339 = vsel %vm1331, %v1314, %v1289
      %v1341 = vsel %vm1331, %v1316, %v1291
      %v1343 = vsel %vm1331, %v1318, %v1293
      %v1345 = vsel %vm1331, %v1320, %v1295
      %v1347 = vsel %vm1331, %v1322, %v1297
      %v1349 = vsel %vm1331, %v1324, %v1299
      %v1351 = vsel %vm1331, %v1326, %v1301
      %v1353 = vsel %vm1331, %v1328, %v1303
      %v1355 = vsel %vm1331, %v1330, %v1305
      %v1356 = vld [vmem:[%s3] sm:$0xf]
      %v1357 = vld [vmem:[%s3 + $0x4] sm:$0x3]
      %s1358 = scalar_lea.vmem %s3, 8
      %v1359 = vld [vmem:[%s1358] sm:$0xf]
      %v1360 = vld [vmem:[%s1358 + $0x4] sm:$0x3]
      %v1363 = vunpack.c.l.b16 %v1359
      %v1364 = vunpack.c.l.b16 %v1360
      %v1365 = vpack.c.b16 %v1364, %v1363
      %vm1366 = vcmask 97280
      %v1367 = vsel %vm1366, %v1335, 0
      %v1369 = vsel %vm1366, %v1337, 0
      %v1371 = vsel %vm1366, %v1339, 0
      %v1373 = vsel %vm1366, %v1341, 0
      %v1375 = vsel %vm1366, %v1343, 0
      %v1377 = vsel %vm1366, %v1345, 0
      %v1379 = vsel %vm1366, %v1347, 0
      %v1381 = vsel %vm1366, %v1349, 0
      %v1383 = vsel %vm1366, %v1351, 0
      %v1385 = vsel %vm1366, %v1353, 0
      %vm1387 = vcmask 1045504
      %v1389 = vsel %vm1387, %v1365, 0
      %1391 = vmatprep.subr.bf16.mxu0 0
      %1392 = vmatpush1.bf16.msra.mxu0 0
      %1393 = vmatprep.subr.bf16.mxu0 0
      %1394 = vmatpush1.bf16.msra.mxu0 0
      %1395 = vmatprep.subr.bf16.mxu0 0
      %1396 = vmatpush1.bf16.msra.mxu0 0
      %1397 = vmatprep.subr.bf16.mxu0 0
      %1398 = vmatpush1.bf16.msra.mxu0 0
      %1399 = vmatprep.subr.bf16.mxu0 0
      %1400 = vmatpush1.bf16.msra.mxu0 0
      %1401 = vmatprep.subr.bf16.mxu0 0
      %1402 = vmatpush1.bf16.msra.mxu0 0
      %1403 = vmatprep.subr.bf16.mxu0 0
      %1404 = vmatpush1.bf16.msra.mxu0 0
      %1405 = vmatprep.subr.bf16.mxu0 0
      %1406 = vmatpush1.bf16.msra.mxu0 %v1389
      %1407 = vmatprep.subr.bf16.mxu0 0
      %1408 = vmatpush2.bf16.msra.mxu0 0
      %1409 = vmatprep.subr.bf16.mxu0 0
      %1410 = vmatpush2.bf16.msra.mxu0 0
      %1411 = vmatprep.subr.bf16.mxu0 0
      %1412 = vmatpush2.bf16.msra.mxu0 0
      %1413 = vmatprep.subr.bf16.mxu0 0
      %1414 = vmatpush2.bf16.msra.mxu0 0
      %1415 = vmatprep.subr.bf16.mxu0 0
      %1416 = vmatpush2.bf16.msra.mxu0 0
      %1417 = vmatprep.subr.bf16.mxu0 0
      %1418 = vmatpush2.bf16.msra.mxu0 0
      %1419 = vmatprep.subr.bf16.mxu0 0
      %1420 = vmatpush2.bf16.msra.mxu0 0
      %1421 = vmatprep.subr.bf16.mxu0 0
      %1422 = vmatpush2.bf16.msra.mxu0 0
      %1423 = vmatprep.mubr.bf16.mxu0 0
      %1424 = vmatmul.mubr.bf16.gmra.mxu0 %v1367
      %v1425 = vpop.f32.mrf.mxu0
      %v1426 = vadd.f32 0.0, %v1425
      %v1427 = vpop.f32.mrf.mxu0
      %v1428 = vpop.f32.mrf.mxu0
      %v1429 = vadd.f32 0.0, %v1428
      %v1430 = vpop.f32.mrf.mxu0
      %1431 = vmatprep.mubr.bf16.mxu0 0
      %1432 = vmatmul.mubr.bf16.gmra.mxu0 %v1369
      %v1433 = vpop.f32.mrf.mxu0
      %v1434 = vadd.f32 0.0, %v1433
      %v1435 = vpop.f32.mrf.mxu0
      %v1436 = vpop.f32.mrf.mxu0
      %v1437 = vadd.f32 0.0, %v1436
      %v1438 = vpop.f32.mrf.mxu0
      %1439 = vmatprep.mubr.bf16.mxu0 0
      %1440 = vmatmul.mubr.bf16.gmra.mxu0 %v1371
      %v1441 = vpop.f32.mrf.mxu0
      %v1442 = vadd.f32 0.0, %v1441
      %v1443 = vpop.f32.mrf.mxu0
      %v1444 = vpop.f32.mrf.mxu0
      %v1445 = vadd.f32 0.0, %v1444
      %v1446 = vpop.f32.mrf.mxu0
      %1447 = vmatprep.mubr.bf16.mxu0 0
      %1448 = vmatmul.mubr.bf16.gmra.mxu0 %v1373
      %v1449 = vpop.f32.mrf.mxu0
      %v1450 = vadd.f32 0.0, %v1449
      %v1451 = vpop.f32.mrf.mxu0
      %v1452 = vpop.f32.mrf.mxu0
      %v1453 = vadd.f32 0.0, %v1452
      %v1454 = vpop.f32.mrf.mxu0
      %1455 = vmatprep.mubr.bf16.mxu0 0
      %1456 = vmatmul.mubr.bf16.gmra.mxu0 %v1375
      %v1457 = vpop.f32.mrf.mxu0
      %v1458 = vadd.f32 0.0, %v1457
      %v1459 = vpop.f32.mrf.mxu0
      %v1460 = vpop.f32.mrf.mxu0
      %v1461 = vadd.f32 0.0, %v1460
      %v1462 = vpop.f32.mrf.mxu0
      %1463 = vmatprep.mubr.bf16.mxu0 0
      %1464 = vmatmul.mubr.bf16.gmra.mxu0 %v1377
      %v1465 = vpop.f32.mrf.mxu0
      %v1466 = vadd.f32 0.0, %v1465
      %v1467 = vpop.f32.mrf.mxu0
      %v1468 = vpop.f32.mrf.mxu0
      %v1469 = vadd.f32 0.0, %v1468
      %v1470 = vpop.f32.mrf.mxu0
      %1471 = vmatprep.mubr.bf16.mxu0 0
      %1472 = vmatmul.mubr.bf16.gmra.mxu0 %v1379
      %v1473 = vpop.f32.mrf.mxu0
      %v1474 = vadd.f32 0.0, %v1473
      %v1475 = vpop.f32.mrf.mxu0
      %v1476 = vpop.f32.mrf.mxu0
      %v1477 = vadd.f32 0.0, %v1476
      %v1478 = vpop.f32.mrf.mxu0
      %1479 = vmatprep.mubr.bf16.mxu0 0
      %1480 = vmatmul.mubr.bf16.gmra.mxu0 %v1381
      %v1481 = vpop.f32.mrf.mxu0
      %v1482 = vadd.f32 0.0, %v1481
      %v1483 = vpop.f32.mrf.mxu0
      %v1484 = vpop.f32.mrf.mxu0
      %v1485 = vadd.f32 0.0, %v1484
      %v1486 = vpop.f32.mrf.mxu0
      %1487 = vmatprep.mubr.bf16.mxu0 0
      %1488 = vmatmul.mubr.bf16.gmra.mxu0 %v1383
      %v1489 = vpop.f32.mrf.mxu0
      %v1490 = vadd.f32 0.0, %v1489
      %v1491 = vpop.f32.mrf.mxu0
      %v1492 = vpop.f32.mrf.mxu0
      %v1493 = vadd.f32 0.0, %v1492
      %v1494 = vpop.f32.mrf.mxu0
      %1495 = vmatprep.mubr.bf16.mxu0 0
      %1496 = vmatmul.mubr.bf16.gmra.mxu0 %v1385
      %v1497 = vpop.f32.mrf.mxu0
      %v1498 = vadd.f32 0.0, %v1497
      %v1499 = vpop.f32.mrf.mxu0
      %v1500 = vpop.f32.mrf.mxu0
      %v1501 = vadd.f32 0.0, %v1500
      %v1502 = vpop.f32.mrf.mxu0
      %1503 = vdwg.mxu0
      %v1506 = vunpack.c.l.b16 %v1356
      %v1507 = vunpack.c.l.b16 %v1357
      %v1508 = vpack.c.b16 %v1507, %v1506
      %v1509 = vsel %vm1366, %v1333, 0
      %v1512 = vsel %vm1387, %v1508, 0
      %1514 = vmatprep.subr.bf16.mxu0 0
      %1515 = vmatpush1.bf16.msra.mxu0 0
      %1516 = vmatprep.subr.bf16.mxu0 0
      %1517 = vmatpush1.bf16.msra.mxu0 0
      %1518 = vmatprep.subr.bf16.mxu0 0
      %1519 = vmatpush1.bf16.msra.mxu0 0
      %1520 = vmatprep.subr.bf16.mxu0 0
      %1521 = vmatpush1.bf16.msra.mxu0 0
      %1522 = vmatprep.subr.bf16.mxu0 0
      %1523 = vmatpush1.bf16.msra.mxu0 0
      %1524 = vmatprep.subr.bf16.mxu0 0
      %1525 = vmatpush1.bf16.msra.mxu0 0
      %1526 = vmatprep.subr.bf16.mxu0 0
      %1527 = vmatpush1.bf16.msra.mxu0 0
      %1528 = vmatprep.subr.bf16.mxu0 0
      %1529 = vmatpush1.bf16.msra.mxu0 %v1512
      %1530 = vmatprep.subr.bf16.mxu0 0
      %1531 = vmatpush2.bf16.msra.mxu0 0
      %1532 = vmatprep.subr.bf16.mxu0 0
      %1533 = vmatpush2.bf16.msra.mxu0 0
      %1534 = vmatprep.subr.bf16.mxu0 0
      %1535 = vmatpush2.bf16.msra.mxu0 0
      %1536 = vmatprep.subr.bf16.mxu0 0
      %1537 = vmatpush2.bf16.msra.mxu0 0
      %1538 = vmatprep.subr.bf16.mxu0 0
      %1539 = vmatpush2.bf16.msra.mxu0 0
      %1540 = vmatprep.subr.bf16.mxu0 0
      %1541 = vmatpush2.bf16.msra.mxu0 0
      %1542 = vmatprep.subr.bf16.mxu0 0
      %1543 = vmatpush2.bf16.msra.mxu0 0
      %1544 = vmatprep.subr.bf16.mxu0 0
      %1545 = vmatpush2.bf16.msra.mxu0 0
      %1546 = vmatprep.mubr.bf16.mxu0 0
      %1547 = vmatmul.mubr.bf16.gmra.mxu0 %v1509
      %v1548 = vpop.f32.mrf.mxu0
      %v1549 = vadd.f32 %v1426, %v1548
      %v1550 = vpop.f32.mrf.mxu0
      %v1551 = vpop.f32.mrf.mxu0
      %v1552 = vadd.f32 %v1429, %v1551
      %v1553 = vpop.f32.mrf.mxu0
      %1554 = vmatprep.mubr.bf16.mxu0 0
      %1555 = vmatmul.mubr.bf16.gmra.mxu0 %v1367
      %v1556 = vpop.f32.mrf.mxu0
      %v1557 = vadd.f32 %v1434, %v1556
      %v1558 = vpop.f32.mrf.mxu0
      %v1559 = vpop.f32.mrf.mxu0
      %v1560 = vadd.f32 %v1437, %v1559
      %v1561 = vpop.f32.mrf.mxu0
      %1562 = vmatprep.mubr.bf16.mxu0 0
      %1563 = vmatmul.mubr.bf16.gmra.mxu0 %v1369
      %v1564 = vpop.f32.mrf.mxu0
      %v1565 = vadd.f32 %v1442, %v1564
      %v1566 = vpop.f32.mrf.mxu0
      %v1567 = vpop.f32.mrf.mxu0
      %v1568 = vadd.f32 %v1445, %v1567
      %v1569 = vpop.f32.mrf.mxu0
      %1570 = vmatprep.mubr.bf16.mxu0 0
      %1571 = vmatmul.mubr.bf16.gmra.mxu0 %v1371
      %v1572 = vpop.f32.mrf.mxu0
      %v1573 = vadd.f32 %v1450, %v1572
      %v1574 = vpop.f32.mrf.mxu0
      %v1575 = vpop.f32.mrf.mxu0
      %v1576 = vadd.f32 %v1453, %v1575
      %v1577 = vpop.f32.mrf.mxu0
      %1578 = vmatprep.mubr.bf16.mxu0 0
      %1579 = vmatmul.mubr.bf16.gmra.mxu0 %v1373
      %v1580 = vpop.f32.mrf.mxu0
      %v1581 = vadd.f32 %v1458, %v1580
      %v1582 = vpop.f32.mrf.mxu0
      %v1583 = vpop.f32.mrf.mxu0
      %v1584 = vadd.f32 %v1461, %v1583
      %v1585 = vpop.f32.mrf.mxu0
      %1586 = vmatprep.mubr.bf16.mxu0 0
      %1587 = vmatmul.mubr.bf16.gmra.mxu0 %v1375
      %v1588 = vpop.f32.mrf.mxu0
      %v1589 = vadd.f32 %v1466, %v1588
      %v1590 = vpop.f32.mrf.mxu0
      %v1591 = vpop.f32.mrf.mxu0
      %v1592 = vadd.f32 %v1469, %v1591
      %v1593 = vpop.f32.mrf.mxu0
      %1594 = vmatprep.mubr.bf16.mxu0 0
      %1595 = vmatmul.mubr.bf16.gmra.mxu0 %v1377
      %v1596 = vpop.f32.mrf.mxu0
      %v1597 = vadd.f32 %v1474, %v1596
      %v1598 = vpop.f32.mrf.mxu0
      %v1599 = vpop.f32.mrf.mxu0
      %v1600 = vadd.f32 %v1477, %v1599
      %v1601 = vpop.f32.mrf.mxu0
      %1602 = vmatprep.mubr.bf16.mxu0 0
      %1603 = vmatmul.mubr.bf16.gmra.mxu0 %v1379
      %v1604 = vpop.f32.mrf.mxu0
      %v1605 = vadd.f32 %v1482, %v1604
      %v1606 = vpop.f32.mrf.mxu0
      %v1607 = vpop.f32.mrf.mxu0
      %v1608 = vadd.f32 %v1485, %v1607
      %v1609 = vpop.f32.mrf.mxu0
      %1610 = vmatprep.mubr.bf16.mxu0 0
      %1611 = vmatmul.mubr.bf16.gmra.mxu0 %v1381
      %v1612 = vpop.f32.mrf.mxu0
      %v1613 = vadd.f32 %v1490, %v1612
      %v1614 = vpop.f32.mrf.mxu0
      %v1615 = vpop.f32.mrf.mxu0
      %v1616 = vadd.f32 %v1493, %v1615
      %v1617 = vpop.f32.mrf.mxu0
      %1618 = vmatprep.mubr.bf16.mxu0 0
      %1619 = vmatmul.mubr.bf16.gmra.mxu0 %v1383
      %v1620 = vpop.f32.mrf.mxu0
      %v1621 = vadd.f32 %v1498, %v1620
      %v1622 = vpop.f32.mrf.mxu0
      %v1623 = vpop.f32.mrf.mxu0
      %v1624 = vadd.f32 %v1501, %v1623
      %v1625 = vpop.f32.mrf.mxu0
      %1626 = vdwg.mxu0
      %s1627 = scalar_lea.vmem %s3, 16
      %v1628 = vld [vmem:[%s1627] sm:$0xf]
      %v1629 = vld [vmem:[%s1627 + $0x4] sm:$0x3]
      %v1632 = vunpack.c.l.b16 %v1628
      %v1633 = vunpack.c.l.b16 %v1629
      %v1634 = vpack.c.b16 %v1633, %v1632
      %v1635 = vsel %vm1366, %v1355, 0
      %v1638 = vsel %vm1387, %v1634, 0
      %1640 = vmatprep.subr.bf16.mxu0 0
      %1641 = vmatpush1.bf16.msra.mxu0 0
      %1642 = vmatprep.subr.bf16.mxu0 0
      %1643 = vmatpush1.bf16.msra.mxu0 0
      %1644 = vmatprep.subr.bf16.mxu0 0
      %1645 = vmatpush1.bf16.msra.mxu0 0
      %1646 = vmatprep.subr.bf16.mxu0 0
      %1647 = vmatpush1.bf16.msra.mxu0 0
      %1648 = vmatprep.subr.bf16.mxu0 0
      %1649 = vmatpush1.bf16.msra.mxu0 0
      %1650 = vmatprep.subr.bf16.mxu0 0
      %1651 = vmatpush1.bf16.msra.mxu0 0
      %1652 = vmatprep.subr.bf16.mxu0 0
      %1653 = vmatpush1.bf16.msra.mxu0 0
      %1654 = vmatprep.subr.bf16.mxu0 0
      %1655 = vmatpush1.bf16.msra.mxu0 %v1638
      %1656 = vmatprep.subr.bf16.mxu0 0
      %1657 = vmatpush2.bf16.msra.mxu0 0
      %1658 = vmatprep.subr.bf16.mxu0 0
      %1659 = vmatpush2.bf16.msra.mxu0 0
      %1660 = vmatprep.subr.bf16.mxu0 0
      %1661 = vmatpush2.bf16.msra.mxu0 0
      %1662 = vmatprep.subr.bf16.mxu0 0
      %1663 = vmatpush2.bf16.msra.mxu0 0
      %1664 = vmatprep.subr.bf16.mxu0 0
      %1665 = vmatpush2.bf16.msra.mxu0 0
      %1666 = vmatprep.subr.bf16.mxu0 0
      %1667 = vmatpush2.bf16.msra.mxu0 0
      %1668 = vmatprep.subr.bf16.mxu0 0
      %1669 = vmatpush2.bf16.msra.mxu0 0
      %1670 = vmatprep.subr.bf16.mxu0 0
      %1671 = vmatpush2.bf16.msra.mxu0 0
      %1672 = vmatprep.mubr.bf16.mxu0 0
      %1673 = vmatmul.mubr.bf16.gmra.mxu0 %v1369
      %v1674 = vpop.f32.mrf.mxu0
      %v1675 = vadd.f32 0.0, %v1674
      %v1676 = vpop.f32.mrf.mxu0
      %v1677 = vpop.f32.mrf.mxu0
      %v1678 = vadd.f32 0.0, %v1677
      %v1679 = vpop.f32.mrf.mxu0
      %1680 = vmatprep.mubr.bf16.mxu0 0
      %1681 = vmatmul.mubr.bf16.gmra.mxu0 %v1371
      %v1682 = vpop.f32.mrf.mxu0
      %v1683 = vadd.f32 0.0, %v1682
      %v1684 = vpop.f32.mrf.mxu0
      %v1685 = vpop.f32.mrf.mxu0
      %v1686 = vadd.f32 0.0, %v1685
      %v1687 = vpop.f32.mrf.mxu0
      %1688 = vmatprep.mubr.bf16.mxu0 0
      %1689 = vmatmul.mubr.bf16.gmra.mxu0 %v1373
      %v1690 = vpop.f32.mrf.mxu0
      %v1691 = vadd.f32 0.0, %v1690
      %v1692 = vpop.f32.mrf.mxu0
      %v1693 = vpop.f32.mrf.mxu0
      %v1694 = vadd.f32 0.0, %v1693
      %v1695 = vpop.f32.mrf.mxu0
      %1696 = vmatprep.mubr.bf16.mxu0 0
      %1697 = vmatmul.mubr.bf16.gmra.mxu0 %v1375
      %v1698 = vpop.f32.mrf.mxu0
      %v1699 = vadd.f32 0.0, %v1698
      %v1700 = vpop.f32.mrf.mxu0
      %v1701 = vpop.f32.mrf.mxu0
      %v1702 = vadd.f32 0.0, %v1701
      %v1703 = vpop.f32.mrf.mxu0
      %1704 = vmatprep.mubr.bf16.mxu0 0
      %1705 = vmatmul.mubr.bf16.gmra.mxu0 %v1377
      %v1706 = vpop.f32.mrf.mxu0
      %v1707 = vadd.f32 0.0, %v1706
      %v1708 = vpop.f32.mrf.mxu0
      %v1709 = vpop.f32.mrf.mxu0
      %v1710 = vadd.f32 0.0, %v1709
      %v1711 = vpop.f32.mrf.mxu0
      %1712 = vmatprep.mubr.bf16.mxu0 0
      %1713 = vmatmul.mubr.bf16.gmra.mxu0 %v1379
      %v1714 = vpop.f32.mrf.mxu0
      %v1715 = vadd.f32 0.0, %v1714
      %v1716 = vpop.f32.mrf.mxu0
      %v1717 = vpop.f32.mrf.mxu0
      %v1718 = vadd.f32 0.0, %v1717
      %v1719 = vpop.f32.mrf.mxu0
      %1720 = vmatprep.mubr.bf16.mxu0 0
      %1721 = vmatmul.mubr.bf16.gmra.mxu0 %v1381
      %v1722 = vpop.f32.mrf.mxu0
      %v1723 = vadd.f32 0.0, %v1722
      %v1724 = vpop.f32.mrf.mxu0
      %v1725 = vpop.f32.mrf.mxu0
      %v1726 = vadd.f32 0.0, %v1725
      %v1727 = vpop.f32.mrf.mxu0
      %1728 = vmatprep.mubr.bf16.mxu0 0
      %1729 = vmatmul.mubr.bf16.gmra.mxu0 %v1383
      %v1730 = vpop.f32.mrf.mxu0
      %v1731 = vadd.f32 0.0, %v1730
      %v1732 = vpop.f32.mrf.mxu0
      %v1733 = vpop.f32.mrf.mxu0
      %v1734 = vadd.f32 0.0, %v1733
      %v1735 = vpop.f32.mrf.mxu0
      %1736 = vmatprep.mubr.bf16.mxu0 0
      %1737 = vmatmul.mubr.bf16.gmra.mxu0 %v1385
      %v1738 = vpop.f32.mrf.mxu0
      %v1739 = vadd.f32 0.0, %v1738
      %v1740 = vpop.f32.mrf.mxu0
      %v1741 = vpop.f32.mrf.mxu0
      %v1742 = vadd.f32 0.0, %v1741
      %v1743 = vpop.f32.mrf.mxu0
      %1744 = vmatprep.mubr.bf16.mxu0 0
      %1745 = vmatmul.mubr.bf16.gmra.mxu0 %v1635
      %v1746 = vpop.f32.mrf.mxu0
      %v1747 = vadd.f32 0.0, %v1746
      %v1748 = vpop.f32.mrf.mxu0
      %v1749 = vpop.f32.mrf.mxu0
      %v1750 = vadd.f32 0.0, %v1749
      %v1751 = vpop.f32.mrf.mxu0
      %1752 = vdwg.mxu0
      %v1753 = vadd.f32 %v1549, %v1675
      %v1754 = vadd.f32 %v1552, %v1678
      %v1755 = vadd.f32 %v1557, %v1683
      %v1756 = vadd.f32 %v1560, %v1686
      %v1757 = vadd.f32 %v1565, %v1691
      %v1758 = vadd.f32 %v1568, %v1694
      %v1759 = vadd.f32 %v1573, %v1699
      %v1760 = vadd.f32 %v1576, %v1702
      %v1761 = vadd.f32 %v1581, %v1707
      %v1762 = vadd.f32 %v1584, %v1710
      %v1763 = vadd.f32 %v1589, %v1715
      %v1764 = vadd.f32 %v1592, %v1718
      %v1765 = vadd.f32 %v1597, %v1723
      %v1766 = vadd.f32 %v1600, %v1726
      %v1767 = vadd.f32 %v1605, %v1731
      %v1768 = vadd.f32 %v1608, %v1734
      %v1769 = vadd.f32 %v1613, %v1739
      %v1770 = vadd.f32 %v1616, %v1742
      %v1771 = vadd.f32 %v1621, %v1747
      %v1772 = vadd.f32 %v1624, %v1750
      %v1773 = vpack.c.bf16 %v1754, %v1753
      %v1774 = vpack.c.bf16 %v1756, %v1755
      %v1775 = vpack.c.bf16 %v1758, %v1757
      %v1776 = vpack.c.bf16 %v1760, %v1759
      %v1777 = vpack.c.bf16 %v1762, %v1761
      %v1778 = vpack.c.bf16 %v1764, %v1763
      %v1779 = vpack.c.bf16 %v1766, %v1765
      %v1780 = vpack.c.bf16 %v1768, %v1767
      %v1781 = vpack.c.bf16 %v1770, %v1769
      %v1782 = vpack.c.bf16 %v1772, %v1771
      %v1784 = vpack.i.b16 %v311, %v311
      %v1786 = vlaneseq
      %v1787 = vshrl.u32 %v1786, 7
      %v1788 = vsub.s32 0, %v1787
      %v1789 = vrot.slane %v1784, %v1788
      %v1790 = vmul.bf16 %v1773, %v1789
      %v1791 = vmul.bf16 %v1774, %v1789
      %v1792 = vmul.bf16 %v1775, %v1789
      %v1793 = vmul.bf16 %v1776, %v1789
      %v1794 = vmul.bf16 %v1777, %v1789
      %v1795 = vmul.bf16 %v1778, %v1789
      %v1796 = vmul.bf16 %v1779, %v1789
      %v1797 = vmul.bf16 %v1780, %v1789
      %v1798 = vmul.bf16 %v1781, %v1789
      %v1799 = vmul.bf16 %v1782, %v1789
      %v1801 = vpack.i.b16 %v313, %v313
      %v1803 = vlaneseq
      %v1804 = vshrl.u32 %v1803, 7
      %v1805 = vsub.s32 0, %v1804
      %v1806 = vrot.slane %v1801, %v1805
      %v1807 = vadd.bf16 %v1790, %v1806
      %v1808 = vadd.bf16 %v1791, %v1806
      %v1809 = vadd.bf16 %v1792, %v1806
      %v1810 = vadd.bf16 %v1793, %v1806
      %v1811 = vadd.bf16 %v1794, %v1806
      %v1812 = vadd.bf16 %v1795, %v1806
      %v1813 = vadd.bf16 %v1796, %v1806
      %v1814 = vadd.bf16 %v1797, %v1806
      %v1815 = vadd.bf16 %v1798, %v1806
      %v1816 = vadd.bf16 %v1799, %v1806
      %v1817 = vmax.bf16 %v1807, 0
      %v1818 = vmax.bf16 %v1808, 0
      %v1819 = vmax.bf16 %v1809, 0
      %v1820 = vmax.bf16 %v1810, 0
      %v1821 = vmax.bf16 %v1811, 0
      %v1822 = vmax.bf16 %v1812, 0
      %v1823 = vmax.bf16 %v1813, 0
      %v1824 = vmax.bf16 %v1814, 0
      %v1825 = vmax.bf16 %v1815, 0
      %v1826 = vmax.bf16 %v1816, 0
      %v1827 = vld [vmem:[#allocation3] sm:$0x1]
      %v1828 = vsel %vm316, 0, %v1827
      %1829 = vst [vmem:[#allocation3] sm:$0x1] %v1828
      %v1830 = vld [vmem:[#allocation3 + $0xc] sm:$0x1]
      %v1831 = vsel %vm316, 0, %v1830
      %1832 = vst [vmem:[#allocation3 + $0xc] sm:$0x1] %v1831
      %v1833 = vld [vmem:[#allocation3 + $0x18] sm:$0x1]
      %v1834 = vsel %vm316, 0, %v1833
      %1835 = vst [vmem:[#allocation3 + $0x18] sm:$0x1] %v1834
      %v1836 = vld [vmem:[#allocation3 + $0x24] sm:$0x1]
      %v1837 = vsel %vm316, 0, %v1836
      %1838 = vst [vmem:[#allocation3 + $0x24] sm:$0x1] %v1837
      %v1839 = vld [vmem:[#allocation3 + $0x30] sm:$0x1]
      %v1840 = vsel %vm316, 0, %v1839
      %1841 = vst [vmem:[#allocation3 + $0x30] sm:$0x1] %v1840
      %v1842 = vld [vmem:[#allocation3 + $0x3c] sm:$0x1]
      %v1843 = vsel %vm316, 0, %v1842
      %1844 = vst [vmem:[#allocation3 + $0x3c] sm:$0x1] %v1843
      %v1845 = vld [vmem:[#allocation3 + $0x48] sm:$0x1]
      %v1846 = vsel %vm316, 0, %v1845
      %1847 = vst [vmem:[#allocation3 + $0x48] sm:$0x1] %v1846
      %v1848 = vld [vmem:[#allocation3 + $0x54] sm:$0x1]
      %v1849 = vsel %vm316, 0, %v1848
      %1850 = vst [vmem:[#allocation3 + $0x54] sm:$0x1] %v1849
      %v1851 = vld [vmem:[#allocation3 + $0x60] sm:$0x1]
      %v1852 = vsel %vm316, 0, %v1851
      %1853 = vst [vmem:[#allocation3 + $0x60] sm:$0x1] %v1852
      %v1854 = vld [vmem:[#allocation3 + $0x6c] sm:$0x1]
      %v1855 = vsel %vm316, 0, %v1854
      %1856 = vst [vmem:[#allocation3 + $0x6c] sm:$0x1] %v1855
      %v1857 = vld [vmem:[#allocation3 + $0x8] sm:$0x1]
      %v1858 = vsel %vm354, 0, %v1857
      %1859 = vst [vmem:[#allocation3 + $0x8] sm:$0x1] %v1858
      %v1860 = vld [vmem:[#allocation3 + $0x14] sm:$0x1]
      %v1861 = vsel %vm354, 0, %v1860
      %1862 = vst [vmem:[#allocation3 + $0x14] sm:$0x1] %v1861
      %v1863 = vld [vmem:[#allocation3 + $0x20] sm:$0x1]
      %v1864 = vsel %vm354, 0, %v1863
      %1865 = vst [vmem:[#allocation3 + $0x20] sm:$0x1] %v1864
      %v1866 = vld [vmem:[#allocation3 + $0x2c] sm:$0x1]
      %v1867 = vsel %vm354, 0, %v1866
      %1868 = vst [vmem:[#allocation3 + $0x2c] sm:$0x1] %v1867
      %v1869 = vld [vmem:[#allocation3 + $0x38] sm:$0x1]
      %v1870 = vsel %vm354, 0, %v1869
      %1871 = vst [vmem:[#allocation3 + $0x38] sm:$0x1] %v1870
      %v1872 = vld [vmem:[#allocation3 + $0x44] sm:$0x1]
      %v1873 = vsel %vm354, 0, %v1872
      %1874 = vst [vmem:[#allocation3 + $0x44] sm:$0x1] %v1873
      %v1875 = vld [vmem:[#allocation3 + $0x50] sm:$0x1]
      %v1876 = vsel %vm354, 0, %v1875
      %1877 = vst [vmem:[#allocation3 + $0x50] sm:$0x1] %v1876
      %v1878 = vld [vmem:[#allocation3 + $0x5c] sm:$0x1]
      %v1879 = vsel %vm354, 0, %v1878
      %1880 = vst [vmem:[#allocation3 + $0x5c] sm:$0x1] %v1879
      %v1881 = vld [vmem:[#allocation3 + $0x68] sm:$0x1]
      %v1882 = vsel %vm354, 0, %v1881
      %1883 = vst [vmem:[#allocation3 + $0x68] sm:$0x1] %v1882
      %v1884 = vld [vmem:[#allocation3 + $0x74] sm:$0x1]
      %v1885 = vsel %vm354, 0, %v1884
      %1886 = vst [vmem:[#allocation3 + $0x74] sm:$0x1] %v1885
      %v1897 = vunpack.c.l.b16 %v1817
      %v1898 = vunpack.c.h.b16 %v1817
      %v1899 = vunpack.c.l.b16 %v1818
      %v1900 = vunpack.c.h.b16 %v1818
      %v1901 = vunpack.c.l.b16 %v1819
      %v1902 = vunpack.c.h.b16 %v1819
      %v1903 = vunpack.c.l.b16 %v1820
      %v1904 = vunpack.c.h.b16 %v1820
      %v1905 = vunpack.c.l.b16 %v1821
      %v1906 = vunpack.c.h.b16 %v1821
      %v1907 = vunpack.c.l.b16 %v1822
      %v1908 = vunpack.c.h.b16 %v1822
      %v1909 = vunpack.c.l.b16 %v1823
      %v1910 = vunpack.c.h.b16 %v1823
      %v1911 = vunpack.c.l.b16 %v1824
      %v1912 = vunpack.c.h.b16 %v1824
      %v1913 = vunpack.c.l.b16 %v1825
      %v1914 = vunpack.c.h.b16 %v1825
      %v1915 = vunpack.c.l.b16 %v1826
      %v1916 = vunpack.c.h.b16 %v1826
      %v1917 = vpack.c.b16 %v1897, %v1897
      %v1918 = vpack.c.b16 %v1898, %v1898
      %v1919 = vpack.c.b16 %v1899, %v1899
      %v1920 = vpack.c.b16 %v1900, %v1900
      %v1921 = vpack.c.b16 %v1901, %v1901
      %v1922 = vpack.c.b16 %v1902, %v1902
      %v1923 = vpack.c.b16 %v1903, %v1903
      %v1924 = vpack.c.b16 %v1904, %v1904
      %v1925 = vpack.c.b16 %v1905, %v1905
      %v1926 = vpack.c.b16 %v1906, %v1906
      %v1927 = vpack.c.b16 %v1907, %v1907
      %v1928 = vpack.c.b16 %v1908, %v1908
      %v1929 = vpack.c.b16 %v1909, %v1909
      %v1930 = vpack.c.b16 %v1910, %v1910
      %v1931 = vpack.c.b16 %v1911, %v1911
      %v1932 = vpack.c.b16 %v1912, %v1912
      %v1933 = vpack.c.b16 %v1913, %v1913
      %v1934 = vpack.c.b16 %v1914, %v1914
      %v1935 = vpack.c.b16 %v1915, %v1915
      %v1936 = vpack.c.b16 %v1916, %v1916
      %v1938 = vshrl.u32 %v1917, 16
      %v1940 = vrot.slane %v1938, 7
      %v1941 = vshll.u32 %v1917, 16
      %v1943 = vor.u32 %v1940, %v1941
      %v1944 = vrot.slane %v1940, 4
      %v1946 = vshrl.u32 %v1918, 16
      %v1948 = vrot.slane %v1946, 7
      %v1949 = vshll.u32 %v1918, 16
      %v1951 = vor.u32 %v1948, %v1949
      %v1952 = vsel %vm481, %v1944, %v1951
      %v1953 = vrot.slane %v1948, 4
      %v1955 = vshrl.u32 %v1919, 16
      %v1957 = vrot.slane %v1955, 7
      %v1958 = vshll.u32 %v1919, 16
      %v1960 = vor.u32 %v1957, %v1958
      %v1961 = vrot.slane %v1957, 4
      %v1963 = vshrl.u32 %v1920, 16
      %v1965 = vrot.slane %v1963, 7
      %v1966 = vshll.u32 %v1920, 16
      %v1968 = vor.u32 %v1965, %v1966
      %v1969 = vsel %vm481, %v1961, %v1968
      %v1970 = vrot.slane %v1965, 4
      %v1972 = vshrl.u32 %v1921, 16
      %v1974 = vrot.slane %v1972, 7
      %v1975 = vshll.u32 %v1921, 16
      %v1977 = vor.u32 %v1974, %v1975
      %v1978 = vrot.slane %v1974, 4
      %v1980 = vshrl.u32 %v1922, 16
      %v1982 = vrot.slane %v1980, 7
      %v1983 = vshll.u32 %v1922, 16
      %v1985 = vor.u32 %v1982, %v1983
      %v1986 = vsel %vm481, %v1978, %v1985
      %v1987 = vrot.slane %v1982, 4
      %v1989 = vshrl.u32 %v1923, 16
      %v1991 = vrot.slane %v1989, 7
      %v1992 = vshll.u32 %v1923, 16
      %v1994 = vor.u32 %v1991, %v1992
      %v1995 = vrot.slane %v1991, 4
      %v1997 = vshrl.u32 %v1924, 16
      %v1999 = vrot.slane %v1997, 7
      %v2000 = vshll.u32 %v1924, 16
      %v2002 = vor.u32 %v1999, %v2000
      %v2003 = vsel %vm481, %v1995, %v2002
      %v2004 = vrot.slane %v1999, 4
      %v2006 = vshrl.u32 %v1925, 16
      %v2008 = vrot.slane %v2006, 7
      %v2009 = vshll.u32 %v1925, 16
      %v2011 = vor.u32 %v2008, %v2009
      %v2012 = vrot.slane %v2008, 4
      %v2014 = vshrl.u32 %v1926, 16
      %v2016 = vrot.slane %v2014, 7
      %v2017 = vshll.u32 %v1926, 16
      %v2019 = vor.u32 %v2016, %v2017
      %v2020 = vsel %vm481, %v2012, %v2019
      %v2021 = vrot.slane %v2016, 4
      %v2023 = vshrl.u32 %v1927, 16
      %v2025 = vrot.slane %v2023, 7
      %v2026 = vshll.u32 %v1927, 16
      %v2028 = vor.u32 %v2025, %v2026
      %v2029 = vrot.slane %v2025, 4
      %v2031 = vshrl.u32 %v1928, 16
      %v2033 = vrot.slane %v2031, 7
      %v2034 = vshll.u32 %v1928, 16
      %v2036 = vor.u32 %v2033, %v2034
      %v2037 = vsel %vm481, %v2029, %v2036
      %v2038 = vrot.slane %v2033, 4
      %v2040 = vshrl.u32 %v1929, 16
      %v2042 = vrot.slane %v2040, 7
      %v2043 = vshll.u32 %v1929, 16
      %v2045 = vor.u32 %v2042, %v2043
      %v2046 = vrot.slane %v2042, 4
      %v2048 = vshrl.u32 %v1930, 16
      %v2050 = vrot.slane %v2048, 7
      %v2051 = vshll.u32 %v1930, 16
      %v2053 = vor.u32 %v2050, %v2051
      %v2054 = vsel %vm481, %v2046, %v2053
      %v2055 = vrot.slane %v2050, 4
      %v2057 = vshrl.u32 %v1931, 16
      %v2059 = vrot.slane %v2057, 7
      %v2060 = vshll.u32 %v1931, 16
      %v2062 = vor.u32 %v2059, %v2060
      %v2063 = vrot.slane %v2059, 4
      %v2065 = vshrl.u32 %v1932, 16
      %v2067 = vrot.slane %v2065, 7
      %v2068 = vshll.u32 %v1932, 16
      %v2070 = vor.u32 %v2067, %v2068
      %v2071 = vsel %vm481, %v2063, %v2070
      %v2072 = vrot.slane %v2067, 4
      %v2074 = vshrl.u32 %v1933, 16
      %v2076 = vrot.slane %v2074, 7
      %v2077 = vshll.u32 %v1933, 16
      %v2079 = vor.u32 %v2076, %v2077
      %v2080 = vrot.slane %v2076, 4
      %v2082 = vshrl.u32 %v1934, 16
      %v2084 = vrot.slane %v2082, 7
      %v2085 = vshll.u32 %v1934, 16
      %v2087 = vor.u32 %v2084, %v2085
      %v2088 = vsel %vm481, %v2080, %v2087
      %v2089 = vrot.slane %v2084, 4
      %v2091 = vshrl.u32 %v1935, 16
      %v2093 = vrot.slane %v2091, 7
      %v2094 = vshll.u32 %v1935, 16
      %v2096 = vor.u32 %v2093, %v2094
      %v2097 = vrot.slane %v2093, 4
      %v2099 = vshrl.u32 %v1936, 16
      %v2101 = vrot.slane %v2099, 7
      %v2102 = vshll.u32 %v1936, 16
      %v2104 = vor.u32 %v2101, %v2102
      %v2105 = vsel %vm481, %v2097, %v2104
      %v2106 = vrot.slane %v2101, 4
      %v2137 = vld [vmem:[#allocation3] sm:$0xf]
      %v2138 = vsel %vm644, %v1943, %v2137
      %2139 = vst [vmem:[#allocation3] sm:$0xf] %v2138
      %2140 = vst.msk [vmem:[#allocation3 + $0x4] sm:$0xf] %vm648, %v1952
      %v2141 = vld [vmem:[#allocation3 + $0x8] sm:$0x1]
      %v2142 = vsel %vm316, %v1953, %v2141
      %2143 = vst [vmem:[#allocation3 + $0x8] sm:$0x1] %v2142
      %v2144 = vld [vmem:[#allocation3 + $0xc] sm:$0xf]
      %v2145 = vsel %vm644, %v1960, %v2144
      %2146 = vst [vmem:[#allocation3 + $0xc] sm:$0xf] %v2145
      %2147 = vst.msk [vmem:[#allocation3 + $0x10] sm:$0xf] %vm648, %v1969
      %v2148 = vld [vmem:[#allocation3 + $0x14] sm:$0x1]
      %v2149 = vsel %vm316, %v1970, %v2148
      %2150 = vst [vmem:[#allocation3 + $0x14] sm:$0x1] %v2149
      %v2151 = vld [vmem:[#allocation3 + $0x18] sm:$0xf]
      %v2152 = vsel %vm644, %v1977, %v2151
      %2153 = vst [vmem:[#allocation3 + $0x18] sm:$0xf] %v2152
      %2154 = vst.msk [vmem:[#allocation3 + $0x1c] sm:$0xf] %vm648, %v1986
      %v2155 = vld [vmem:[#allocation3 + $0x20] sm:$0x1]
      %v2156 = vsel %vm316, %v1987, %v2155
      %2157 = vst [vmem:[#allocation3 + $0x20] sm:$0x1] %v2156
      %v2158 = vld [vmem:[#allocation3 + $0x24] sm:$0xf]
      %v2159 = vsel %vm644, %v1994, %v2158
      %2160 = vst [vmem:[#allocation3 + $0x24] sm:$0xf] %v2159
      %2161 = vst.msk [vmem:[#allocation3 + $0x28] sm:$0xf] %vm648, %v2003
      %v2162 = vld [vmem:[#allocation3 + $0x2c] sm:$0x1]
      %v2163 = vsel %vm316, %v2004, %v2162
      %2164 = vst [vmem:[#allocation3 + $0x2c] sm:$0x1] %v2163
      %v2165 = vld [vmem:[#allocation3 + $0x30] sm:$0xf]
      %v2166 = vsel %vm644, %v2011, %v2165
      %2167 = vst [vmem:[#allocation3 + $0x30] sm:$0xf] %v2166
      %2168 = vst.msk [vmem:[#allocation3 + $0x34] sm:$0xf] %vm648, %v2020
      %v2169 = vld [vmem:[#allocation3 + $0x38] sm:$0x1]
      %v2170 = vsel %vm316, %v2021, %v2169
      %2171 = vst [vmem:[#allocation3 + $0x38] sm:$0x1] %v2170
      %v2172 = vld [vmem:[#allocation3 + $0x3c] sm:$0xf]
      %v2173 = vsel %vm644, %v2028, %v2172
      %2174 = vst [vmem:[#allocation3 + $0x3c] sm:$0xf] %v2173
      %2175 = vst.msk [vmem:[#allocation3 + $0x40] sm:$0xf] %vm648, %v2037
      %v2176 = vld [vmem:[#allocation3 + $0x44] sm:$0x1]
      %v2177 = vsel %vm316, %v2038, %v2176
      %2178 = vst [vmem:[#allocation3 + $0x44] sm:$0x1] %v2177
      %v2179 = vld [vmem:[#allocation3 + $0x48] sm:$0xf]
      %v2180 = vsel %vm644, %v2045, %v2179
      %2181 = vst [vmem:[#allocation3 + $0x48] sm:$0xf] %v2180
      %2182 = vst.msk [vmem:[#allocation3 + $0x4c] sm:$0xf] %vm648, %v2054
      %v2183 = vld [vmem:[#allocation3 + $0x50] sm:$0x1]
      %v2184 = vsel %vm316, %v2055, %v2183
      %2185 = vst [vmem:[#allocation3 + $0x50] sm:$0x1] %v2184
      %v2186 = vld [vmem:[#allocation3 + $0x54] sm:$0xf]
      %v2187 = vsel %vm644, %v2062, %v2186
      %2188 = vst [vmem:[#allocation3 + $0x54] sm:$0xf] %v2187
      %2189 = vst.msk [vmem:[#allocation3 + $0x58] sm:$0xf] %vm648, %v2071
      %v2190 = vld [vmem:[#allocation3 + $0x5c] sm:$0x1]
      %v2191 = vsel %vm316, %v2072, %v2190
      %2192 = vst [vmem:[#allocation3 + $0x5c] sm:$0x1] %v2191
      %v2193 = vld [vmem:[#allocation3 + $0x60] sm:$0xf]
      %v2194 = vsel %vm644, %v2079, %v2193
      %2195 = vst [vmem:[#allocation3 + $0x60] sm:$0xf] %v2194
      %2196 = vst.msk [vmem:[#allocation3 + $0x64] sm:$0xf] %vm648, %v2088
      %v2197 = vld [vmem:[#allocation3 + $0x68] sm:$0x1]
      %v2198 = vsel %vm316, %v2089, %v2197
      %2199 = vst [vmem:[#allocation3 + $0x68] sm:$0x1] %v2198
      %v2200 = vld [vmem:[#allocation3 + $0x6c] sm:$0xf]
      %v2201 = vsel %vm644, %v2096, %v2200
      %2202 = vst [vmem:[#allocation3 + $0x6c] sm:$0xf] %v2201
      %2203 = vst.msk [vmem:[#allocation3 + $0x70] sm:$0xf] %vm648, %v2105
      %v2204 = vld [vmem:[#allocation3 + $0x74] sm:$0x1]
      %v2205 = vsel %vm316, %v2106, %v2204
      %2206 = vst [vmem:[#allocation3 + $0x74] sm:$0x1] %v2205
      // Predicated region
      $region65: #{tpu_custom_call.1} parent=47 // pred_check
        %p2207 = pneg %p780
      $region66: #{tpu_custom_call.1} parent=47 // pred_check_branch
        %2209 = sbr.rel (%p2207) target = $region68
      $region67: #{tpu_custom_call.1} parent=47 // pred_region
        %v2210 = vld [vmem:[#allocation3] sm:$0xf]
        %v2211 = vsel %vm644, 0, %v2210
        %2212 = vst [vmem:[#allocation3] sm:$0xf] %v2211
        %2213 = vst.msk [vmem:[#allocation3 + $0x4] sm:$0xf] %vm648, 0
        %v2214 = vld [vmem:[#allocation3 + $0x8] sm:$0x1]
        %v2215 = vsel %vm316, 0, %v2214
        %2216 = vst [vmem:[#allocation3 + $0x8] sm:$0x1] %v2215
      $region68: #{tpu_custom_call.1} parent=47 // pred_fallthru
        _
      // Predicated region
      $region69: #{tpu_custom_call.1} parent=47 // pred_check
        %p2217 = pneg %p877
      $region70: #{tpu_custom_call.1} parent=47 // pred_check_branch
        %2219 = sbr.rel (%p2217) target = $region72
      $region71: #{tpu_custom_call.1} parent=47 // pred_region
        %s2220 = scalar_lea.vmem [#allocation3], 108
        %v2221 = vld [vmem:[%s2220] sm:$0xf]
        %v2222 = vsel %vm644, 0, %v2221
        %2223 = vst [vmem:[%s2220] sm:$0xf] %v2222
        %2224 = vst.msk [vmem:[%s2220 + $0x4] sm:$0xf] %vm648, 0
        %v2225 = vld [vmem:[%s2220 + $0x8] sm:$0x1]
        %v2226 = vsel %vm316, 0, %v2225
        %2227 = vst [vmem:[%s2220 + $0x8] sm:$0x1] %v2226
      $region72: #{tpu_custom_call.1} parent=47 // pred_fallthru
        _
      %v2228 = vld [vmem:[#allocation3] sm:$0xf]
      %v2229 = vld [vmem:[#allocation3 + $0x4] sm:$0xf]
      %v2230 = vld [vmem:[#allocation3 + $0xc] sm:$0xf]
      %v2231 = vld [vmem:[#allocation3 + $0x10] sm:$0xf]
      %v2232 = vld [vmem:[#allocation3 + $0x18] sm:$0xf]
      %v2233 = vld [vmem:[#allocation3 + $0x1c] sm:$0xf]
      %v2234 = vld [vmem:[#allocation3 + $0x24] sm:$0xf]
      %v2235 = vld [vmem:[#allocation3 + $0x28] sm:$0xf]
      %v2236 = vld [vmem:[#allocation3 + $0x30] sm:$0xf]
      %v2237 = vld [vmem:[#allocation3 + $0x34] sm:$0xf]
      %v2238 = vld [vmem:[#allocation3 + $0x3c] sm:$0xf]
      %v2239 = vld [vmem:[#allocation3 + $0x40] sm:$0xf]
      %v2240 = vld [vmem:[#allocation3 + $0x48] sm:$0xf]
      %v2241 = vld [vmem:[#allocation3 + $0x4c] sm:$0xf]
      %v2242 = vld [vmem:[#allocation3 + $0x54] sm:$0xf]
      %v2243 = vld [vmem:[#allocation3 + $0x58] sm:$0xf]
      %v2244 = vld [vmem:[#allocation3 + $0x60] sm:$0xf]
      %v2245 = vld [vmem:[#allocation3 + $0x64] sm:$0xf]
      %v2246 = vld [vmem:[#allocation3 + $0x6c] sm:$0xf]
      %v2247 = vld [vmem:[#allocation3 + $0x70] sm:$0xf]
      %v2248 = vld [vmem:[#allocation3 + $0x8] sm:$0x1]
      %v2249 = vld [vmem:[#allocation3 + $0x14] sm:$0x1]
      %v2250 = vld [vmem:[#allocation3 + $0x20] sm:$0x1]
      %v2251 = vld [vmem:[#allocation3 + $0x2c] sm:$0x1]
      %v2252 = vld [vmem:[#allocation3 + $0x38] sm:$0x1]
      %v2253 = vld [vmem:[#allocation3 + $0x44] sm:$0x1]
      %v2254 = vld [vmem:[#allocation3 + $0x50] sm:$0x1]
      %v2255 = vld [vmem:[#allocation3 + $0x5c] sm:$0x1]
      %v2256 = vld [vmem:[#allocation3 + $0x68] sm:$0x1]
      %v2257 = vld [vmem:[#allocation3 + $0x74] sm:$0x1]
      %v2258 = vld [vmem:[#allocation3] sm:$0xe]
      %v2259 = vld [vmem:[#allocation3 + $0xc] sm:$0xe]
      %v2260 = vld [vmem:[#allocation3 + $0x18] sm:$0xe]
      %v2261 = vld [vmem:[#allocation3 + $0x24] sm:$0xe]
      %v2262 = vld [vmem:[#allocation3 + $0x30] sm:$0xe]
      %v2263 = vld [vmem:[#allocation3 + $0x3c] sm:$0xe]
      %v2264 = vld [vmem:[#allocation3 + $0x48] sm:$0xe]
      %v2265 = vld [vmem:[#allocation3 + $0x54] sm:$0xe]
      %v2266 = vld [vmem:[#allocation3 + $0x60] sm:$0xe]
      %v2267 = vld [vmem:[#allocation3 + $0x6c] sm:$0xe]
      %v2288 = vunpack.c.l.b16 %v2228
      %v2289 = vunpack.c.l.b16 %v2229
      %v2290 = vunpack.c.l.b16 %v2230
      %v2291 = vunpack.c.l.b16 %v2231
      %v2292 = vunpack.c.l.b16 %v2232
      %v2293 = vunpack.c.l.b16 %v2233
      %v2294 = vunpack.c.l.b16 %v2234
      %v2295 = vunpack.c.l.b16 %v2235
      %v2296 = vunpack.c.l.b16 %v2236
      %v2297 = vunpack.c.l.b16 %v2237
      %v2298 = vunpack.c.l.b16 %v2238
      %v2299 = vunpack.c.l.b16 %v2239
      %v2300 = vunpack.c.l.b16 %v2240
      %v2301 = vunpack.c.l.b16 %v2241
      %v2302 = vunpack.c.l.b16 %v2242
      %v2303 = vunpack.c.l.b16 %v2243
      %v2304 = vunpack.c.l.b16 %v2244
      %v2305 = vunpack.c.l.b16 %v2245
      %v2306 = vunpack.c.l.b16 %v2246
      %v2307 = vunpack.c.l.b16 %v2247
      %v2308 = vpack.c.b16 %v2289, %v2288
      %v2309 = vpack.c.b16 %v2291, %v2290
      %v2310 = vpack.c.b16 %v2293, %v2292
      %v2311 = vpack.c.b16 %v2295, %v2294
      %v2312 = vpack.c.b16 %v2297, %v2296
      %v2313 = vpack.c.b16 %v2299, %v2298
      %v2314 = vpack.c.b16 %v2301, %v2300
      %v2315 = vpack.c.b16 %v2303, %v2302
      %v2316 = vpack.c.b16 %v2305, %v2304
      %v2317 = vpack.c.b16 %v2307, %v2306
      %v2328 = vunpack.c.l.b16 %v2248
      %v2329 = vunpack.c.l.b16 %v2249
      %v2330 = vunpack.c.l.b16 %v2250
      %v2331 = vunpack.c.l.b16 %v2251
      %v2332 = vunpack.c.l.b16 %v2252
      %v2333 = vunpack.c.l.b16 %v2253
      %v2334 = vunpack.c.l.b16 %v2254
      %v2335 = vunpack.c.l.b16 %v2255
      %v2336 = vunpack.c.l.b16 %v2256
      %v2337 = vunpack.c.l.b16 %v2257
      %v2338 = vpack.c.b16 %v2328, %v2328
      %v2339 = vpack.c.b16 %v2329, %v2329
      %v2340 = vpack.c.b16 %v2330, %v2330
      %v2341 = vpack.c.b16 %v2331, %v2331
      %v2342 = vpack.c.b16 %v2332, %v2332
      %v2343 = vpack.c.b16 %v2333, %v2333
      %v2344 = vpack.c.b16 %v2334, %v2334
      %v2345 = vpack.c.b16 %v2335, %v2335
      %v2346 = vpack.c.b16 %v2336, %v2336
      %v2347 = vpack.c.b16 %v2337, %v2337
      %v2349 = vshrl.u32 %v2308, 16
      %v2351 = vshll.u32 %v2308, 16
      %v2353 = vrot.slane %v2351, 1
      %v2354 = vor.u32 %v2349, %v2353
      %v2356 = vshll.u32 %v2338, 16
      %v2358 = vrot.slane %v2356, 1
      %v2359 = vsel %vm1040, %v2354, %v2358
      %v2361 = vshrl.u32 %v2309, 16
      %v2363 = vshll.u32 %v2309, 16
      %v2365 = vrot.slane %v2363, 1
      %v2366 = vor.u32 %v2361, %v2365
      %v2368 = vshll.u32 %v2339, 16
      %v2370 = vrot.slane %v2368, 1
      %v2371 = vsel %vm1040, %v2366, %v2370
      %v2373 = vshrl.u32 %v2310, 16
      %v2375 = vshll.u32 %v2310, 16
      %v2377 = vrot.slane %v2375, 1
      %v2378 = vor.u32 %v2373, %v2377
      %v2380 = vshll.u32 %v2340, 16
      %v2382 = vrot.slane %v2380, 1
      %v2383 = vsel %vm1040, %v2378, %v2382
      %v2385 = vshrl.u32 %v2311, 16
      %v2387 = vshll.u32 %v2311, 16
      %v2389 = vrot.slane %v2387, 1
      %v2390 = vor.u32 %v2385, %v2389
      %v2392 = vshll.u32 %v2341, 16
      %v2394 = vrot.slane %v2392, 1
      %v2395 = vsel %vm1040, %v2390, %v2394
      %v2397 = vshrl.u32 %v2312, 16
      %v2399 = vshll.u32 %v2312, 16
      %v2401 = vrot.slane %v2399, 1
      %v2402 = vor.u32 %v2397, %v2401
      %v2404 = vshll.u32 %v2342, 16
      %v2406 = vrot.slane %v2404, 1
      %v2407 = vsel %vm1040, %v2402, %v2406
      %v2409 = vshrl.u32 %v2313, 16
      %v2411 = vshll.u32 %v2313, 16
      %v2413 = vrot.slane %v2411, 1
      %v2414 = vor.u32 %v2409, %v2413
      %v2416 = vshll.u32 %v2343, 16
      %v2418 = vrot.slane %v2416, 1
      %v2419 = vsel %vm1040, %v2414, %v2418
      %v2421 = vshrl.u32 %v2314, 16
      %v2423 = vshll.u32 %v2314, 16
      %v2425 = vrot.slane %v2423, 1
      %v2426 = vor.u32 %v2421, %v2425
      %v2428 = vshll.u32 %v2344, 16
      %v2430 = vrot.slane %v2428, 1
      %v2431 = vsel %vm1040, %v2426, %v2430
      %v2433 = vshrl.u32 %v2315, 16
      %v2435 = vshll.u32 %v2315, 16
      %v2437 = vrot.slane %v2435, 1
      %v2438 = vor.u32 %v2433, %v2437
      %v2440 = vshll.u32 %v2345, 16
      %v2442 = vrot.slane %v2440, 1
      %v2443 = vsel %vm1040, %v2438, %v2442
      %v2445 = vshrl.u32 %v2316, 16
      %v2447 = vshll.u32 %v2316, 16
      %v2449 = vrot.slane %v2447, 1
      %v2450 = vor.u32 %v2445, %v2449
      %v2452 = vshll.u32 %v2346, 16
      %v2454 = vrot.slane %v2452, 1
      %v2455 = vsel %vm1040, %v2450, %v2454
      %v2457 = vshrl.u32 %v2317, 16
      %v2459 = vshll.u32 %v2317, 16
      %v2461 = vrot.slane %v2459, 1
      %v2462 = vor.u32 %v2457, %v2461
      %v2464 = vshll.u32 %v2347, 16
      %v2466 = vrot.slane %v2464, 1
      %v2467 = vsel %vm1040, %v2462, %v2466
      %2468 = vrot.lane.b32.xlu0 %v2359, 4
      %v2469 = vpop.permute.xlu0 %2468
      %2470 = vrot.lane.b32.xlu0 %v2371, 4
      %v2471 = vpop.permute.xlu0 %2470
      %2472 = vrot.lane.b32.xlu0 %v2383, 4
      %v2473 = vpop.permute.xlu0 %2472
      %2474 = vrot.lane.b32.xlu0 %v2395, 4
      %v2475 = vpop.permute.xlu0 %2474
      %2476 = vrot.lane.b32.xlu0 %v2407, 4
      %v2477 = vpop.permute.xlu0 %2476
      %2478 = vrot.lane.b32.xlu0 %v2419, 4
      %v2479 = vpop.permute.xlu0 %2478
      %2480 = vrot.lane.b32.xlu0 %v2431, 4
      %v2481 = vpop.permute.xlu0 %2480
      %2482 = vrot.lane.b32.xlu0 %v2443, 4
      %v2483 = vpop.permute.xlu0 %2482
      %2484 = vrot.lane.b32.xlu0 %v2455, 4
      %v2485 = vpop.permute.xlu0 %2484
      %2486 = vrot.lane.b32.xlu0 %v2467, 4
      %v2487 = vpop.permute.xlu0 %2486
      %v2498 = vunpack.c.l.b16 %v2258
      %v2499 = vunpack.c.l.b16 %v2259
      %v2500 = vunpack.c.l.b16 %v2260
      %v2501 = vunpack.c.l.b16 %v2261
      %v2502 = vunpack.c.l.b16 %v2262
      %v2503 = vunpack.c.l.b16 %v2263
      %v2504 = vunpack.c.l.b16 %v2264
      %v2505 = vunpack.c.l.b16 %v2265
      %v2506 = vunpack.c.l.b16 %v2266
      %v2507 = vunpack.c.l.b16 %v2267
      %v2508 = vpack.c.b16 %v2289, %v2498
      %v2509 = vpack.c.b16 %v2291, %v2499
      %v2510 = vpack.c.b16 %v2293, %v2500
      %v2511 = vpack.c.b16 %v2295, %v2501
      %v2512 = vpack.c.b16 %v2297, %v2502
      %v2513 = vpack.c.b16 %v2299, %v2503
      %v2514 = vpack.c.b16 %v2301, %v2504
      %v2515 = vpack.c.b16 %v2303, %v2505
      %v2516 = vpack.c.b16 %v2305, %v2506
      %v2517 = vpack.c.b16 %v2307, %v2507
      %v2518 = vrot.slane %v2508, 1
      %v2519 = vrot.slane %v2338, 1
      %v2520 = vsel %vm1245, %v2518, %v2519
      %v2521 = vrot.slane %v2509, 1
      %v2522 = vrot.slane %v2339, 1
      %v2523 = vsel %vm1245, %v2521, %v2522
      %v2524 = vrot.slane %v2510, 1
      %v2525 = vrot.slane %v2340, 1
      %v2526 = vsel %vm1245, %v2524, %v2525
      %v2527 = vrot.slane %v2511, 1
      %v2528 = vrot.slane %v2341, 1
      %v2529 = vsel %vm1245, %v2527, %v2528
      %v2530 = vrot.slane %v2512, 1
      %v2531 = vrot.slane %v2342, 1
      %v2532 = vsel %vm1245, %v2530, %v2531
      %v2533 = vrot.slane %v2513, 1
      %v2534 = vrot.slane %v2343, 1
      %v2535 = vsel %vm1245, %v2533, %v2534
      %v2536 = vrot.slane %v2514, 1
      %v2537 = vrot.slane %v2344, 1
      %v2538 = vsel %vm1245, %v2536, %v2537
      %v2539 = vrot.slane %v2515, 1
      %v2540 = vrot.slane %v2345, 1
      %v2541 = vsel %vm1245, %v2539, %v2540
      %v2542 = vrot.slane %v2516, 1
      %v2543 = vrot.slane %v2346, 1
      %v2544 = vsel %vm1245, %v2542, %v2543
      %v2545 = vrot.slane %v2517, 1
      %v2546 = vrot.slane %v2347, 1
      %v2547 = vsel %vm1245, %v2545, %v2546
      %2548 = vrot.lane.b32.xlu0 %v2520, 8
      %v2549 = vpop.permute.xlu0 %2548
      %2550 = vrot.lane.b32.xlu0 %v2523, 8
      %v2551 = vpop.permute.xlu0 %2550
      %2552 = vrot.lane.b32.xlu0 %v2526, 8
      %v2553 = vpop.permute.xlu0 %2552
      %2554 = vrot.lane.b32.xlu0 %v2529, 8
      %v2555 = vpop.permute.xlu0 %2554
      %2556 = vrot.lane.b32.xlu0 %v2532, 8
      %v2557 = vpop.permute.xlu0 %2556
      %2558 = vrot.lane.b32.xlu0 %v2535, 8
      %v2559 = vpop.permute.xlu0 %2558
      %2560 = vrot.lane.b32.xlu0 %v2538, 8
      %v2561 = vpop.permute.xlu0 %2560
      %2562 = vrot.lane.b32.xlu0 %v2541, 8
      %v2563 = vpop.permute.xlu0 %2562
      %2564 = vrot.lane.b32.xlu0 %v2544, 8
      %v2565 = vpop.permute.xlu0 %2564
      %2566 = vrot.lane.b32.xlu0 %v2547, 8
      %v2567 = vpop.permute.xlu0 %2566
      %v2569 = vsel %vm1306, %v2308, %v2469
      %v2571 = vsel %vm1306, %v2309, %v2471
      %v2573 = vsel %vm1306, %v2310, %v2473
      %v2575 = vsel %vm1306, %v2311, %v2475
      %v2577 = vsel %vm1306, %v2312, %v2477
      %v2579 = vsel %vm1306, %v2313, %v2479
      %v2581 = vsel %vm1306, %v2314, %v2481
      %v2583 = vsel %vm1306, %v2315, %v2483
      %v2585 = vsel %vm1306, %v2316, %v2485
      %v2587 = vsel %vm1306, %v2317, %v2487
      %v2589 = vsel %vm1331, %v2569, %v2549
      %v2591 = vsel %vm1331, %v2571, %v2551
      %v2593 = vsel %vm1331, %v2573, %v2553
      %v2595 = vsel %vm1331, %v2575, %v2555
      %v2597 = vsel %vm1331, %v2577, %v2557
      %v2599 = vsel %vm1331, %v2579, %v2559
      %v2601 = vsel %vm1331, %v2581, %v2561
      %v2603 = vsel %vm1331, %v2583, %v2563
      %v2605 = vsel %vm1331, %v2585, %v2565
      %v2607 = vsel %vm1331, %v2587, %v2567
      %v2608 = vld [vmem:[%s6] sm:$0xf]
      %v2609 = vld [vmem:[%s6 + $0x4] sm:$0x3]
      %s2610 = scalar_lea.vmem %s6, 8
      %v2611 = vld [vmem:[%s2610] sm:$0xf]
      %v2612 = vld [vmem:[%s2610 + $0x4] sm:$0x3]
      %v2615 = vunpack.c.l.b16 %v2611
      %v2616 = vunpack.c.l.b16 %v2612
      %v2617 = vpack.c.b16 %v2616, %v2615
      %v2618 = vsel %vm1366, %v2591, 0
      %v2620 = vsel %vm1366, %v2593, 0
      %v2622 = vsel %vm1366, %v2595, 0
      %v2624 = vsel %vm1366, %v2597, 0
      %v2626 = vsel %vm1366, %v2599, 0
      %v2628 = vsel %vm1366, %v2601, 0
      %v2630 = vsel %vm1366, %v2603, 0
      %v2632 = vsel %vm1366, %v2605, 0
      %v2635 = vsel %vm1387, %v2617, 0
      %2637 = vmatprep.subr.bf16.mxu0 0
      %2638 = vmatpush1.bf16.msra.mxu0 0
      %2639 = vmatprep.subr.bf16.mxu0 0
      %2640 = vmatpush1.bf16.msra.mxu0 0
      %2641 = vmatprep.subr.bf16.mxu0 0
      %2642 = vmatpush1.bf16.msra.mxu0 0
      %2643 = vmatprep.subr.bf16.mxu0 0
      %2644 = vmatpush1.bf16.msra.mxu0 0
      %2645 = vmatprep.subr.bf16.mxu0 0
      %2646 = vmatpush1.bf16.msra.mxu0 0
      %2647 = vmatprep.subr.bf16.mxu0 0
      %2648 = vmatpush1.bf16.msra.mxu0 0
      %2649 = vmatprep.subr.bf16.mxu0 0
      %2650 = vmatpush1.bf16.msra.mxu0 0
      %2651 = vmatprep.subr.bf16.mxu0 0
      %2652 = vmatpush1.bf16.msra.mxu0 %v2635
      %2653 = vmatprep.subr.bf16.mxu0 0
      %2654 = vmatpush2.bf16.msra.mxu0 0
      %2655 = vmatprep.subr.bf16.mxu0 0
      %2656 = vmatpush2.bf16.msra.mxu0 0
      %2657 = vmatprep.subr.bf16.mxu0 0
      %2658 = vmatpush2.bf16.msra.mxu0 0
      %2659 = vmatprep.subr.bf16.mxu0 0
      %2660 = vmatpush2.bf16.msra.mxu0 0
      %2661 = vmatprep.subr.bf16.mxu0 0
      %2662 = vmatpush2.bf16.msra.mxu0 0
      %2663 = vmatprep.subr.bf16.mxu0 0
      %2664 = vmatpush2.bf16.msra.mxu0 0
      %2665 = vmatprep.subr.bf16.mxu0 0
      %2666 = vmatpush2.bf16.msra.mxu0 0
      %2667 = vmatprep.subr.bf16.mxu0 0
      %2668 = vmatpush2.bf16.msra.mxu0 0
      %2669 = vmatprep.mubr.bf16.mxu0 0
      %2670 = vmatmul.mubr.bf16.gmra.mxu0 %v2618
      %v2671 = vpop.f32.mrf.mxu0
      %v2672 = vadd.f32 0.0, %v2671
      %v2673 = vpop.f32.mrf.mxu0
      %v2674 = vpop.f32.mrf.mxu0
      %v2675 = vadd.f32 0.0, %v2674
      %v2676 = vpop.f32.mrf.mxu0
      %2677 = vmatprep.mubr.bf16.mxu0 0
      %2678 = vmatmul.mubr.bf16.gmra.mxu0 %v2620
      %v2679 = vpop.f32.mrf.mxu0
      %v2680 = vadd.f32 0.0, %v2679
      %v2681 = vpop.f32.mrf.mxu0
      %v2682 = vpop.f32.mrf.mxu0
      %v2683 = vadd.f32 0.0, %v2682
      %v2684 = vpop.f32.mrf.mxu0
      %2685 = vmatprep.mubr.bf16.mxu0 0
      %2686 = vmatmul.mubr.bf16.gmra.mxu0 %v2622
      %v2687 = vpop.f32.mrf.mxu0
      %v2688 = vadd.f32 0.0, %v2687
      %v2689 = vpop.f32.mrf.mxu0
      %v2690 = vpop.f32.mrf.mxu0
      %v2691 = vadd.f32 0.0, %v2690
      %v2692 = vpop.f32.mrf.mxu0
      %2693 = vmatprep.mubr.bf16.mxu0 0
      %2694 = vmatmul.mubr.bf16.gmra.mxu0 %v2624
      %v2695 = vpop.f32.mrf.mxu0
      %v2696 = vadd.f32 0.0, %v2695
      %v2697 = vpop.f32.mrf.mxu0
      %v2698 = vpop.f32.mrf.mxu0
      %v2699 = vadd.f32 0.0, %v2698
      %v2700 = vpop.f32.mrf.mxu0
      %2701 = vmatprep.mubr.bf16.mxu0 0
      %2702 = vmatmul.mubr.bf16.gmra.mxu0 %v2626
      %v2703 = vpop.f32.mrf.mxu0
      %v2704 = vadd.f32 0.0, %v2703
      %v2705 = vpop.f32.mrf.mxu0
      %v2706 = vpop.f32.mrf.mxu0
      %v2707 = vadd.f32 0.0, %v2706
      %v2708 = vpop.f32.mrf.mxu0
      %2709 = vmatprep.mubr.bf16.mxu0 0
      %2710 = vmatmul.mubr.bf16.gmra.mxu0 %v2628
      %v2711 = vpop.f32.mrf.mxu0
      %v2712 = vadd.f32 0.0, %v2711
      %v2713 = vpop.f32.mrf.mxu0
      %v2714 = vpop.f32.mrf.mxu0
      %v2715 = vadd.f32 0.0, %v2714
      %v2716 = vpop.f32.mrf.mxu0
      %2717 = vmatprep.mubr.bf16.mxu0 0
      %2718 = vmatmul.mubr.bf16.gmra.mxu0 %v2630
      %v2719 = vpop.f32.mrf.mxu0
      %v2720 = vadd.f32 0.0, %v2719
      %v2721 = vpop.f32.mrf.mxu0
      %v2722 = vpop.f32.mrf.mxu0
      %v2723 = vadd.f32 0.0, %v2722
      %v2724 = vpop.f32.mrf.mxu0
      %2725 = vmatprep.mubr.bf16.mxu0 0
      %2726 = vmatmul.mubr.bf16.gmra.mxu0 %v2632
      %v2727 = vpop.f32.mrf.mxu0
      %v2728 = vadd.f32 0.0, %v2727
      %v2729 = vpop.f32.mrf.mxu0
      %v2730 = vpop.f32.mrf.mxu0
      %v2731 = vadd.f32 0.0, %v2730
      %v2732 = vpop.f32.mrf.mxu0
      %2733 = vdwg.mxu0
      %v2736 = vunpack.c.l.b16 %v2608
      %v2737 = vunpack.c.l.b16 %v2609
      %v2738 = vpack.c.b16 %v2737, %v2736
      %v2739 = vsel %vm1366, %v2589, 0
      %v2742 = vsel %vm1387, %v2738, 0
      %2744 = vmatprep.subr.bf16.mxu0 0
      %2745 = vmatpush1.bf16.msra.mxu0 0
      %2746 = vmatprep.subr.bf16.mxu0 0
      %2747 = vmatpush1.bf16.msra.mxu0 0
      %2748 = vmatprep.subr.bf16.mxu0 0
      %2749 = vmatpush1.bf16.msra.mxu0 0
      %2750 = vmatprep.subr.bf16.mxu0 0
      %2751 = vmatpush1.bf16.msra.mxu0 0
      %2752 = vmatprep.subr.bf16.mxu0 0
      %2753 = vmatpush1.bf16.msra.mxu0 0
      %2754 = vmatprep.subr.bf16.mxu0 0
      %2755 = vmatpush1.bf16.msra.mxu0 0
      %2756 = vmatprep.subr.bf16.mxu0 0
      %2757 = vmatpush1.bf16.msra.mxu0 0
      %2758 = vmatprep.subr.bf16.mxu0 0
      %2759 = vmatpush1.bf16.msra.mxu0 %v2742
      %2760 = vmatprep.subr.bf16.mxu0 0
      %2761 = vmatpush2.bf16.msra.mxu0 0
      %2762 = vmatprep.subr.bf16.mxu0 0
      %2763 = vmatpush2.bf16.msra.mxu0 0
      %2764 = vmatprep.subr.bf16.mxu0 0
      %2765 = vmatpush2.bf16.msra.mxu0 0
      %2766 = vmatprep.subr.bf16.mxu0 0
      %2767 = vmatpush2.bf16.msra.mxu0 0
      %2768 = vmatprep.subr.bf16.mxu0 0
      %2769 = vmatpush2.bf16.msra.mxu0 0
      %2770 = vmatprep.subr.bf16.mxu0 0
      %2771 = vmatpush2.bf16.msra.mxu0 0
      %2772 = vmatprep.subr.bf16.mxu0 0
      %2773 = vmatpush2.bf16.msra.mxu0 0
      %2774 = vmatprep.subr.bf16.mxu0 0
      %2775 = vmatpush2.bf16.msra.mxu0 0
      %2776 = vmatprep.mubr.bf16.mxu0 0
      %2777 = vmatmul.mubr.bf16.gmra.mxu0 %v2739
      %v2778 = vpop.f32.mrf.mxu0
      %v2779 = vadd.f32 %v2672, %v2778
      %v2780 = vpop.f32.mrf.mxu0
      %v2781 = vpop.f32.mrf.mxu0
      %v2782 = vadd.f32 %v2675, %v2781
      %v2783 = vpop.f32.mrf.mxu0
      %2784 = vmatprep.mubr.bf16.mxu0 0
      %2785 = vmatmul.mubr.bf16.gmra.mxu0 %v2618
      %v2786 = vpop.f32.mrf.mxu0
      %v2787 = vadd.f32 %v2680, %v2786
      %v2788 = vpop.f32.mrf.mxu0
      %v2789 = vpop.f32.mrf.mxu0
      %v2790 = vadd.f32 %v2683, %v2789
      %v2791 = vpop.f32.mrf.mxu0
      %2792 = vmatprep.mubr.bf16.mxu0 0
      %2793 = vmatmul.mubr.bf16.gmra.mxu0 %v2620
      %v2794 = vpop.f32.mrf.mxu0
      %v2795 = vadd.f32 %v2688, %v2794
      %v2796 = vpop.f32.mrf.mxu0
      %v2797 = vpop.f32.mrf.mxu0
      %v2798 = vadd.f32 %v2691, %v2797
      %v2799 = vpop.f32.mrf.mxu0
      %2800 = vmatprep.mubr.bf16.mxu0 0
      %2801 = vmatmul.mubr.bf16.gmra.mxu0 %v2622
      %v2802 = vpop.f32.mrf.mxu0
      %v2803 = vadd.f32 %v2696, %v2802
      %v2804 = vpop.f32.mrf.mxu0
      %v2805 = vpop.f32.mrf.mxu0
      %v2806 = vadd.f32 %v2699, %v2805
      %v2807 = vpop.f32.mrf.mxu0
      %2808 = vmatprep.mubr.bf16.mxu0 0
      %2809 = vmatmul.mubr.bf16.gmra.mxu0 %v2624
      %v2810 = vpop.f32.mrf.mxu0
      %v2811 = vadd.f32 %v2704, %v2810
      %v2812 = vpop.f32.mrf.mxu0
      %v2813 = vpop.f32.mrf.mxu0
      %v2814 = vadd.f32 %v2707, %v2813
      %v2815 = vpop.f32.mrf.mxu0
      %2816 = vmatprep.mubr.bf16.mxu0 0
      %2817 = vmatmul.mubr.bf16.gmra.mxu0 %v2626
      %v2818 = vpop.f32.mrf.mxu0
      %v2819 = vadd.f32 %v2712, %v2818
      %v2820 = vpop.f32.mrf.mxu0
      %v2821 = vpop.f32.mrf.mxu0
      %v2822 = vadd.f32 %v2715, %v2821
      %v2823 = vpop.f32.mrf.mxu0
      %2824 = vmatprep.mubr.bf16.mxu0 0
      %2825 = vmatmul.mubr.bf16.gmra.mxu0 %v2628
      %v2826 = vpop.f32.mrf.mxu0
      %v2827 = vadd.f32 %v2720, %v2826
      %v2828 = vpop.f32.mrf.mxu0
      %v2829 = vpop.f32.mrf.mxu0
      %v2830 = vadd.f32 %v2723, %v2829
      %v2831 = vpop.f32.mrf.mxu0
      %2832 = vmatprep.mubr.bf16.mxu0 0
      %2833 = vmatmul.mubr.bf16.gmra.mxu0 %v2630
      %v2834 = vpop.f32.mrf.mxu0
      %v2835 = vadd.f32 %v2728, %v2834
      %v2836 = vpop.f32.mrf.mxu0
      %v2837 = vpop.f32.mrf.mxu0
      %v2838 = vadd.f32 %v2731, %v2837
      %v2839 = vpop.f32.mrf.mxu0
      %2840 = vdwg.mxu0
      %s2841 = scalar_lea.vmem %s6, 16
      %v2842 = vld [vmem:[%s2841] sm:$0xf]
      %v2843 = vld [vmem:[%s2841 + $0x4] sm:$0x3]
      %v2846 = vunpack.c.l.b16 %v2842
      %v2847 = vunpack.c.l.b16 %v2843
      %v2848 = vpack.c.b16 %v2847, %v2846
      %v2849 = vsel %vm1366, %v2607, 0
      %v2852 = vsel %vm1387, %v2848, 0
      %2854 = vmatprep.subr.bf16.mxu0 0
      %2855 = vmatpush1.bf16.msra.mxu0 0
      %2856 = vmatprep.subr.bf16.mxu0 0
      %2857 = vmatpush1.bf16.msra.mxu0 0
      %2858 = vmatprep.subr.bf16.mxu0 0
      %2859 = vmatpush1.bf16.msra.mxu0 0
      %2860 = vmatprep.subr.bf16.mxu0 0
      %2861 = vmatpush1.bf16.msra.mxu0 0
      %2862 = vmatprep.subr.bf16.mxu0 0
      %2863 = vmatpush1.bf16.msra.mxu0 0
      %2864 = vmatprep.subr.bf16.mxu0 0
      %2865 = vmatpush1.bf16.msra.mxu0 0
      %2866 = vmatprep.subr.bf16.mxu0 0
      %2867 = vmatpush1.bf16.msra.mxu0 0
      %2868 = vmatprep.subr.bf16.mxu0 0
      %2869 = vmatpush1.bf16.msra.mxu0 %v2852
      %2870 = vmatprep.subr.bf16.mxu0 0
      %2871 = vmatpush2.bf16.msra.mxu0 0
      %2872 = vmatprep.subr.bf16.mxu0 0
      %2873 = vmatpush2.bf16.msra.mxu0 0
      %2874 = vmatprep.subr.bf16.mxu0 0
      %2875 = vmatpush2.bf16.msra.mxu0 0
      %2876 = vmatprep.subr.bf16.mxu0 0
      %2877 = vmatpush2.bf16.msra.mxu0 0
      %2878 = vmatprep.subr.bf16.mxu0 0
      %2879 = vmatpush2.bf16.msra.mxu0 0
      %2880 = vmatprep.subr.bf16.mxu0 0
      %2881 = vmatpush2.bf16.msra.mxu0 0
      %2882 = vmatprep.subr.bf16.mxu0 0
      %2883 = vmatpush2.bf16.msra.mxu0 0
      %2884 = vmatprep.subr.bf16.mxu0 0
      %2885 = vmatpush2.bf16.msra.mxu0 0
      %2886 = vmatprep.mubr.bf16.mxu0 0
      %2887 = vmatmul.mubr.bf16.gmra.mxu0 %v2620
      %v2888 = vpop.f32.mrf.mxu0
      %v2889 = vadd.f32 0.0, %v2888
      %v2890 = vpop.f32.mrf.mxu0
      %v2891 = vpop.f32.mrf.mxu0
      %v2892 = vadd.f32 0.0, %v2891
      %v2893 = vpop.f32.mrf.mxu0
      %2894 = vmatprep.mubr.bf16.mxu0 0
      %2895 = vmatmul.mubr.bf16.gmra.mxu0 %v2622
      %v2896 = vpop.f32.mrf.mxu0
      %v2897 = vadd.f32 0.0, %v2896
      %v2898 = vpop.f32.mrf.mxu0
      %v2899 = vpop.f32.mrf.mxu0
      %v2900 = vadd.f32 0.0, %v2899
      %v2901 = vpop.f32.mrf.mxu0
      %2902 = vmatprep.mubr.bf16.mxu0 0
      %2903 = vmatmul.mubr.bf16.gmra.mxu0 %v2624
      %v2904 = vpop.f32.mrf.mxu0
      %v2905 = vadd.f32 0.0, %v2904
      %v2906 = vpop.f32.mrf.mxu0
      %v2907 = vpop.f32.mrf.mxu0
      %v2908 = vadd.f32 0.0, %v2907
      %v2909 = vpop.f32.mrf.mxu0
      %2910 = vmatprep.mubr.bf16.mxu0 0
      %2911 = vmatmul.mubr.bf16.gmra.mxu0 %v2626
      %v2912 = vpop.f32.mrf.mxu0
      %v2913 = vadd.f32 0.0, %v2912
      %v2914 = vpop.f32.mrf.mxu0
      %v2915 = vpop.f32.mrf.mxu0
      %v2916 = vadd.f32 0.0, %v2915
      %v2917 = vpop.f32.mrf.mxu0
      %2918 = vmatprep.mubr.bf16.mxu0 0
      %2919 = vmatmul.mubr.bf16.gmra.mxu0 %v2628
      %v2920 = vpop.f32.mrf.mxu0
      %v2921 = vadd.f32 0.0, %v2920
      %v2922 = vpop.f32.mrf.mxu0
      %v2923 = vpop.f32.mrf.mxu0
      %v2924 = vadd.f32 0.0, %v2923
      %v2925 = vpop.f32.mrf.mxu0
      %2926 = vmatprep.mubr.bf16.mxu0 0
      %2927 = vmatmul.mubr.bf16.gmra.mxu0 %v2630
      %v2928 = vpop.f32.mrf.mxu0
      %v2929 = vadd.f32 0.0, %v2928
      %v2930 = vpop.f32.mrf.mxu0
      %v2931 = vpop.f32.mrf.mxu0
      %v2932 = vadd.f32 0.0, %v2931
      %v2933 = vpop.f32.mrf.mxu0
      %2934 = vmatprep.mubr.bf16.mxu0 0
      %2935 = vmatmul.mubr.bf16.gmra.mxu0 %v2632
      %v2936 = vpop.f32.mrf.mxu0
      %v2937 = vadd.f32 0.0, %v2936
      %v2938 = vpop.f32.mrf.mxu0
      %v2939 = vpop.f32.mrf.mxu0
      %v2940 = vadd.f32 0.0, %v2939
      %v2941 = vpop.f32.mrf.mxu0
      %2942 = vmatprep.mubr.bf16.mxu0 0
      %2943 = vmatmul.mubr.bf16.gmra.mxu0 %v2849
      %v2944 = vpop.f32.mrf.mxu0
      %v2945 = vadd.f32 0.0, %v2944
      %v2946 = vpop.f32.mrf.mxu0
      %v2947 = vpop.f32.mrf.mxu0
      %v2948 = vadd.f32 0.0, %v2947
      %v2949 = vpop.f32.mrf.mxu0
      %2950 = vdwg.mxu0
      %v2951 = vadd.f32 %v2779, %v2889
      %v2952 = vadd.f32 %v2782, %v2892
      %v2953 = vadd.f32 %v2787, %v2897
      %v2954 = vadd.f32 %v2790, %v2900
      %v2955 = vadd.f32 %v2795, %v2905
      %v2956 = vadd.f32 %v2798, %v2908
      %v2957 = vadd.f32 %v2803, %v2913
      %v2958 = vadd.f32 %v2806, %v2916
      %v2959 = vadd.f32 %v2811, %v2921
      %v2960 = vadd.f32 %v2814, %v2924
      %v2961 = vadd.f32 %v2819, %v2929
      %v2962 = vadd.f32 %v2822, %v2932
      %v2963 = vadd.f32 %v2827, %v2937
      %v2964 = vadd.f32 %v2830, %v2940
      %v2965 = vadd.f32 %v2835, %v2945
      %v2966 = vadd.f32 %v2838, %v2948
      %v2967 = vld [vmem:[%s393] sm:$0xf]
      %v2968 = vld [vmem:[%s393 + $0x4] sm:$0xf]
      %v2969 = vld [vmem:[%s393 + $0x8] sm:$0xf]
      %v2970 = vld [vmem:[%s393 + $0xc] sm:$0xf]
      %v2971 = vld [vmem:[%s393 + $0x10] sm:$0xf]
      %v2972 = vld [vmem:[%s393 + $0x14] sm:$0xf]
      %v2973 = vld [vmem:[%s393 + $0x18] sm:$0xf]
      %v2974 = vld [vmem:[%s393 + $0x1c] sm:$0xf]
      %v2975 = vld [vmem:[%s393 + $0x20] sm:$0xf]
      %v2976 = vld [vmem:[%s393 + $0x24] sm:$0xf]
      %v2977 = vld [vmem:[%s393 + $0x28] sm:$0xf]
      %v2978 = vld [vmem:[%s393 + $0x2c] sm:$0xf]
      %v2979 = vld [vmem:[%s393 + $0x30] sm:$0xf]
      %v2980 = vld [vmem:[%s393 + $0x34] sm:$0xf]
      %v2981 = vld [vmem:[%s393 + $0x38] sm:$0xf]
      %v2982 = vld [vmem:[%s393 + $0x3c] sm:$0xf]
      %v2983 = vunpack.c.l.bf16 %v2967
      %v2984 = vunpack.c.l.bf16 %v2968
      %v2985 = vunpack.c.l.bf16 %v2969
      %v2986 = vunpack.c.l.bf16 %v2970
      %v2987 = vunpack.c.l.bf16 %v2971
      %v2988 = vunpack.c.l.bf16 %v2972
      %v2989 = vunpack.c.l.bf16 %v2973
      %v2990 = vunpack.c.l.bf16 %v2974
      %v2991 = vunpack.c.l.bf16 %v2975
      %v2992 = vunpack.c.l.bf16 %v2976
      %v2993 = vunpack.c.l.bf16 %v2977
      %v2994 = vunpack.c.l.bf16 %v2978
      %v2995 = vunpack.c.l.bf16 %v2979
      %v2996 = vunpack.c.l.bf16 %v2980
      %v2997 = vunpack.c.l.bf16 %v2981
      %v2998 = vunpack.c.l.bf16 %v2982
      %v2999 = vadd.f32 %v2983, %v2951
      %v3000 = vadd.f32 %v2984, %v2952
      %v3001 = vadd.f32 %v2985, %v2953
      %v3002 = vadd.f32 %v2986, %v2954
      %v3003 = vadd.f32 %v2987, %v2955
      %v3004 = vadd.f32 %v2988, %v2956
      %v3005 = vadd.f32 %v2989, %v2957
      %v3006 = vadd.f32 %v2990, %v2958
      %v3007 = vadd.f32 %v2991, %v2959
      %v3008 = vadd.f32 %v2992, %v2960
      %v3009 = vadd.f32 %v2993, %v2961
      %v3010 = vadd.f32 %v2994, %v2962
      %v3011 = vadd.f32 %v2995, %v2963
      %v3012 = vadd.f32 %v2996, %v2964
      %v3013 = vadd.f32 %v2997, %v2965
      %v3014 = vadd.f32 %v2998, %v2966
      %v3015 = vpack.c.bf16 %v3000, %v2999
      %v3016 = vpack.c.bf16 %v3002, %v3001
      %v3017 = vpack.c.bf16 %v3004, %v3003
      %v3018 = vpack.c.bf16 %v3006, %v3005
      %v3019 = vpack.c.bf16 %v3008, %v3007
      %v3020 = vpack.c.bf16 %v3010, %v3009
      %v3021 = vpack.c.bf16 %v3012, %v3011
      %v3022 = vpack.c.bf16 %v3014, %v3013
      %v3031 = vunpack.c.l.b16 %v3015
      %v3032 = vunpack.c.h.b16 %v3015
      %v3033 = vunpack.c.l.b16 %v3016
      %v3034 = vunpack.c.h.b16 %v3016
      %v3035 = vunpack.c.l.b16 %v3017
      %v3036 = vunpack.c.h.b16 %v3017
      %v3037 = vunpack.c.l.b16 %v3018
      %v3038 = vunpack.c.h.b16 %v3018
      %v3039 = vunpack.c.l.b16 %v3019
      %v3040 = vunpack.c.h.b16 %v3019
      %v3041 = vunpack.c.l.b16 %v3020
      %v3042 = vunpack.c.h.b16 %v3020
      %v3043 = vunpack.c.l.b16 %v3021
      %v3044 = vunpack.c.h.b16 %v3021
      %v3045 = vunpack.c.l.b16 %v3022
      %v3046 = vunpack.c.h.b16 %v3022
      %v3047 = vpack.c.b16 %v3031, %v3031
      %v3048 = vpack.c.b16 %v3032, %v3032
      %v3049 = vpack.c.b16 %v3033, %v3033
      %v3050 = vpack.c.b16 %v3034, %v3034
      %v3051 = vpack.c.b16 %v3035, %v3035
      %v3052 = vpack.c.b16 %v3036, %v3036
      %v3053 = vpack.c.b16 %v3037, %v3037
      %v3054 = vpack.c.b16 %v3038, %v3038
      %v3055 = vpack.c.b16 %v3039, %v3039
      %v3056 = vpack.c.b16 %v3040, %v3040
      %v3057 = vpack.c.b16 %v3041, %v3041
      %v3058 = vpack.c.b16 %v3042, %v3042
      %v3059 = vpack.c.b16 %v3043, %v3043
      %v3060 = vpack.c.b16 %v3044, %v3044
      %v3061 = vpack.c.b16 %v3045, %v3045
      %v3062 = vpack.c.b16 %v3046, %v3046
      %3079 = vst.msk [vmem:[%s302] sm:$0xf] %vm648, %v3047
      %3080 = vst.msk [vmem:[%s302 + $0x4] sm:$0xf] %vm648, %v3048
      %3081 = vst.msk [vmem:[%s302 + $0x8] sm:$0xf] %vm648, %v3049
      %3082 = vst.msk [vmem:[%s302 + $0xc] sm:$0xf] %vm648, %v3050
      %3083 = vst.msk [vmem:[%s302 + $0x10] sm:$0xf] %vm648, %v3051
      %3084 = vst.msk [vmem:[%s302 + $0x14] sm:$0xf] %vm648, %v3052
      %3085 = vst.msk [vmem:[%s302 + $0x18] sm:$0xf] %vm648, %v3053
      %3086 = vst.msk [vmem:[%s302 + $0x1c] sm:$0xf] %vm648, %v3054
      %3087 = vst.msk [vmem:[%s302 + $0x20] sm:$0xf] %vm648, %v3055
      %3088 = vst.msk [vmem:[%s302 + $0x24] sm:$0xf] %vm648, %v3056
      %3089 = vst.msk [vmem:[%s302 + $0x28] sm:$0xf] %vm648, %v3057
      %3090 = vst.msk [vmem:[%s302 + $0x2c] sm:$0xf] %vm648, %v3058
      %3091 = vst.msk [vmem:[%s302 + $0x30] sm:$0xf] %vm648, %v3059
      %3092 = vst.msk [vmem:[%s302 + $0x34] sm:$0xf] %vm648, %v3060
      %3093 = vst.msk [vmem:[%s302 + $0x38] sm:$0xf] %vm648, %v3061
      %3094 = vst.msk [vmem:[%s302 + $0x3c] sm:$0xf] %vm648, %v3062
      %s3095 = smul.u32 8, %s23
      %p3096 = scmp.lt.s32.totalorder %s22, 1
      %s3097 = scalar_select %p3096, %s22, 1
      %p3098 = scmp.lt.s32.totalorder %s3095, 15
      %s3099 = scalar_select %p3098, %s3095, 15
      %s3100 = smul.addr %s3099, 2
      %s3101 = smul.addr %s3097, 32
      %s3102 = sadd.s32 %s3100, %s3101
      %s3103 = smul.addr %s3102, 4
      %s3104 = scalar_lea.vmem %s7, %s3103
      // Predicated region
      $region73: #{tpu_custom_call.1} parent=47 // pred_check
        %p3105 = pneg %p202
      $region74: #{tpu_custom_call.1} parent=47 // pred_check_branch
        %3107 = sbr.rel (%p3105) target = $region76
      $region75: #{tpu_custom_call.1} parent=47 // pred_region
        %s3108 = smul.u32 8, %s23
      $region76: #{tpu_custom_call.1} parent=47 // pred_fallthru
        _
    $region48: #{tpu_custom_call.1} parent=5 // pred_fallthru
      _
    %p3109 = scmp.le.s32.totalorder 2, %s13
    // Predicated region
    $region77: #{tpu_custom_call.1} parent=5 // pred_check
      %p3110 = pneg %p3109
    $region78: #{tpu_custom_call.1} parent=5 // pred_check_branch
      %3112 = sbr.rel (%p3110) target = $region80
    $region79: #{tpu_custom_call.1} parent=5 // pred_region
      %s3113 = ssub.s32 %s13, 2
      // Predicated region
      $region81: #{tpu_custom_call.1} parent=79 // pred_check
        %p3114 = pneg %p208
      $region82: #{tpu_custom_call.1} parent=79 // pred_check_branch
        %3116 = sbr.rel (%p3114) target = $region84
      $region83: #{tpu_custom_call.1} parent=79 // pred_region
        %s3117 = smul.u32 8, %s25
        %p3118 = scmp.lt.s32.totalorder %s24, 1
        %s3119 = scalar_select %p3118, %s24, 1
        %p3120 = scmp.lt.s32.totalorder %s3117, 15
        %s3121 = scalar_select %p3120, %s3117, 15
        %s3122 = smul.addr %s3121, 2
        %s3123 = smul.addr %s3119, 32
        %s3124 = sadd.s32 %s3122, %s3123
        %s3125 = smul.addr %s3124, 4
        %s3126 = scalar_lea.vmem %s7, %s3125
      $region84: #{tpu_custom_call.1} parent=79 // pred_fallthru
        _
    $region80: #{tpu_custom_call.1} parent=5 // pred_fallthru
      _
  $region6: #{tpu_custom_call.1} parent=0 // loop_footer
    %s17 = sadd.s32 1, %s13
  $region7: #{tpu_custom_call.1} parent=0 // loop_footer_branch
    %12 = sbr.rel target = $region3
  $region8: #{tpu_custom_call.1} parent=0 // loop_exit
    _

// kernel: tpu_custom_call.1
$region0: #{tpu_custom_call.1}
  #allocation0 [shape = 'u32[]', space=smem, size = 0x4, offset = 0x4, fixed_abs, tag = 'smem constant byte address 0x4 - core index']
  #allocation1 [shape = 'u32[144,128]{1,0:T(1,128)}', space=vmem, size = 0x12000, scoped, tag = 'internal scratch']
  #allocation2 [shape = 'bf16[12,18,4]{2,1,0:T(8,128)(2,1)}', space=vmem, size = 0x12000, scoped, tag = 'scratch operand']
  #allocation3 [shape = 'bf16[10,18,4]{2,1,0:T(8,128)(2,1)}', space=vmem, size = 0xf000, scoped, tag = 'scratch operand']
  %s0 = inlined_call_operand.vmem [shape: bf16[2,16,16,4], index: 0, kind: input, shape index: {}]
  %s1 = inlined_call_operand.vmem [shape: f32[1,1,4], index: 1, kind: input, shape index: {}]
  %s2 = inlined_call_operand.vmem [shape: f32[1,1,4], index: 2, kind: input, shape index: {}]
  %s3 = inlined_call_operand.vmem [shape: bf16[3,12,4], index: 3, kind: input, shape index: {}]
  %s4 = inlined_call_operand.vmem [shape: f32[1,1,4], index: 4, kind: input, shape index: {}]
  %s5 = inlined_call_operand.vmem [shape: f32[1,1,4], index: 5, kind: input, shape index: {}]
  %s6 = inlined_call_operand.vmem [shape: bf16[3,12,4], index: 6, kind: input, shape index: {}]
  %s7 = inlined_call_operand.vmem [shape: bf16[2,16,16,4], index: 7, kind: output, shape index: {}]
  %s8 = sld [smem:[#allocation0]]
  $region85: #{tpu_custom_call.1} parent=0
    _
  %s10 = ssub.s32 1, %s8
  %s11 = scalar_select 0, %s10, %s8
  loop: start=0, step=1, limit=6
  $region2: #{tpu_custom_call.1} parent=0 // loop_pre_header
    _
  $region3: #{tpu_custom_call.1} parent=0 // loop_header
    %s13 = sphi 0, %s17
    %p14 = scmp.ge.s32.totalorder %s13, 6
    %s20 = sphi 0, %s32
    %s21 = sphi 0, %s28
    %s22 = sphi 0, %s20
    %s23 = sphi 0, %s21
    %s24 = sphi 0, %s22
    %s25 = sphi 0, %s23
    %s35 = sphi 0, %s37
    %s38 = sphi 0, %s35
    %s39 = sphi 0, %s38
    %s55 = sphi 0, %s39
    %s59 = sphi 0, %s59
    %s61 = sphi 0, %s59
    %s62 = sphi 0, %s61
    %s76 = sphi 0, %s62
    %s80 = sphi 0, %s80
    %s82 = sphi 0, %s80
    %s83 = sphi 0, %s82
    %s97 = sphi 0, %s83
    %s101 = sphi 0, %s101
    %s103 = sphi 0, %s101
    %s104 = sphi 0, %s103
    %s118 = sphi 0, %s104
    %s122 = sphi 0, %s122
    %s124 = sphi 0, %s122
    %s125 = sphi 0, %s124
    %s139 = sphi 0, %s125
    %s143 = sphi 0, %s143
    %s145 = sphi 0, %s143
    %s146 = sphi 0, %s145
    %s160 = sphi 0, %s146
    %s164 = sphi 0, %s164
    %s166 = sphi 0, %s164
    %s167 = sphi 0, %s166
    %s181 = sphi 0, %s167
    %s189 = sphi 0, %s191
    %s192 = sphi 0, %s189
    %s193 = sphi 0, %s192
    %s209 = sphi 0, %s193
  $region4: #{tpu_custom_call.1} parent=0 // loop_header_branch
    %16 = sbr.rel (%p14) target = $region8
  $region5: #{tpu_custom_call.1} parent=0 // loop_body
    %s18 = ssub.s32 %s13, 1
    %s19 = ssub.s32 %s13, 2
    %s26 = sadd.s32 1, %s21
    %p27 = scmp.ge.s32.totalorder %s26, 2
    %s28 = scalar_select %p27, 0, %s26
    %s29 = sadd.s32 1, %s20
    %s30 = scalar_select %p27, %s29, %s20
    %p31 = scmp.ge.s32.totalorder %s30, 2
    %s32 = scalar_select %p31, 0, %s30
    %s33 = ssub.s32 %s20, %s32
    %p34 = scmp.eq.s32.totalorder %s33, 0
    %s36 = sadd.s32 %s35, 1
    %s37 = scalar_select %p34, %s35, %s36
    %p40 = pneg %p34
    %p41 = scmp.eq.s32.totalorder %s13, 3
    %p42 = por %p40, %p41
    %p43 = scmp.ne.s32.totalorder %s35, %s38
    %p44 = scmp.eq.s32.totalorder %s13, 0
    %p45 = por %p43, %p44
    %p46 = scmp.ne.s32.totalorder %s35, %s38
    %p47 = scmp.eq.s32.totalorder %s18, 3
    %p48 = por %p46, %p47
    %p49 = scmp.ne.s32.totalorder %s38, %s39
    %p50 = scmp.eq.s32.totalorder %s18, 0
    %p51 = por %p49, %p50
    %p52 = scmp.ne.s32.totalorder %s38, %s39
    %p53 = scmp.eq.s32.totalorder %s19, 3
    %p54 = por %p52, %p53
    %p56 = scmp.ne.s32.totalorder %s39, %s55
    %p57 = scmp.eq.s32.totalorder %s19, 0
    %p58 = por %p56, %p57
    %s60 = sadd.s32 %s59, 1
    %p63 = scmp.eq.s32.totalorder %s13, 3
    %p64 = scmp.ne.s32.totalorder %s59, %s61
    %p65 = scmp.eq.s32.totalorder %s13, 0
    %p66 = por %p64, %p65
    %p67 = scmp.ne.s32.totalorder %s59, %s61
    %p68 = scmp.eq.s32.totalorder %s18, 3
    %p69 = por %p67, %p68
    %p70 = scmp.ne.s32.totalorder %s61, %s62
    %p71 = scmp.eq.s32.totalorder %s18, 0
    %p72 = por %p70, %p71
    %p73 = scmp.ne.s32.totalorder %s61, %s62
    %p74 = scmp.eq.s32.totalorder %s19, 3
    %p75 = por %p73, %p74
    %p77 = scmp.ne.s32.totalorder %s62, %s76
    %p78 = scmp.eq.s32.totalorder %s19, 0
    %p79 = por %p77, %p78
    %s81 = sadd.s32 %s80, 1
    %p84 = scmp.eq.s32.totalorder %s13, 3
    %p85 = scmp.ne.s32.totalorder %s80, %s82
    %p86 = scmp.eq.s32.totalorder %s13, 0
    %p87 = por %p85, %p86
    %p88 = scmp.ne.s32.totalorder %s80, %s82
    %p89 = scmp.eq.s32.totalorder %s18, 3
    %p90 = por %p88, %p89
    %p91 = scmp.ne.s32.totalorder %s82, %s83
    %p92 = scmp.eq.s32.totalorder %s18, 0
    %p93 = por %p91, %p92
    %p94 = scmp.ne.s32.totalorder %s82, %s83
    %p95 = scmp.eq.s32.totalorder %s19, 3
    %p96 = por %p94, %p95
    %p98 = scmp.ne.s32.totalorder %s83, %s97
    %p99 = scmp.eq.s32.totalorder %s19, 0
    %p100 = por %p98, %p99
    %s102 = sadd.s32 %s101, 1
    %p105 = scmp.eq.s32.totalorder %s13, 3
    %p106 = scmp.ne.s32.totalorder %s101, %s103
    %p107 = scmp.eq.s32.totalorder %s13, 0
    %p108 = por %p106, %p107
    %p109 = scmp.ne.s32.totalorder %s101, %s103
    %p110 = scmp.eq.s32.totalorder %s18, 3
    %p111 = por %p109, %p110
    %p112 = scmp.ne.s32.totalorder %s103, %s104
    %p113 = scmp.eq.s32.totalorder %s18, 0
    %p114 = por %p112, %p113
    %p115 = scmp.ne.s32.totalorder %s103, %s104
    %p116 = scmp.eq.s32.totalorder %s19, 3
    %p117 = por %p115, %p116
    %p119 = scmp.ne.s32.totalorder %s104, %s118
    %p120 = scmp.eq.s32.totalorder %s19, 0
    %p121 = por %p119, %p120
    %s123 = sadd.s32 %s122, 1
    %p126 = scmp.eq.s32.totalorder %s13, 3
    %p127 = scmp.ne.s32.totalorder %s122, %s124
    %p128 = scmp.eq.s32.totalorder %s13, 0
    %p129 = por %p127, %p128
    %p130 = scmp.ne.s32.totalorder %s122, %s124
    %p131 = scmp.eq.s32.totalorder %s18, 3
    %p132 = por %p130, %p131
    %p133 = scmp.ne.s32.totalorder %s124, %s125
    %p134 = scmp.eq.s32.totalorder %s18, 0
    %p135 = por %p133, %p134
    %p136 = scmp.ne.s32.totalorder %s124, %s125
    %p137 = scmp.eq.s32.totalorder %s19, 3
    %p138 = por %p136, %p137
    %p140 = scmp.ne.s32.totalorder %s125, %s139
    %p141 = scmp.eq.s32.totalorder %s19, 0
    %p142 = por %p140, %p141
    %s144 = sadd.s32 %s143, 1
    %p147 = scmp.eq.s32.totalorder %s13, 3
    %p148 = scmp.ne.s32.totalorder %s143, %s145
    %p149 = scmp.eq.s32.totalorder %s13, 0
    %p150 = por %p148, %p149
    %p151 = scmp.ne.s32.totalorder %s143, %s145
    %p152 = scmp.eq.s32.totalorder %s18, 3
    %p153 = por %p151, %p152
    %p154 = scmp.ne.s32.totalorder %s145, %s146
    %p155 = scmp.eq.s32.totalorder %s18, 0
    %p156 = por %p154, %p155
    %p157 = scmp.ne.s32.totalorder %s145, %s146
    %p158 = scmp.eq.s32.totalorder %s19, 3
    %p159 = por %p157, %p158
    %p161 = scmp.ne.s32.totalorder %s146, %s160
    %p162 = scmp.eq.s32.totalorder %s19, 0
    %p163 = por %p161, %p162
    %s165 = sadd.s32 %s164, 1
    %p168 = scmp.eq.s32.totalorder %s13, 3
    %p169 = scmp.ne.s32.totalorder %s164, %s166
    %p170 = scmp.eq.s32.totalorder %s13, 0
    %p171 = por %p169, %p170
    %p172 = scmp.ne.s32.totalorder %s164, %s166
    %p173 = scmp.eq.s32.totalorder %s18, 3
    %p174 = por %p172, %p173
    %p175 = scmp.ne.s32.totalorder %s166, %s167
    %p176 = scmp.eq.s32.totalorder %s18, 0
    %p177 = por %p175, %p176
    %p178 = scmp.ne.s32.totalorder %s166, %s167
    %p179 = scmp.eq.s32.totalorder %s19, 3
    %p180 = por %p178, %p179
    %p182 = scmp.ne.s32.totalorder %s167, %s181
    %p183 = scmp.eq.s32.totalorder %s19, 0
    %p184 = por %p182, %p183
    %s185 = ssub.s32 %s20, %s32
    %s186 = ssub.s32 %s21, %s28
    %s187 = sor.u32 %s185, %s186
    %p188 = scmp.eq.s32.totalorder %s187, 0
    %s190 = sadd.s32 %s189, 1
    %s191 = scalar_select %p188, %s189, %s190
    %p194 = pneg %p188
    %p195 = scmp.eq.s32.totalorder %s13, 3
    %p196 = por %p194, %p195
    %p197 = scmp.ne.s32.totalorder %s189, %s192
    %p198 = scmp.eq.s32.totalorder %s13, 0
    %p199 = por %p197, %p198
    %p200 = scmp.ne.s32.totalorder %s189, %s192
    %p201 = scmp.eq.s32.totalorder %s18, 3
    %p202 = por %p200, %p201
    %p203 = scmp.ne.s32.totalorder %s192, %s193
    %p204 = scmp.eq.s32.totalorder %s18, 0
    %p205 = por %p203, %p204
    %p206 = scmp.ne.s32.totalorder %s192, %s193
    %p207 = scmp.eq.s32.totalorder %s19, 3
    %p208 = por %p206, %p207
    %p210 = scmp.ne.s32.totalorder %s193, %s209
    %p211 = scmp.eq.s32.totalorder %s19, 0
    %p212 = por %p210, %p211
    %p213 = scmp.le.s32.totalorder 1, %s13
    %p214 = scmp.lt.s32.totalorder %s13, 5
    %p215 = pnand %p213, %p214
    %p216 = pneg %p215
    // Predicated region
    $region9: #{tpu_custom_call.1} parent=5 // pred_check
      _
    $region10: #{tpu_custom_call.1} parent=5 // pred_check_branch
      %218 = sbr.rel (%p215) target = $region12
    $region11: #{tpu_custom_call.1} parent=5 // pred_region
      %s219 = ssub.s32 %s13, 1
      // Predicated region
      $region13: #{tpu_custom_call.1} parent=11 // pred_check
        %p220 = pneg %p72
      $region14: #{tpu_custom_call.1} parent=11 // pred_check_branch
        %222 = sbr.rel (%p220) target = $region16
      $region15: #{tpu_custom_call.1} parent=11 // pred_region
        _
      $region16: #{tpu_custom_call.1} parent=11 // pred_fallthru
        _
      // Predicated region
      $region17: #{tpu_custom_call.1} parent=11 // pred_check
        %p223 = pneg %p93
      $region18: #{tpu_custom_call.1} parent=11 // pred_check_branch
        %225 = sbr.rel (%p223) target = $region20
      $region19: #{tpu_custom_call.1} parent=11 // pred_region
        _
      $region20: #{tpu_custom_call.1} parent=11 // pred_fallthru
        _
      // Predicated region
      $region21: #{tpu_custom_call.1} parent=11 // pred_check
        %p226 = pneg %p114
      $region22: #{tpu_custom_call.1} parent=11 // pred_check_branch
        %228 = sbr.rel (%p226) target = $region24
      $region23: #{tpu_custom_call.1} parent=11 // pred_region
        _
      $region24: #{tpu_custom_call.1} parent=11 // pred_fallthru
        _
      // Predicated region
      $region25: #{tpu_custom_call.1} parent=11 // pred_check
        %p229 = pneg %p135
      $region26: #{tpu_custom_call.1} parent=11 // pred_check_branch
        %231 = sbr.rel (%p229) target = $region28
      $region27: #{tpu_custom_call.1} parent=11 // pred_region
        _
      $region28: #{tpu_custom_call.1} parent=11 // pred_fallthru
        _
      // Predicated region
      $region29: #{tpu_custom_call.1} parent=11 // pred_check
        %p232 = pneg %p156
      $region30: #{tpu_custom_call.1} parent=11 // pred_check_branch
        %234 = sbr.rel (%p232) target = $region32
      $region31: #{tpu_custom_call.1} parent=11 // pred_region
        _
      $region32: #{tpu_custom_call.1} parent=11 // pred_fallthru
        _
      // Predicated region
      $region33: #{tpu_custom_call.1} parent=11 // pred_check
        %p235 = pneg %p177
      $region34: #{tpu_custom_call.1} parent=11 // pred_check_branch
        %237 = sbr.rel (%p235) target = $region36
      $region35: #{tpu_custom_call.1} parent=11 // pred_region
        _
      $region36: #{tpu_custom_call.1} parent=11 // pred_fallthru
        _
    $region12: #{tpu_custom_call.1} parent=5 // pred_fallthru
      _
    %p238 = scmp.lt.s32.totalorder %s13, 4
    // Predicated region
    $region37: #{tpu_custom_call.1} parent=5 // pred_check
      %p239 = pneg %p238
    $region38: #{tpu_custom_call.1} parent=5 // pred_check_branch
      %241 = sbr.rel (%p239) target = $region40
    $region39: #{tpu_custom_call.1} parent=5 // pred_region
      // Predicated region
      $region41: #{tpu_custom_call.1} parent=39 // pred_check
        %p242 = pneg %p45
      $region42: #{tpu_custom_call.1} parent=39 // pred_check_branch
        %244 = sbr.rel (%p242) target = $region44
      $region43: #{tpu_custom_call.1} parent=39 // pred_region
        %p245 = scmp.lt.s32.totalorder %s20, 1
        %s246 = scalar_select %p245, %s20, 1
        %s247 = smul.addr %s246, 32
        %s248 = smul.addr %s247, 4
        %s249 = scalar_lea.vmem %s0, %s248
      $region44: #{tpu_custom_call.1} parent=39 // pred_fallthru
        _
    $region40: #{tpu_custom_call.1} parent=5 // pred_fallthru
      _
    %p250 = scmp.le.s32.totalorder 1, %s13
    %p251 = scmp.lt.s32.totalorder %s13, 5
    %p252 = pnand %p250, %p251
    %p253 = pneg %p252
    // Predicated region
    $region45: #{tpu_custom_call.1} parent=5 // pred_check
      _
    $region46: #{tpu_custom_call.1} parent=5 // pred_check_branch
      %255 = sbr.rel (%p252) target = $region48
    $region47: #{tpu_custom_call.1} parent=5 // pred_region
      %s256 = ssub.s32 %s13, 1
      %p257 = scmp.lt.s32.totalorder %s22, 1
      %s258 = scalar_select %p257, %s22, 1
      %s259 = smul.addr %s258, 32
      %s260 = smul.addr %s259, 4
      %s261 = scalar_lea.vmem %s0, %s260
      %p262 = pneg %p51
      %p263 = pneg %p48
      %p264 = pneg %p72
      %p265 = pneg %p69
      %p266 = pneg %p93
      %p267 = pneg %p90
      %p268 = pneg %p114
      %p269 = pneg %p111
      %p270 = pneg %p135
      %p271 = pneg %p132
      %p272 = pneg %p156
      %p273 = pneg %p153
      %p274 = pneg %p177
      %p275 = pneg %p174
      %p276 = pneg %p205
      %p277 = pneg %p202
      %s278 = smul.u32 8, %s23
      %p279 = scmp.lt.s32.totalorder %s22, 1
      %s280 = scalar_select %p279, %s22, 1
      %p281 = scmp.lt.s32.totalorder %s278, 15
      %s282 = scalar_select %p281, %s278, 15
      %s283 = smul.addr %s282, 2
      %s284 = smul.addr %s280, 32
      %s285 = sadd.s32 %s283, %s284
      %s286 = smul.addr %s285, 4
      %s287 = scalar_lea.vmem %s7, %s286
      %p288 = scmp.lt.s32.totalorder %s22, 1
      %s289 = scalar_select %p288, %s22, 1
      %s290 = smul.addr %s289, 32
      %s291 = smul.addr %s290, 4
      %s292 = scalar_lea.vmem %s0, %s291
      %s293 = smul.u32 8, %s23
      %p294 = scmp.lt.s32.totalorder %s22, 1
      %s295 = scalar_select %p294, %s22, 1
      %p296 = scmp.lt.s32.totalorder %s293, 15
      %s297 = scalar_select %p296, %s293, 15
      %s298 = smul.addr %s297, 2
      %s299 = smul.addr %s295, 32
      %s300 = sadd.s32 %s298, %s299
      %s301 = smul.addr %s300, 4
      %s302 = scalar_lea.vmem %s7, %s301
      %s303 = smul.u32 8, %s23
      %s305 = smul.u32 %s23, 8
      %v306 = vld [vmem:[%s1] sm:$0x1]
      %v307 = vpack.c.bf16 %v306, %v306
      %v308 = vld [vmem:[%s2] sm:$0x1]
      %v309 = vpack.c.bf16 %v308, %v308
      %v310 = vld [vmem:[%s4] sm:$0x1]
      %v311 = vpack.c.bf16 %v310, %v310
      %v312 = vld [vmem:[%s5] sm:$0x1]
      %v313 = vpack.c.bf16 %v312, %v312
      %vm314 = vcmask 24576
      %vm315 = vsmask.f32 256
      %vm316 = vmand %vm314, %vm315
      %v317 = vld [vmem:[#allocation2] sm:$0x1]
      %v318 = vsel %vm316, 0, %v317
      %319 = vst [vmem:[#allocation2] sm:$0x1] %v318
      %v320 = vld [vmem:[#allocation2 + $0xc] sm:$0x1]
      %v321 = vsel %vm316, 0, %v320
      %322 = vst [vmem:[#allocation2 + $0xc] sm:$0x1] %v321
      %v323 = vld [vmem:[#allocation2 + $0x18] sm:$0x1]
      %v324 = vsel %vm316, 0, %v323
      %325 = vst [vmem:[#allocation2 + $0x18] sm:$0x1] %v324
      %v326 = vld [vmem:[#allocation2 + $0x24] sm:$0x1]
      %v327 = vsel %vm316, 0, %v326
      %328 = vst [vmem:[#allocation2 + $0x24] sm:$0x1] %v327
      %v329 = vld [vmem:[#allocation2 + $0x30] sm:$0x1]
      %v330 = vsel %vm316, 0, %v329
      %331 = vst [vmem:[#allocation2 + $0x30] sm:$0x1] %v330
      %v332 = vld [vmem:[#allocation2 + $0x3c] sm:$0x1]
      %v333 = vsel %vm316, 0, %v332
      %334 = vst [vmem:[#allocation2 + $0x3c] sm:$0x1] %v333
      %v335 = vld [vmem:[#allocation2 + $0x48] sm:$0x1]
      %v336 = vsel %vm316, 0, %v335
      %337 = vst [vmem:[#allocation2 + $0x48] sm:$0x1] %v336
      %v338 = vld [vmem:[#allocation2 + $0x54] sm:$0x1]
      %v339 = vsel %vm316, 0, %v338
      %340 = vst [vmem:[#allocation2 + $0x54] sm:$0x1] %v339
      %v341 = vld [vmem:[#allocation2 + $0x60] sm:$0x1]
      %v342 = vsel %vm316, 0, %v341
      %343 = vst [vmem:[#allocation2 + $0x60] sm:$0x1] %v342
      %v344 = vld [vmem:[#allocation2 + $0x6c] sm:$0x1]
      %v345 = vsel %vm316, 0, %v344
      %346 = vst [vmem:[#allocation2 + $0x6c] sm:$0x1] %v345
      %v347 = vld [vmem:[#allocation2 + $0x78] sm:$0x1]
      %v348 = vsel %vm316, 0, %v347
      %349 = vst [vmem:[#allocation2 + $0x78] sm:$0x1] %v348
      %v350 = vld [vmem:[#allocation2 + $0x84] sm:$0x1]
      %v351 = vsel %vm316, 0, %v350
      %352 = vst [vmem:[#allocation2 + $0x84] sm:$0x1] %v351
      %vm353 = vsmask.f32 7938
      %vm354 = vmand %vm314, %vm353
      %v355 = vld [vmem:[#allocation2 + $0x8] sm:$0x1]
      %v356 = vsel %vm354, 0, %v355
      %357 = vst [vmem:[#allocation2 + $0x8] sm:$0x1] %v356
      %v358 = vld [vmem:[#allocation2 + $0x14] sm:$0x1]
      %v359 = vsel %vm354, 0, %v358
      %360 = vst [vmem:[#allocation2 + $0x14] sm:$0x1] %v359
      %v361 = vld [vmem:[#allocation2 + $0x20] sm:$0x1]
      %v362 = vsel %vm354, 0, %v361
      %363 = vst [vmem:[#allocation2 + $0x20] sm:$0x1] %v362
      %v364 = vld [vmem:[#allocation2 + $0x2c] sm:$0x1]
      %v365 = vsel %vm354, 0, %v364
      %366 = vst [vmem:[#allocation2 + $0x2c] sm:$0x1] %v365
      %v367 = vld [vmem:[#allocation2 + $0x38] sm:$0x1]
      %v368 = vsel %vm354, 0, %v367
      %369 = vst [vmem:[#allocation2 + $0x38] sm:$0x1] %v368
      %v370 = vld [vmem:[#allocation2 + $0x44] sm:$0x1]
      %v371 = vsel %vm354, 0, %v370
      %372 = vst [vmem:[#allocation2 + $0x44] sm:$0x1] %v371
      %v373 = vld [vmem:[#allocation2 + $0x50] sm:$0x1]
      %v374 = vsel %vm354, 0, %v373
      %375 = vst [vmem:[#allocation2 + $0x50] sm:$0x1] %v374
      %v376 = vld [vmem:[#allocation2 + $0x5c] sm:$0x1]
      %v377 = vsel %vm354, 0, %v376
      %378 = vst [vmem:[#allocation2 + $0x5c] sm:$0x1] %v377
      %v379 = vld [vmem:[#allocation2 + $0x68] sm:$0x1]
      %v380 = vsel %vm354, 0, %v379
      %381 = vst [vmem:[#allocation2 + $0x68] sm:$0x1] %v380
      %v382 = vld [vmem:[#allocation2 + $0x74] sm:$0x1]
      %v383 = vsel %vm354, 0, %v382
      %384 = vst [vmem:[#allocation2 + $0x74] sm:$0x1] %v383
      %v385 = vld [vmem:[#allocation2 + $0x80] sm:$0x1]
      %v386 = vsel %vm354, 0, %v385
      %387 = vst [vmem:[#allocation2 + $0x80] sm:$0x1] %v386
      %v388 = vld [vmem:[#allocation2 + $0x8c] sm:$0x1]
      %v389 = vsel %vm354, 0, %v388
      %390 = vst [vmem:[#allocation2 + $0x8c] sm:$0x1] %v389
      %s391 = smul.u32 %s305, 2
      %s392 = smul.addr %s391, 4
      %s393 = scalar_lea.vmem %s292, %s392
      %v394 = vld [vmem:[%s393] sm:$0xf]
      %v395 = vld [vmem:[%s393 + $0x4] sm:$0xf]
      %v396 = vld [vmem:[%s393 + $0x8] sm:$0xf]
      %v397 = vld [vmem:[%s393 + $0xc] sm:$0xf]
      %v398 = vld [vmem:[%s393 + $0x10] sm:$0xf]
      %v399 = vld [vmem:[%s393 + $0x14] sm:$0xf]
      %v400 = vld [vmem:[%s393 + $0x18] sm:$0xf]
      %v401 = vld [vmem:[%s393 + $0x1c] sm:$0xf]
      %v402 = vld [vmem:[%s393 + $0x20] sm:$0xf]
      %v403 = vld [vmem:[%s393 + $0x24] sm:$0xf]
      %v404 = vld [vmem:[%s393 + $0x28] sm:$0xf]
      %v405 = vld [vmem:[%s393 + $0x2c] sm:$0xf]
      %v406 = vld [vmem:[%s393 + $0x30] sm:$0xf]
      %v407 = vld [vmem:[%s393 + $0x34] sm:$0xf]
      %v408 = vld [vmem:[%s393 + $0x38] sm:$0xf]
      %v409 = vld [vmem:[%s393 + $0x3c] sm:$0xf]
      %v411 = vpack.i.b16 %v307, %v307
      %v413 = vlaneseq
      %v414 = vshrl.u32 %v413, 7
      %v415 = vsub.s32 0, %v414
      %v416 = vrot.slane %v411, %v415
      %v418 = vunpack.c.l.b16 %v416
      %v419 = vpack.c.b16 %v418, %v418
      %v421 = vmul.bf16 %v394, %v419
      %v422 = vmul.bf16 %v395, %v419
      %v423 = vmul.bf16 %v396, %v419
      %v424 = vmul.bf16 %v397, %v419
      %v425 = vmul.bf16 %v398, %v419
      %v426 = vmul.bf16 %v399, %v419
      %v427 = vmul.bf16 %v400, %v419
      %v428 = vmul.bf16 %v401, %v419
      %v429 = vmul.bf16 %v402, %v419
      %v430 = vmul.bf16 %v403, %v419
      %v431 = vmul.bf16 %v404, %v419
      %v432 = vmul.bf16 %v405, %v419
      %v433 = vmul.bf16 %v406, %v419
      %v434 = vmul.bf16 %v407, %v419
      %v435 = vmul.bf16 %v408, %v419
      %v436 = vmul.bf16 %v409, %v419
      %v438 = vpack.i.b16 %v309, %v309
      %v440 = vlaneseq
      %v441 = vshrl.u32 %v440, 7
      %v442 = vsub.s32 0, %v441
      %v443 = vrot.slane %v438, %v442
      %v445 = vunpack.c.l.b16 %v443
      %v446 = vpack.c.b16 %v445, %v445
      %v448 = vadd.bf16 %v421, %v446
      %v449 = vadd.bf16 %v422, %v446
      %v450 = vadd.bf16 %v423, %v446
      %v451 = vadd.bf16 %v424, %v446
      %v452 = vadd.bf16 %v425, %v446
      %v453 = vadd.bf16 %v426, %v446
      %v454 = vadd.bf16 %v427, %v446
      %v455 = vadd.bf16 %v428, %v446
      %v456 = vadd.bf16 %v429, %v446
      %v457 = vadd.bf16 %v430, %v446
      %v458 = vadd.bf16 %v431, %v446
      %v459 = vadd.bf16 %v432, %v446
      %v460 = vadd.bf16 %v433, %v446
      %v461 = vadd.bf16 %v434, %v446
      %v462 = vadd.bf16 %v435, %v446
      %v463 = vadd.bf16 %v436, %v446
      %v464 = vmax.bf16 %v448, 0
      %v465 = vmax.bf16 %v449, 0
      %v466 = vmax.bf16 %v450, 0
      %v467 = vmax.bf16 %v451, 0
      %v468 = vmax.bf16 %v452, 0
      %v469 = vmax.bf16 %v453, 0
      %v470 = vmax.bf16 %v454, 0
      %v471 = vmax.bf16 %v455, 0
      %v472 = vmax.bf16 %v456, 0
      %v473 = vmax.bf16 %v457, 0
      %v474 = vmax.bf16 %v458, 0
      %v475 = vmax.bf16 %v459, 0
      %v476 = vmax.bf16 %v460, 0
      %v477 = vmax.bf16 %v461, 0
      %v478 = vmax.bf16 %v462, 0
      %v479 = vmax.bf16 %v463, 0
      %vm480 = vsmask.f32 4368
      %vm481 = vmor %vm315, %vm480
      %v483 = vshrl.u32 %v464, 16
      %v485 = vrot.slane %v483, 7
      %v486 = vshll.u32 %v464, 16
      %v488 = vor.u32 %v485, %v486
      %v489 = vrot.slane %v485, 4
      %v491 = vshrl.u32 %v465, 16
      %v493 = vrot.slane %v491, 7
      %v494 = vshll.u32 %v465, 16
      %v496 = vor.u32 %v493, %v494
      %v497 = vsel %vm481, %v489, %v496
      %v498 = vrot.slane %v493, 4
      %v500 = vshrl.u32 %v466, 16
      %v502 = vrot.slane %v500, 7
      %v503 = vshll.u32 %v466, 16
      %v505 = vor.u32 %v502, %v503
      %v506 = vrot.slane %v502, 4
      %v508 = vshrl.u32 %v467, 16
      %v510 = vrot.slane %v508, 7
      %v511 = vshll.u32 %v467, 16
      %v513 = vor.u32 %v510, %v511
      %v514 = vsel %vm481, %v506, %v513
      %v515 = vrot.slane %v510, 4
      %v517 = vshrl.u32 %v468, 16
      %v519 = vrot.slane %v517, 7
      %v520 = vshll.u32 %v468, 16
      %v522 = vor.u32 %v519, %v520
      %v523 = vrot.slane %v519, 4
      %v525 = vshrl.u32 %v469, 16
      %v527 = vrot.slane %v525, 7
      %v528 = vshll.u32 %v469, 16
      %v530 = vor.u32 %v527, %v528
      %v531 = vsel %vm481, %v523, %v530
      %v532 = vrot.slane %v527, 4
      %v534 = vshrl.u32 %v470, 16
      %v536 = vrot.slane %v534, 7
      %v537 = vshll.u32 %v470, 16
      %v539 = vor.u32 %v536, %v537
      %v540 = vrot.slane %v536, 4
      %v542 = vshrl.u32 %v471, 16
      %v544 = vrot.slane %v542, 7
      %v545 = vshll.u32 %v471, 16
      %v547 = vor.u32 %v544, %v545
      %v548 = vsel %vm481, %v540, %v547
      %v549 = vrot.slane %v544, 4
      %v551 = vshrl.u32 %v472, 16
      %v553 = vrot.slane %v551, 7
      %v554 = vshll.u32 %v472, 16
      %v556 = vor.u32 %v553, %v554
      %v557 = vrot.slane %v553, 4
      %v559 = vshrl.u32 %v473, 16
      %v561 = vrot.slane %v559, 7
      %v562 = vshll.u32 %v473, 16
      %v564 = vor.u32 %v561, %v562
      %v565 = vsel %vm481, %v557, %v564
      %v566 = vrot.slane %v561, 4
      %v568 = vshrl.u32 %v474, 16
      %v570 = vrot.slane %v568, 7
      %v571 = vshll.u32 %v474, 16
      %v573 = vor.u32 %v570, %v571
      %v574 = vrot.slane %v570, 4
      %v576 = vshrl.u32 %v475, 16
      %v578 = vrot.slane %v576, 7
      %v579 = vshll.u32 %v475, 16
      %v581 = vor.u32 %v578, %v579
      %v582 = vsel %vm481, %v574, %v581
      %v583 = vrot.slane %v578, 4
      %v585 = vshrl.u32 %v476, 16
      %v587 = vrot.slane %v585, 7
      %v588 = vshll.u32 %v476, 16
      %v590 = vor.u32 %v587, %v588
      %v591 = vrot.slane %v587, 4
      %v593 = vshrl.u32 %v477, 16
      %v595 = vrot.slane %v593, 7
      %v596 = vshll.u32 %v477, 16
      %v598 = vor.u32 %v595, %v596
      %v599 = vsel %vm481, %v591, %v598
      %v600 = vrot.slane %v595, 4
      %v602 = vshrl.u32 %v478, 16
      %v604 = vrot.slane %v602, 7
      %v605 = vshll.u32 %v478, 16
      %v607 = vor.u32 %v604, %v605
      %v608 = vrot.slane %v604, 4
      %v610 = vshrl.u32 %v479, 16
      %v612 = vrot.slane %v610, 7
      %v613 = vshll.u32 %v479, 16
      %v615 = vor.u32 %v612, %v613
      %v616 = vsel %vm481, %v608, %v615
      %v617 = vrot.slane %v612, 4
      %s642 = scalar_lea.vmem [#allocation2], 24
      %vm643 = vcmask 27648
      %vm644 = vmand %vm643, %vm353
      %v645 = vld [vmem:[%s642] sm:$0xf]
      %v646 = vsel %vm644, %v488, %v645
      %647 = vst [vmem:[%s642] sm:$0xf] %v646
      %vm648 = vcmask 27648
      %649 = vst.msk [vmem:[%s642 + $0x4] sm:$0xf] %vm648, %v497
      %v650 = vld [vmem:[%s642 + $0x8] sm:$0x1]
      %v651 = vsel %vm316, %v498, %v650
      %652 = vst [vmem:[%s642 + $0x8] sm:$0x1] %v651
      %v653 = vld [vmem:[%s642 + $0xc] sm:$0xf]
      %v654 = vsel %vm644, %v505, %v653
      %655 = vst [vmem:[%s642 + $0xc] sm:$0xf] %v654
      %656 = vst.msk [vmem:[%s642 + $0x10] sm:$0xf] %vm648, %v514
      %v657 = vld [vmem:[%s642 + $0x14] sm:$0x1]
      %v658 = vsel %vm316, %v515, %v657
      %659 = vst [vmem:[%s642 + $0x14] sm:$0x1] %v658
      %v660 = vld [vmem:[%s642 + $0x18] sm:$0xf]
      %v661 = vsel %vm644, %v522, %v660
      %662 = vst [vmem:[%s642 + $0x18] sm:$0xf] %v661
      %663 = vst.msk [vmem:[%s642 + $0x1c] sm:$0xf] %vm648, %v531
      %v664 = vld [vmem:[%s642 + $0x20] sm:$0x1]
      %v665 = vsel %vm316, %v532, %v664
      %666 = vst [vmem:[%s642 + $0x20] sm:$0x1] %v665
      %v667 = vld [vmem:[%s642 + $0x24] sm:$0xf]
      %v668 = vsel %vm644, %v539, %v667
      %669 = vst [vmem:[%s642 + $0x24] sm:$0xf] %v668
      %670 = vst.msk [vmem:[%s642 + $0x28] sm:$0xf] %vm648, %v548
      %v671 = vld [vmem:[%s642 + $0x2c] sm:$0x1]
      %v672 = vsel %vm316, %v549, %v671
      %673 = vst [vmem:[%s642 + $0x2c] sm:$0x1] %v672
      %v674 = vld [vmem:[%s642 + $0x30] sm:$0xf]
      %v675 = vsel %vm644, %v556, %v674
      %676 = vst [vmem:[%s642 + $0x30] sm:$0xf] %v675
      %677 = vst.msk [vmem:[%s642 + $0x34] sm:$0xf] %vm648, %v565
      %v678 = vld [vmem:[%s642 + $0x38] sm:$0x1]
      %v679 = vsel %vm316, %v566, %v678
      %680 = vst [vmem:[%s642 + $0x38] sm:$0x1] %v679
      %v681 = vld [vmem:[%s642 + $0x3c] sm:$0xf]
      %v682 = vsel %vm644, %v573, %v681
      %683 = vst [vmem:[%s642 + $0x3c] sm:$0xf] %v682
      %684 = vst.msk [vmem:[%s642 + $0x40] sm:$0xf] %vm648, %v582
      %v685 = vld [vmem:[%s642 + $0x44] sm:$0x1]
      %v686 = vsel %vm316, %v583, %v685
      %687 = vst [vmem:[%s642 + $0x44] sm:$0x1] %v686
      %v688 = vld [vmem:[%s642 + $0x48] sm:$0xf]
      %v689 = vsel %vm644, %v590, %v688
      %690 = vst [vmem:[%s642 + $0x48] sm:$0xf] %v689
      %691 = vst.msk [vmem:[%s642 + $0x4c] sm:$0xf] %vm648, %v599
      %v692 = vld [vmem:[%s642 + $0x50] sm:$0x1]
      %v693 = vsel %vm316, %v600, %v692
      %694 = vst [vmem:[%s642 + $0x50] sm:$0x1] %v693
      %v695 = vld [vmem:[%s642 + $0x54] sm:$0xf]
      %v696 = vsel %vm644, %v607, %v695
      %697 = vst [vmem:[%s642 + $0x54] sm:$0xf] %v696
      %698 = vst.msk [vmem:[%s642 + $0x58] sm:$0xf] %vm648, %v616
      %v699 = vld [vmem:[%s642 + $0x5c] sm:$0x1]
      %v700 = vsel %vm316, %v617, %v699
      %701 = vst [vmem:[%s642 + $0x5c] sm:$0x1] %v700
      %p702 = scmp.gt.s32.totalorder %s23, 0
      // Predicated region
      $region49: #{tpu_custom_call.1} parent=47 // pred_check
        %p703 = pneg %p702
      $region50: #{tpu_custom_call.1} parent=47 // pred_check_branch
        %705 = sbr.rel (%p703) target = $region52
      $region51: #{tpu_custom_call.1} parent=47 // pred_region
        %s706 = ssub.s32 %s305, 2
        %s707 = smul.u32 %s706, 2
        %s708 = smul.addr %s707, 4
        %s709 = scalar_lea.vmem %s292, %s708
        %v710 = vld [vmem:[%s709] sm:$0xf]
        %v711 = vld [vmem:[%s709 + $0x4] sm:$0xf]
        %v712 = vld [vmem:[%s709 + $0x8] sm:$0xf]
        %v713 = vld [vmem:[%s709 + $0xc] sm:$0xf]
        %v714 = vmul.bf16 %v710, %v419
        %v715 = vmul.bf16 %v711, %v419
        %v716 = vmul.bf16 %v712, %v419
        %v717 = vmul.bf16 %v713, %v419
        %v718 = vadd.bf16 %v714, %v446
        %v719 = vadd.bf16 %v715, %v446
        %v720 = vadd.bf16 %v716, %v446
        %v721 = vadd.bf16 %v717, %v446
        %v722 = vmax.bf16 %v718, 0
        %v723 = vmax.bf16 %v719, 0
        %v724 = vmax.bf16 %v720, 0
        %v725 = vmax.bf16 %v721, 0
        %v727 = vshrl.u32 %v722, 16
        %v729 = vrot.slane %v727, 7
        %v730 = vshll.u32 %v722, 16
        %v732 = vor.u32 %v729, %v730
        %v733 = vrot.slane %v729, 4
        %v735 = vshrl.u32 %v723, 16
        %v737 = vrot.slane %v735, 7
        %v738 = vshll.u32 %v723, 16
        %v740 = vor.u32 %v737, %v738
        %v741 = vsel %vm481, %v733, %v740
        %v742 = vrot.slane %v737, 4
        %v744 = vshrl.u32 %v724, 16
        %v746 = vrot.slane %v744, 7
        %v747 = vshll.u32 %v724, 16
        %v749 = vor.u32 %v746, %v747
        %v750 = vrot.slane %v746, 4
        %v752 = vshrl.u32 %v725, 16
        %v754 = vrot.slane %v752, 7
        %v755 = vshll.u32 %v725, 16
        %v757 = vor.u32 %v754, %v755
        %v758 = vsel %vm481, %v750, %v757
        %v759 = vrot.slane %v754, 4
        %v766 = vld [vmem:[#allocation2] sm:$0xf]
        %v767 = vsel %vm644, %v732, %v766
        %768 = vst [vmem:[#allocation2] sm:$0xf] %v767
        %769 = vst.msk [vmem:[#allocation2 + $0x4] sm:$0xf] %vm648, %v741
        %v770 = vld [vmem:[#allocation2 + $0x8] sm:$0x1]
        %v771 = vsel %vm316, %v742, %v770
        %772 = vst [vmem:[#allocation2 + $0x8] sm:$0x1] %v771
        %v773 = vld [vmem:[#allocation2 + $0xc] sm:$0xf]
        %v774 = vsel %vm644, %v749, %v773
        %775 = vst [vmem:[#allocation2 + $0xc] sm:$0xf] %v774
        %776 = vst.msk [vmem:[#allocation2 + $0x10] sm:$0xf] %vm648, %v758
        %v777 = vld [vmem:[#allocation2 + $0x14] sm:$0x1]
        %v778 = vsel %vm316, %v759, %v777
        %779 = vst [vmem:[#allocation2 + $0x14] sm:$0x1] %v778
      $region52: #{tpu_custom_call.1} parent=47 // pred_fallthru
        _
      %p780 = scmp.eq.s32.totalorder %s23, 0
      // Predicated region
      $region53: #{tpu_custom_call.1} parent=47 // pred_check
        %p781 = pneg %p780
      $region54: #{tpu_custom_call.1} parent=47 // pred_check_branch
        %783 = sbr.rel (%p781) target = $region56
      $region55: #{tpu_custom_call.1} parent=47 // pred_region
        %v784 = vld [vmem:[#allocation2] sm:$0xf]
        %v785 = vsel %vm644, 0, %v784
        %786 = vst [vmem:[#allocation2] sm:$0xf] %v785
        %787 = vst.msk [vmem:[#allocation2 + $0x4] sm:$0xf] %vm648, 0
        %v788 = vld [vmem:[#allocation2 + $0x8] sm:$0x1]
        %v789 = vsel %vm316, 0, %v788
        %790 = vst [vmem:[#allocation2 + $0x8] sm:$0x1] %v789
        %v791 = vld [vmem:[#allocation2 + $0xc] sm:$0xf]
        %v792 = vsel %vm644, 0, %v791
        %793 = vst [vmem:[#allocation2 + $0xc] sm:$0xf] %v792
        %794 = vst.msk [vmem:[#allocation2 + $0x10] sm:$0xf] %vm648, 0
        %v795 = vld [vmem:[#allocation2 + $0x14] sm:$0x1]
        %v796 = vsel %vm316, 0, %v795
        %797 = vst [vmem:[#allocation2 + $0x14] sm:$0x1] %v796
      $region56: #{tpu_custom_call.1} parent=47 // pred_fallthru
        _
      %p798 = scmp.lt.s32.totalorder %s23, 1
      // Predicated region
      $region57: #{tpu_custom_call.1} parent=47 // pred_check
        %p799 = pneg %p798
      $region58: #{tpu_custom_call.1} parent=47 // pred_check_branch
        %801 = sbr.rel (%p799) target = $region60
      $region59: #{tpu_custom_call.1} parent=47 // pred_region
        %s802 = sadd.s32 %s305, 8
        %s803 = smul.u32 %s802, 2
        %s804 = smul.addr %s803, 4
        %s805 = scalar_lea.vmem %s292, %s804
        %v806 = vld [vmem:[%s805] sm:$0xf]
        %v807 = vld [vmem:[%s805 + $0x4] sm:$0xf]
        %v808 = vld [vmem:[%s805 + $0x8] sm:$0xf]
        %v809 = vld [vmem:[%s805 + $0xc] sm:$0xf]
        %v810 = vmul.bf16 %v806, %v419
        %v811 = vmul.bf16 %v807, %v419
        %v812 = vmul.bf16 %v808, %v419
        %v813 = vmul.bf16 %v809, %v419
        %v814 = vadd.bf16 %v810, %v446
        %v815 = vadd.bf16 %v811, %v446
        %v816 = vadd.bf16 %v812, %v446
        %v817 = vadd.bf16 %v813, %v446
        %v818 = vmax.bf16 %v814, 0
        %v819 = vmax.bf16 %v815, 0
        %v820 = vmax.bf16 %v816, 0
        %v821 = vmax.bf16 %v817, 0
        %v823 = vshrl.u32 %v818, 16
        %v825 = vrot.slane %v823, 7
        %v826 = vshll.u32 %v818, 16
        %v828 = vor.u32 %v825, %v826
        %v829 = vrot.slane %v825, 4
        %v831 = vshrl.u32 %v819, 16
        %v833 = vrot.slane %v831, 7
        %v834 = vshll.u32 %v819, 16
        %v836 = vor.u32 %v833, %v834
        %v837 = vsel %vm481, %v829, %v836
        %v838 = vrot.slane %v833, 4
        %v840 = vshrl.u32 %v820, 16
        %v842 = vrot.slane %v840, 7
        %v843 = vshll.u32 %v820, 16
        %v845 = vor.u32 %v842, %v843
        %v846 = vrot.slane %v842, 4
        %v848 = vshrl.u32 %v821, 16
        %v850 = vrot.slane %v848, 7
        %v851 = vshll.u32 %v821, 16
        %v853 = vor.u32 %v850, %v851
        %v854 = vsel %vm481, %v846, %v853
        %v855 = vrot.slane %v850, 4
        %s862 = scalar_lea.vmem [#allocation2], 120
        %v863 = vld [vmem:[%s862] sm:$0xf]
        %v864 = vsel %vm644, %v828, %v863
        %865 = vst [vmem:[%s862] sm:$0xf] %v864
        %866 = vst.msk [vmem:[%s862 + $0x4] sm:$0xf] %vm648, %v837
        %v867 = vld [vmem:[%s862 + $0x8] sm:$0x1]
        %v868 = vsel %vm316, %v838, %v867
        %869 = vst [vmem:[%s862 + $0x8] sm:$0x1] %v868
        %v870 = vld [vmem:[%s862 + $0xc] sm:$0xf]
        %v871 = vsel %vm644, %v845, %v870
        %872 = vst [vmem:[%s862 + $0xc] sm:$0xf] %v871
        %873 = vst.msk [vmem:[%s862 + $0x10] sm:$0xf] %vm648, %v854
        %v874 = vld [vmem:[%s862 + $0x14] sm:$0x1]
        %v875 = vsel %vm316, %v855, %v874
        %876 = vst [vmem:[%s862 + $0x14] sm:$0x1] %v875
      $region60: #{tpu_custom_call.1} parent=47 // pred_fallthru
        _
      %p877 = scmp.eq.s32.totalorder %s23, 1
      // Predicated region
      $region61: #{tpu_custom_call.1} parent=47 // pred_check
        %p878 = pneg %p877
      $region62: #{tpu_custom_call.1} parent=47 // pred_check_branch
        %880 = sbr.rel (%p878) target = $region64
      $region63: #{tpu_custom_call.1} parent=47 // pred_region
        %s881 = scalar_lea.vmem [#allocation2], 120
        %v882 = vld [vmem:[%s881] sm:$0xf]
        %v883 = vsel %vm644, 0, %v882
        %884 = vst [vmem:[%s881] sm:$0xf] %v883
        %885 = vst.msk [vmem:[%s881 + $0x4] sm:$0xf] %vm648, 0
        %v886 = vld [vmem:[%s881 + $0x8] sm:$0x1]
        %v887 = vsel %vm316, 0, %v886
        %888 = vst [vmem:[%s881 + $0x8] sm:$0x1] %v887
        %v889 = vld [vmem:[%s881 + $0xc] sm:$0xf]
        %v890 = vsel %vm644, 0, %v889
        %891 = vst [vmem:[%s881 + $0xc] sm:$0xf] %v890
        %892 = vst.msk [vmem:[%s881 + $0x10] sm:$0xf] %vm648, 0
        %v893 = vld [vmem:[%s881 + $0x14] sm:$0x1]
        %v894 = vsel %vm316, 0, %v893
        %895 = vst [vmem:[%s881 + $0x14] sm:$0x1] %v894
      $region64: #{tpu_custom_call.1} parent=47 // pred_fallthru
        _
      %v896 = vld [vmem:[#allocation2] sm:$0xf]
      %v897 = vld [vmem:[#allocation2 + $0x4] sm:$0xf]
      %v898 = vld [vmem:[#allocation2 + $0xc] sm:$0xf]
      %v899 = vld [vmem:[#allocation2 + $0x10] sm:$0xf]
      %v900 = vld [vmem:[#allocation2 + $0x18] sm:$0xf]
      %v901 = vld [vmem:[#allocation2 + $0x1c] sm:$0xf]
      %v902 = vld [vmem:[#allocation2 + $0x24] sm:$0xf]
      %v903 = vld [vmem:[#allocation2 + $0x28] sm:$0xf]
      %v904 = vld [vmem:[#allocation2 + $0x30] sm:$0xf]
      %v905 = vld [vmem:[#allocation2 + $0x34] sm:$0xf]
      %v906 = vld [vmem:[#allocation2 + $0x3c] sm:$0xf]
      %v907 = vld [vmem:[#allocation2 + $0x40] sm:$0xf]
      %v908 = vld [vmem:[#allocation2 + $0x48] sm:$0xf]
      %v909 = vld [vmem:[#allocation2 + $0x4c] sm:$0xf]
      %v910 = vld [vmem:[#allocation2 + $0x54] sm:$0xf]
      %v911 = vld [vmem:[#allocation2 + $0x58] sm:$0xf]
      %v912 = vld [vmem:[#allocation2 + $0x60] sm:$0xf]
      %v913 = vld [vmem:[#allocation2 + $0x64] sm:$0xf]
      %v914 = vld [vmem:[#allocation2 + $0x6c] sm:$0xf]
      %v915 = vld [vmem:[#allocation2 + $0x70] sm:$0xf]
      %v916 = vld [vmem:[#allocation2 + $0x78] sm:$0xf]
      %v917 = vld [vmem:[#allocation2 + $0x7c] sm:$0xf]
      %v918 = vld [vmem:[#allocation2 + $0x84] sm:$0xf]
      %v919 = vld [vmem:[#allocation2 + $0x88] sm:$0xf]
      %v920 = vld [vmem:[#allocation2 + $0x8] sm:$0x1]
      %v921 = vld [vmem:[#allocation2 + $0x14] sm:$0x1]
      %v922 = vld [vmem:[#allocation2 + $0x20] sm:$0x1]
      %v923 = vld [vmem:[#allocation2 + $0x2c] sm:$0x1]
      %v924 = vld [vmem:[#allocation2 + $0x38] sm:$0x1]
      %v925 = vld [vmem:[#allocation2 + $0x44] sm:$0x1]
      %v926 = vld [vmem:[#allocation2 + $0x50] sm:$0x1]
      %v927 = vld [vmem:[#allocation2 + $0x5c] sm:$0x1]
      %v928 = vld [vmem:[#allocation2 + $0x68] sm:$0x1]
      %v929 = vld [vmem:[#allocation2 + $0x74] sm:$0x1]
      %v930 = vld [vmem:[#allocation2 + $0x80] sm:$0x1]
      %v931 = vld [vmem:[#allocation2 + $0x8c] sm:$0x1]
      %v932 = vld [vmem:[#allocation2] sm:$0xe]
      %v933 = vld [vmem:[#allocation2 + $0xc] sm:$0xe]
      %v934 = vld [vmem:[#allocation2 + $0x18] sm:$0xe]
      %v935 = vld [vmem:[#allocation2 + $0x24] sm:$0xe]
      %v936 = vld [vmem:[#allocation2 + $0x30] sm:$0xe]
      %v937 = vld [vmem:[#allocation2 + $0x3c] sm:$0xe]
      %v938 = vld [vmem:[#allocation2 + $0x48] sm:$0xe]
      %v939 = vld [vmem:[#allocation2 + $0x54] sm:$0xe]
      %v940 = vld [vmem:[#allocation2 + $0x60] sm:$0xe]
      %v941 = vld [vmem:[#allocation2 + $0x6c] sm:$0xe]
      %v942 = vld [vmem:[#allocation2 + $0x78] sm:$0xe]
      %v943 = vld [vmem:[#allocation2 + $0x84] sm:$0xe]
      %v968 = vunpack.c.l.b16 %v896
      %v969 = vunpack.c.l.b16 %v897
      %v970 = vunpack.c.l.b16 %v898
      %v971 = vunpack.c.l.b16 %v899
      %v972 = vunpack.c.l.b16 %v900
      %v973 = vunpack.c.l.b16 %v901
      %v974 = vunpack.c.l.b16 %v902
      %v975 = vunpack.c.l.b16 %v903
      %v976 = vunpack.c.l.b16 %v904
      %v977 = vunpack.c.l.b16 %v905
      %v978 = vunpack.c.l.b16 %v906
      %v979 = vunpack.c.l.b16 %v907
      %v980 = vunpack.c.l.b16 %v908
      %v981 = vunpack.c.l.b16 %v909
      %v982 = vunpack.c.l.b16 %v910
      %v983 = vunpack.c.l.b16 %v911
      %v984 = vunpack.c.l.b16 %v912
      %v985 = vunpack.c.l.b16 %v913
      %v986 = vunpack.c.l.b16 %v914
      %v987 = vunpack.c.l.b16 %v915
      %v988 = vunpack.c.l.b16 %v916
      %v989 = vunpack.c.l.b16 %v917
      %v990 = vunpack.c.l.b16 %v918
      %v991 = vunpack.c.l.b16 %v919
      %v992 = vpack.c.b16 %v969, %v968
      %v993 = vpack.c.b16 %v971, %v970
      %v994 = vpack.c.b16 %v973, %v972
      %v995 = vpack.c.b16 %v975, %v974
      %v996 = vpack.c.b16 %v977, %v976
      %v997 = vpack.c.b16 %v979, %v978
      %v998 = vpack.c.b16 %v981, %v980
      %v999 = vpack.c.b16 %v983, %v982
      %v1000 = vpack.c.b16 %v985, %v984
      %v1001 = vpack.c.b16 %v987, %v986
      %v1002 = vpack.c.b16 %v989, %v988
      %v1003 = vpack.c.b16 %v991, %v990
      %v1016 = vunpack.c.l.b16 %v920
      %v1017 = vunpack.c.l.b16 %v921
      %v1018 = vunpack.c.l.b16 %v922
      %v1019 = vunpack.c.l.b16 %v923
      %v1020 = vunpack.c.l.b16 %v924
      %v1021 = vunpack.c.l.b16 %v925
      %v1022 = vunpack.c.l.b16 %v926
      %v1023 = vunpack.c.l.b16 %v927
      %v1024 = vunpack.c.l.b16 %v928
      %v1025 = vunpack.c.l.b16 %v929
      %v1026 = vunpack.c.l.b16 %v930
      %v1027 = vunpack.c.l.b16 %v931
      %v1028 = vpack.c.b16 %v1016, %v1016
      %v1029 = vpack.c.b16 %v1017, %v1017
      %v1030 = vpack.c.b16 %v1018, %v1018
      %v1031 = vpack.c.b16 %v1019, %v1019
      %v1032 = vpack.c.b16 %v1020, %v1020
      %v1033 = vpack.c.b16 %v1021, %v1021
      %v1034 = vpack.c.b16 %v1022, %v1022
      %v1035 = vpack.c.b16 %v1023, %v1023
      %v1036 = vpack.c.b16 %v1024, %v1024
      %v1037 = vpack.c.b16 %v1025, %v1025
      %v1038 = vpack.c.b16 %v1026, %v1026
      %v1039 = vpack.c.b16 %v1027, %v1027
      %vm1040 = vsmask.f32 7424
      %v1042 = vshrl.u32 %v992, 16
      %v1044 = vshll.u32 %v992, 16
      %v1046 = vrot.slane %v1044, 1
      %v1047 = vor.u32 %v1042, %v1046
      %v1049 = vshll.u32 %v1028, 16
      %v1051 = vrot.slane %v1049, 1
      %v1052 = vsel %vm1040, %v1047, %v1051
      %v1054 = vshrl.u32 %v993, 16
      %v1056 = vshll.u32 %v993, 16
      %v1058 = vrot.slane %v1056, 1
      %v1059 = vor.u32 %v1054, %v1058
      %v1061 = vshll.u32 %v1029, 16
      %v1063 = vrot.slane %v1061, 1
      %v1064 = vsel %vm1040, %v1059, %v1063
      %v1066 = vshrl.u32 %v994, 16
      %v1068 = vshll.u32 %v994, 16
      %v1070 = vrot.slane %v1068, 1
      %v1071 = vor.u32 %v1066, %v1070
      %v1073 = vshll.u32 %v1030, 16
      %v1075 = vrot.slane %v1073, 1
      %v1076 = vsel %vm1040, %v1071, %v1075
      %v1078 = vshrl.u32 %v995, 16
      %v1080 = vshll.u32 %v995, 16
      %v1082 = vrot.slane %v1080, 1
      %v1083 = vor.u32 %v1078, %v1082
      %v1085 = vshll.u32 %v1031, 16
      %v1087 = vrot.slane %v1085, 1
      %v1088 = vsel %vm1040, %v1083, %v1087
      %v1090 = vshrl.u32 %v996, 16
      %v1092 = vshll.u32 %v996, 16
      %v1094 = vrot.slane %v1092, 1
      %v1095 = vor.u32 %v1090, %v1094
      %v1097 = vshll.u32 %v1032, 16
      %v1099 = vrot.slane %v1097, 1
      %v1100 = vsel %vm1040, %v1095, %v1099
      %v1102 = vshrl.u32 %v997, 16
      %v1104 = vshll.u32 %v997, 16
      %v1106 = vrot.slane %v1104, 1
      %v1107 = vor.u32 %v1102, %v1106
      %v1109 = vshll.u32 %v1033, 16
      %v1111 = vrot.slane %v1109, 1
      %v1112 = vsel %vm1040, %v1107, %v1111
      %v1114 = vshrl.u32 %v998, 16
      %v1116 = vshll.u32 %v998, 16
      %v1118 = vrot.slane %v1116, 1
      %v1119 = vor.u32 %v1114, %v1118
      %v1121 = vshll.u32 %v1034, 16
      %v1123 = vrot.slane %v1121, 1
      %v1124 = vsel %vm1040, %v1119, %v1123
      %v1126 = vshrl.u32 %v999, 16
      %v1128 = vshll.u32 %v999, 16
      %v1130 = vrot.slane %v1128, 1
      %v1131 = vor.u32 %v1126, %v1130
      %v1133 = vshll.u32 %v1035, 16
      %v1135 = vrot.slane %v1133, 1
      %v1136 = vsel %vm1040, %v1131, %v1135
      %v1138 = vshrl.u32 %v1000, 16
      %v1140 = vshll.u32 %v1000, 16
      %v1142 = vrot.slane %v1140, 1
      %v1143 = vor.u32 %v1138, %v1142
      %v1145 = vshll.u32 %v1036, 16
      %v1147 = vrot.slane %v1145, 1
      %v1148 = vsel %vm1040, %v1143, %v1147
      %v1150 = vshrl.u32 %v1001, 16
      %v1152 = vshll.u32 %v1001, 16
      %v1154 = vrot.slane %v1152, 1
      %v1155 = vor.u32 %v1150, %v1154
      %v1157 = vshll.u32 %v1037, 16
      %v1159 = vrot.slane %v1157, 1
      %v1160 = vsel %vm1040, %v1155, %v1159
      %v1162 = vshrl.u32 %v1002, 16
      %v1164 = vshll.u32 %v1002, 16
      %v1166 = vrot.slane %v1164, 1
      %v1167 = vor.u32 %v1162, %v1166
      %v1169 = vshll.u32 %v1038, 16
      %v1171 = vrot.slane %v1169, 1
      %v1172 = vsel %vm1040, %v1167, %v1171
      %v1174 = vshrl.u32 %v1003, 16
      %v1176 = vshll.u32 %v1003, 16
      %v1178 = vrot.slane %v1176, 1
      %v1179 = vor.u32 %v1174, %v1178
      %v1181 = vshll.u32 %v1039, 16
      %v1183 = vrot.slane %v1181, 1
      %v1184 = vsel %vm1040, %v1179, %v1183
      %1185 = vrot.lane.b32.xlu0 %v1052, 4
      %v1186 = vpop.permute.xlu0 %1185
      %1187 = vrot.lane.b32.xlu0 %v1064, 4
      %v1188 = vpop.permute.xlu0 %1187
      %1189 = vrot.lane.b32.xlu0 %v1076, 4
      %v1190 = vpop.permute.xlu0 %1189
      %1191 = vrot.lane.b32.xlu0 %v1088, 4
      %v1192 = vpop.permute.xlu0 %1191
      %1193 = vrot.lane.b32.xlu0 %v1100, 4
      %v1194 = vpop.permute.xlu0 %1193
      %1195 = vrot.lane.b32.xlu0 %v1112, 4
      %v1196 = vpop.permute.xlu0 %1195
      %1197 = vrot.lane.b32.xlu0 %v1124, 4
      %v1198 = vpop.permute.xlu0 %1197
      %1199 = vrot.lane.b32.xlu0 %v1136, 4
      %v1200 = vpop.permute.xlu0 %1199
      %1201 = vrot.lane.b32.xlu0 %v1148, 4
      %v1202 = vpop.permute.xlu0 %1201
      %1203 = vrot.lane.b32.xlu0 %v1160, 4
      %v1204 = vpop.permute.xlu0 %1203
      %1205 = vrot.lane.b32.xlu0 %v1172, 4
      %v1206 = vpop.permute.xlu0 %1205
      %1207 = vrot.lane.b32.xlu0 %v1184, 4
      %v1208 = vpop.permute.xlu0 %1207
      %v1221 = vunpack.c.l.b16 %v932
      %v1222 = vunpack.c.l.b16 %v933
      %v1223 = vunpack.c.l.b16 %v934
      %v1224 = vunpack.c.l.b16 %v935
      %v1225 = vunpack.c.l.b16 %v936
      %v1226 = vunpack.c.l.b16 %v937
      %v1227 = vunpack.c.l.b16 %v938
      %v1228 = vunpack.c.l.b16 %v939
      %v1229 = vunpack.c.l.b16 %v940
      %v1230 = vunpack.c.l.b16 %v941
      %v1231 = vunpack.c.l.b16 %v942
      %v1232 = vunpack.c.l.b16 %v943
      %v1233 = vpack.c.b16 %v969, %v1221
      %v1234 = vpack.c.b16 %v971, %v1222
      %v1235 = vpack.c.b16 %v973, %v1223
      %v1236 = vpack.c.b16 %v975, %v1224
      %v1237 = vpack.c.b16 %v977, %v1225
      %v1238 = vpack.c.b16 %v979, %v1226
      %v1239 = vpack.c.b16 %v981, %v1227
      %v1240 = vpack.c.b16 %v983, %v1228
      %v1241 = vpack.c.b16 %v985, %v1229
      %v1242 = vpack.c.b16 %v987, %v1230
      %v1243 = vpack.c.b16 %v989, %v1231
      %v1244 = vpack.c.b16 %v991, %v1232
      %vm1245 = vcmask 1046528
      %v1246 = vrot.slane %v1233, 1
      %v1247 = vrot.slane %v1028, 1
      %v1248 = vsel %vm1245, %v1246, %v1247
      %v1249 = vrot.slane %v1234, 1
      %v1250 = vrot.slane %v1029, 1
      %v1251 = vsel %vm1245, %v1249, %v1250
      %v1252 = vrot.slane %v1235, 1
      %v1253 = vrot.slane %v1030, 1
      %v1254 = vsel %vm1245, %v1252, %v1253
      %v1255 = vrot.slane %v1236, 1
      %v1256 = vrot.slane %v1031, 1
      %v1257 = vsel %vm1245, %v1255, %v1256
      %v1258 = vrot.slane %v1237, 1
      %v1259 = vrot.slane %v1032, 1
      %v1260 = vsel %vm1245, %v1258, %v1259
      %v1261 = vrot.slane %v1238, 1
      %v1262 = vrot.slane %v1033, 1
      %v1263 = vsel %vm1245, %v1261, %v1262
      %v1264 = vrot.slane %v1239, 1
      %v1265 = vrot.slane %v1034, 1
      %v1266 = vsel %vm1245, %v1264, %v1265
      %v1267 = vrot.slane %v1240, 1
      %v1268 = vrot.slane %v1035, 1
      %v1269 = vsel %vm1245, %v1267, %v1268
      %v1270 = vrot.slane %v1241, 1
      %v1271 = vrot.slane %v1036, 1
      %v1272 = vsel %vm1245, %v1270, %v1271
      %v1273 = vrot.slane %v1242, 1
      %v1274 = vrot.slane %v1037, 1
      %v1275 = vsel %vm1245, %v1273, %v1274
      %v1276 = vrot.slane %v1243, 1
      %v1277 = vrot.slane %v1038, 1
      %v1278 = vsel %vm1245, %v1276, %v1277
      %v1279 = vrot.slane %v1244, 1
      %v1280 = vrot.slane %v1039, 1
      %v1281 = vsel %vm1245, %v1279, %v1280
      %1282 = vrot.lane.b32.xlu0 %v1248, 8
      %v1283 = vpop.permute.xlu0 %1282
      %1284 = vrot.lane.b32.xlu0 %v1251, 8
      %v1285 = vpop.permute.xlu0 %1284
      %1286 = vrot.lane.b32.xlu0 %v1254, 8
      %v1287 = vpop.permute.xlu0 %1286
      %1288 = vrot.lane.b32.xlu0 %v1257, 8
      %v1289 = vpop.permute.xlu0 %1288
      %1290 = vrot.lane.b32.xlu0 %v1260, 8
      %v1291 = vpop.permute.xlu0 %1290
      %1292 = vrot.lane.b32.xlu0 %v1263, 8
      %v1293 = vpop.permute.xlu0 %1292
      %1294 = vrot.lane.b32.xlu0 %v1266, 8
      %v1295 = vpop.permute.xlu0 %1294
      %1296 = vrot.lane.b32.xlu0 %v1269, 8
      %v1297 = vpop.permute.xlu0 %1296
      %1298 = vrot.lane.b32.xlu0 %v1272, 8
      %v1299 = vpop.permute.xlu0 %1298
      %1300 = vrot.lane.b32.xlu0 %v1275, 8
      %v1301 = vpop.permute.xlu0 %1300
      %1302 = vrot.lane.b32.xlu0 %v1278, 8
      %v1303 = vpop.permute.xlu0 %1302
      %1304 = vrot.lane.b32.xlu0 %v1281, 8
      %v1305 = vpop.permute.xlu0 %1304
      %vm1306 = vcmask 31744
      %v1308 = vsel %vm1306, %v992, %v1186
      %v1310 = vsel %vm1306, %v993, %v1188
      %v1312 = vsel %vm1306, %v994, %v1190
      %v1314 = vsel %vm1306, %v995, %v1192
      %v1316 = vsel %vm1306, %v996, %v1194
      %v1318 = vsel %vm1306, %v997, %v1196
      %v1320 = vsel %vm1306, %v998, %v1198
      %v1322 = vsel %vm1306, %v999, %v1200
      %v1324 = vsel %vm1306, %v1000, %v1202
      %v1326 = vsel %vm1306, %v1001, %v1204
      %v1328 = vsel %vm1306, %v1002, %v1206
      %v1330 = vsel %vm1306, %v1003, %v1208
      %vm1331 = vcmask 64512
      %v1333 = vsel %vm1331, %v1308, %v1283
      %v1335 = vsel %vm1331, %v1310, %v1285
      %v1337 = vsel %vm1331, %v1312, %v1287
      %v1339 = vsel %vm1331, %v1314, %v1289
      %v1341 = vsel %vm1331, %v1316, %v1291
      %v1343 = vsel %vm1331, %v1318, %v1293
      %v1345 = vsel %vm1331, %v1320, %v1295
      %v1347 = vsel %vm1331, %v1322, %v1297
      %v1349 = vsel %vm1331, %v1324, %v1299
      %v1351 = vsel %vm1331, %v1326, %v1301
      %v1353 = vsel %vm1331, %v1328, %v1303
      %v1355 = vsel %vm1331, %v1330, %v1305
      %v1356 = vld [vmem:[%s3] sm:$0xf]
      %v1357 = vld [vmem:[%s3 + $0x4] sm:$0x3]
      %s1358 = scalar_lea.vmem %s3, 8
      %v1359 = vld [vmem:[%s1358] sm:$0xf]
      %v1360 = vld [vmem:[%s1358 + $0x4] sm:$0x3]
      %v1363 = vunpack.c.l.b16 %v1359
      %v1364 = vunpack.c.l.b16 %v1360
      %v1365 = vpack.c.b16 %v1364, %v1363
      %vm1366 = vcmask 97280
      %v1367 = vsel %vm1366, %v1335, 0
      %v1369 = vsel %vm1366, %v1337, 0
      %v1371 = vsel %vm1366, %v1339, 0
      %v1373 = vsel %vm1366, %v1341, 0
      %v1375 = vsel %vm1366, %v1343, 0
      %v1377 = vsel %vm1366, %v1345, 0
      %v1379 = vsel %vm1366, %v1347, 0
      %v1381 = vsel %vm1366, %v1349, 0
      %v1383 = vsel %vm1366, %v1351, 0
      %v1385 = vsel %vm1366, %v1353, 0
      %vm1387 = vcmask 1045504
      %v1389 = vsel %vm1387, %v1365, 0
      %1391 = vmatprep.subr.bf16.mxu0 0
      %1392 = vmatpush1.bf16.msra.mxu0 0
      %1393 = vmatprep.subr.bf16.mxu0 0
      %1394 = vmatpush1.bf16.msra.mxu0 0
      %1395 = vmatprep.subr.bf16.mxu0 0
      %1396 = vmatpush1.bf16.msra.mxu0 0
      %1397 = vmatprep.subr.bf16.mxu0 0
      %1398 = vmatpush1.bf16.msra.mxu0 0
      %1399 = vmatprep.subr.bf16.mxu0 0
      %1400 = vmatpush1.bf16.msra.mxu0 0
      %1401 = vmatprep.subr.bf16.mxu0 0
      %1402 = vmatpush1.bf16.msra.mxu0 0
      %1403 = vmatprep.subr.bf16.mxu0 0
      %1404 = vmatpush1.bf16.msra.mxu0 0
      %1405 = vmatprep.subr.bf16.mxu0 0
      %1406 = vmatpush1.bf16.msra.mxu0 %v1389
      %1407 = vmatprep.subr.bf16.mxu0 0
      %1408 = vmatpush2.bf16.msra.mxu0 0
      %1409 = vmatprep.subr.bf16.mxu0 0
      %1410 = vmatpush2.bf16.msra.mxu0 0
      %1411 = vmatprep.subr.bf16.mxu0 0
      %1412 = vmatpush2.bf16.msra.mxu0 0
      %1413 = vmatprep.subr.bf16.mxu0 0
      %1414 = vmatpush2.bf16.msra.mxu0 0
      %1415 = vmatprep.subr.bf16.mxu0 0
      %1416 = vmatpush2.bf16.msra.mxu0 0
      %1417 = vmatprep.subr.bf16.mxu0 0
      %1418 = vmatpush2.bf16.msra.mxu0 0
      %1419 = vmatprep.subr.bf16.mxu0 0
      %1420 = vmatpush2.bf16.msra.mxu0 0
      %1421 = vmatprep.subr.bf16.mxu0 0
      %1422 = vmatpush2.bf16.msra.mxu0 0
      %1423 = vmatprep.mubr.bf16.mxu0 0
      %1424 = vmatmul.mubr.bf16.gmra.mxu0 %v1367
      %v1425 = vpop.f32.mrf.mxu0
      %v1426 = vadd.f32 0.0, %v1425
      %v1427 = vpop.f32.mrf.mxu0
      %v1428 = vpop.f32.mrf.mxu0
      %v1429 = vadd.f32 0.0, %v1428
      %v1430 = vpop.f32.mrf.mxu0
      %1431 = vmatprep.mubr.bf16.mxu0 0
      %1432 = vmatmul.mubr.bf16.gmra.mxu0 %v1369
      %v1433 = vpop.f32.mrf.mxu0
      %v1434 = vadd.f32 0.0, %v1433
      %v1435 = vpop.f32.mrf.mxu0
      %v1436 = vpop.f32.mrf.mxu0
      %v1437 = vadd.f32 0.0, %v1436
      %v1438 = vpop.f32.mrf.mxu0
      %1439 = vmatprep.mubr.bf16.mxu0 0
      %1440 = vmatmul.mubr.bf16.gmra.mxu0 %v1371
      %v1441 = vpop.f32.mrf.mxu0
      %v1442 = vadd.f32 0.0, %v1441
      %v1443 = vpop.f32.mrf.mxu0
      %v1444 = vpop.f32.mrf.mxu0
      %v1445 = vadd.f32 0.0, %v1444
      %v1446 = vpop.f32.mrf.mxu0
      %1447 = vmatprep.mubr.bf16.mxu0 0
      %1448 = vmatmul.mubr.bf16.gmra.mxu0 %v1373
      %v1449 = vpop.f32.mrf.mxu0
      %v1450 = vadd.f32 0.0, %v1449
      %v1451 = vpop.f32.mrf.mxu0
      %v1452 = vpop.f32.mrf.mxu0
      %v1453 = vadd.f32 0.0, %v1452
      %v1454 = vpop.f32.mrf.mxu0
      %1455 = vmatprep.mubr.bf16.mxu0 0
      %1456 = vmatmul.mubr.bf16.gmra.mxu0 %v1375
      %v1457 = vpop.f32.mrf.mxu0
      %v1458 = vadd.f32 0.0, %v1457
      %v1459 = vpop.f32.mrf.mxu0
      %v1460 = vpop.f32.mrf.mxu0
      %v1461 = vadd.f32 0.0, %v1460
      %v1462 = vpop.f32.mrf.mxu0
      %1463 = vmatprep.mubr.bf16.mxu0 0
      %1464 = vmatmul.mubr.bf16.gmra.mxu0 %v1377
      %v1465 = vpop.f32.mrf.mxu0
      %v1466 = vadd.f32 0.0, %v1465
      %v1467 = vpop.f32.mrf.mxu0
      %v1468 = vpop.f32.mrf.mxu0
      %v1469 = vadd.f32 0.0, %v1468
      %v1470 = vpop.f32.mrf.mxu0
      %1471 = vmatprep.mubr.bf16.mxu0 0
      %1472 = vmatmul.mubr.bf16.gmra.mxu0 %v1379
      %v1473 = vpop.f32.mrf.mxu0
      %v1474 = vadd.f32 0.0, %v1473
      %v1475 = vpop.f32.mrf.mxu0
      %v1476 = vpop.f32.mrf.mxu0
      %v1477 = vadd.f32 0.0, %v1476
      %v1478 = vpop.f32.mrf.mxu0
      %1479 = vmatprep.mubr.bf16.mxu0 0
      %1480 = vmatmul.mubr.bf16.gmra.mxu0 %v1381
      %v1481 = vpop.f32.mrf.mxu0
      %v1482 = vadd.f32 0.0, %v1481
      %v1483 = vpop.f32.mrf.mxu0
      %v1484 = vpop.f32.mrf.mxu0
      %v1485 = vadd.f32 0.0, %v1484
      %v1486 = vpop.f32.mrf.mxu0
      %1487 = vmatprep.mubr.bf16.mxu0 0
      %1488 = vmatmul.mubr.bf16.gmra.mxu0 %v1383
      %v1489 = vpop.f32.mrf.mxu0
      %v1490 = vadd.f32 0.0, %v1489
      %v1491 = vpop.f32.mrf.mxu0
      %v1492 = vpop.f32.mrf.mxu0
      %v1493 = vadd.f32 0.0, %v1492
      %v1494 = vpop.f32.mrf.mxu0
      %1495 = vmatprep.mubr.bf16.mxu0 0
      %1496 = vmatmul.mubr.bf16.gmra.mxu0 %v1385
      %v1497 = vpop.f32.mrf.mxu0
      %v1498 = vadd.f32 0.0, %v1497
      %v1499 = vpop.f32.mrf.mxu0
      %v1500 = vpop.f32.mrf.mxu0
      %v1501 = vadd.f32 0.0, %v1500
      %v1502 = vpop.f32.mrf.mxu0
      %1503 = vdwg.mxu0
      %v1506 = vunpack.c.l.b16 %v1356
      %v1507 = vunpack.c.l.b16 %v1357
      %v1508 = vpack.c.b16 %v1507, %v1506
      %v1509 = vsel %vm1366, %v1333, 0
      %v1512 = vsel %vm1387, %v1508, 0
      %1514 = vmatprep.subr.bf16.mxu0 0
      %1515 = vmatpush1.bf16.msra.mxu0 0
      %1516 = vmatprep.subr.bf16.mxu0 0
      %1517 = vmatpush1.bf16.msra.mxu0 0
      %1518 = vmatprep.subr.bf16.mxu0 0
      %1519 = vmatpush1.bf16.msra.mxu0 0
      %1520 = vmatprep.subr.bf16.mxu0 0
      %1521 = vmatpush1.bf16.msra.mxu0 0
      %1522 = vmatprep.subr.bf16.mxu0 0
      %1523 = vmatpush1.bf16.msra.mxu0 0
      %1524 = vmatprep.subr.bf16.mxu0 0
      %1525 = vmatpush1.bf16.msra.mxu0 0
      %1526 = vmatprep.subr.bf16.mxu0 0
      %1527 = vmatpush1.bf16.msra.mxu0 0
      %1528 = vmatprep.subr.bf16.mxu0 0
      %1529 = vmatpush1.bf16.msra.mxu0 %v1512
      %1530 = vmatprep.subr.bf16.mxu0 0
      %1531 = vmatpush2.bf16.msra.mxu0 0
      %1532 = vmatprep.subr.bf16.mxu0 0
      %1533 = vmatpush2.bf16.msra.mxu0 0
      %1534 = vmatprep.subr.bf16.mxu0 0
      %1535 = vmatpush2.bf16.msra.mxu0 0
      %1536 = vmatprep.subr.bf16.mxu0 0
      %1537 = vmatpush2.bf16.msra.mxu0 0
      %1538 = vmatprep.subr.bf16.mxu0 0
      %1539 = vmatpush2.bf16.msra.mxu0 0
      %1540 = vmatprep.subr.bf16.mxu0 0
      %1541 = vmatpush2.bf16.msra.mxu0 0
      %1542 = vmatprep.subr.bf16.mxu0 0
      %1543 = vmatpush2.bf16.msra.mxu0 0
      %1544 = vmatprep.subr.bf16.mxu0 0
      %1545 = vmatpush2.bf16.msra.mxu0 0
      %1546 = vmatprep.mubr.bf16.mxu0 0
      %1547 = vmatmul.mubr.bf16.gmra.mxu0 %v1509
      %v1548 = vpop.f32.mrf.mxu0
      %v1549 = vadd.f32 %v1426, %v1548
      %v1550 = vpop.f32.mrf.mxu0
      %v1551 = vpop.f32.mrf.mxu0
      %v1552 = vadd.f32 %v1429, %v1551
      %v1553 = vpop.f32.mrf.mxu0
      %1554 = vmatprep.mubr.bf16.mxu0 0
      %1555 = vmatmul.mubr.bf16.gmra.mxu0 %v1367
      %v1556 = vpop.f32.mrf.mxu0
      %v1557 = vadd.f32 %v1434, %v1556
      %v1558 = vpop.f32.mrf.mxu0
      %v1559 = vpop.f32.mrf.mxu0
      %v1560 = vadd.f32 %v1437, %v1559
      %v1561 = vpop.f32.mrf.mxu0
      %1562 = vmatprep.mubr.bf16.mxu0 0
      %1563 = vmatmul.mubr.bf16.gmra.mxu0 %v1369
      %v1564 = vpop.f32.mrf.mxu0
      %v1565 = vadd.f32 %v1442, %v1564
      %v1566 = vpop.f32.mrf.mxu0
      %v1567 = vpop.f32.mrf.mxu0
      %v1568 = vadd.f32 %v1445, %v1567
      %v1569 = vpop.f32.mrf.mxu0
      %1570 = vmatprep.mubr.bf16.mxu0 0
      %1571 = vmatmul.mubr.bf16.gmra.mxu0 %v1371
      %v1572 = vpop.f32.mrf.mxu0
      %v1573 = vadd.f32 %v1450, %v1572
      %v1574 = vpop.f32.mrf.mxu0
      %v1575 = vpop.f32.mrf.mxu0
      %v1576 = vadd.f32 %v1453, %v1575
      %v1577 = vpop.f32.mrf.mxu0
      %1578 = vmatprep.mubr.bf16.mxu0 0
      %1579 = vmatmul.mubr.bf16.gmra.mxu0 %v1373
      %v1580 = vpop.f32.mrf.mxu0
      %v1581 = vadd.f32 %v1458, %v1580
      %v1582 = vpop.f32.mrf.mxu0
      %v1583 = vpop.f32.mrf.mxu0
      %v1584 = vadd.f32 %v1461, %v1583
      %v1585 = vpop.f32.mrf.mxu0
      %1586 = vmatprep.mubr.bf16.mxu0 0
      %1587 = vmatmul.mubr.bf16.gmra.mxu0 %v1375
      %v1588 = vpop.f32.mrf.mxu0
      %v1589 = vadd.f32 %v1466, %v1588
      %v1590 = vpop.f32.mrf.mxu0
      %v1591 = vpop.f32.mrf.mxu0
      %v1592 = vadd.f32 %v1469, %v1591
      %v1593 = vpop.f32.mrf.mxu0
      %1594 = vmatprep.mubr.bf16.mxu0 0
      %1595 = vmatmul.mubr.bf16.gmra.mxu0 %v1377
      %v1596 = vpop.f32.mrf.mxu0
      %v1597 = vadd.f32 %v1474, %v1596
      %v1598 = vpop.f32.mrf.mxu0
      %v1599 = vpop.f32.mrf.mxu0
      %v1600 = vadd.f32 %v1477, %v1599
      %v1601 = vpop.f32.mrf.mxu0
      %1602 = vmatprep.mubr.bf16.mxu0 0
      %1603 = vmatmul.mubr.bf16.gmra.mxu0 %v1379
      %v1604 = vpop.f32.mrf.mxu0
      %v1605 = vadd.f32 %v1482, %v1604
      %v1606 = vpop.f32.mrf.mxu0
      %v1607 = vpop.f32.mrf.mxu0
      %v1608 = vadd.f32 %v1485, %v1607
      %v1609 = vpop.f32.mrf.mxu0
      %1610 = vmatprep.mubr.bf16.mxu0 0
      %1611 = vmatmul.mubr.bf16.gmra.mxu0 %v1381
      %v1612 = vpop.f32.mrf.mxu0
      %v1613 = vadd.f32 %v1490, %v1612
      %v1614 = vpop.f32.mrf.mxu0
      %v1615 = vpop.f32.mrf.mxu0
      %v1616 = vadd.f32 %v1493, %v1615
      %v1617 = vpop.f32.mrf.mxu0
      %1618 = vmatprep.mubr.bf16.mxu0 0
      %1619 = vmatmul.mubr.bf16.gmra.mxu0 %v1383
      %v1620 = vpop.f32.mrf.mxu0
      %v1621 = vadd.f32 %v1498, %v1620
      %v1622 = vpop.f32.mrf.mxu0
      %v1623 = vpop.f32.mrf.mxu0
      %v1624 = vadd.f32 %v1501, %v1623
      %v1625 = vpop.f32.mrf.mxu0
      %1626 = vdwg.mxu0
      %s1627 = scalar_lea.vmem %s3, 16
      %v1628 = vld [vmem:[%s1627] sm:$0xf]
      %v1629 = vld [vmem:[%s1627 + $0x4] sm:$0x3]
      %v1632 = vunpack.c.l.b16 %v1628
      %v1633 = vunpack.c.l.b16 %v1629
      %v1634 = vpack.c.b16 %v1633, %v1632
      %v1635 = vsel %vm1366, %v1355, 0
      %v1638 = vsel %vm1387, %v1634, 0
      %1640 = vmatprep.subr.bf16.mxu0 0
      %1641 = vmatpush1.bf16.msra.mxu0 0
      %1642 = vmatprep.subr.bf16.mxu0 0
      %1643 = vmatpush1.bf16.msra.mxu0 0
      %1644 = vmatprep.subr.bf16.mxu0 0
      %1645 = vmatpush1.bf16.msra.mxu0 0
      %1646 = vmatprep.subr.bf16.mxu0 0
      %1647 = vmatpush1.bf16.msra.mxu0 0
      %1648 = vmatprep.subr.bf16.mxu0 0
      %1649 = vmatpush1.bf16.msra.mxu0 0
      %1650 = vmatprep.subr.bf16.mxu0 0
      %1651 = vmatpush1.bf16.msra.mxu0 0
      %1652 = vmatprep.subr.bf16.mxu0 0
      %1653 = vmatpush1.bf16.msra.mxu0 0
      %1654 = vmatprep.subr.bf16.mxu0 0
      %1655 = vmatpush1.bf16.msra.mxu0 %v1638
      %1656 = vmatprep.subr.bf16.mxu0 0
      %1657 = vmatpush2.bf16.msra.mxu0 0
      %1658 = vmatprep.subr.bf16.mxu0 0
      %1659 = vmatpush2.bf16.msra.mxu0 0
      %1660 = vmatprep.subr.bf16.mxu0 0
      %1661 = vmatpush2.bf16.msra.mxu0 0
      %1662 = vmatprep.subr.bf16.mxu0 0
      %1663 = vmatpush2.bf16.msra.mxu0 0
      %1664 = vmatprep.subr.bf16.mxu0 0
      %1665 = vmatpush2.bf16.msra.mxu0 0
      %1666 = vmatprep.subr.bf16.mxu0 0
      %1667 = vmatpush2.bf16.msra.mxu0 0
      %1668 = vmatprep.subr.bf16.mxu0 0
      %1669 = vmatpush2.bf16.msra.mxu0 0
      %1670 = vmatprep.subr.bf16.mxu0 0
      %1671 = vmatpush2.bf16.msra.mxu0 0
      %1672 = vmatprep.mubr.bf16.mxu0 0
      %1673 = vmatmul.mubr.bf16.gmra.mxu0 %v1369
      %v1674 = vpop.f32.mrf.mxu0
      %v1675 = vadd.f32 0.0, %v1674
      %v1676 = vpop.f32.mrf.mxu0
      %v1677 = vpop.f32.mrf.mxu0
      %v1678 = vadd.f32 0.0, %v1677
      %v1679 = vpop.f32.mrf.mxu0
      %1680 = vmatprep.mubr.bf16.mxu0 0
      %1681 = vmatmul.mubr.bf16.gmra.mxu0 %v1371
      %v1682 = vpop.f32.mrf.mxu0
      %v1683 = vadd.f32 0.0, %v1682
      %v1684 = vpop.f32.mrf.mxu0
      %v1685 = vpop.f32.mrf.mxu0
      %v1686 = vadd.f32 0.0, %v1685
      %v1687 = vpop.f32.mrf.mxu0
      %1688 = vmatprep.mubr.bf16.mxu0 0
      %1689 = vmatmul.mubr.bf16.gmra.mxu0 %v1373
      %v1690 = vpop.f32.mrf.mxu0
      %v1691 = vadd.f32 0.0, %v1690
      %v1692 = vpop.f32.mrf.mxu0
      %v1693 = vpop.f32.mrf.mxu0
      %v1694 = vadd.f32 0.0, %v1693
      %v1695 = vpop.f32.mrf.mxu0
      %1696 = vmatprep.mubr.bf16.mxu0 0
      %1697 = vmatmul.mubr.bf16.gmra.mxu0 %v1375
      %v1698 = vpop.f32.mrf.mxu0
      %v1699 = vadd.f32 0.0, %v1698
      %v1700 = vpop.f32.mrf.mxu0
      %v1701 = vpop.f32.mrf.mxu0
      %v1702 = vadd.f32 0.0, %v1701
      %v1703 = vpop.f32.mrf.mxu0
      %1704 = vmatprep.mubr.bf16.mxu0 0
      %1705 = vmatmul.mubr.bf16.gmra.mxu0 %v1377
      %v1706 = vpop.f32.mrf.mxu0
      %v1707 = vadd.f32 0.0, %v1706
      %v1708 = vpop.f32.mrf.mxu0
      %v1709 = vpop.f32.mrf.mxu0
      %v1710 = vadd.f32 0.0, %v1709
      %v1711 = vpop.f32.mrf.mxu0
      %1712 = vmatprep.mubr.bf16.mxu0 0
      %1713 = vmatmul.mubr.bf16.gmra.mxu0 %v1379
      %v1714 = vpop.f32.mrf.mxu0
      %v1715 = vadd.f32 0.0, %v1714
      %v1716 = vpop.f32.mrf.mxu0
      %v1717 = vpop.f32.mrf.mxu0
      %v1718 = vadd.f32 0.0, %v1717
      %v1719 = vpop.f32.mrf.mxu0
      %1720 = vmatprep.mubr.bf16.mxu0 0
      %1721 = vmatmul.mubr.bf16.gmra.mxu0 %v1381
      %v1722 = vpop.f32.mrf.mxu0
      %v1723 = vadd.f32 0.0, %v1722
      %v1724 = vpop.f32.mrf.mxu0
      %v1725 = vpop.f32.mrf.mxu0
      %v1726 = vadd.f32 0.0, %v1725
      %v1727 = vpop.f32.mrf.mxu0
      %1728 = vmatprep.mubr.bf16.mxu0 0
      %1729 = vmatmul.mubr.bf16.gmra.mxu0 %v1383
      %v1730 = vpop.f32.mrf.mxu0
      %v1731 = vadd.f32 0.0, %v1730
      %v1732 = vpop.f32.mrf.mxu0
      %v1733 = vpop.f32.mrf.mxu0
      %v1734 = vadd.f32 0.0, %v1733
      %v1735 = vpop.f32.mrf.mxu0
      %1736 = vmatprep.mubr.bf16.mxu0 0
      %1737 = vmatmul.mubr.bf16.gmra.mxu0 %v1385
      %v1738 = vpop.f32.mrf.mxu0
      %v1739 = vadd.f32 0.0, %v1738
      %v1740 = vpop.f32.mrf.mxu0
      %v1741 = vpop.f32.mrf.mxu0
      %v1742 = vadd.f32 0.0, %v1741
      %v1743 = vpop.f32.mrf.mxu0
      %1744 = vmatprep.mubr.bf16.mxu0 0
      %1745 = vmatmul.mubr.bf16.gmra.mxu0 %v1635
      %v1746 = vpop.f32.mrf.mxu0
      %v1747 = vadd.f32 0.0, %v1746
      %v1748 = vpop.f32.mrf.mxu0
      %v1749 = vpop.f32.mrf.mxu0
      %v1750 = vadd.f32 0.0, %v1749
      %v1751 = vpop.f32.mrf.mxu0
      %1752 = vdwg.mxu0
      %v1753 = vadd.f32 %v1549, %v1675
      %v1754 = vadd.f32 %v1552, %v1678
      %v1755 = vadd.f32 %v1557, %v1683
      %v1756 = vadd.f32 %v1560, %v1686
      %v1757 = vadd.f32 %v1565, %v1691
      %v1758 = vadd.f32 %v1568, %v1694
      %v1759 = vadd.f32 %v1573, %v1699
      %v1760 = vadd.f32 %v1576, %v1702
      %v1761 = vadd.f32 %v1581, %v1707
      %v1762 = vadd.f32 %v1584, %v1710
      %v1763 = vadd.f32 %v1589, %v1715
      %v1764 = vadd.f32 %v1592, %v1718
      %v1765 = vadd.f32 %v1597, %v1723
      %v1766 = vadd.f32 %v1600, %v1726
      %v1767 = vadd.f32 %v1605, %v1731
      %v1768 = vadd.f32 %v1608, %v1734
      %v1769 = vadd.f32 %v1613, %v1739
      %v1770 = vadd.f32 %v1616, %v1742
      %v1771 = vadd.f32 %v1621, %v1747
      %v1772 = vadd.f32 %v1624, %v1750
      %v1773 = vpack.c.bf16 %v1754, %v1753
      %v1774 = vpack.c.bf16 %v1756, %v1755
      %v1775 = vpack.c.bf16 %v1758, %v1757
      %v1776 = vpack.c.bf16 %v1760, %v1759
      %v1777 = vpack.c.bf16 %v1762, %v1761
      %v1778 = vpack.c.bf16 %v1764, %v1763
      %v1779 = vpack.c.bf16 %v1766, %v1765
      %v1780 = vpack.c.bf16 %v1768, %v1767
      %v1781 = vpack.c.bf16 %v1770, %v1769
      %v1782 = vpack.c.bf16 %v1772, %v1771
      %v1784 = vpack.i.b16 %v311, %v311
      %v1786 = vlaneseq
      %v1787 = vshrl.u32 %v1786, 7
      %v1788 = vsub.s32 0, %v1787
      %v1789 = vrot.slane %v1784, %v1788
      %v1790 = vmul.bf16 %v1773, %v1789
      %v1791 = vmul.bf16 %v1774, %v1789
      %v1792 = vmul.bf16 %v1775, %v1789
      %v1793 = vmul.bf16 %v1776, %v1789
      %v1794 = vmul.bf16 %v1777, %v1789
      %v1795 = vmul.bf16 %v1778, %v1789
      %v1796 = vmul.bf16 %v1779, %v1789
      %v1797 = vmul.bf16 %v1780, %v1789
      %v1798 = vmul.bf16 %v1781, %v1789
      %v1799 = vmul.bf16 %v1782, %v1789
      %v1801 = vpack.i.b16 %v313, %v313
      %v1803 = vlaneseq
      %v1804 = vshrl.u32 %v1803, 7
      %v1805 = vsub.s32 0, %v1804
      %v1806 = vrot.slane %v1801, %v1805
      %v1807 = vadd.bf16 %v1790, %v1806
      %v1808 = vadd.bf16 %v1791, %v1806
      %v1809 = vadd.bf16 %v1792, %v1806
      %v1810 = vadd.bf16 %v1793, %v1806
      %v1811 = vadd.bf16 %v1794, %v1806
      %v1812 = vadd.bf16 %v1795, %v1806
      %v1813 = vadd.bf16 %v1796, %v1806
      %v1814 = vadd.bf16 %v1797, %v1806
      %v1815 = vadd.bf16 %v1798, %v1806
      %v1816 = vadd.bf16 %v1799, %v1806
      %v1817 = vmax.bf16 %v1807, 0
      %v1818 = vmax.bf16 %v1808, 0
      %v1819 = vmax.bf16 %v1809, 0
      %v1820 = vmax.bf16 %v1810, 0
      %v1821 = vmax.bf16 %v1811, 0
      %v1822 = vmax.bf16 %v1812, 0
      %v1823 = vmax.bf16 %v1813, 0
      %v1824 = vmax.bf16 %v1814, 0
      %v1825 = vmax.bf16 %v1815, 0
      %v1826 = vmax.bf16 %v1816, 0
      %v1827 = vld [vmem:[#allocation3] sm:$0x1]
      %v1828 = vsel %vm316, 0, %v1827
      %1829 = vst [vmem:[#allocation3] sm:$0x1] %v1828
      %v1830 = vld [vmem:[#allocation3 + $0xc] sm:$0x1]
      %v1831 = vsel %vm316, 0, %v1830
      %1832 = vst [vmem:[#allocation3 + $0xc] sm:$0x1] %v1831
      %v1833 = vld [vmem:[#allocation3 + $0x18] sm:$0x1]
      %v1834 = vsel %vm316, 0, %v1833
      %1835 = vst [vmem:[#allocation3 + $0x18] sm:$0x1] %v1834
      %v1836 = vld [vmem:[#allocation3 + $0x24] sm:$0x1]
      %v1837 = vsel %vm316, 0, %v1836
      %1838 = vst [vmem:[#allocation3 + $0x24] sm:$0x1] %v1837
      %v1839 = vld [vmem:[#allocation3 + $0x30] sm:$0x1]
      %v1840 = vsel %vm316, 0, %v1839
      %1841 = vst [vmem:[#allocation3 + $0x30] sm:$0x1] %v1840
      %v1842 = vld [vmem:[#allocation3 + $0x3c] sm:$0x1]
      %v1843 = vsel %vm316, 0, %v1842
      %1844 = vst [vmem:[#allocation3 + $0x3c] sm:$0x1] %v1843
      %v1845 = vld [vmem:[#allocation3 + $0x48] sm:$0x1]
      %v1846 = vsel %vm316, 0, %v1845
      %1847 = vst [vmem:[#allocation3 + $0x48] sm:$0x1] %v1846
      %v1848 = vld [vmem:[#allocation3 + $0x54] sm:$0x1]
      %v1849 = vsel %vm316, 0, %v1848
      %1850 = vst [vmem:[#allocation3 + $0x54] sm:$0x1] %v1849
      %v1851 = vld [vmem:[#allocation3 + $0x60] sm:$0x1]
      %v1852 = vsel %vm316, 0, %v1851
      %1853 = vst [vmem:[#allocation3 + $0x60] sm:$0x1] %v1852
      %v1854 = vld [vmem:[#allocation3 + $0x6c] sm:$0x1]
      %v1855 = vsel %vm316, 0, %v1854
      %1856 = vst [vmem:[#allocation3 + $0x6c] sm:$0x1] %v1855
      %v1857 = vld [vmem:[#allocation3 + $0x8] sm:$0x1]
      %v1858 = vsel %vm354, 0, %v1857
      %1859 = vst [vmem:[#allocation3 + $0x8] sm:$0x1] %v1858
      %v1860 = vld [vmem:[#allocation3 + $0x14] sm:$0x1]
      %v1861 = vsel %vm354, 0, %v1860
      %1862 = vst [vmem:[#allocation3 + $0x14] sm:$0x1] %v1861
      %v1863 = vld [vmem:[#allocation3 + $0x20] sm:$0x1]
      %v1864 = vsel %vm354, 0, %v1863
      %1865 = vst [vmem:[#allocation3 + $0x20] sm:$0x1] %v1864
      %v1866 = vld [vmem:[#allocation3 + $0x2c] sm:$0x1]
      %v1867 = vsel %vm354, 0, %v1866
      %1868 = vst [vmem:[#allocation3 + $0x2c] sm:$0x1] %v1867
      %v1869 = vld [vmem:[#allocation3 + $0x38] sm:$0x1]
      %v1870 = vsel %vm354, 0, %v1869
      %1871 = vst [vmem:[#allocation3 + $0x38] sm:$0x1] %v1870
      %v1872 = vld [vmem:[#allocation3 + $0x44] sm:$0x1]
      %v1873 = vsel %vm354, 0, %v1872
      %1874 = vst [vmem:[#allocation3 + $0x44] sm:$0x1] %v1873
      %v1875 = vld [vmem:[#allocation3 + $0x50] sm:$0x1]
      %v1876 = vsel %vm354, 0, %v1875
      %1877 = vst [vmem:[#allocation3 + $0x50] sm:$0x1] %v1876
      %v1878 = vld [vmem:[#allocation3 + $0x5c] sm:$0x1]
      %v1879 = vsel %vm354, 0, %v1878
      %1880 = vst [vmem:[#allocation3 + $0x5c] sm:$0x1] %v1879
      %v1881 = vld [vmem:[#allocation3 + $0x68] sm:$0x1]
      %v1882 = vsel %vm354, 0, %v1881
      %1883 = vst [vmem:[#allocation3 + $0x68] sm:$0x1] %v1882
      %v1884 = vld [vmem:[#allocation3 + $0x74] sm:$0x1]
      %v1885 = vsel %vm354, 0, %v1884
      %1886 = vst [vmem:[#allocation3 + $0x74] sm:$0x1] %v1885
      %v1897 = vunpack.c.l.b16 %v1817
      %v1898 = vunpack.c.h.b16 %v1817
      %v1899 = vunpack.c.l.b16 %v1818
      %v1900 = vunpack.c.h.b16 %v1818
      %v1901 = vunpack.c.l.b16 %v1819
      %v1902 = vunpack.c.h.b16 %v1819
      %v1903 = vunpack.c.l.b16 %v1820
      %v1904 = vunpack.c.h.b16 %v1820
      %v1905 = vunpack.c.l.b16 %v1821
      %v1906 = vunpack.c.h.b16 %v1821
      %v1907 = vunpack.c.l.b16 %v1822
      %v1908 = vunpack.c.h.b16 %v1822
      %v1909 = vunpack.c.l.b16 %v1823
      %v1910 = vunpack.c.h.b16 %v1823
      %v1911 = vunpack.c.l.b16 %v1824
      %v1912 = vunpack.c.h.b16 %v1824
      %v1913 = vunpack.c.l.b16 %v1825
      %v1914 = vunpack.c.h.b16 %v1825
      %v1915 = vunpack.c.l.b16 %v1826
      %v1916 = vunpack.c.h.b16 %v1826
      %v1917 = vpack.c.b16 %v1897, %v1897
      %v1918 = vpack.c.b16 %v1898, %v1898
      %v1919 = vpack.c.b16 %v1899, %v1899
      %v1920 = vpack.c.b16 %v1900, %v1900
      %v1921 = vpack.c.b16 %v1901, %v1901
      %v1922 = vpack.c.b16 %v1902, %v1902
      %v1923 = vpack.c.b16 %v1903, %v1903
      %v1924 = vpack.c.b16 %v1904, %v1904
      %v1925 = vpack.c.b16 %v1905, %v1905
      %v1926 = vpack.c.b16 %v1906, %v1906
      %v1927 = vpack.c.b16 %v1907, %v1907
      %v1928 = vpack.c.b16 %v1908, %v1908
      %v1929 = vpack.c.b16 %v1909, %v1909
      %v1930 = vpack.c.b16 %v1910, %v1910
      %v1931 = vpack.c.b16 %v1911, %v1911
      %v1932 = vpack.c.b16 %v1912, %v1912
      %v1933 = vpack.c.b16 %v1913, %v1913
      %v1934 = vpack.c.b16 %v1914, %v1914
      %v1935 = vpack.c.b16 %v1915, %v1915
      %v1936 = vpack.c.b16 %v1916, %v1916
      %v1938 = vshrl.u32 %v1917, 16
      %v1940 = vrot.slane %v1938, 7
      %v1941 = vshll.u32 %v1917, 16
      %v1943 = vor.u32 %v1940, %v1941
      %v1944 = vrot.slane %v1940, 4
      %v1946 = vshrl.u32 %v1918, 16
      %v1948 = vrot.slane %v1946, 7
      %v1949 = vshll.u32 %v1918, 16
      %v1951 = vor.u32 %v1948, %v1949
      %v1952 = vsel %vm481, %v1944, %v1951
      %v1953 = vrot.slane %v1948, 4
      %v1955 = vshrl.u32 %v1919, 16
      %v1957 = vrot.slane %v1955, 7
      %v1958 = vshll.u32 %v1919, 16
      %v1960 = vor.u32 %v1957, %v1958
      %v1961 = vrot.slane %v1957, 4
      %v1963 = vshrl.u32 %v1920, 16
      %v1965 = vrot.slane %v1963, 7
      %v1966 = vshll.u32 %v1920, 16
      %v1968 = vor.u32 %v1965, %v1966
      %v1969 = vsel %vm481, %v1961, %v1968
      %v1970 = vrot.slane %v1965, 4
      %v1972 = vshrl.u32 %v1921, 16
      %v1974 = vrot.slane %v1972, 7
      %v1975 = vshll.u32 %v1921, 16
      %v1977 = vor.u32 %v1974, %v1975
      %v1978 = vrot.slane %v1974, 4
      %v1980 = vshrl.u32 %v1922, 16
      %v1982 = vrot.slane %v1980, 7
      %v1983 = vshll.u32 %v1922, 16
      %v1985 = vor.u32 %v1982, %v1983
      %v1986 = vsel %vm481, %v1978, %v1985
      %v1987 = vrot.slane %v1982, 4
      %v1989 = vshrl.u32 %v1923, 16
      %v1991 = vrot.slane %v1989, 7
      %v1992 = vshll.u32 %v1923, 16
      %v1994 = vor.u32 %v1991, %v1992
      %v1995 = vrot.slane %v1991, 4
      %v1997 = vshrl.u32 %v1924, 16
      %v1999 = vrot.slane %v1997, 7
      %v2000 = vshll.u32 %v1924, 16
      %v2002 = vor.u32 %v1999, %v2000
      %v2003 = vsel %vm481, %v1995, %v2002
      %v2004 = vrot.slane %v1999, 4
      %v2006 = vshrl.u32 %v1925, 16
      %v2008 = vrot.slane %v2006, 7
      %v2009 = vshll.u32 %v1925, 16
      %v2011 = vor.u32 %v2008, %v2009
      %v2012 = vrot.slane %v2008, 4
      %v2014 = vshrl.u32 %v1926, 16
      %v2016 = vrot.slane %v2014, 7
      %v2017 = vshll.u32 %v1926, 16
      %v2019 = vor.u32 %v2016, %v2017
      %v2020 = vsel %vm481, %v2012, %v2019
      %v2021 = vrot.slane %v2016, 4
      %v2023 = vshrl.u32 %v1927, 16
      %v2025 = vrot.slane %v2023, 7
      %v2026 = vshll.u32 %v1927, 16
      %v2028 = vor.u32 %v2025, %v2026
      %v2029 = vrot.slane %v2025, 4
      %v2031 = vshrl.u32 %v1928, 16
      %v2033 = vrot.slane %v2031, 7
      %v2034 = vshll.u32 %v1928, 16
      %v2036 = vor.u32 %v2033, %v2034
      %v2037 = vsel %vm481, %v2029, %v2036
      %v2038 = vrot.slane %v2033, 4
      %v2040 = vshrl.u32 %v1929, 16
      %v2042 = vrot.slane %v2040, 7
      %v2043 = vshll.u32 %v1929, 16
      %v2045 = vor.u32 %v2042, %v2043
      %v2046 = vrot.slane %v2042, 4
      %v2048 = vshrl.u32 %v1930, 16
      %v2050 = vrot.slane %v2048, 7
      %v2051 = vshll.u32 %v1930, 16
      %v2053 = vor.u32 %v2050, %v2051
      %v2054 = vsel %vm481, %v2046, %v2053
      %v2055 = vrot.slane %v2050, 4
      %v2057 = vshrl.u32 %v1931, 16
      %v2059 = vrot.slane %v2057, 7
      %v2060 = vshll.u32 %v1931, 16
      %v2062 = vor.u32 %v2059, %v2060
      %v2063 = vrot.slane %v2059, 4
      %v2065 = vshrl.u32 %v1932, 16
      %v2067 = vrot.slane %v2065, 7
      %v2068 = vshll.u32 %v1932, 16
      %v2070 = vor.u32 %v2067, %v2068
      %v2071 = vsel %vm481, %v2063, %v2070
      %v2072 = vrot.slane %v2067, 4
      %v2074 = vshrl.u32 %v1933, 16
      %v2076 = vrot.slane %v2074, 7
      %v2077 = vshll.u32 %v1933, 16
      %v2079 = vor.u32 %v2076, %v2077
      %v2080 = vrot.slane %v2076, 4
      %v2082 = vshrl.u32 %v1934, 16
      %v2084 = vrot.slane %v2082, 7
      %v2085 = vshll.u32 %v1934, 16
      %v2087 = vor.u32 %v2084, %v2085
      %v2088 = vsel %vm481, %v2080, %v2087
      %v2089 = vrot.slane %v2084, 4
      %v2091 = vshrl.u32 %v1935, 16
      %v2093 = vrot.slane %v2091, 7
      %v2094 = vshll.u32 %v1935, 16
      %v2096 = vor.u32 %v2093, %v2094
      %v2097 = vrot.slane %v2093, 4
      %v2099 = vshrl.u32 %v1936, 16
      %v2101 = vrot.slane %v2099, 7
      %v2102 = vshll.u32 %v1936, 16
      %v2104 = vor.u32 %v2101, %v2102
      %v2105 = vsel %vm481, %v2097, %v2104
      %v2106 = vrot.slane %v2101, 4
      %v2137 = vld [vmem:[#allocation3] sm:$0xf]
      %v2138 = vsel %vm644, %v1943, %v2137
      %2139 = vst [vmem:[#allocation3] sm:$0xf] %v2138
      %2140 = vst.msk [vmem:[#allocation3 + $0x4] sm:$0xf] %vm648, %v1952
      %v2141 = vld [vmem:[#allocation3 + $0x8] sm:$0x1]
      %v2142 = vsel %vm316, %v1953, %v2141
      %2143 = vst [vmem:[#allocation3 + $0x8] sm:$0x1] %v2142
      %v2144 = vld [vmem:[#allocation3 + $0xc] sm:$0xf]
      %v2145 = vsel %vm644, %v1960, %v2144
      %2146 = vst [vmem:[#allocation3 + $0xc] sm:$0xf] %v2145
      %2147 = vst.msk [vmem:[#allocation3 + $0x10] sm:$0xf] %vm648, %v1969
      %v2148 = vld [vmem:[#allocation3 + $0x14] sm:$0x1]
      %v2149 = vsel %vm316, %v1970, %v2148
      %2150 = vst [vmem:[#allocation3 + $0x14] sm:$0x1] %v2149
      %v2151 = vld [vmem:[#allocation3 + $0x18] sm:$0xf]
      %v2152 = vsel %vm644, %v1977, %v2151
      %2153 = vst [vmem:[#allocation3 + $0x18] sm:$0xf] %v2152
      %2154 = vst.msk [vmem:[#allocation3 + $0x1c] sm:$0xf] %vm648, %v1986
      %v2155 = vld [vmem:[#allocation3 + $0x20] sm:$0x1]
      %v2156 = vsel %vm316, %v1987, %v2155
      %2157 = vst [vmem:[#allocation3 + $0x20] sm:$0x1] %v2156
      %v2158 = vld [vmem:[#allocation3 + $0x24] sm:$0xf]
      %v2159 = vsel %vm644, %v1994, %v2158
      %2160 = vst [vmem:[#allocation3 + $0x24] sm:$0xf] %v2159
      %2161 = vst.msk [vmem:[#allocation3 + $0x28] sm:$0xf] %vm648, %v2003
      %v2162 = vld [vmem:[#allocation3 + $0x2c] sm:$0x1]
      %v2163 = vsel %vm316, %v2004, %v2162
      %2164 = vst [vmem:[#allocation3 + $0x2c] sm:$0x1] %v2163
      %v2165 = vld [vmem:[#allocation3 + $0x30] sm:$0xf]
      %v2166 = vsel %vm644, %v2011, %v2165
      %2167 = vst [vmem:[#allocation3 + $0x30] sm:$0xf] %v2166
      %2168 = vst.msk [vmem:[#allocation3 + $0x34] sm:$0xf] %vm648, %v2020
      %v2169 = vld [vmem:[#allocation3 + $0x38] sm:$0x1]
      %v2170 = vsel %vm316, %v2021, %v2169
      %2171 = vst [vmem:[#allocation3 + $0x38] sm:$0x1] %v2170
      %v2172 = vld [vmem:[#allocation3 + $0x3c] sm:$0xf]
      %v2173 = vsel %vm644, %v2028, %v2172
      %2174 = vst [vmem:[#allocation3 + $0x3c] sm:$0xf] %v2173
      %2175 = vst.msk [vmem:[#allocation3 + $0x40] sm:$0xf] %vm648, %v2037
      %v2176 = vld [vmem:[#allocation3 + $0x44] sm:$0x1]
      %v2177 = vsel %vm316, %v2038, %v2176
      %2178 = vst [vmem:[#allocation3 + $0x44] sm:$0x1] %v2177
      %v2179 = vld [vmem:[#allocation3 + $0x48] sm:$0xf]
      %v2180 = vsel %vm644, %v2045, %v2179
      %2181 = vst [vmem:[#allocation3 + $0x48] sm:$0xf] %v2180
      %2182 = vst.msk [vmem:[#allocation3 + $0x4c] sm:$0xf] %vm648, %v2054
      %v2183 = vld [vmem:[#allocation3 + $0x50] sm:$0x1]
      %v2184 = vsel %vm316, %v2055, %v2183
      %2185 = vst [vmem:[#allocation3 + $0x50] sm:$0x1] %v2184
      %v2186 = vld [vmem:[#allocation3 + $0x54] sm:$0xf]
      %v2187 = vsel %vm644, %v2062, %v2186
      %2188 = vst [vmem:[#allocation3 + $0x54] sm:$0xf] %v2187
      %2189 = vst.msk [vmem:[#allocation3 + $0x58] sm:$0xf] %vm648, %v2071
      %v2190 = vld [vmem:[#allocation3 + $0x5c] sm:$0x1]
      %v2191 = vsel %vm316, %v2072, %v2190
      %2192 = vst [vmem:[#allocation3 + $0x5c] sm:$0x1] %v2191
      %v2193 = vld [vmem:[#allocation3 + $0x60] sm:$0xf]
      %v2194 = vsel %vm644, %v2079, %v2193
      %2195 = vst [vmem:[#allocation3 + $0x60] sm:$0xf] %v2194
      %2196 = vst.msk [vmem:[#allocation3 + $0x64] sm:$0xf] %vm648, %v2088
      %v2197 = vld [vmem:[#allocation3 + $0x68] sm:$0x1]
      %v2198 = vsel %vm316, %v2089, %v2197
      %2199 = vst [vmem:[#allocation3 + $0x68] sm:$0x1] %v2198
      %v2200 = vld [vmem:[#allocation3 + $0x6c] sm:$0xf]
      %v2201 = vsel %vm644, %v2096, %v2200
      %2202 = vst [vmem:[#allocation3 + $0x6c] sm:$0xf] %v2201
      %2203 = vst.msk [vmem:[#allocation3 + $0x70] sm:$0xf] %vm648, %v2105
      %v2204 = vld [vmem:[#allocation3 + $0x74] sm:$0x1]
      %v2205 = vsel %vm316, %v2106, %v2204
      %2206 = vst [vmem:[#allocation3 + $0x74] sm:$0x1] %v2205
      // Predicated region
      $region65: #{tpu_custom_call.1} parent=47 // pred_check
        %p2207 = pneg %p780
      $region66: #{tpu_custom_call.1} parent=47 // pred_check_branch
        %2209 = sbr.rel (%p2207) target = $region68
      $region67: #{tpu_custom_call.1} parent=47 // pred_region
        %v2210 = vld [vmem:[#allocation3] sm:$0xf]
        %v2211 = vsel %vm644, 0, %v2210
        %2212 = vst [vmem:[#allocation3] sm:$0xf] %v2211
        %2213 = vst.msk [vmem:[#allocation3 + $0x4] sm:$0xf] %vm648, 0
        %v2214 = vld [vmem:[#allocation3 + $0x8] sm:$0x1]
        %v2215 = vsel %vm316, 0, %v2214
        %2216 = vst [vmem:[#allocation3 + $0x8] sm:$0x1] %v2215
      $region68: #{tpu_custom_call.1} parent=47 // pred_fallthru
        _
      // Predicated region
      $region69: #{tpu_custom_call.1} parent=47 // pred_check
        %p2217 = pneg %p877
      $region70: #{tpu_custom_call.1} parent=47 // pred_check_branch
        %2219 = sbr.rel (%p2217) target = $region72
      $region71: #{tpu_custom_call.1} parent=47 // pred_region
        %s2220 = scalar_lea.vmem [#allocation3], 108
        %v2221 = vld [vmem:[%s2220] sm:$0xf]
        %v2222 = vsel %vm644, 0, %v2221
        %2223 = vst [vmem:[%s2220] sm:$0xf] %v2222
        %2224 = vst.msk [vmem:[%s2220 + $0x4] sm:$0xf] %vm648, 0
        %v2225 = vld [vmem:[%s2220 + $0x8] sm:$0x1]
        %v2226 = vsel %vm316, 0, %v2225
        %2227 = vst [vmem:[%s2220 + $0x8] sm:$0x1] %v2226
      $region72: #{tpu_custom_call.1} parent=47 // pred_fallthru
        _
      %v2228 = vld [vmem:[#allocation3] sm:$0xf]
      %v2229 = vld [vmem:[#allocation3 + $0x4] sm:$0xf]
      %v2230 = vld [vmem:[#allocation3 + $0xc] sm:$0xf]
      %v2231 = vld [vmem:[#allocation3 + $0x10] sm:$0xf]
      %v2232 = vld [vmem:[#allocation3 + $0x18] sm:$0xf]
      %v2233 = vld [vmem:[#allocation3 + $0x1c] sm:$0xf]
      %v2234 = vld [vmem:[#allocation3 + $0x24] sm:$0xf]
      %v2235 = vld [vmem:[#allocation3 + $0x28] sm:$0xf]
      %v2236 = vld [vmem:[#allocation3 + $0x30] sm:$0xf]
      %v2237 = vld [vmem:[#allocation3 + $0x34] sm:$0xf]
      %v2238 = vld [vmem:[#allocation3 + $0x3c] sm:$0xf]
      %v2239 = vld [vmem:[#allocation3 + $0x40] sm:$0xf]
      %v2240 = vld [vmem:[#allocation3 + $0x48] sm:$0xf]
      %v2241 = vld [vmem:[#allocation3 + $0x4c] sm:$0xf]
      %v2242 = vld [vmem:[#allocation3 + $0x54] sm:$0xf]
      %v2243 = vld [vmem:[#allocation3 + $0x58] sm:$0xf]
      %v2244 = vld [vmem:[#allocation3 + $0x60] sm:$0xf]
      %v2245 = vld [vmem:[#allocation3 + $0x64] sm:$0xf]
      %v2246 = vld [vmem:[#allocation3 + $0x6c] sm:$0xf]
      %v2247 = vld [vmem:[#allocation3 + $0x70] sm:$0xf]
      %v2248 = vld [vmem:[#allocation3 + $0x8] sm:$0x1]
      %v2249 = vld [vmem:[#allocation3 + $0x14] sm:$0x1]
      %v2250 = vld [vmem:[#allocation3 + $0x20] sm:$0x1]
      %v2251 = vld [vmem:[#allocation3 + $0x2c] sm:$0x1]
      %v2252 = vld [vmem:[#allocation3 + $0x38] sm:$0x1]
      %v2253 = vld [vmem:[#allocation3 + $0x44] sm:$0x1]
      %v2254 = vld [vmem:[#allocation3 + $0x50] sm:$0x1]
      %v2255 = vld [vmem:[#allocation3 + $0x5c] sm:$0x1]
      %v2256 = vld [vmem:[#allocation3 + $0x68] sm:$0x1]
      %v2257 = vld [vmem:[#allocation3 + $0x74] sm:$0x1]
      %v2258 = vld [vmem:[#allocation3] sm:$0xe]
      %v2259 = vld [vmem:[#allocation3 + $0xc] sm:$0xe]
      %v2260 = vld [vmem:[#allocation3 + $0x18] sm:$0xe]
      %v2261 = vld [vmem:[#allocation3 + $0x24] sm:$0xe]
      %v2262 = vld [vmem:[#allocation3 + $0x30] sm:$0xe]
      %v2263 = vld [vmem:[#allocation3 + $0x3c] sm:$0xe]
      %v2264 = vld [vmem:[#allocation3 + $0x48] sm:$0xe]
      %v2265 = vld [vmem:[#allocation3 + $0x54] sm:$0xe]
      %v2266 = vld [vmem:[#allocation3 + $0x60] sm:$0xe]
      %v2267 = vld [vmem:[#allocation3 + $0x6c] sm:$0xe]
      %v2288 = vunpack.c.l.b16 %v2228
      %v2289 = vunpack.c.l.b16 %v2229
      %v2290 = vunpack.c.l.b16 %v2230
      %v2291 = vunpack.c.l.b16 %v2231
      %v2292 = vunpack.c.l.b16 %v2232
      %v2293 = vunpack.c.l.b16 %v2233
      %v2294 = vunpack.c.l.b16 %v2234
      %v2295 = vunpack.c.l.b16 %v2235
      %v2296 = vunpack.c.l.b16 %v2236
      %v2297 = vunpack.c.l.b16 %v2237
      %v2298 = vunpack.c.l.b16 %v2238
      %v2299 = vunpack.c.l.b16 %v2239
      %v2300 = vunpack.c.l.b16 %v2240
      %v2301 = vunpack.c.l.b16 %v2241
      %v2302 = vunpack.c.l.b16 %v2242
      %v2303 = vunpack.c.l.b16 %v2243
      %v2304 = vunpack.c.l.b16 %v2244
      %v2305 = vunpack.c.l.b16 %v2245
      %v2306 = vunpack.c.l.b16 %v2246
      %v2307 = vunpack.c.l.b16 %v2247
      %v2308 = vpack.c.b16 %v2289, %v2288
      %v2309 = vpack.c.b16 %v2291, %v2290
      %v2310 = vpack.c.b16 %v2293, %v2292
      %v2311 = vpack.c.b16 %v2295, %v2294
      %v2312 = vpack.c.b16 %v2297, %v2296
      %v2313 = vpack.c.b16 %v2299, %v2298
      %v2314 = vpack.c.b16 %v2301, %v2300
      %v2315 = vpack.c.b16 %v2303, %v2302
      %v2316 = vpack.c.b16 %v2305, %v2304
      %v2317 = vpack.c.b16 %v2307, %v2306
      %v2328 = vunpack.c.l.b16 %v2248
      %v2329 = vunpack.c.l.b16 %v2249
      %v2330 = vunpack.c.l.b16 %v2250
      %v2331 = vunpack.c.l.b16 %v2251
      %v2332 = vunpack.c.l.b16 %v2252
      %v2333 = vunpack.c.l.b16 %v2253
      %v2334 = vunpack.c.l.b16 %v2254
      %v2335 = vunpack.c.l.b16 %v2255
      %v2336 = vunpack.c.l.b16 %v2256
      %v2337 = vunpack.c.l.b16 %v2257
      %v2338 = vpack.c.b16 %v2328, %v2328
      %v2339 = vpack.c.b16 %v2329, %v2329
      %v2340 = vpack.c.b16 %v2330, %v2330
      %v2341 = vpack.c.b16 %v2331, %v2331
      %v2342 = vpack.c.b16 %v2332, %v2332
      %v2343 = vpack.c.b16 %v2333, %v2333
      %v2344 = vpack.c.b16 %v2334, %v2334
      %v2345 = vpack.c.b16 %v2335, %v2335
      %v2346 = vpack.c.b16 %v2336, %v2336
      %v2347 = vpack.c.b16 %v2337, %v2337
      %v2349 = vshrl.u32 %v2308, 16
      %v2351 = vshll.u32 %v2308, 16
      %v2353 = vrot.slane %v2351, 1
      %v2354 = vor.u32 %v2349, %v2353
      %v2356 = vshll.u32 %v2338, 16
      %v2358 = vrot.slane %v2356, 1
      %v2359 = vsel %vm1040, %v2354, %v2358
      %v2361 = vshrl.u32 %v2309, 16
      %v2363 = vshll.u32 %v2309, 16
      %v2365 = vrot.slane %v2363, 1
      %v2366 = vor.u32 %v2361, %v2365
      %v2368 = vshll.u32 %v2339, 16
      %v2370 = vrot.slane %v2368, 1
      %v2371 = vsel %vm1040, %v2366, %v2370
      %v2373 = vshrl.u32 %v2310, 16
      %v2375 = vshll.u32 %v2310, 16
      %v2377 = vrot.slane %v2375, 1
      %v2378 = vor.u32 %v2373, %v2377
      %v2380 = vshll.u32 %v2340, 16
      %v2382 = vrot.slane %v2380, 1
      %v2383 = vsel %vm1040, %v2378, %v2382
      %v2385 = vshrl.u32 %v2311, 16
      %v2387 = vshll.u32 %v2311, 16
      %v2389 = vrot.slane %v2387, 1
      %v2390 = vor.u32 %v2385, %v2389
      %v2392 = vshll.u32 %v2341, 16
      %v2394 = vrot.slane %v2392, 1
      %v2395 = vsel %vm1040, %v2390, %v2394
      %v2397 = vshrl.u32 %v2312, 16
      %v2399 = vshll.u32 %v2312, 16
      %v2401 = vrot.slane %v2399, 1
      %v2402 = vor.u32 %v2397, %v2401
      %v2404 = vshll.u32 %v2342, 16
      %v2406 = vrot.slane %v2404, 1
      %v2407 = vsel %vm1040, %v2402, %v2406
      %v2409 = vshrl.u32 %v2313, 16
      %v2411 = vshll.u32 %v2313, 16
      %v2413 = vrot.slane %v2411, 1
      %v2414 = vor.u32 %v2409, %v2413
      %v2416 = vshll.u32 %v2343, 16
      %v2418 = vrot.slane %v2416, 1
      %v2419 = vsel %vm1040, %v2414, %v2418
      %v2421 = vshrl.u32 %v2314, 16
      %v2423 = vshll.u32 %v2314, 16
      %v2425 = vrot.slane %v2423, 1
      %v2426 = vor.u32 %v2421, %v2425
      %v2428 = vshll.u32 %v2344, 16
      %v2430 = vrot.slane %v2428, 1
      %v2431 = vsel %vm1040, %v2426, %v2430
      %v2433 = vshrl.u32 %v2315, 16
      %v2435 = vshll.u32 %v2315, 16
      %v2437 = vrot.slane %v2435, 1
      %v2438 = vor.u32 %v2433, %v2437
      %v2440 = vshll.u32 %v2345, 16
      %v2442 = vrot.slane %v2440, 1
      %v2443 = vsel %vm1040, %v2438, %v2442
      %v2445 = vshrl.u32 %v2316, 16
      %v2447 = vshll.u32 %v2316, 16
      %v2449 = vrot.slane %v2447, 1
      %v2450 = vor.u32 %v2445, %v2449
      %v2452 = vshll.u32 %v2346, 16
      %v2454 = vrot.slane %v2452, 1
      %v2455 = vsel %vm1040, %v2450, %v2454
      %v2457 = vshrl.u32 %v2317, 16
      %v2459 = vshll.u32 %v2317, 16
      %v2461 = vrot.slane %v2459, 1
      %v2462 = vor.u32 %v2457, %v2461
      %v2464 = vshll.u32 %v2347, 16
      %v2466 = vrot.slane %v2464, 1
      %v2467 = vsel %vm1040, %v2462, %v2466
      %2468 = vrot.lane.b32.xlu0 %v2359, 4
      %v2469 = vpop.permute.xlu0 %2468
      %2470 = vrot.lane.b32.xlu0 %v2371, 4
      %v2471 = vpop.permute.xlu0 %2470
      %2472 = vrot.lane.b32.xlu0 %v2383, 4
      %v2473 = vpop.permute.xlu0 %2472
      %2474 = vrot.lane.b32.xlu0 %v2395, 4
      %v2475 = vpop.permute.xlu0 %2474
      %2476 = vrot.lane.b32.xlu0 %v2407, 4
      %v2477 = vpop.permute.xlu0 %2476
      %2478 = vrot.lane.b32.xlu0 %v2419, 4
      %v2479 = vpop.permute.xlu0 %2478
      %2480 = vrot.lane.b32.xlu0 %v2431, 4
      %v2481 = vpop.permute.xlu0 %2480
      %2482 = vrot.lane.b32.xlu0 %v2443, 4
      %v2483 = vpop.permute.xlu0 %2482
      %2484 = vrot.lane.b32.xlu0 %v2455, 4
      %v2485 = vpop.permute.xlu0 %2484
      %2486 = vrot.lane.b32.xlu0 %v2467, 4
      %v2487 = vpop.permute.xlu0 %2486
      %v2498 = vunpack.c.l.b16 %v2258
      %v2499 = vunpack.c.l.b16 %v2259
      %v2500 = vunpack.c.l.b16 %v2260
      %v2501 = vunpack.c.l.b16 %v2261
      %v2502 = vunpack.c.l.b16 %v2262
      %v2503 = vunpack.c.l.b16 %v2263
      %v2504 = vunpack.c.l.b16 %v2264
      %v2505 = vunpack.c.l.b16 %v2265
      %v2506 = vunpack.c.l.b16 %v2266
      %v2507 = vunpack.c.l.b16 %v2267
      %v2508 = vpack.c.b16 %v2289, %v2498
      %v2509 = vpack.c.b16 %v2291, %v2499
      %v2510 = vpack.c.b16 %v2293, %v2500
      %v2511 = vpack.c.b16 %v2295, %v2501
      %v2512 = vpack.c.b16 %v2297, %v2502
      %v2513 = vpack.c.b16 %v2299, %v2503
      %v2514 = vpack.c.b16 %v2301, %v2504
      %v2515 = vpack.c.b16 %v2303, %v2505
      %v2516 = vpack.c.b16 %v2305, %v2506
      %v2517 = vpack.c.b16 %v2307, %v2507
      %v2518 = vrot.slane %v2508, 1
      %v2519 = vrot.slane %v2338, 1
      %v2520 = vsel %vm1245, %v2518, %v2519
      %v2521 = vrot.slane %v2509, 1
      %v2522 = vrot.slane %v2339, 1
      %v2523 = vsel %vm1245, %v2521, %v2522
      %v2524 = vrot.slane %v2510, 1
      %v2525 = vrot.slane %v2340, 1
      %v2526 = vsel %vm1245, %v2524, %v2525
      %v2527 = vrot.slane %v2511, 1
      %v2528 = vrot.slane %v2341, 1
      %v2529 = vsel %vm1245, %v2527, %v2528
      %v2530 = vrot.slane %v2512, 1
      %v2531 = vrot.slane %v2342, 1
      %v2532 = vsel %vm1245, %v2530, %v2531
      %v2533 = vrot.slane %v2513, 1
      %v2534 = vrot.slane %v2343, 1
      %v2535 = vsel %vm1245, %v2533, %v2534
      %v2536 = vrot.slane %v2514, 1
      %v2537 = vrot.slane %v2344, 1
      %v2538 = vsel %vm1245, %v2536, %v2537
      %v2539 = vrot.slane %v2515, 1
      %v2540 = vrot.slane %v2345, 1
      %v2541 = vsel %vm1245, %v2539, %v2540
      %v2542 = vrot.slane %v2516, 1
      %v2543 = vrot.slane %v2346, 1
      %v2544 = vsel %vm1245, %v2542, %v2543
      %v2545 = vrot.slane %v2517, 1
      %v2546 = vrot.slane %v2347, 1
      %v2547 = vsel %vm1245, %v2545, %v2546
      %2548 = vrot.lane.b32.xlu0 %v2520, 8
      %v2549 = vpop.permute.xlu0 %2548
      %2550 = vrot.lane.b32.xlu0 %v2523, 8
      %v2551 = vpop.permute.xlu0 %2550
      %2552 = vrot.lane.b32.xlu0 %v2526, 8
      %v2553 = vpop.permute.xlu0 %2552
      %2554 = vrot.lane.b32.xlu0 %v2529, 8
      %v2555 = vpop.permute.xlu0 %2554
      %2556 = vrot.lane.b32.xlu0 %v2532, 8
      %v2557 = vpop.permute.xlu0 %2556
      %2558 = vrot.lane.b32.xlu0 %v2535, 8
      %v2559 = vpop.permute.xlu0 %2558
      %2560 = vrot.lane.b32.xlu0 %v2538, 8
      %v2561 = vpop.permute.xlu0 %2560
      %2562 = vrot.lane.b32.xlu0 %v2541, 8
      %v2563 = vpop.permute.xlu0 %2562
      %2564 = vrot.lane.b32.xlu0 %v2544, 8
      %v2565 = vpop.permute.xlu0 %2564
      %2566 = vrot.lane.b32.xlu0 %v2547, 8
      %v2567 = vpop.permute.xlu0 %2566
      %v2569 = vsel %vm1306, %v2308, %v2469
      %v2571 = vsel %vm1306, %v2309, %v2471
      %v2573 = vsel %vm1306, %v2310, %v2473
      %v2575 = vsel %vm1306, %v2311, %v2475
      %v2577 = vsel %vm1306, %v2312, %v2477
      %v2579 = vsel %vm1306, %v2313, %v2479
      %v2581 = vsel %vm1306, %v2314, %v2481
      %v2583 = vsel %vm1306, %v2315, %v2483
      %v2585 = vsel %vm1306, %v2316, %v2485
      %v2587 = vsel %vm1306, %v2317, %v2487
      %v2589 = vsel %vm1331, %v2569, %v2549
      %v2591 = vsel %vm1331, %v2571, %v2551
      %v2593 = vsel %vm1331, %v2573, %v2553
      %v2595 = vsel %vm1331, %v2575, %v2555
      %v2597 = vsel %vm1331, %v2577, %v2557
      %v2599 = vsel %vm1331, %v2579, %v2559
      %v2601 = vsel %vm1331, %v2581, %v2561
      %v2603 = vsel %vm1331, %v2583, %v2563
      %v2605 = vsel %vm1331, %v2585, %v2565
      %v2607 = vsel %vm1331, %v2587, %v2567
      %v2608 = vld [vmem:[%s6] sm:$0xf]
      %v2609 = vld [vmem:[%s6 + $0x4] sm:$0x3]
      %s2610 = scalar_lea.vmem %s6, 8
      %v2611 = vld [vmem:[%s2610] sm:$0xf]
      %v2612 = vld [vmem:[%s2610 + $0x4] sm:$0x3]
      %v2615 = vunpack.c.l.b16 %v2611
      %v2616 = vunpack.c.l.b16 %v2612
      %v2617 = vpack.c.b16 %v2616, %v2615
      %v2618 = vsel %vm1366, %v2591, 0
      %v2620 = vsel %vm1366, %v2593, 0
      %v2622 = vsel %vm1366, %v2595, 0
      %v2624 = vsel %vm1366, %v2597, 0
      %v2626 = vsel %vm1366, %v2599, 0
      %v2628 = vsel %vm1366, %v2601, 0
      %v2630 = vsel %vm1366, %v2603, 0
      %v2632 = vsel %vm1366, %v2605, 0
      %v2635 = vsel %vm1387, %v2617, 0
      %2637 = vmatprep.subr.bf16.mxu0 0
      %2638 = vmatpush1.bf16.msra.mxu0 0
      %2639 = vmatprep.subr.bf16.mxu0 0
      %2640 = vmatpush1.bf16.msra.mxu0 0
      %2641 = vmatprep.subr.bf16.mxu0 0
      %2642 = vmatpush1.bf16.msra.mxu0 0
      %2643 = vmatprep.subr.bf16.mxu0 0
      %2644 = vmatpush1.bf16.msra.mxu0 0
      %2645 = vmatprep.subr.bf16.mxu0 0
      %2646 = vmatpush1.bf16.msra.mxu0 0
      %2647 = vmatprep.subr.bf16.mxu0 0
      %2648 = vmatpush1.bf16.msra.mxu0 0
      %2649 = vmatprep.subr.bf16.mxu0 0
      %2650 = vmatpush1.bf16.msra.mxu0 0
      %2651 = vmatprep.subr.bf16.mxu0 0
      %2652 = vmatpush1.bf16.msra.mxu0 %v2635
      %2653 = vmatprep.subr.bf16.mxu0 0
      %2654 = vmatpush2.bf16.msra.mxu0 0
      %2655 = vmatprep.subr.bf16.mxu0 0
      %2656 = vmatpush2.bf16.msra.mxu0 0
      %2657 = vmatprep.subr.bf16.mxu0 0
      %2658 = vmatpush2.bf16.msra.mxu0 0
      %2659 = vmatprep.subr.bf16.mxu0 0
      %2660 = vmatpush2.bf16.msra.mxu0 0
      %2661 = vmatprep.subr.bf16.mxu0 0
      %2662 = vmatpush2.bf16.msra.mxu0 0
      %2663 = vmatprep.subr.bf16.mxu0 0
      %2664 = vmatpush2.bf16.msra.mxu0 0
      %2665 = vmatprep.subr.bf16.mxu0 0
      %2666 = vmatpush2.bf16.msra.mxu0 0
      %2667 = vmatprep.subr.bf16.mxu0 0
      %2668 = vmatpush2.bf16.msra.mxu0 0
      %2669 = vmatprep.mubr.bf16.mxu0 0
      %2670 = vmatmul.mubr.bf16.gmra.mxu0 %v2618
      %v2671 = vpop.f32.mrf.mxu0
      %v2672 = vadd.f32 0.0, %v2671
      %v2673 = vpop.f32.mrf.mxu0
      %v2674 = vpop.f32.mrf.mxu0
      %v2675 = vadd.f32 0.0, %v2674
      %v2676 = vpop.f32.mrf.mxu0
      %2677 = vmatprep.mubr.bf16.mxu0 0
      %2678 = vmatmul.mubr.bf16.gmra.mxu0 %v2620
      %v2679 = vpop.f32.mrf.mxu0
      %v2680 = vadd.f32 0.0, %v2679
      %v2681 = vpop.f32.mrf.mxu0
      %v2682 = vpop.f32.mrf.mxu0
      %v2683 = vadd.f32 0.0, %v2682
      %v2684 = vpop.f32.mrf.mxu0
      %2685 = vmatprep.mubr.bf16.mxu0 0
      %2686 = vmatmul.mubr.bf16.gmra.mxu0 %v2622
      %v2687 = vpop.f32.mrf.mxu0
      %v2688 = vadd.f32 0.0, %v2687
      %v2689 = vpop.f32.mrf.mxu0
      %v2690 = vpop.f32.mrf.mxu0
      %v2691 = vadd.f32 0.0, %v2690
      %v2692 = vpop.f32.mrf.mxu0
      %2693 = vmatprep.mubr.bf16.mxu0 0
      %2694 = vmatmul.mubr.bf16.gmra.mxu0 %v2624
      %v2695 = vpop.f32.mrf.mxu0
      %v2696 = vadd.f32 0.0, %v2695
      %v2697 = vpop.f32.mrf.mxu0
      %v2698 = vpop.f32.mrf.mxu0
      %v2699 = vadd.f32 0.0, %v2698
      %v2700 = vpop.f32.mrf.mxu0
      %2701 = vmatprep.mubr.bf16.mxu0 0
      %2702 = vmatmul.mubr.bf16.gmra.mxu0 %v2626
      %v2703 = vpop.f32.mrf.mxu0
      %v2704 = vadd.f32 0.0, %v2703
      %v2705 = vpop.f32.mrf.mxu0
      %v2706 = vpop.f32.mrf.mxu0
      %v2707 = vadd.f32 0.0, %v2706
      %v2708 = vpop.f32.mrf.mxu0
      %2709 = vmatprep.mubr.bf16.mxu0 0
      %2710 = vmatmul.mubr.bf16.gmra.mxu0 %v2628
      %v2711 = vpop.f32.mrf.mxu0
      %v2712 = vadd.f32 0.0, %v2711
      %v2713 = vpop.f32.mrf.mxu0
      %v2714 = vpop.f32.mrf.mxu0
      %v2715 = vadd.f32 0.0, %v2714
      %v2716 = vpop.f32.mrf.mxu0
      %2717 = vmatprep.mubr.bf16.mxu0 0
      %2718 = vmatmul.mubr.bf16.gmra.mxu0 %v2630
      %v2719 = vpop.f32.mrf.mxu0
      %v2720 = vadd.f32 0.0, %v2719
      %v2721 = vpop.f32.mrf.mxu0
      %v2722 = vpop.f32.mrf.mxu0
      %v2723 = vadd.f32 0.0, %v2722
      %v2724 = vpop.f32.mrf.mxu0
      %2725 = vmatprep.mubr.bf16.mxu0 0
      %2726 = vmatmul.mubr.bf16.gmra.mxu0 %v2632
      %v2727 = vpop.f32.mrf.mxu0
      %v2728 = vadd.f32 0.0, %v2727
      %v2729 = vpop.f32.mrf.mxu0
      %v2730 = vpop.f32.mrf.mxu0
      %v2731 = vadd.f32 0.0, %v2730
      %v2732 = vpop.f32.mrf.mxu0
      %2733 = vdwg.mxu0
      %v2736 = vunpack.c.l.b16 %v2608
      %v2737 = vunpack.c.l.b16 %v2609
      %v2738 = vpack.c.b16 %v2737, %v2736
      %v2739 = vsel %vm1366, %v2589, 0
      %v2742 = vsel %vm1387, %v2738, 0
      %2744 = vmatprep.subr.bf16.mxu0 0
      %2745 = vmatpush1.bf16.msra.mxu0 0
      %2746 = vmatprep.subr.bf16.mxu0 0
      %2747 = vmatpush1.bf16.msra.mxu0 0
      %2748 = vmatprep.subr.bf16.mxu0 0
      %2749 = vmatpush1.bf16.msra.mxu0 0
      %2750 = vmatprep.subr.bf16.mxu0 0
      %2751 = vmatpush1.bf16.msra.mxu0 0
      %2752 = vmatprep.subr.bf16.mxu0 0
      %2753 = vmatpush1.bf16.msra.mxu0 0
      %2754 = vmatprep.subr.bf16.mxu0 0
      %2755 = vmatpush1.bf16.msra.mxu0 0
      %2756 = vmatprep.subr.bf16.mxu0 0
      %2757 = vmatpush1.bf16.msra.mxu0 0
      %2758 = vmatprep.subr.bf16.mxu0 0
      %2759 = vmatpush1.bf16.msra.mxu0 %v2742
      %2760 = vmatprep.subr.bf16.mxu0 0
      %2761 = vmatpush2.bf16.msra.mxu0 0
      %2762 = vmatprep.subr.bf16.mxu0 0
      %2763 = vmatpush2.bf16.msra.mxu0 0
      %2764 = vmatprep.subr.bf16.mxu0 0
      %2765 = vmatpush2.bf16.msra.mxu0 0
      %2766 = vmatprep.subr.bf16.mxu0 0
      %2767 = vmatpush2.bf16.msra.mxu0 0
      %2768 = vmatprep.subr.bf16.mxu0 0
      %2769 = vmatpush2.bf16.msra.mxu0 0
      %2770 = vmatprep.subr.bf16.mxu0 0
      %2771 = vmatpush2.bf16.msra.mxu0 0
      %2772 = vmatprep.subr.bf16.mxu0 0
      %2773 = vmatpush2.bf16.msra.mxu0 0
      %2774 = vmatprep.subr.bf16.mxu0 0
      %2775 = vmatpush2.bf16.msra.mxu0 0
      %2776 = vmatprep.mubr.bf16.mxu0 0
      %2777 = vmatmul.mubr.bf16.gmra.mxu0 %v2739
      %v2778 = vpop.f32.mrf.mxu0
      %v2779 = vadd.f32 %v2672, %v2778
      %v2780 = vpop.f32.mrf.mxu0
      %v2781 = vpop.f32.mrf.mxu0
      %v2782 = vadd.f32 %v2675, %v2781
      %v2783 = vpop.f32.mrf.mxu0
      %2784 = vmatprep.mubr.bf16.mxu0 0
      %2785 = vmatmul.mubr.bf16.gmra.mxu0 %v2618
      %v2786 = vpop.f32.mrf.mxu0
      %v2787 = vadd.f32 %v2680, %v2786
      %v2788 = vpop.f32.mrf.mxu0
      %v2789 = vpop.f32.mrf.mxu0
      %v2790 = vadd.f32 %v2683, %v2789
      %v2791 = vpop.f32.mrf.mxu0
      %2792 = vmatprep.mubr.bf16.mxu0 0
      %2793 = vmatmul.mubr.bf16.gmra.mxu0 %v2620
      %v2794 = vpop.f32.mrf.mxu0
      %v2795 = vadd.f32 %v2688, %v2794
      %v2796 = vpop.f32.mrf.mxu0
      %v2797 = vpop.f32.mrf.mxu0
      %v2798 = vadd.f32 %v2691, %v2797
      %v2799 = vpop.f32.mrf.mxu0
      %2800 = vmatprep.mubr.bf16.mxu0 0
      %2801 = vmatmul.mubr.bf16.gmra.mxu0 %v2622
      %v2802 = vpop.f32.mrf.mxu0
      %v2803 = vadd.f32 %v2696, %v2802
      %v2804 = vpop.f32.mrf.mxu0
      %v2805 = vpop.f32.mrf.mxu0
      %v2806 = vadd.f32 %v2699, %v2805
      %v2807 = vpop.f32.mrf.mxu0
      %2808 = vmatprep.mubr.bf16.mxu0 0
      %2809 = vmatmul.mubr.bf16.gmra.mxu0 %v2624
      %v2810 = vpop.f32.mrf.mxu0
      %v2811 = vadd.f32 %v2704, %v2810
      %v2812 = vpop.f32.mrf.mxu0
      %v2813 = vpop.f32.mrf.mxu0
      %v2814 = vadd.f32 %v2707, %v2813
      %v2815 = vpop.f32.mrf.mxu0
      %2816 = vmatprep.mubr.bf16.mxu0 0
      %2817 = vmatmul.mubr.bf16.gmra.mxu0 %v2626
      %v2818 = vpop.f32.mrf.mxu0
      %v2819 = vadd.f32 %v2712, %v2818
      %v2820 = vpop.f32.mrf.mxu0
      %v2821 = vpop.f32.mrf.mxu0
      %v2822 = vadd.f32 %v2715, %v2821
      %v2823 = vpop.f32.mrf.mxu0
      %2824 = vmatprep.mubr.bf16.mxu0 0
      %2825 = vmatmul.mubr.bf16.gmra.mxu0 %v2628
      %v2826 = vpop.f32.mrf.mxu0
      %v2827 = vadd.f32 %v2720, %v2826
      %v2828 = vpop.f32.mrf.mxu0
      %v2829 = vpop.f32.mrf.mxu0
      %v2830 = vadd.f32 %v2723, %v2829
      %v2831 = vpop.f32.mrf.mxu0
      %2832 = vmatprep.mubr.bf16.mxu0 0
      %2833 = vmatmul.mubr.bf16.gmra.mxu0 %v2630
      %v2834 = vpop.f32.mrf.mxu0
      %v2835 = vadd.f32 %v2728, %v2834
      %v2836 = vpop.f32.mrf.mxu0
      %v2837 = vpop.f32.mrf.mxu0
      %v2838 = vadd.f32 %v2731, %v2837
      %v2839 = vpop.f32.mrf.mxu0
      %2840 = vdwg.mxu0
      %s2841 = scalar_lea.vmem %s6, 16
      %v2842 = vld [vmem:[%s2841] sm:$0xf]
      %v2843 = vld [vmem:[%s2841 + $0x4] sm:$0x3]
      %v2846 = vunpack.c.l.b16 %v2842
      %v2847 = vunpack.c.l.b16 %v2843
      %v2848 = vpack.c.b16 %v2847, %v2846
      %v2849 = vsel %vm1366, %v2607, 0
      %v2852 = vsel %vm1387, %v2848, 0
      %2854 = vmatprep.subr.bf16.mxu0 0
      %2855 = vmatpush1.bf16.msra.mxu0 0
      %2856 = vmatprep.subr.bf16.mxu0 0
      %2857 = vmatpush1.bf16.msra.mxu0 0
      %2858 = vmatprep.subr.bf16.mxu0 0
      %2859 = vmatpush1.bf16.msra.mxu0 0
      %2860 = vmatprep.subr.bf16.mxu0 0
      %2861 = vmatpush1.bf16.msra.mxu0 0
      %2862 = vmatprep.subr.bf16.mxu0 0
      %2863 = vmatpush1.bf16.msra.mxu0 0
      %2864 = vmatprep.subr.bf16.mxu0 0
      %2865 = vmatpush1.bf16.msra.mxu0 0
      %2866 = vmatprep.subr.bf16.mxu0 0
      %2867 = vmatpush1.bf16.msra.mxu0 0
      %2868 = vmatprep.subr.bf16.mxu0 0
      %2869 = vmatpush1.bf16.msra.mxu0 %v2852
      %2870 = vmatprep.subr.bf16.mxu0 0
      %2871 = vmatpush2.bf16.msra.mxu0 0
      %2872 = vmatprep.subr.bf16.mxu0 0
      %2873 = vmatpush2.bf16.msra.mxu0 0
      %2874 = vmatprep.subr.bf16.mxu0 0
      %2875 = vmatpush2.bf16.msra.mxu0 0
      %2876 = vmatprep.subr.bf16.mxu0 0
      %2877 = vmatpush2.bf16.msra.mxu0 0
      %2878 = vmatprep.subr.bf16.mxu0 0
      %2879 = vmatpush2.bf16.msra.mxu0 0
      %2880 = vmatprep.subr.bf16.mxu0 0
      %2881 = vmatpush2.bf16.msra.mxu0 0
      %2882 = vmatprep.subr.bf16.mxu0 0
      %2883 = vmatpush2.bf16.msra.mxu0 0
      %2884 = vmatprep.subr.bf16.mxu0 0
      %2885 = vmatpush2.bf16.msra.mxu0 0
      %2886 = vmatprep.mubr.bf16.mxu0 0
      %2887 = vmatmul.mubr.bf16.gmra.mxu0 %v2620
      %v2888 = vpop.f32.mrf.mxu0
      %v2889 = vadd.f32 0.0, %v2888
      %v2890 = vpop.f32.mrf.mxu0
      %v2891 = vpop.f32.mrf.mxu0
      %v2892 = vadd.f32 0.0, %v2891
      %v2893 = vpop.f32.mrf.mxu0
      %2894 = vmatprep.mubr.bf16.mxu0 0
      %2895 = vmatmul.mubr.bf16.gmra.mxu0 %v2622
      %v2896 = vpop.f32.mrf.mxu0
      %v2897 = vadd.f32 0.0, %v2896
      %v2898 = vpop.f32.mrf.mxu0
      %v2899 = vpop.f32.mrf.mxu0
      %v2900 = vadd.f32 0.0, %v2899
      %v2901 = vpop.f32.mrf.mxu0
      %2902 = vmatprep.mubr.bf16.mxu0 0
      %2903 = vmatmul.mubr.bf16.gmra.mxu0 %v2624
      %v2904 = vpop.f32.mrf.mxu0
      %v2905 = vadd.f32 0.0, %v2904
      %v2906 = vpop.f32.mrf.mxu0
      %v2907 = vpop.f32.mrf.mxu0
      %v2908 = vadd.f32 0.0, %v2907
      %v2909 = vpop.f32.mrf.mxu0
      %2910 = vmatprep.mubr.bf16.mxu0 0
      %2911 = vmatmul.mubr.bf16.gmra.mxu0 %v2626
      %v2912 = vpop.f32.mrf.mxu0
      %v2913 = vadd.f32 0.0, %v2912
      %v2914 = vpop.f32.mrf.mxu0
      %v2915 = vpop.f32.mrf.mxu0
      %v2916 = vadd.f32 0.0, %v2915
      %v2917 = vpop.f32.mrf.mxu0
      %2918 = vmatprep.mubr.bf16.mxu0 0
      %2919 = vmatmul.mubr.bf16.gmra.mxu0 %v2628
      %v2920 = vpop.f32.mrf.mxu0
      %v2921 = vadd.f32 0.0, %v2920
      %v2922 = vpop.f32.mrf.mxu0
      %v2923 = vpop.f32.mrf.mxu0
      %v2924 = vadd.f32 0.0, %v2923
      %v2925 = vpop.f32.mrf.mxu0
      %2926 = vmatprep.mubr.bf16.mxu0 0
      %2927 = vmatmul.mubr.bf16.gmra.mxu0 %v2630
      %v2928 = vpop.f32.mrf.mxu0
      %v2929 = vadd.f32 0.0, %v2928
      %v2930 = vpop.f32.mrf.mxu0
      %v2931 = vpop.f32.mrf.mxu0
      %v2932 = vadd.f32 0.0, %v2931
      %v2933 = vpop.f32.mrf.mxu0
      %2934 = vmatprep.mubr.bf16.mxu0 0
      %2935 = vmatmul.mubr.bf16.gmra.mxu0 %v2632
      %v2936 = vpop.f32.mrf.mxu0
      %v2937 = vadd.f32 0.0, %v2936
      %v2938 = vpop.f32.mrf.mxu0
      %v2939 = vpop.f32.mrf.mxu0
      %v2940 = vadd.f32 0.0, %v2939
      %v2941 = vpop.f32.mrf.mxu0
      %2942 = vmatprep.mubr.bf16.mxu0 0
      %2943 = vmatmul.mubr.bf16.gmra.mxu0 %v2849
      %v2944 = vpop.f32.mrf.mxu0
      %v2945 = vadd.f32 0.0, %v2944
      %v2946 = vpop.f32.mrf.mxu0
      %v2947 = vpop.f32.mrf.mxu0
      %v2948 = vadd.f32 0.0, %v2947
      %v2949 = vpop.f32.mrf.mxu0
      %2950 = vdwg.mxu0
      %v2951 = vadd.f32 %v2779, %v2889
      %v2952 = vadd.f32 %v2782, %v2892
      %v2953 = vadd.f32 %v2787, %v2897
      %v2954 = vadd.f32 %v2790, %v2900
      %v2955 = vadd.f32 %v2795, %v2905
      %v2956 = vadd.f32 %v2798, %v2908
      %v2957 = vadd.f32 %v2803, %v2913
      %v2958 = vadd.f32 %v2806, %v2916
      %v2959 = vadd.f32 %v2811, %v2921
      %v2960 = vadd.f32 %v2814, %v2924
      %v2961 = vadd.f32 %v2819, %v2929
      %v2962 = vadd.f32 %v2822, %v2932
      %v2963 = vadd.f32 %v2827, %v2937
      %v2964 = vadd.f32 %v2830, %v2940
      %v2965 = vadd.f32 %v2835, %v2945
      %v2966 = vadd.f32 %v2838, %v2948
      %v2967 = vld [vmem:[%s393] sm:$0xf]
      %v2968 = vld [vmem:[%s393 + $0x4] sm:$0xf]
      %v2969 = vld [vmem:[%s393 + $0x8] sm:$0xf]
      %v2970 = vld [vmem:[%s393 + $0xc] sm:$0xf]
      %v2971 = vld [vmem:[%s393 + $0x10] sm:$0xf]
      %v2972 = vld [vmem:[%s393 + $0x14] sm:$0xf]
      %v2973 = vld [vmem:[%s393 + $0x18] sm:$0xf]
      %v2974 = vld [vmem:[%s393 + $0x1c] sm:$0xf]
      %v2975 = vld [vmem:[%s393 + $0x20] sm:$0xf]
      %v2976 = vld [vmem:[%s393 + $0x24] sm:$0xf]
      %v2977 = vld [vmem:[%s393 + $0x28] sm:$0xf]
      %v2978 = vld [vmem:[%s393 + $0x2c] sm:$0xf]
      %v2979 = vld [vmem:[%s393 + $0x30] sm:$0xf]
      %v2980 = vld [vmem:[%s393 + $0x34] sm:$0xf]
      %v2981 = vld [vmem:[%s393 + $0x38] sm:$0xf]
      %v2982 = vld [vmem:[%s393 + $0x3c] sm:$0xf]
      %v2983 = vunpack.c.l.bf16 %v2967
      %v2984 = vunpack.c.l.bf16 %v2968
      %v2985 = vunpack.c.l.bf16 %v2969
      %v2986 = vunpack.c.l.bf16 %v2970
      %v2987 = vunpack.c.l.bf16 %v2971
      %v2988 = vunpack.c.l.bf16 %v2972
      %v2989 = vunpack.c.l.bf16 %v2973
      %v2990 = vunpack.c.l.bf16 %v2974
      %v2991 = vunpack.c.l.bf16 %v2975
      %v2992 = vunpack.c.l.bf16 %v2976
      %v2993 = vunpack.c.l.bf16 %v2977
      %v2994 = vunpack.c.l.bf16 %v2978
      %v2995 = vunpack.c.l.bf16 %v2979
      %v2996 = vunpack.c.l.bf16 %v2980
      %v2997 = vunpack.c.l.bf16 %v2981
      %v2998 = vunpack.c.l.bf16 %v2982
      %v2999 = vadd.f32 %v2983, %v2951
      %v3000 = vadd.f32 %v2984, %v2952
      %v3001 = vadd.f32 %v2985, %v2953
      %v3002 = vadd.f32 %v2986, %v2954
      %v3003 = vadd.f32 %v2987, %v2955
      %v3004 = vadd.f32 %v2988, %v2956
      %v3005 = vadd.f32 %v2989, %v2957
      %v3006 = vadd.f32 %v2990, %v2958
      %v3007 = vadd.f32 %v2991, %v2959
      %v3008 = vadd.f32 %v2992, %v2960
      %v3009 = vadd.f32 %v2993, %v2961
      %v3010 = vadd.f32 %v2994, %v2962
      %v3011 = vadd.f32 %v2995, %v2963
      %v3012 = vadd.f32 %v2996, %v2964
      %v3013 = vadd.f32 %v2997, %v2965
      %v3014 = vadd.f32 %v2998, %v2966
      %v3015 = vpack.c.bf16 %v3000, %v2999
      %v3016 = vpack.c.bf16 %v3002, %v3001
      %v3017 = vpack.c.bf16 %v3004, %v3003
      %v3018 = vpack.c.bf16 %v3006, %v3005
      %v3019 = vpack.c.bf16 %v3008, %v3007
      %v3020 = vpack.c.bf16 %v3010, %v3009
      %v3021 = vpack.c.bf16 %v3012, %v3011
      %v3022 = vpack.c.bf16 %v3014, %v3013
      %v3031 = vunpack.c.l.b16 %v3015
      %v3032 = vunpack.c.h.b16 %v3015
      %v3033 = vunpack.c.l.b16 %v3016
      %v3034 = vunpack.c.h.b16 %v3016
      %v3035 = vunpack.c.l.b16 %v3017
      %v3036 = vunpack.c.h.b16 %v3017
      %v3037 = vunpack.c.l.b16 %v3018
      %v3038 = vunpack.c.h.b16 %v3018
      %v3039 = vunpack.c.l.b16 %v3019
      %v3040 = vunpack.c.h.b16 %v3019
      %v3041 = vunpack.c.l.b16 %v3020
      %v3042 = vunpack.c.h.b16 %v3020
      %v3043 = vunpack.c.l.b16 %v3021
      %v3044 = vunpack.c.h.b16 %v3021
      %v3045 = vunpack.c.l.b16 %v3022
      %v3046 = vunpack.c.h.b16 %v3022
      %v3047 = vpack.c.b16 %v3031, %v3031
      %v3048 = vpack.c.b16 %v3032, %v3032
      %v3049 = vpack.c.b16 %v3033, %v3033
      %v3050 = vpack.c.b16 %v3034, %v3034
      %v3051 = vpack.c.b16 %v3035, %v3035
      %v3052 = vpack.c.b16 %v3036, %v3036
      %v3053 = vpack.c.b16 %v3037, %v3037
      %v3054 = vpack.c.b16 %v3038, %v3038
      %v3055 = vpack.c.b16 %v3039, %v3039
      %v3056 = vpack.c.b16 %v3040, %v3040
      %v3057 = vpack.c.b16 %v3041, %v3041
      %v3058 = vpack.c.b16 %v3042, %v3042
      %v3059 = vpack.c.b16 %v3043, %v3043
      %v3060 = vpack.c.b16 %v3044, %v3044
      %v3061 = vpack.c.b16 %v3045, %v3045
      %v3062 = vpack.c.b16 %v3046, %v3046
      %3079 = vst.msk [vmem:[%s302] sm:$0xf] %vm648, %v3047
      %3080 = vst.msk [vmem:[%s302 + $0x4] sm:$0xf] %vm648, %v3048
      %3081 = vst.msk [vmem:[%s302 + $0x8] sm:$0xf] %vm648, %v3049
      %3082 = vst.msk [vmem:[%s302 + $0xc] sm:$0xf] %vm648, %v3050
      %3083 = vst.msk [vmem:[%s302 + $0x10] sm:$0xf] %vm648, %v3051
      %3084 = vst.msk [vmem:[%s302 + $0x14] sm:$0xf] %vm648, %v3052
      %3085 = vst.msk [vmem:[%s302 + $0x18] sm:$0xf] %vm648, %v3053
      %3086 = vst.msk [vmem:[%s302 + $0x1c] sm:$0xf] %vm648, %v3054
      %3087 = vst.msk [vmem:[%s302 + $0x20] sm:$0xf] %vm648, %v3055
      %3088 = vst.msk [vmem:[%s302 + $0x24] sm:$0xf] %vm648, %v3056
      %3089 = vst.msk [vmem:[%s302 + $0x28] sm:$0xf] %vm648, %v3057
      %3090 = vst.msk [vmem:[%s302 + $0x2c] sm:$0xf] %vm648, %v3058
      %3091 = vst.msk [vmem:[%s302 + $0x30] sm:$0xf] %vm648, %v3059
      %3092 = vst.msk [vmem:[%s302 + $0x34] sm:$0xf] %vm648, %v3060
      %3093 = vst.msk [vmem:[%s302 + $0x38] sm:$0xf] %vm648, %v3061
      %3094 = vst.msk [vmem:[%s302 + $0x3c] sm:$0xf] %vm648, %v3062
      %s3095 = smul.u32 8, %s23
      %p3096 = scmp.lt.s32.totalorder %s22, 1
      %s3097 = scalar_select %p3096, %s22, 1
      %p3098 = scmp.lt.s32.totalorder %s3095, 15
      %s3099 = scalar_select %p3098, %s3095, 15
      %s3100 = smul.addr %s3099, 2
      %s3101 = smul.addr %s3097, 32
      %s3102 = sadd.s32 %s3100, %s3101
      %s3103 = smul.addr %s3102, 4
      %s3104 = scalar_lea.vmem %s7, %s3103
      // Predicated region
      $region73: #{tpu_custom_call.1} parent=47 // pred_check
        %p3105 = pneg %p202
      $region74: #{tpu_custom_call.1} parent=47 // pred_check_branch
        %3107 = sbr.rel (%p3105) target = $region76
      $region75: #{tpu_custom_call.1} parent=47 // pred_region
        %s3108 = smul.u32 8, %s23
      $region76: #{tpu_custom_call.1} parent=47 // pred_fallthru
        _
    $region48: #{tpu_custom_call.1} parent=5 // pred_fallthru
      _
    %p3109 = scmp.le.s32.totalorder 2, %s13
    // Predicated region
    $region77: #{tpu_custom_call.1} parent=5 // pred_check
      %p3110 = pneg %p3109
    $region78: #{tpu_custom_call.1} parent=5 // pred_check_branch
      %3112 = sbr.rel (%p3110) target = $region80
    $region79: #{tpu_custom_call.1} parent=5 // pred_region
      %s3113 = ssub.s32 %s13, 2
      // Predicated region
      $region81: #{tpu_custom_call.1} parent=79 // pred_check
        %p3114 = pneg %p208
      $region82: #{tpu_custom_call.1} parent=79 // pred_check_branch
        %3116 = sbr.rel (%p3114) target = $region84
      $region83: #{tpu_custom_call.1} parent=79 // pred_region
        %s3117 = smul.u32 8, %s25
        %p3118 = scmp.lt.s32.totalorder %s24, 1
        %s3119 = scalar_select %p3118, %s24, 1
        %p3120 = scmp.lt.s32.totalorder %s3117, 15
        %s3121 = scalar_select %p3120, %s3117, 15
        %s3122 = smul.addr %s3121, 2
        %s3123 = smul.addr %s3119, 32
        %s3124 = sadd.s32 %s3122, %s3123
        %s3125 = smul.addr %s3124, 4
        %s3126 = scalar_lea.vmem %s7, %s3125
      $region84: #{tpu_custom_call.1} parent=79 // pred_fallthru
        _
    $region80: #{tpu_custom_call.1} parent=5 // pred_fallthru
      _
  $region6: #{tpu_custom_call.1} parent=0 // loop_footer
    %s17 = sadd.s32 1, %s13
  $region7: #{tpu_custom_call.1} parent=0 // loop_footer_branch
    %12 = sbr.rel target = $region3
  $region8: #{tpu_custom_call.1} parent=0 // loop_exit
    _

</llo_original>
